<compile_context>
chip_gen: v7x
topology: tpu7x:2x2x1
jax: 0.10.0
libtpu: 0.0.40
codegen_flags: <defaults>
</compile_context>

<pallas_src>
import math
from functools import partial

import jax
import jax.numpy as jnp
from jax.experimental import pallas as pl
from jax.experimental.pallas import tpu as pltpu


PARAM_DTYPE = jnp.bfloat16
ACT_DTYPE = jnp.bfloat16
LN_EPS = 1e-5
_NORM_EPS = 1e-12
_MAX_TILE_M = 512                      # cap on rows per block in row-tiled linears
_FUSED_VMEM_LIMIT = 48 * 1024 * 1024   # fused block working set (> v5e 16MiB default)


def _round_up(x, m):
    return ((x + m - 1) // m) * m


def _row_tile(m, cap=_MAX_TILE_M):
    # ~half the rows per block so a ("parallel",) row grid splits evenly across
    # v7x's two TensorCores; capped for VMEM, never larger than M.
    half = _round_up(-(-m // 2), 8)
    return max(1, min(m, cap, half))


# ----------------------------------------------------------------------------
# in-kernel helpers
# ----------------------------------------------------------------------------
def _gelu(x):
    # TODO(synk): PyTorch F.gelu default is the exact erf form; the tanh
    # approximation is used because it lowers directly to the TPU EUP.
    c = math.sqrt(2.0 / math.pi)
    return 0.5 * x * (1.0 + jnp.tanh(c * (x + 0.044715 * x * x * x)))


def _layernorm(x, g, b, eps):
    mu = jnp.mean(x, axis=-1, keepdims=True)
    var = jnp.mean((x - mu) ** 2, axis=-1, keepdims=True)
    return (x - mu) * jax.lax.rsqrt(var + eps) * g + b


# ----------------------------------------------------------------------------
# Pallas kernels
# ----------------------------------------------------------------------------
def _linear_kernel(x_ref, w_ref, b_ref, o_ref, *, scale):
    # x: [tm, K], w: [K, N] bf16, b: [1, N]
    x = x_ref[...].astype(w_ref.dtype)
    y = jnp.dot(x, w_ref[...], preferred_element_type=jnp.float32)
    y = y + b_ref[...].astype(jnp.float32)
    if scale != 1.0:
        y = y * scale
    o_ref[...] = y.astype(o_ref.dtype)


def _proj_tokens_kernel(base_ref, w_ref, b_ref, o_ref):
    # base: [1, C_base, N] (flattened NCHW, no HBM transpose); contract channels.
    x = base_ref[0].astype(w_ref.dtype)                                   # [C, N]
    y = jax.lax.dot_general(x, w_ref[...], (((0,), (0,)), ((), ())),
                            preferred_element_type=jnp.float32)           # [N, H]
    o_ref[0] = (y + b_ref[...].astype(jnp.float32)).astype(o_ref.dtype)


def _scene_fg_kernel(clip_ref, base_ref, w1_ref, b1_ref, w2_ref, b2_ref,
                     g_ref, be_ref, o_ref, *, eps):
    # SceneFG: LayerNorm(MLP(clip + mean_tokens(base)))
    base_mean = jnp.mean(base_ref[...].astype(jnp.float32), axis=1)       # [B, H]
    x = clip_ref[...].astype(jnp.float32) + base_mean
    h = jnp.dot(x.astype(w1_ref.dtype), w1_ref[...],
                preferred_element_type=jnp.float32)
    h = _gelu(h + b1_ref[...].astype(jnp.float32))
    y = jnp.dot(h.astype(w2_ref.dtype), w2_ref[...],
                preferred_element_type=jnp.float32)
    y = y + b2_ref[...].astype(jnp.float32)
    o_ref[...] = _layernorm(y, g_ref[...].astype(jnp.float32),
                            be_ref[...].astype(jnp.float32), eps).astype(o_ref.dtype)


def _fused_block_kernel(*refs, num_heads, residual, project_q, eps):
    # One whole cross-attention block per grid step (one batch element):
    #   attn(target, image, image) -> out-proj -> (+residual) -> LN1
    #   -> MLP -> +residual -> LN2.  Everything stays in VMEM.
    if project_q:
        (tgt_ref, img_ref, wq_ref, bq_ref, wkv_ref, bkv_ref, wo_ref, bo_ref,
         g1_ref, be1_ref, w1_ref, b1_ref, w2_ref, b2_ref, g2_ref, be2_ref,
         o_ref) = refs
    else:
        (q_ref, img_ref, wkv_ref, bkv_ref, wo_ref, bo_ref,
         g1_ref, be1_ref, w1_ref, b1_ref, w2_ref, b2_ref, g2_ref, be2_ref,
         o_ref) = refs

    img = img_ref[0]                              # [Lk, H] bf16
    H = img.shape[-1]
    dh = H // num_heads
    scale = 1.0 / math.sqrt(dh)

    if project_q:
        tgt = tgt_ref[0]                          # [Lq, H] bf16
        q32 = jnp.dot(tgt, wq_ref[...], preferred_element_type=jnp.float32)
        q32 = (q32 + bq_ref[...].astype(jnp.float32)) * scale
        q = q32.astype(img.dtype)                 # pre-scaled q (one mul, not per head)
    else:
        q = q_ref[0]                              # already (x@wq + bq) * scale

    kv = jnp.dot(img, wkv_ref[...], preferred_element_type=jnp.float32)
    kv = kv + bkv_ref[...].astype(jnp.float32)    # [Lk, 2H]
    k = kv[:, :H].astype(img.dtype)
    v = kv[:, H:].astype(img.dtype)

    # Per-head attention (statically unrolled); head outputs are concatenated
    # so the output projection runs once at full MXU contraction depth K=H.
    heads = []
    for hd in range(num_heads):
        sl = slice(hd * dh, (hd + 1) * dh)
        s = jax.lax.dot_general(q[:, sl], k[:, sl], (((1,), (1,)), ((), ())),
                                preferred_element_type=jnp.float32)       # [Lq, Lk]
        m = jnp.max(s, axis=-1, keepdims=True)
        p = jnp.exp(s - m)
        p = p * pl.reciprocal(jnp.sum(p, axis=-1, keepdims=True))         # exact
        heads.append(jnp.dot(p.astype(v.dtype), v[:, sl],
                             preferred_element_type=jnp.float32))         # [Lq, dh]
    attn = jnp.concatenate(heads, axis=-1)                                # [Lq, H]

    y = jnp.dot(attn.astype(wo_ref.dtype), wo_ref[...],
                preferred_element_type=jnp.float32)
    y = y + bo_ref[...].astype(jnp.float32)
    if residual:
        y = y + tgt.astype(jnp.float32)
    x1 = _layernorm(y, g1_ref[...].astype(jnp.float32),
                    be1_ref[...].astype(jnp.float32), eps)                # f32 [Lq, H]

    # MLP + residual + LN2 (intermediate kept f32 in VMEM).
    h = jnp.dot(x1.astype(w1_ref.dtype), w1_ref[...],
                preferred_element_type=jnp.float32)
    h = _gelu(h + b1_ref[...].astype(jnp.float32))
    y2 = jnp.dot(h.astype(w2_ref.dtype), w2_ref[...],
                 preferred_element_type=jnp.float32)
    y2 = y2 + b2_ref[...].astype(jnp.float32) + x1
    o_ref[0] = _layernorm(y2, g2_ref[...].astype(jnp.float32),
                          be2_ref[...].astype(jnp.float32), eps).astype(o_ref.dtype)


def _output_head_kernel(class_ref, scene_ref, tn_ref, wct_ref, bct_ref,
                        wst_ref, bst_ref, wh_ref, bh_ref,
                        cls_ref, s1_ref, s2_ref):
    # Fused: head(scene), proj_ct_ou(class_f), proj_st_ou(scene), and both
    # cosine similarities.  class_out / scene_out never go to HBM.
    cf = class_ref[0]                                  # [C, H] bf16
    sf = scene_ref[0]                                  # [1, H] bf16
    t_n = tn_ref[...]                                  # [C, D] f32, pre-normalized
    C = t_n.shape[0]

    co = jnp.dot(cf, wct_ref[...], preferred_element_type=jnp.float32)
    co = co + bct_ref[...].astype(jnp.float32)         # [C, D]
    so = jnp.dot(sf, wst_ref[...], preferred_element_type=jnp.float32)
    so = so + bst_ref[...].astype(jnp.float32)         # [1, D]
    c_n = co * jax.lax.rsqrt(jnp.sum(co * co, axis=-1, keepdims=True) + _NORM_EPS)
    s_n = so * jax.lax.rsqrt(jnp.sum(so * so, axis=-1, keepdims=True) + _NORM_EPS)

    # sim1[c] = <c_n[c], t_n[c]> : diagonal of c_n @ t_n^T, extracted onto the
    # lane axis with a masked sublane reduce so the store is lane-dense [1, C].
    ct = jax.lax.dot_general(c_n, t_n, (((1,), (1,)), ((), ())),
                             preferred_element_type=jnp.float32)          # [C, C]
    rows = jax.lax.broadcasted_iota(jnp.int32, (C, C), 0)
    cols = jax.lax.broadcasted_iota(jnp.int32, (C, C), 1)
    diag = jnp.where(rows == cols, ct, 0.0)
    s1_ref[0] = 100.0 * jnp.sum(diag, axis=0, keepdims=True)              # [1, C]

    s2_ref[0] = 100.0 * jax.lax.dot_general(
        s_n, t_n, (((1,), (1,)), ((), ())), preferred_element_type=jnp.float32)

    cls = jnp.dot(sf, wh_ref[...], preferred_element_type=jnp.float32)
    cls_ref[0] = cls + bh_ref[...].astype(jnp.float32)                    # [1, NC]


# ----------------------------------------------------------------------------
# wrappers around pallas_call
# ----------------------------------------------------------------------------
def linear(x, w, b, *, scale=1.0, out_dtype=ACT_DTYPE):
    shp = x.shape
    K = shp[-1]
    M = int(math.prod(shp[:-1]))
    N = w.shape[1]
    tm = _row_tile(M)
    out = pl.pallas_call(
        partial(_linear_kernel, scale=scale),
        grid=(pl.cdiv(M, tm),),
        in_specs=[pl.BlockSpec((tm, K), lambda i: (i, 0)),
                  pl.BlockSpec((K, N), lambda i: (0, 0)),
                  pl.BlockSpec((1, N), lambda i: (0, 0))],
        out_specs=pl.BlockSpec((tm, N), lambda i: (i, 0)),
        out_shape=jax.ShapeDtypeStruct((M, N), out_dtype),
        compiler_params=pltpu.CompilerParams(dimension_semantics=("parallel",)),
    )(x.reshape(M, K), w, b.reshape(1, N))
    return out.reshape(shp[:-1] + (N,))


def project_base(base_cn, w, b):
    # base_cn: [B, C_base, N] (flattened NCHW; the transpose to token-major
    # happens inside the matmul via the contraction dims, not as an HBM pass).
    B, Cb, N = base_cn.shape
    H = w.shape[1]
    return pl.pallas_call(
        _proj_tokens_kernel,
        grid=(B,),
        in_specs=[pl.BlockSpec((1, Cb, N), lambda i: (i, 0, 0)),
                  pl.BlockSpec((Cb, H), lambda i: (0, 0)),
                  pl.BlockSpec((1, H), lambda i: (0, 0))],
        out_specs=pl.BlockSpec((1, N, H), lambda i: (i, 0, 0)),
        out_shape=jax.ShapeDtypeStruct((B, N, H), ACT_DTYPE),
        compiler_params=pltpu.CompilerParams(dimension_semantics=("parallel",)),
    )(base_cn, w, b.reshape(1, H))


def scene_fg(clip_f, base_f, p):
    B, H = clip_f.shape
    Dh = p["w1"].shape[1]
    return pl.pallas_call(
        partial(_scene_fg_kernel, eps=LN_EPS),
        out_shape=jax.ShapeDtypeStruct((B, H), clip_f.dtype),
    )(clip_f, base_f, p["w1"], p["b1"].reshape(1, Dh),
      p["w2"], p["b2"].reshape(1, H),
      p["ln_g"].reshape(1, H), p["ln_b"].reshape(1, H))


def fused_cross_block(target_or_q, image, p, *, num_heads, residual, project_q):
    # One fused pallas_call per cross-attention block, gridded over batch.
    #   project_q=True : target_or_q is the raw target (scene branch); q is
    #                    projected in-kernel and the attention residual applies.
    #   project_q=False: target_or_q is a pre-projected, pre-scaled q shared by
    #                    every batch element (class branch), broadcast via the
    #                    index_map (no per-batch recompute, no wq DMA).
    assert (not residual) or project_q
    B, Lk, H = image.shape
    Bt, Lq, _ = target_or_q.shape
    Dh = p["mlp_w1"].shape[1]
    t_map = (lambda b: (0, 0, 0)) if Bt == 1 else (lambda b: (b, 0, 0))

    specs = [pl.BlockSpec((1, Lq, H), t_map),
             pl.BlockSpec((1, Lk, H), lambda b: (b, 0, 0))]
    args = [target_or_q, image]
    if project_q:
        specs += [pl.BlockSpec((H, H), lambda b: (0, 0)),
                  pl.BlockSpec((1, H), lambda b: (0, 0))]
        args += [p["wq"], p["bq"].reshape(1, H)]
    specs += [pl.BlockSpec((H, 2 * H), lambda b: (0, 0)),
              pl.BlockSpec((1, 2 * H), lambda b: (0, 0)),
              pl.BlockSpec((H, H), lambda b: (0, 0)),
              pl.BlockSpec((1, H), lambda b: (0, 0)),
              pl.BlockSpec((1, H), lambda b: (0, 0)),
              pl.BlockSpec((1, H), lambda b: (0, 0)),
              pl.BlockSpec((H, Dh), lambda b: (0, 0)),
              pl.BlockSpec((1, Dh), lambda b: (0, 0)),
              pl.BlockSpec((Dh, H), lambda b: (0, 0)),
              pl.BlockSpec((1, H), lambda b: (0, 0)),
              pl.BlockSpec((1, H), lambda b: (0, 0)),
              pl.BlockSpec((1, H), lambda b: (0, 0))]
    args += [p["wkv"], p["bkv"].reshape(1, 2 * H), p["wo"], p["bo"].reshape(1, H),
             p["ln1_g"].reshape(1, H), p["ln1_b"].reshape(1, H),
             p["mlp_w1"], p["mlp_b1"].reshape(1, Dh),
             p["mlp_w2"], p["mlp_b2"].reshape(1, H),
             p["ln2_g"].reshape(1, H), p["ln2_b"].reshape(1, H)]

    kernel = partial(_fused_block_kernel, num_heads=num_heads,
                     residual=residual, project_q=project_q, eps=LN_EPS)
    return pl.pallas_call(
        kernel,
        grid=(B,),
        in_specs=specs,
        out_specs=pl.BlockSpec((1, Lq, H), lambda b: (b, 0, 0)),
        out_shape=jax.ShapeDtypeStruct((B, Lq, H), image.dtype),
        compiler_params=pltpu.CompilerParams(
            dimension_semantics=("parallel",),
            vmem_limit_bytes=_FUSED_VMEM_LIMIT),
    )(*args)


def output_head(class_f, scene, text_f, params):
    # Fused head + output projections + similarities; sim/cls outputs are
    # lane-dense [B, 1, C] / [B, 1, NC].
    B, C, H = class_f.shape
    Dc = params["proj_ct_ou"][0].shape[1]
    NC = params["head"][0].shape[1]

    # text normalization hoisted out of the per-batch grid (computed once).
    t32 = text_f.astype(jnp.float32)
    t_n = t32 * jax.lax.rsqrt(jnp.sum(t32 * t32, axis=-1, keepdims=True) + _NORM_EPS)

    cls, s1, s2 = pl.pallas_call(
        _output_head_kernel,
        grid=(B,),
        in_specs=[pl.BlockSpec((1, C, H), lambda b: (b, 0, 0)),
                  pl.BlockSpec((1, 1, H), lambda b: (b, 0, 0)),
                  pl.BlockSpec((C, Dc), lambda b: (0, 0)),
                  pl.BlockSpec((H, Dc), lambda b: (0, 0)),
                  pl.BlockSpec((1, Dc), lambda b: (0, 0)),
                  pl.BlockSpec((H, Dc), lambda b: (0, 0)),
                  pl.BlockSpec((1, Dc), lambda b: (0, 0)),
                  pl.BlockSpec((H, NC), lambda b: (0, 0)),
                  pl.BlockSpec((1, NC), lambda b: (0, 0))],
        out_specs=(pl.BlockSpec((1, 1, NC), lambda b: (b, 0, 0)),
                   pl.BlockSpec((1, 1, C), lambda b: (b, 0, 0)),
                   pl.BlockSpec((1, 1, C), lambda b: (b, 0, 0))),
        out_shape=(jax.ShapeDtypeStruct((B, 1, NC), jnp.float32),
                   jax.ShapeDtypeStruct((B, 1, C), jnp.float32),
                   jax.ShapeDtypeStruct((B, 1, C), jnp.float32)),
        compiler_params=pltpu.CompilerParams(dimension_semantics=("parallel",)),
    )(class_f, scene, t_n,
      params["proj_ct_ou"][0], params["proj_ct_ou"][1].reshape(1, Dc),
      params["proj_st_ou"][0], params["proj_st_ou"][1].reshape(1, Dc),
      params["head"][0], params["head"][1].reshape(1, NC))
    return cls[:, 0, :], s1[:, 0, :], s2[:, 0, :]


# ----------------------------------------------------------------------------
# parameter initialization (deterministic, synthetic; bf16 storage)
# ----------------------------------------------------------------------------
def init_linear_params(key, din, dout, scale=0.05):
    kw, kb = jax.random.split(key)
    w = (scale * jax.random.normal(kw, (din, dout), jnp.float32)).astype(PARAM_DTYPE)
    b = (scale * jax.random.normal(kb, (dout,), jnp.float32)).astype(PARAM_DTYPE)
    return w, b


def init_mha_params(key, dim):
    ks = jax.random.split(key, 4)
    wq, bq = init_linear_params(ks[0], dim, dim)
    wk, bk = init_linear_params(ks[1], dim, dim)
    wv, bv = init_linear_params(ks[2], dim, dim)
    wo, bo = init_linear_params(ks[3], dim, dim)
    # fuse K|V projections into one [H, 2H] matmul
    return dict(wq=wq, bq=bq,
                wkv=jnp.concatenate([wk, wv], axis=1),
                bkv=jnp.concatenate([bk, bv], axis=0),
                wo=wo, bo=bo)


def init_cross_block_params(key, dim, ffn_ratio=4):
    ks = jax.random.split(key, 3)
    mha = init_mha_params(ks[0], dim)
    w1, b1 = init_linear_params(ks[1], dim, dim * ffn_ratio)
    w2, b2 = init_linear_params(ks[2], dim * ffn_ratio, dim)
    return dict(**mha,
                mlp_w1=w1, mlp_b1=b1, mlp_w2=w2, mlp_b2=b2,
                ln1_g=jnp.ones((dim,), PARAM_DTYPE),
                ln1_b=jnp.zeros((dim,), PARAM_DTYPE),
                ln2_g=jnp.ones((dim,), PARAM_DTYPE),
                ln2_b=jnp.zeros((dim,), PARAM_DTYPE))


def init_osfa_params(key, base_dim, clip_dim, hidden_dim, num_class, ffn_ratio=4):
    ks = jax.random.split(key, 10)
    w1, b1 = init_linear_params(ks[5], hidden_dim, hidden_dim * ffn_ratio)
    w2, b2 = init_linear_params(ks[6], hidden_dim * ffn_ratio, hidden_dim)
    return dict(
        proj_cv=init_linear_params(ks[0], clip_dim, hidden_dim),
        proj_ct=init_linear_params(ks[1], clip_dim, hidden_dim),
        proj_bv=init_linear_params(ks[2], base_dim, hidden_dim),
        proj_st_ou=init_linear_params(ks[3], hidden_dim, clip_dim),
        proj_ct_ou=init_linear_params(ks[4], hidden_dim, clip_dim),
        sfg=dict(w1=w1, b1=b1, w2=w2, b2=b2,
                 ln_g=jnp.ones((hidden_dim,), PARAM_DTYPE),
                 ln_b=jnp.zeros((hidden_dim,), PARAM_DTYPE)),
        olca=init_cross_block_params(ks[7], hidden_dim),
        cafg=init_cross_block_params(ks[8], hidden_dim),
        slca=init_cross_block_params(ks[9], hidden_dim),
        head=init_linear_params(jax.random.fold_in(key, 99), hidden_dim, num_class),
    )


# ----------------------------------------------------------------------------
# OSFA forward (post-backbone portion)
# ----------------------------------------------------------------------------
def osfa_forward(params, clip_features, base_features_nchw, text_features,
                 *, num_heads):
    b, cch, fh, fw = base_features_nchw.shape
    # flatten(2) only; the 0,2,1 permute is absorbed into the projection kernel.
    base_cn = base_features_nchw.reshape(b, cch, fh * fw)        # [B, C_base, N]

    clip_f = linear(clip_features, *params["proj_cv"])           # [B, H]
    text_f = linear(text_features, *params["proj_ct"])           # [C, H]
    base_f = project_base(base_cn, *params["proj_bv"])           # [B, N, H]

    scene = scene_fg(clip_f, base_f, params["sfg"])[:, None, :]  # [B, 1, H]

    # olca: CrossAttnAgg(scene, base_f)
    scene = fused_cross_block(scene, base_f, params["olca"],
                              num_heads=num_heads, residual=True, project_q=True)

    # cafg: CategoryAwareFG(text_f broadcast over batch, base_f).
    # The broadcast target's Q-projection (with the 1/sqrt(dh) scale folded in)
    # is computed once and broadcast via the index_map.
    H = text_f.shape[-1]
    dh = H // num_heads
    q_class = linear(text_f, params["cafg"]["wq"], params["cafg"]["bq"],
                     scale=1.0 / math.sqrt(dh))[None]            # [1, C, H]
    class_f = fused_cross_block(q_class, base_f, params["cafg"],
                                num_heads=num_heads, residual=False,
                                project_q=False)                 # [B, C, H]

    # slca: CrossAttnAgg(scene, class_f)
    scene = fused_cross_block(scene, class_f, params["slca"],
                              num_heads=num_heads, residual=True, project_q=True)

    return output_head(class_f, scene, text_f, params)


# ----------------------------------------------------------------------------
# main
# ----------------------------------------------------------------------------
if __name__ == "__main__":
    B = 2
    BASE_DIM = 64          # stands in for 2048
    CLIP_DIM = 64          # stands in for 512 (clip_dim == hidden_dim, as in
                           # the PyTorch default config where both are 512)
    HIDDEN_DIM = 64        # stands in for 512
    NUM_CLASS = 8          # stands in for 365
    NUM_HEADS = 8
    FH = FW = 4            # base-backbone feature-map spatial size

    key = jax.random.PRNGKey(0)
    k_param, k_clip, k_base, k_text = jax.random.split(key, 4)

    params = init_osfa_params(k_param, BASE_DIM, CLIP_DIM, HIDDEN_DIM, NUM_CLASS)

    # TODO(synk): synthetic stand-ins for the Backbone outputs (CLIP ViT-B/32 +
    # Places365 ResNet50 are checkpoint-dependent and not translated).
    clip_features = jax.random.normal(k_clip, (B, CLIP_DIM), jnp.float32)
    base_features = jax.random.normal(k_base, (B, BASE_DIM, FH, FW), jnp.float32)
    text_features = jax.random.normal(k_text, (NUM_CLASS, CLIP_DIM), jnp.float32)

    fwd = jax.jit(osfa_forward, static_argnames=("num_heads",))
    cls, sim1, sim2 = fwd(params, clip_features, base_features, text_features,
                          num_heads=NUM_HEADS)
    jax.block_until_ready((cls, sim1, sim2))

    assert cls.shape == (B, NUM_CLASS)
    assert sim1.shape == (B, NUM_CLASS)
    assert sim2.shape == (B, NUM_CLASS)
    assert bool(jnp.all(jnp.isfinite(cls)))
    assert bool(jnp.all(jnp.isfinite(sim1)))
    assert bool(jnp.all(jnp.isfinite(sim2)))
    print("KERNEL_OK")
</pallas_src>

<mosaic_0001>
module attributes {stable_mosaic.version = 11 : i64} {
  func.func @_proj_tokens_kernel(%arg0: i32, %arg1: memref<1x64x16xf32, #tpu.memory_space<vmem>>, %arg2: memref<64x64xbf16, #tpu.memory_space<vmem>>, %arg3: memref<1x64xbf16, #tpu.memory_space<vmem>>, %arg4: memref<1x16x64xbf16, #tpu.memory_space<vmem>>) attributes {dimension_semantics = [#tpu.dimension_semantics<parallel>], iteration_bounds = array<i64: 2>, scalar_prefetch = 0 : i64, scratch_operands = 0 : i64, tpu.core_type = #tpu.core_type<tc>, window_params = [{transform_indices = @transform_0, window_bounds = array<i64: 1, 64, 16>}, {pipeline_mode = #tpu.pipeline_mode<synchronous>, transform_indices = @transform_1, window_bounds = array<i64: 64, 64>}, {pipeline_mode = #tpu.pipeline_mode<synchronous>, transform_indices = @transform_2, window_bounds = array<i64: 1, 64>}, {transform_indices = @transform_3, window_bounds = array<i64: 1, 16, 64>}]} {
    %c0 = arith.constant 0 : index
    %c0_0 = arith.constant 0 : index
    %c0_1 = arith.constant 0 : index
    %0 = vector.load %arg1[%c0, %c0_0, %c0_1] : memref<1x64x16xf32, #tpu.memory_space<vmem>>, vector<1x64x16xf32>
    %1 = vector.shape_cast %0 : vector<1x64x16xf32> to vector<64x16xf32>
    %2 = arith.truncf %1 : vector<64x16xf32> to vector<64x16xbf16>
    %c0_2 = arith.constant 0 : index
    %c0_3 = arith.constant 0 : index
    %3 = vector.load %arg2[%c0_2, %c0_3] : memref<64x64xbf16, #tpu.memory_space<vmem>>, vector<64x64xbf16>
    %cst = arith.constant dense<0.000000e+00> : vector<16x64xf32>
    %4 = tpu.matmul %2, %3, %cst {dimension_numbers = #tpu.dot_dimension_numbers<[0], [0], [1], [1], [0, 1, 1, 1], [], []>} : vector<64x16xbf16>, vector<64x64xbf16>, vector<16x64xf32> -> vector<16x64xf32>
    %c0_4 = arith.constant 0 : index
    %c0_5 = arith.constant 0 : index
    %5 = vector.load %arg3[%c0_4, %c0_5] : memref<1x64xbf16, #tpu.memory_space<vmem>>, vector<1x64xbf16>
    %6 = arith.extf %5 : vector<1x64xbf16> to vector<1x64xf32>
    %7 = vector.broadcast %6 : vector<1x64xf32> to vector<16x64xf32>
    %8 = arith.addf %4, %7 : vector<16x64xf32>
    %9 = arith.truncf %8 : vector<16x64xf32> to vector<16x64xbf16>
    %c0_6 = arith.constant 0 : index
    %c0_7 = arith.constant 0 : index
    %c0_8 = arith.constant 0 : index
    %10 = vector.load %arg4[%c0_6, %c0_7, %c0_8] : memref<1x16x64xbf16, #tpu.memory_space<vmem>>, vector<1x16x64xbf16>
    %11 = vector.shape_cast %10 : vector<1x16x64xbf16> to vector<16x64xbf16>
    %12 = vector.shape_cast %9 : vector<16x64xbf16> to vector<1x16x64xbf16>
    tpu.vector_store %arg4[%c0_6, %c0_7, %c0_8], %12 {strides = array<i32>} : memref<1x16x64xbf16, #tpu.memory_space<vmem>>, vector<1x16x64xbf16>,
    return
  }
  func.func @transform_0(%arg0: i32) -> (i32, i32, i32) {
    %c0_i32 = arith.constant 0 : i32
    %c0_i32_0 = arith.constant 0 : i32
    %c0_i32_1 = arith.constant 0 : i32
    return %arg0, %c0_i32, %c0_i32_0 : i32, i32, i32
  }
  func.func @transform_1(%arg0: i32) -> (i32, i32) {
    %c0_i32 = arith.constant 0 : i32
    %c0_i32_0 = arith.constant 0 : i32
    %c0_i32_1 = arith.constant 0 : i32
    return %c0_i32, %c0_i32_0 : i32, i32
  }
  func.func @transform_2(%arg0: i32) -> (i32, i32) {
    %c0_i32 = arith.constant 0 : i32
    %c0_i32_0 = arith.constant 0 : i32
    %c0_i32_1 = arith.constant 0 : i32
    return %c0_i32, %c0_i32_0 : i32, i32
  }
  func.func @transform_3(%arg0: i32) -> (i32, i32, i32) {
    %c0_i32 = arith.constant 0 : i32
    %c0_i32_0 = arith.constant 0 : i32
    %c0_i32_1 = arith.constant 0 : i32
    return %arg0, %c0_i32, %c0_i32_0 : i32, i32, i32
  }
}

module attributes {stable_mosaic.version = 11 : i64} {
  func.func @_linear_kernel(%arg0: i32, %arg1: memref<8x64xf32, #tpu.memory_space<vmem>>, %arg2: memref<64x64xbf16, #tpu.memory_space<vmem>>, %arg3: memref<1x64xbf16, #tpu.memory_space<vmem>>, %arg4: memref<8x64xbf16, #tpu.memory_space<vmem>>) attributes {dimension_semantics = [#tpu.dimension_semantics<parallel>], iteration_bounds = array<i64: 1>, scalar_prefetch = 0 : i64, scratch_operands = 0 : i64, tpu.core_type = #tpu.core_type<tc>, window_params = [{transform_indices = @transform_0, window_bounds = array<i64: 8, 64>}, {pipeline_mode = #tpu.pipeline_mode<synchronous>, transform_indices = @transform_1, window_bounds = array<i64: 64, 64>}, {pipeline_mode = #tpu.pipeline_mode<synchronous>, transform_indices = @transform_2, window_bounds = array<i64: 1, 64>}, {transform_indices = @transform_3, window_bounds = array<i64: 8, 64>}]} {
    %c0 = arith.constant 0 : index
    %c0_0 = arith.constant 0 : index
    %0 = vector.load %arg1[%c0, %c0_0] : memref<8x64xf32, #tpu.memory_space<vmem>>, vector<8x64xf32>
    %1 = arith.truncf %0 : vector<8x64xf32> to vector<8x64xbf16>
    %c0_1 = arith.constant 0 : index
    %c0_2 = arith.constant 0 : index
    %2 = vector.load %arg2[%c0_1, %c0_2] : memref<64x64xbf16, #tpu.memory_space<vmem>>, vector<64x64xbf16>
    %cst = arith.constant dense<0.000000e+00> : vector<8x64xf32>
    %3 = tpu.matmul %1, %2, %cst {dimension_numbers = #tpu.dot_dimension_numbers<[1], [0], [0], [1], [0, 0, 1, 1], [], []>} : vector<8x64xbf16>, vector<64x64xbf16>, vector<8x64xf32> -> vector<8x64xf32>
    %c0_3 = arith.constant 0 : index
    %c0_4 = arith.constant 0 : index
    %4 = vector.load %arg3[%c0_3, %c0_4] : memref<1x64xbf16, #tpu.memory_space<vmem>>, vector<1x64xbf16>
    %5 = arith.extf %4 : vector<1x64xbf16> to vector<1x64xf32>
    %6 = vector.broadcast %5 : vector<1x64xf32> to vector<8x64xf32>
    %7 = arith.addf %3, %6 : vector<8x64xf32>
    %8 = arith.truncf %7 : vector<8x64xf32> to vector<8x64xbf16>
    %c0_5 = arith.constant 0 : index
    %c0_6 = arith.constant 0 : index
    %9 = vector.load %arg4[%c0_5, %c0_6] : memref<8x64xbf16, #tpu.memory_space<vmem>>, vector<8x64xbf16>
    tpu.vector_store %arg4[%c0_5, %c0_6], %8 {strides = array<i32>} : memref<8x64xbf16, #tpu.memory_space<vmem>>, vector<8x64xbf16>,
    return
  }
  func.func @transform_0(%arg0: i32) -> (i32, i32) {
    %c0_i32 = arith.constant 0 : i32
    %c0_i32_0 = arith.constant 0 : i32
    return %arg0, %c0_i32 : i32, i32
  }
  func.func @transform_1(%arg0: i32) -> (i32, i32) {
    %c0_i32 = arith.constant 0 : i32
    %c0_i32_0 = arith.constant 0 : i32
    %c0_i32_1 = arith.constant 0 : i32
    return %c0_i32, %c0_i32_0 : i32, i32
  }
  func.func @transform_2(%arg0: i32) -> (i32, i32) {
    %c0_i32 = arith.constant 0 : i32
    %c0_i32_0 = arith.constant 0 : i32
    %c0_i32_1 = arith.constant 0 : i32
    return %c0_i32, %c0_i32_0 : i32, i32
  }
  func.func @transform_3(%arg0: i32) -> (i32, i32) {
    %c0_i32 = arith.constant 0 : i32
    %c0_i32_0 = arith.constant 0 : i32
    return %arg0, %c0_i32 : i32, i32
  }
}

module attributes {stable_mosaic.version = 11 : i64} {
  func.func @_linear_kernel(%arg0: i32, %arg1: memref<8x64xbf16, #tpu.memory_space<vmem>>, %arg2: memref<64x64xbf16, #tpu.memory_space<vmem>>, %arg3: memref<1x64xbf16, #tpu.memory_space<vmem>>, %arg4: memref<8x64xbf16, #tpu.memory_space<vmem>>) attributes {dimension_semantics = [#tpu.dimension_semantics<parallel>], iteration_bounds = array<i64: 1>, scalar_prefetch = 0 : i64, scratch_operands = 0 : i64, tpu.core_type = #tpu.core_type<tc>, window_params = [{transform_indices = @transform_0, window_bounds = array<i64: 8, 64>}, {pipeline_mode = #tpu.pipeline_mode<synchronous>, transform_indices = @transform_1, window_bounds = array<i64: 64, 64>}, {pipeline_mode = #tpu.pipeline_mode<synchronous>, transform_indices = @transform_2, window_bounds = array<i64: 1, 64>}, {transform_indices = @transform_3, window_bounds = array<i64: 8, 64>}]} {
    %c0 = arith.constant 0 : index
    %c0_0 = arith.constant 0 : index
    %0 = vector.load %arg1[%c0, %c0_0] : memref<8x64xbf16, #tpu.memory_space<vmem>>, vector<8x64xbf16>
    %c0_1 = arith.constant 0 : index
    %c0_2 = arith.constant 0 : index
    %1 = vector.load %arg2[%c0_1, %c0_2] : memref<64x64xbf16, #tpu.memory_space<vmem>>, vector<64x64xbf16>
    %cst = arith.constant dense<0.000000e+00> : vector<8x64xf32>
    %2 = tpu.matmul %0, %1, %cst {dimension_numbers = #tpu.dot_dimension_numbers<[1], [0], [0], [1], [0, 0, 1, 1], [], []>} : vector<8x64xbf16>, vector<64x64xbf16>, vector<8x64xf32> -> vector<8x64xf32>
    %c0_3 = arith.constant 0 : index
    %c0_4 = arith.constant 0 : index
    %3 = vector.load %arg3[%c0_3, %c0_4] : memref<1x64xbf16, #tpu.memory_space<vmem>>, vector<1x64xbf16>
    %4 = arith.extf %3 : vector<1x64xbf16> to vector<1x64xf32>
    %5 = vector.broadcast %4 : vector<1x64xf32> to vector<8x64xf32>
    %6 = arith.addf %2, %5 : vector<8x64xf32>
    %cst_5 = arith.constant 0.353553385 : f32
    %7 = vector.broadcast %cst_5 : f32 to vector<8x64xf32>
    %8 = arith.mulf %6, %7 : vector<8x64xf32>
    %9 = arith.truncf %8 : vector<8x64xf32> to vector<8x64xbf16>
    %c0_6 = arith.constant 0 : index
    %c0_7 = arith.constant 0 : index
    %10 = vector.load %arg4[%c0_6, %c0_7] : memref<8x64xbf16, #tpu.memory_space<vmem>>, vector<8x64xbf16>
    tpu.vector_store %arg4[%c0_6, %c0_7], %9 {strides = array<i32>} : memref<8x64xbf16, #tpu.memory_space<vmem>>, vector<8x64xbf16>,
    return
  }
  func.func @transform_0(%arg0: i32) -> (i32, i32) {
    %c0_i32 = arith.constant 0 : i32
    %c0_i32_0 = arith.constant 0 : i32
    return %arg0, %c0_i32 : i32, i32
  }
  func.func @transform_1(%arg0: i32) -> (i32, i32) {
    %c0_i32 = arith.constant 0 : i32
    %c0_i32_0 = arith.constant 0 : i32
    %c0_i32_1 = arith.constant 0 : i32
    return %c0_i32, %c0_i32_0 : i32, i32
  }
  func.func @transform_2(%arg0: i32) -> (i32, i32) {
    %c0_i32 = arith.constant 0 : i32
    %c0_i32_0 = arith.constant 0 : i32
    %c0_i32_1 = arith.constant 0 : i32
    return %c0_i32, %c0_i32_0 : i32, i32
  }
  func.func @transform_3(%arg0: i32) -> (i32, i32) {
    %c0_i32 = arith.constant 0 : i32
    %c0_i32_0 = arith.constant 0 : i32
    return %arg0, %c0_i32 : i32, i32
  }
}

module attributes {stable_mosaic.version = 11 : i64} {
  func.func @_scene_fg_kernel(%arg0: memref<2x64xbf16, #tpu.memory_space<vmem>>, %arg1: memref<2x16x64xbf16, #tpu.memory_space<vmem>>, %arg2: memref<64x256xbf16, #tpu.memory_space<vmem>>, %arg3: memref<1x256xbf16, #tpu.memory_space<vmem>>, %arg4: memref<256x64xbf16, #tpu.memory_space<vmem>>, %arg5: memref<1x64xbf16, #tpu.memory_space<vmem>>, %arg6: memref<1x64xbf16, #tpu.memory_space<vmem>>, %arg7: memref<1x64xbf16, #tpu.memory_space<vmem>>, %arg8: memref<2x64xbf16, #tpu.memory_space<vmem>>) attributes {dimension_semantics = [], scalar_prefetch = 0 : i64, scratch_operands = 0 : i64, tpu.core_type = #tpu.core_type<tc>} {
    %c0 = arith.constant 0 : index
    %c0_0 = arith.constant 0 : index
    %c0_1 = arith.constant 0 : index
    %0 = vector.load %arg1[%c0, %c0_0, %c0_1] : memref<2x16x64xbf16, #tpu.memory_space<vmem>>, vector<2x16x64xbf16>
    %1 = arith.extf %0 : vector<2x16x64xbf16> to vector<2x16x64xf32>
    %cst = arith.constant dense<0.000000e+00> : vector<2x64xf32>
    %2 = vector.multi_reduction <add>, %1, %cst [1] : vector<2x16x64xf32> to vector<2x64xf32>
    %cst_2 = arith.constant 1.600000e+01 : f32
    %3 = vector.broadcast %cst_2 : f32 to vector<2x64xf32>
    %4 = arith.divf %2, %3 : vector<2x64xf32>
    %c0_3 = arith.constant 0 : index
    %c0_4 = arith.constant 0 : index
    %5 = vector.load %arg0[%c0_3, %c0_4] : memref<2x64xbf16, #tpu.memory_space<vmem>>, vector<2x64xbf16>
    %6 = arith.extf %5 : vector<2x64xbf16> to vector<2x64xf32>
    %7 = arith.addf %6, %4 : vector<2x64xf32>
    %8 = arith.truncf %7 : vector<2x64xf32> to vector<2x64xbf16>
    %c0_5 = arith.constant 0 : index
    %c0_6 = arith.constant 0 : index
    %9 = vector.load %arg2[%c0_5, %c0_6] : memref<64x256xbf16, #tpu.memory_space<vmem>>, vector<64x256xbf16>
    %cst_7 = arith.constant dense<0.000000e+00> : vector<2x256xf32>
    %10 = tpu.matmul %8, %9, %cst_7 {dimension_numbers = #tpu.dot_dimension_numbers<[1], [0], [0], [1], [0, 0, 1, 1], [], []>} : vector<2x64xbf16>, vector<64x256xbf16>, vector<2x256xf32> -> vector<2x256xf32>
    %c0_8 = arith.constant 0 : index
    %c0_9 = arith.constant 0 : index
    %11 = vector.load %arg3[%c0_8, %c0_9] : memref<1x256xbf16, #tpu.memory_space<vmem>>, vector<1x256xbf16>
    %12 = arith.extf %11 : vector<1x256xbf16> to vector<1x256xf32>
    %13 = vector.broadcast %12 : vector<1x256xf32> to vector<2x256xf32>
    %14 = arith.addf %10, %13 : vector<2x256xf32>
    %cst_10 = arith.constant 5.000000e-01 : f32
    %15 = vector.broadcast %cst_10 : f32 to vector<2x256xf32>
    %16 = arith.mulf %15, %14 : vector<2x256xf32>
    %cst_11 = arith.constant 4.471500e-02 : f32
    %17 = vector.broadcast %cst_11 : f32 to vector<2x256xf32>
    %18 = arith.mulf %17, %14 : vector<2x256xf32>
    %19 = arith.mulf %18, %14 : vector<2x256xf32>
    %20 = arith.mulf %19, %14 : vector<2x256xf32>
    %21 = arith.addf %14, %20 : vector<2x256xf32>
    %cst_12 = arith.constant 0.797884583 : f32
    %22 = vector.broadcast %cst_12 : f32 to vector<2x256xf32>
    %23 = arith.mulf %22, %21 : vector<2x256xf32>
    %24 = math.tanh %23 : vector<2x256xf32>
    %cst_13 = arith.constant 1.000000e+00 : f32
    %25 = vector.broadcast %cst_13 : f32 to vector<2x256xf32>
    %26 = arith.addf %25, %24 : vector<2x256xf32>
    %27 = arith.mulf %16, %26 : vector<2x256xf32>
    %28 = arith.truncf %27 : vector<2x256xf32> to vector<2x256xbf16>
    %c0_14 = arith.constant 0 : index
    %c0_15 = arith.constant 0 : index
    %29 = vector.load %arg4[%c0_14, %c0_15] : memref<256x64xbf16, #tpu.memory_space<vmem>>, vector<256x64xbf16>
    %cst_16 = arith.constant dense<0.000000e+00> : vector<2x64xf32>
    %30 = tpu.matmul %28, %29, %cst_16 {dimension_numbers = #tpu.dot_dimension_numbers<[1], [0], [0], [1], [0, 0, 1, 1], [], []>} : vector<2x256xbf16>, vector<256x64xbf16>, vector<2x64xf32> -> vector<2x64xf32>
    %c0_17 = arith.constant 0 : index
    %c0_18 = arith.constant 0 : index
    %31 = vector.load %arg5[%c0_17, %c0_18] : memref<1x64xbf16, #tpu.memory_space<vmem>>, vector<1x64xbf16>
    %32 = arith.extf %31 : vector<1x64xbf16> to vector<1x64xf32>
    %33 = vector.broadcast %32 : vector<1x64xf32> to vector<2x64xf32>
    %34 = arith.addf %30, %33 : vector<2x64xf32>
    %c0_19 = arith.constant 0 : index
    %c0_20 = arith.constant 0 : index
    %35 = vector.load %arg6[%c0_19, %c0_20] : memref<1x64xbf16, #tpu.memory_space<vmem>>, vector<1x64xbf16>
    %36 = arith.extf %35 : vector<1x64xbf16> to vector<1x64xf32>
    %c0_21 = arith.constant 0 : index
    %c0_22 = arith.constant 0 : index
    %37 = vector.load %arg7[%c0_21, %c0_22] : memref<1x64xbf16, #tpu.memory_space<vmem>>, vector<1x64xbf16>
    %38 = arith.extf %37 : vector<1x64xbf16> to vector<1x64xf32>
    %cst_23 = arith.constant dense<0.000000e+00> : vector<2xf32>
    %39 = vector.multi_reduction <add>, %34, %cst_23 [1] : vector<2x64xf32> to vector<2xf32>
    %40 = vector.shape_cast %39 : vector<2xf32> to vector<2x1xf32>
    %cst_24 = arith.constant 6.400000e+01 : f32
    %41 = vector.broadcast %cst_24 : f32 to vector<2x1xf32>
    %42 = arith.divf %40, %41 : vector<2x1xf32>
    %43 = vector.broadcast %42 : vector<2x1xf32> to vector<2x64xf32>
    %44 = arith.subf %34, %43 : vector<2x64xf32>
    %45 = arith.mulf %44, %44 : vector<2x64xf32>
    %cst_25 = arith.constant dense<0.000000e+00> : vector<2xf32>
    %46 = vector.multi_reduction <add>, %45, %cst_25 [1] : vector<2x64xf32> to vector<2xf32>
    %47 = vector.shape_cast %46 : vector<2xf32> to vector<2x1xf32>
    %cst_26 = arith.constant 6.400000e+01 : f32
    %48 = vector.broadcast %cst_26 : f32 to vector<2x1xf32>
    %49 = arith.divf %47, %48 : vector<2x1xf32>
    %50 = vector.broadcast %42 : vector<2x1xf32> to vector<2x64xf32>
    %51 = arith.subf %34, %50 : vector<2x64xf32>
    %cst_27 = arith.constant 9.99999974E-6 : f32
    %52 = vector.broadcast %cst_27 : f32 to vector<2x1xf32>
    %53 = arith.addf %49, %52 : vector<2x1xf32>
    %54 = math.rsqrt %53 : vector<2x1xf32>
    %55 = vector.broadcast %54 : vector<2x1xf32> to vector<2x64xf32>
    %56 = arith.mulf %51, %55 : vector<2x64xf32>
    %57 = vector.broadcast %36 : vector<1x64xf32> to vector<2x64xf32>
    %58 = arith.mulf %56, %57 : vector<2x64xf32>
    %59 = vector.broadcast %38 : vector<1x64xf32> to vector<2x64xf32>
    %60 = arith.addf %58, %59 : vector<2x64xf32>
    %61 = arith.truncf %60 : vector<2x64xf32> to vector<2x64xbf16>
    %c0_28 = arith.constant 0 : index
    %c0_29 = arith.constant 0 : index
    %62 = vector.load %arg8[%c0_28, %c0_29] : memref<2x64xbf16, #tpu.memory_space<vmem>>, vector<2x64xbf16>
    tpu.vector_store %arg8[%c0_28, %c0_29], %61 {strides = array<i32>} : memref<2x64xbf16, #tpu.memory_space<vmem>>, vector<2x64xbf16>,
    return
  }
}

module attributes {stable_mosaic.version = 11 : i64} {
  func.func @_linear_kernel(%arg0: i32, %arg1: memref<2x64xf32, #tpu.memory_space<vmem>>, %arg2: memref<64x64xbf16, #tpu.memory_space<vmem>>, %arg3: memref<1x64xbf16, #tpu.memory_space<vmem>>, %arg4: memref<2x64xbf16, #tpu.memory_space<vmem>>) attributes {dimension_semantics = [#tpu.dimension_semantics<parallel>], iteration_bounds = array<i64: 1>, scalar_prefetch = 0 : i64, scratch_operands = 0 : i64, tpu.core_type = #tpu.core_type<tc>, window_params = [{transform_indices = @transform_0, window_bounds = array<i64: 2, 64>}, {pipeline_mode = #tpu.pipeline_mode<synchronous>, transform_indices = @transform_1, window_bounds = array<i64: 64, 64>}, {pipeline_mode = #tpu.pipeline_mode<synchronous>, transform_indices = @transform_2, window_bounds = array<i64: 1, 64>}, {transform_indices = @transform_3, window_bounds = array<i64: 2, 64>}]} {
    %c0 = arith.constant 0 : index
    %c0_0 = arith.constant 0 : index
    %0 = vector.load %arg1[%c0, %c0_0] : memref<2x64xf32, #tpu.memory_space<vmem>>, vector<2x64xf32>
    %1 = arith.truncf %0 : vector<2x64xf32> to vector<2x64xbf16>
    %c0_1 = arith.constant 0 : index
    %c0_2 = arith.constant 0 : index
    %2 = vector.load %arg2[%c0_1, %c0_2] : memref<64x64xbf16, #tpu.memory_space<vmem>>, vector<64x64xbf16>
    %cst = arith.constant dense<0.000000e+00> : vector<2x64xf32>
    %3 = tpu.matmul %1, %2, %cst {dimension_numbers = #tpu.dot_dimension_numbers<[1], [0], [0], [1], [0, 0, 1, 1], [], []>} : vector<2x64xbf16>, vector<64x64xbf16>, vector<2x64xf32> -> vector<2x64xf32>
    %c0_3 = arith.constant 0 : index
    %c0_4 = arith.constant 0 : index
    %4 = vector.load %arg3[%c0_3, %c0_4] : memref<1x64xbf16, #tpu.memory_space<vmem>>, vector<1x64xbf16>
    %5 = arith.extf %4 : vector<1x64xbf16> to vector<1x64xf32>
    %6 = vector.broadcast %5 : vector<1x64xf32> to vector<2x64xf32>
    %7 = arith.addf %3, %6 : vector<2x64xf32>
    %8 = arith.truncf %7 : vector<2x64xf32> to vector<2x64xbf16>
    %c0_5 = arith.constant 0 : index
    %c0_6 = arith.constant 0 : index
    %9 = vector.load %arg4[%c0_5, %c0_6] : memref<2x64xbf16, #tpu.memory_space<vmem>>, vector<2x64xbf16>
    tpu.vector_store %arg4[%c0_5, %c0_6], %8 {strides = array<i32>} : memref<2x64xbf16, #tpu.memory_space<vmem>>, vector<2x64xbf16>,
    return
  }
  func.func @transform_0(%arg0: i32) -> (i32, i32) {
    %c0_i32 = arith.constant 0 : i32
    %c0_i32_0 = arith.constant 0 : i32
    return %arg0, %c0_i32 : i32, i32
  }
  func.func @transform_1(%arg0: i32) -> (i32, i32) {
    %c0_i32 = arith.constant 0 : i32
    %c0_i32_0 = arith.constant 0 : i32
    %c0_i32_1 = arith.constant 0 : i32
    return %c0_i32, %c0_i32_0 : i32, i32
  }
  func.func @transform_2(%arg0: i32) -> (i32, i32) {
    %c0_i32 = arith.constant 0 : i32
    %c0_i32_0 = arith.constant 0 : i32
    %c0_i32_1 = arith.constant 0 : i32
    return %c0_i32, %c0_i32_0 : i32, i32
  }
  func.func @transform_3(%arg0: i32) -> (i32, i32) {
    %c0_i32 = arith.constant 0 : i32
    %c0_i32_0 = arith.constant 0 : i32
    return %arg0, %c0_i32 : i32, i32
  }
}

module attributes {stable_mosaic.version = 11 : i64} {
  func.func @_fused_block_kernel(%arg0: i32, %arg1: memref<1x8x64xbf16, #tpu.memory_space<vmem>>, %arg2: memref<1x16x64xbf16, #tpu.memory_space<vmem>>, %arg3: memref<64x128xbf16, #tpu.memory_space<vmem>>, %arg4: memref<1x128xbf16, #tpu.memory_space<vmem>>, %arg5: memref<64x64xbf16, #tpu.memory_space<vmem>>, %arg6: memref<1x64xbf16, #tpu.memory_space<vmem>>, %arg7: memref<1x64xbf16, #tpu.memory_space<vmem>>, %arg8: memref<1x64xbf16, #tpu.memory_space<vmem>>, %arg9: memref<64x256xbf16, #tpu.memory_space<vmem>>, %arg10: memref<1x256xbf16, #tpu.memory_space<vmem>>, %arg11: memref<256x64xbf16, #tpu.memory_space<vmem>>, %arg12: memref<1x64xbf16, #tpu.memory_space<vmem>>, %arg13: memref<1x64xbf16, #tpu.memory_space<vmem>>, %arg14: memref<1x64xbf16, #tpu.memory_space<vmem>>, %arg15: memref<1x8x64xbf16, #tpu.memory_space<vmem>>) attributes {dimension_semantics = [#tpu.dimension_semantics<parallel>], iteration_bounds = array<i64: 2>, scalar_prefetch = 0 : i64, scratch_operands = 0 : i64, tpu.core_type = #tpu.core_type<tc>, window_params = [{pipeline_mode = #tpu.pipeline_mode<synchronous>, transform_indices = @transform_0, window_bounds = array<i64: 1, 8, 64>}, {transform_indices = @transform_1, window_bounds = array<i64: 1, 16, 64>}, {pipeline_mode = #tpu.pipeline_mode<synchronous>, transform_indices = @transform_2, window_bounds = array<i64: 64, 128>}, {pipeline_mode = #tpu.pipeline_mode<synchronous>, transform_indices = @transform_3, window_bounds = array<i64: 1, 128>}, {pipeline_mode = #tpu.pipeline_mode<synchronous>, transform_indices = @transform_4, window_bounds = array<i64: 64, 64>}, {pipeline_mode = #tpu.pipeline_mode<synchronous>, transform_indices = @transform_5, window_bounds = array<i64: 1, 64>}, {pipeline_mode = #tpu.pipeline_mode<synchronous>, transform_indices = @transform_6, window_bounds = array<i64: 1, 64>}, {pipeline_mode = #tpu.pipeline_mode<synchronous>, transform_indices = @transform_7, window_bounds = array<i64: 1, 64>}, {pipeline_mode = #tpu.pipeline_mode<synchronous>, transform_indices = @transform_8, window_bounds = array<i64: 64, 256>}, {pipeline_mode = #tpu.pipeline_mode<synchronous>, transform_indices = @transform_9, window_bounds = array<i64: 1, 256>}, {pipeline_mode = #tpu.pipeline_mode<synchronous>, transform_indices = @transform_10, window_bounds = array<i64: 256, 64>}, {pipeline_mode = #tpu.pipeline_mode<synchronous>, transform_indices = @transform_11, window_bounds = array<i64: 1, 64>}, {pipeline_mode = #tpu.pipeline_mode<synchronous>, transform_indices = @transform_12, window_bounds = array<i64: 1, 64>}, {pipeline_mode = #tpu.pipeline_mode<synchronous>, transform_indices = @transform_13, window_bounds = array<i64: 1, 64>}, {transform_indices = @transform_14, window_bounds = array<i64: 1, 8, 64>}]} {
    %c0 = arith.constant 0 : index
    %c0_0 = arith.constant 0 : index
    %c0_1 = arith.constant 0 : index
    %0 = vector.load %arg2[%c0, %c0_0, %c0_1] : memref<1x16x64xbf16, #tpu.memory_space<vmem>>, vector<1x16x64xbf16>
    %1 = vector.shape_cast %0 : vector<1x16x64xbf16> to vector<16x64xbf16>
    %c0_2 = arith.constant 0 : index
    %c0_3 = arith.constant 0 : index
    %c0_4 = arith.constant 0 : index
    %2 = vector.load %arg1[%c0_2, %c0_3, %c0_4] : memref<1x8x64xbf16, #tpu.memory_space<vmem>>, vector<1x8x64xbf16>
    %3 = vector.shape_cast %2 : vector<1x8x64xbf16> to vector<8x64xbf16>
    %c0_5 = arith.constant 0 : index
    %c0_6 = arith.constant 0 : index
    %4 = vector.load %arg3[%c0_5, %c0_6] : memref<64x128xbf16, #tpu.memory_space<vmem>>, vector<64x128xbf16>
    %cst = arith.constant dense<0.000000e+00> : vector<16x128xf32>
    %5 = tpu.matmul %1, %4, %cst {dimension_numbers = #tpu.dot_dimension_numbers<[1], [0], [0], [1], [0, 0, 1, 1], [], []>} : vector<16x64xbf16>, vector<64x128xbf16>, vector<16x128xf32> -> vector<16x128xf32>
    %c0_7 = arith.constant 0 : index
    %c0_8 = arith.constant 0 : index
    %6 = vector.load %arg4[%c0_7, %c0_8] : memref<1x128xbf16, #tpu.memory_space<vmem>>, vector<1x128xbf16>
    %7 = arith.extf %6 : vector<1x128xbf16> to vector<1x128xf32>
    %8 = vector.broadcast %7 : vector<1x128xf32> to vector<16x128xf32>
    %9 = arith.addf %5, %8 : vector<16x128xf32>
    %10 = vector.extract_strided_slice %9 {offsets = [0, 0], sizes = [16, 64], strides = [1, 1]} : vector<16x128xf32> to vector<16x64xf32>
    %11 = arith.truncf %10 : vector<16x64xf32> to vector<16x64xbf16>
    %12 = vector.extract_strided_slice %9 {offsets = [0, 64], sizes = [16, 64], strides = [1, 1]} : vector<16x128xf32> to vector<16x64xf32>
    %13 = arith.truncf %12 : vector<16x64xf32> to vector<16x64xbf16>
    %14 = vector.extract_strided_slice %3 {offsets = [0, 0], sizes = [8, 8], strides = [1, 1]} : vector<8x64xbf16> to vector<8x8xbf16>
    %15 = vector.extract_strided_slice %11 {offsets = [0, 0], sizes = [16, 8], strides = [1, 1]} : vector<16x64xbf16> to vector<16x8xbf16>
    %cst_9 = arith.constant dense<0.000000e+00> : vector<8x16xf32>
    %16 = tpu.matmul %14, %15, %cst_9 {dimension_numbers = #tpu.dot_dimension_numbers<[1], [1], [0], [0], [0, 0, 1, 0], [], []>} : vector<8x8xbf16>, vector<16x8xbf16>, vector<8x16xf32> -> vector<8x16xf32>
    %cst_10 = arith.constant dense<0xFF800000> : vector<8xf32>
    %17 = vector.multi_reduction <maximumf>, %16, %cst_10 [1] : vector<8x16xf32> to vector<8xf32>
    %18 = vector.shape_cast %17 : vector<8xf32> to vector<8x1xf32>
    %19 = vector.broadcast %18 : vector<8x1xf32> to vector<8x16xf32>
    %20 = arith.subf %16, %19 : vector<8x16xf32>
    %21 = math.exp %20 : vector<8x16xf32>
    %cst_11 = arith.constant dense<0.000000e+00> : vector<8xf32>
    %22 = vector.multi_reduction <add>, %21, %cst_11 [1] : vector<8x16xf32> to vector<8xf32>
    %23 = vector.shape_cast %22 : vector<8xf32> to vector<8x1xf32>
    %24 = tpu.reciprocal %23 : vector<8x1xf32> -> vector<8x1xf32>
    %25 = vector.broadcast %24 : vector<8x1xf32> to vector<8x16xf32>
    %26 = arith.mulf %21, %25 : vector<8x16xf32>
    %27 = arith.truncf %26 : vector<8x16xf32> to vector<8x16xbf16>
    %28 = vector.extract_strided_slice %13 {offsets = [0, 0], sizes = [16, 8], strides = [1, 1]} : vector<16x64xbf16> to vector<16x8xbf16>
    %cst_12 = arith.constant dense<0.000000e+00> : vector<8x8xf32>
    %29 = tpu.matmul %27, %28, %cst_12 {dimension_numbers = #tpu.dot_dimension_numbers<[1], [0], [0], [1], [0, 0, 1, 1], [], []>} : vector<8x16xbf16>, vector<16x8xbf16>, vector<8x8xf32> -> vector<8x8xf32>
    %30 = vector.extract_strided_slice %3 {offsets = [0, 8], sizes = [8, 8], strides = [1, 1]} : vector<8x64xbf16> to vector<8x8xbf16>
    %31 = vector.extract_strided_slice %11 {offsets = [0, 8], sizes = [16, 8], strides = [1, 1]} : vector<16x64xbf16> to vector<16x8xbf16>
    %cst_13 = arith.constant dense<0.000000e+00> : vector<8x16xf32>
    %32 = tpu.matmul %30, %31, %cst_13 {dimension_numbers = #tpu.dot_dimension_numbers<[1], [1], [0], [0], [0, 0, 1, 0], [], []>} : vector<8x8xbf16>, vector<16x8xbf16>, vector<8x16xf32> -> vector<8x16xf32>
    %cst_14 = arith.constant dense<0xFF800000> : vector<8xf32>
    %33 = vector.multi_reduction <maximumf>, %32, %cst_14 [1] : vector<8x16xf32> to vector<8xf32>
    %34 = vector.shape_cast %33 : vector<8xf32> to vector<8x1xf32>
    %35 = vector.broadcast %34 : vector<8x1xf32> to vector<8x16xf32>
    %36 = arith.subf %32, %35 : vector<8x16xf32>
    %37 = math.exp %36 : vector<8x16xf32>
    %cst_15 = arith.constant dense<0.000000e+00> : vector<8xf32>
    %38 = vector.multi_reduction <add>, %37, %cst_15 [1] : vector<8x16xf32> to vector<8xf32>
    %39 = vector.shape_cast %38 : vector<8xf32> to vector<8x1xf32>
    %40 = tpu.reciprocal %39 : vector<8x1xf32> -> vector<8x1xf32>
    %41 = vector.broadcast %40 : vector<8x1xf32> to vector<8x16xf32>
    %42 = arith.mulf %37, %41 : vector<8x16xf32>
    %43 = arith.truncf %42 : vector<8x16xf32> to vector<8x16xbf16>
    %44 = vector.extract_strided_slice %13 {offsets = [0, 8], sizes = [16, 8], strides = [1, 1]} : vector<16x64xbf16> to vector<16x8xbf16>
    %cst_16 = arith.constant dense<0.000000e+00> : vector<8x8xf32>
    %45 = tpu.matmul %43, %44, %cst_16 {dimension_numbers = #tpu.dot_dimension_numbers<[1], [0], [0], [1], [0, 0, 1, 1], [], []>} : vector<8x16xbf16>, vector<16x8xbf16>, vector<8x8xf32> -> vector<8x8xf32>
    %46 = vector.extract_strided_slice %3 {offsets = [0, 16], sizes = [8, 8], strides = [1, 1]} : vector<8x64xbf16> to vector<8x8xbf16>
    %47 = vector.extract_strided_slice %11 {offsets = [0, 16], sizes = [16, 8], strides = [1, 1]} : vector<16x64xbf16> to vector<16x8xbf16>
    %cst_17 = arith.constant dense<0.000000e+00> : vector<8x16xf32>
    %48 = tpu.matmul %46, %47, %cst_17 {dimension_numbers = #tpu.dot_dimension_numbers<[1], [1], [0], [0], [0, 0, 1, 0], [], []>} : vector<8x8xbf16>, vector<16x8xbf16>, vector<8x16xf32> -> vector<8x16xf32>
    %cst_18 = arith.constant dense<0xFF800000> : vector<8xf32>
    %49 = vector.multi_reduction <maximumf>, %48, %cst_18 [1] : vector<8x16xf32> to vector<8xf32>
    %50 = vector.shape_cast %49 : vector<8xf32> to vector<8x1xf32>
    %51 = vector.broadcast %50 : vector<8x1xf32> to vector<8x16xf32>
    %52 = arith.subf %48, %51 : vector<8x16xf32>
    %53 = math.exp %52 : vector<8x16xf32>
    %cst_19 = arith.constant dense<0.000000e+00> : vector<8xf32>
    %54 = vector.multi_reduction <add>, %53, %cst_19 [1] : vector<8x16xf32> to vector<8xf32>
    %55 = vector.shape_cast %54 : vector<8xf32> to vector<8x1xf32>
    %56 = tpu.reciprocal %55 : vector<8x1xf32> -> vector<8x1xf32>
    %57 = vector.broadcast %56 : vector<8x1xf32> to vector<8x16xf32>
    %58 = arith.mulf %53, %57 : vector<8x16xf32>
    %59 = arith.truncf %58 : vector<8x16xf32> to vector<8x16xbf16>
    %60 = vector.extract_strided_slice %13 {offsets = [0, 16], sizes = [16, 8], strides = [1, 1]} : vector<16x64xbf16> to vector<16x8xbf16>
    %cst_20 = arith.constant dense<0.000000e+00> : vector<8x8xf32>
    %61 = tpu.matmul %59, %60, %cst_20 {dimension_numbers = #tpu.dot_dimension_numbers<[1], [0], [0], [1], [0, 0, 1, 1], [], []>} : vector<8x16xbf16>, vector<16x8xbf16>, vector<8x8xf32> -> vector<8x8xf32>
    %62 = vector.extract_strided_slice %3 {offsets = [0, 24], sizes = [8, 8], strides = [1, 1]} : vector<8x64xbf16> to vector<8x8xbf16>
    %63 = vector.extract_strided_slice %11 {offsets = [0, 24], sizes = [16, 8], strides = [1, 1]} : vector<16x64xbf16> to vector<16x8xbf16>
    %cst_21 = arith.constant dense<0.000000e+00> : vector<8x16xf32>
    %64 = tpu.matmul %62, %63, %cst_21 {dimension_numbers = #tpu.dot_dimension_numbers<[1], [1], [0], [0], [0, 0, 1, 0], [], []>} : vector<8x8xbf16>, vector<16x8xbf16>, vector<8x16xf32> -> vector<8x16xf32>
    %cst_22 = arith.constant dense<0xFF800000> : vector<8xf32>
    %65 = vector.multi_reduction <maximumf>, %64, %cst_22 [1] : vector<8x16xf32> to vector<8xf32>
    %66 = vector.shape_cast %65 : vector<8xf32> to vector<8x1xf32>
    %67 = vector.broadcast %66 : vector<8x1xf32> to vector<8x16xf32>
    %68 = arith.subf %64, %67 : vector<8x16xf32>
    %69 = math.exp %68 : vector<8x16xf32>
    %cst_23 = arith.constant dense<0.000000e+00> : vector<8xf32>
    %70 = vector.multi_reduction <add>, %69, %cst_23 [1] : vector<8x16xf32> to vector<8xf32>
    %71 = vector.shape_cast %70 : vector<8xf32> to vector<8x1xf32>
    %72 = tpu.reciprocal %71 : vector<8x1xf32> -> vector<8x1xf32>
    %73 = vector.broadcast %72 : vector<8x1xf32> to vector<8x16xf32>
    %74 = arith.mulf %69, %73 : vector<8x16xf32>
    %75 = arith.truncf %74 : vector<8x16xf32> to vector<8x16xbf16>
    %76 = vector.extract_strided_slice %13 {offsets = [0, 24], sizes = [16, 8], strides = [1, 1]} : vector<16x64xbf16> to vector<16x8xbf16>
    %cst_24 = arith.constant dense<0.000000e+00> : vector<8x8xf32>
    %77 = tpu.matmul %75, %76, %cst_24 {dimension_numbers = #tpu.dot_dimension_numbers<[1], [0], [0], [1], [0, 0, 1, 1], [], []>} : vector<8x16xbf16>, vector<16x8xbf16>, vector<8x8xf32> -> vector<8x8xf32>
    %78 = vector.extract_strided_slice %3 {offsets = [0, 32], sizes = [8, 8], strides = [1, 1]} : vector<8x64xbf16> to vector<8x8xbf16>
    %79 = vector.extract_strided_slice %11 {offsets = [0, 32], sizes = [16, 8], strides = [1, 1]} : vector<16x64xbf16> to vector<16x8xbf16>
    %cst_25 = arith.constant dense<0.000000e+00> : vector<8x16xf32>
    %80 = tpu.matmul %78, %79, %cst_25 {dimension_numbers = #tpu.dot_dimension_numbers<[1], [1], [0], [0], [0, 0, 1, 0], [], []>} : vector<8x8xbf16>, vector<16x8xbf16>, vector<8x16xf32> -> vector<8x16xf32>
    %cst_26 = arith.constant dense<0xFF800000> : vector<8xf32>
    %81 = vector.multi_reduction <maximumf>, %80, %cst_26 [1] : vector<8x16xf32> to vector<8xf32>
    %82 = vector.shape_cast %81 : vector<8xf32> to vector<8x1xf32>
    %83 = vector.broadcast %82 : vector<8x1xf32> to vector<8x16xf32>
    %84 = arith.subf %80, %83 : vector<8x16xf32>
    %85 = math.exp %84 : vector<8x16xf32>
    %cst_27 = arith.constant dense<0.000000e+00> : vector<8xf32>
    %86 = vector.multi_reduction <add>, %85, %cst_27 [1] : vector<8x16xf32> to vector<8xf32>
    %87 = vector.shape_cast %86 : vector<8xf32> to vector<8x1xf32>
    %88 = tpu.reciprocal %87 : vector<8x1xf32> -> vector<8x1xf32>
    %89 = vector.broadcast %88 : vector<8x1xf32> to vector<8x16xf32>
    %90 = arith.mulf %85, %89 : vector<8x16xf32>
    %91 = arith.truncf %90 : vector<8x16xf32> to vector<8x16xbf16>
    %92 = vector.extract_strided_slice %13 {offsets = [0, 32], sizes = [16, 8], strides = [1, 1]} : vector<16x64xbf16> to vector<16x8xbf16>
    %cst_28 = arith.constant dense<0.000000e+00> : vector<8x8xf32>
    %93 = tpu.matmul %91, %92, %cst_28 {dimension_numbers = #tpu.dot_dimension_numbers<[1], [0], [0], [1], [0, 0, 1, 1], [], []>} : vector<8x16xbf16>, vector<16x8xbf16>, vector<8x8xf32> -> vector<8x8xf32>
    %94 = vector.extract_strided_slice %3 {offsets = [0, 40], sizes = [8, 8], strides = [1, 1]} : vector<8x64xbf16> to vector<8x8xbf16>
    %95 = vector.extract_strided_slice %11 {offsets = [0, 40], sizes = [16, 8], strides = [1, 1]} : vector<16x64xbf16> to vector<16x8xbf16>
    %cst_29 = arith.constant dense<0.000000e+00> : vector<8x16xf32>
    %96 = tpu.matmul %94, %95, %cst_29 {dimension_numbers = #tpu.dot_dimension_numbers<[1], [1], [0], [0], [0, 0, 1, 0], [], []>} : vector<8x8xbf16>, vector<16x8xbf16>, vector<8x16xf32> -> vector<8x16xf32>
    %cst_30 = arith.constant dense<0xFF800000> : vector<8xf32>
    %97 = vector.multi_reduction <maximumf>, %96, %cst_30 [1] : vector<8x16xf32> to vector<8xf32>
    %98 = vector.shape_cast %97 : vector<8xf32> to vector<8x1xf32>
    %99 = vector.broadcast %98 : vector<8x1xf32> to vector<8x16xf32>
    %100 = arith.subf %96, %99 : vector<8x16xf32>
    %101 = math.exp %100 : vector<8x16xf32>
    %cst_31 = arith.constant dense<0.000000e+00> : vector<8xf32>
    %102 = vector.multi_reduction <add>, %101, %cst_31 [1] : vector<8x16xf32> to vector<8xf32>
    %103 = vector.shape_cast %102 : vector<8xf32> to vector<8x1xf32>
    %104 = tpu.reciprocal %103 : vector<8x1xf32> -> vector<8x1xf32>
    %105 = vector.broadcast %104 : vector<8x1xf32> to vector<8x16xf32>
    %106 = arith.mulf %101, %105 : vector<8x16xf32>
    %107 = arith.truncf %106 : vector<8x16xf32> to vector<8x16xbf16>
    %108 = vector.extract_strided_slice %13 {offsets = [0, 40], sizes = [16, 8], strides = [1, 1]} : vector<16x64xbf16> to vector<16x8xbf16>
    %cst_32 = arith.constant dense<0.000000e+00> : vector<8x8xf32>
    %109 = tpu.matmul %107, %108, %cst_32 {dimension_numbers = #tpu.dot_dimension_numbers<[1], [0], [0], [1], [0, 0, 1, 1], [], []>} : vector<8x16xbf16>, vector<16x8xbf16>, vector<8x8xf32> -> vector<8x8xf32>
    %110 = vector.extract_strided_slice %3 {offsets = [0, 48], sizes = [8, 8], strides = [1, 1]} : vector<8x64xbf16> to vector<8x8xbf16>
    %111 = vector.extract_strided_slice %11 {offsets = [0, 48], sizes = [16, 8], strides = [1, 1]} : vector<16x64xbf16> to vector<16x8xbf16>
    %cst_33 = arith.constant dense<0.000000e+00> : vector<8x16xf32>
    %112 = tpu.matmul %110, %111, %cst_33 {dimension_numbers = #tpu.dot_dimension_numbers<[1], [1], [0], [0], [0, 0, 1, 0], [], []>} : vector<8x8xbf16>, vector<16x8xbf16>, vector<8x16xf32> -> vector<8x16xf32>
    %cst_34 = arith.constant dense<0xFF800000> : vector<8xf32>
    %113 = vector.multi_reduction <maximumf>, %112, %cst_34 [1] : vector<8x16xf32> to vector<8xf32>
    %114 = vector.shape_cast %113 : vector<8xf32> to vector<8x1xf32>
    %115 = vector.broadcast %114 : vector<8x1xf32> to vector<8x16xf32>
    %116 = arith.subf %112, %115 : vector<8x16xf32>
    %117 = math.exp %116 : vector<8x16xf32>
    %cst_35 = arith.constant dense<0.000000e+00> : vector<8xf32>
    %118 = vector.multi_reduction <add>, %117, %cst_35 [1] : vector<8x16xf32> to vector<8xf32>
    %119 = vector.shape_cast %118 : vector<8xf32> to vector<8x1xf32>
    %120 = tpu.reciprocal %119 : vector<8x1xf32> -> vector<8x1xf32>
    %121 = vector.broadcast %120 : vector<8x1xf32> to vector<8x16xf32>
    %122 = arith.mulf %117, %121 : vector<8x16xf32>
    %123 = arith.truncf %122 : vector<8x16xf32> to vector<8x16xbf16>
    %124 = vector.extract_strided_slice %13 {offsets = [0, 48], sizes = [16, 8], strides = [1, 1]} : vector<16x64xbf16> to vector<16x8xbf16>
    %cst_36 = arith.constant dense<0.000000e+00> : vector<8x8xf32>
    %125 = tpu.matmul %123, %124, %cst_36 {dimension_numbers = #tpu.dot_dimension_numbers<[1], [0], [0], [1], [0, 0, 1, 1], [], []>} : vector<8x16xbf16>, vector<16x8xbf16>, vector<8x8xf32> -> vector<8x8xf32>
    %126 = vector.extract_strided_slice %3 {offsets = [0, 56], sizes = [8, 8], strides = [1, 1]} : vector<8x64xbf16> to vector<8x8xbf16>
    %127 = vector.extract_strided_slice %11 {offsets = [0, 56], sizes = [16, 8], strides = [1, 1]} : vector<16x64xbf16> to vector<16x8xbf16>
    %cst_37 = arith.constant dense<0.000000e+00> : vector<8x16xf32>
    %128 = tpu.matmul %126, %127, %cst_37 {dimension_numbers = #tpu.dot_dimension_numbers<[1], [1], [0], [0], [0, 0, 1, 0], [], []>} : vector<8x8xbf16>, vector<16x8xbf16>, vector<8x16xf32> -> vector<8x16xf32>
    %cst_38 = arith.constant dense<0xFF800000> : vector<8xf32>
    %129 = vector.multi_reduction <maximumf>, %128, %cst_38 [1] : vector<8x16xf32> to vector<8xf32>
    %130 = vector.shape_cast %129 : vector<8xf32> to vector<8x1xf32>
    %131 = vector.broadcast %130 : vector<8x1xf32> to vector<8x16xf32>
    %132 = arith.subf %128, %131 : vector<8x16xf32>
    %133 = math.exp %132 : vector<8x16xf32>
    %cst_39 = arith.constant dense<0.000000e+00> : vector<8xf32>
    %134 = vector.multi_reduction <add>, %133, %cst_39 [1] : vector<8x16xf32> to vector<8xf32>
    %135 = vector.shape_cast %134 : vector<8xf32> to vector<8x1xf32>
    %136 = tpu.reciprocal %135 : vector<8x1xf32> -> vector<8x1xf32>
    %137 = vector.broadcast %136 : vector<8x1xf32> to vector<8x16xf32>
    %138 = arith.mulf %133, %137 : vector<8x16xf32>
    %139 = arith.truncf %138 : vector<8x16xf32> to vector<8x16xbf16>
    %140 = vector.extract_strided_slice %13 {offsets = [0, 56], sizes = [16, 8], strides = [1, 1]} : vector<16x64xbf16> to vector<16x8xbf16>
    %cst_40 = arith.constant dense<0.000000e+00> : vector<8x8xf32>
    %141 = tpu.matmul %139, %140, %cst_40 {dimension_numbers = #tpu.dot_dimension_numbers<[1], [0], [0], [1], [0, 0, 1, 1], [], []>} : vector<8x16xbf16>, vector<16x8xbf16>, vector<8x8xf32> -> vector<8x8xf32>
    %142 = tpu.concatenate %29, %45, %61, %77, %93, %109, %125, %141 in 1 : vector<8x8xf32>, vector<8x8xf32>, vector<8x8xf32>, vector<8x8xf32>, vector<8x8xf32>, vector<8x8xf32>, vector<8x8xf32>, vector<8x8xf32> -> vector<8x64xf32>
    %143 = arith.truncf %142 : vector<8x64xf32> to vector<8x64xbf16>
    %c0_41 = arith.constant 0 : index
    %c0_42 = arith.constant 0 : index
    %144 = vector.load %arg5[%c0_41, %c0_42] : memref<64x64xbf16, #tpu.memory_space<vmem>>, vector<64x64xbf16>
    %cst_43 = arith.constant dense<0.000000e+00> : vector<8x64xf32>
    %145 = tpu.matmul %143, %144, %cst_43 {dimension_numbers = #tpu.dot_dimension_numbers<[1], [0], [0], [1], [0, 0, 1, 1], [], []>} : vector<8x64xbf16>, vector<64x64xbf16>, vector<8x64xf32> -> vector<8x64xf32>
    %c0_44 = arith.constant 0 : index
    %c0_45 = arith.constant 0 : index
    %146 = vector.load %arg6[%c0_44, %c0_45] : memref<1x64xbf16, #tpu.memory_space<vmem>>, vector<1x64xbf16>
    %147 = arith.extf %146 : vector<1x64xbf16> to vector<1x64xf32>
    %148 = vector.broadcast %147 : vector<1x64xf32> to vector<8x64xf32>
    %149 = arith.addf %145, %148 : vector<8x64xf32>
    %c0_46 = arith.constant 0 : index
    %c0_47 = arith.constant 0 : index
    %150 = vector.load %arg7[%c0_46, %c0_47] : memref<1x64xbf16, #tpu.memory_space<vmem>>, vector<1x64xbf16>
    %151 = arith.extf %150 : vector<1x64xbf16> to vector<1x64xf32>
    %c0_48 = arith.constant 0 : index
    %c0_49 = arith.constant 0 : index
    %152 = vector.load %arg8[%c0_48, %c0_49] : memref<1x64xbf16, #tpu.memory_space<vmem>>, vector<1x64xbf16>
    %153 = arith.extf %152 : vector<1x64xbf16> to vector<1x64xf32>
    %cst_50 = arith.constant dense<0.000000e+00> : vector<8xf32>
    %154 = vector.multi_reduction <add>, %149, %cst_50 [1] : vector<8x64xf32> to vector<8xf32>
    %155 = vector.shape_cast %154 : vector<8xf32> to vector<8x1xf32>
    %cst_51 = arith.constant 6.400000e+01 : f32
    %156 = vector.broadcast %cst_51 : f32 to vector<8x1xf32>
    %157 = arith.divf %155, %156 : vector<8x1xf32>
    %158 = vector.broadcast %157 : vector<8x1xf32> to vector<8x64xf32>
    %159 = arith.subf %149, %158 : vector<8x64xf32>
    %160 = arith.mulf %159, %159 : vector<8x64xf32>
    %cst_52 = arith.constant dense<0.000000e+00> : vector<8xf32>
    %161 = vector.multi_reduction <add>, %160, %cst_52 [1] : vector<8x64xf32> to vector<8xf32>
    %162 = vector.shape_cast %161 : vector<8xf32> to vector<8x1xf32>
    %cst_53 = arith.constant 6.400000e+01 : f32
    %163 = vector.broadcast %cst_53 : f32 to vector<8x1xf32>
    %164 = arith.divf %162, %163 : vector<8x1xf32>
    %165 = vector.broadcast %157 : vector<8x1xf32> to vector<8x64xf32>
    %166 = arith.subf %149, %165 : vector<8x64xf32>
    %cst_54 = arith.constant 9.99999974E-6 : f32
    %167 = vector.broadcast %cst_54 : f32 to vector<8x1xf32>
    %168 = arith.addf %164, %167 : vector<8x1xf32>
    %169 = math.rsqrt %168 : vector<8x1xf32>
    %170 = vector.broadcast %169 : vector<8x1xf32> to vector<8x64xf32>
    %171 = arith.mulf %166, %170 : vector<8x64xf32>
    %172 = vector.broadcast %151 : vector<1x64xf32> to vector<8x64xf32>
    %173 = arith.mulf %171, %172 : vector<8x64xf32>
    %174 = vector.broadcast %153 : vector<1x64xf32> to vector<8x64xf32>
    %175 = arith.addf %173, %174 : vector<8x64xf32>
    %176 = arith.truncf %175 : vector<8x64xf32> to vector<8x64xbf16>
    %c0_55 = arith.constant 0 : index
    %c0_56 = arith.constant 0 : index
    %177 = vector.load %arg9[%c0_55, %c0_56] : memref<64x256xbf16, #tpu.memory_space<vmem>>, vector<64x256xbf16>
    %cst_57 = arith.constant dense<0.000000e+00> : vector<8x256xf32>
    %178 = tpu.matmul %176, %177, %cst_57 {dimension_numbers = #tpu.dot_dimension_numbers<[1], [0], [0], [1], [0, 0, 1, 1], [], []>} : vector<8x64xbf16>, vector<64x256xbf16>, vector<8x256xf32> -> vector<8x256xf32>
    %c0_58 = arith.constant 0 : index
    %c0_59 = arith.constant 0 : index
    %179 = vector.load %arg10[%c0_58, %c0_59] : memref<1x256xbf16, #tpu.memory_space<vmem>>, vector<1x256xbf16>
    %180 = arith.extf %179 : vector<1x256xbf16> to vector<1x256xf32>
    %181 = vector.broadcast %180 : vector<1x256xf32> to vector<8x256xf32>
    %182 = arith.addf %178, %181 : vector<8x256xf32>
    %cst_60 = arith.constant 5.000000e-01 : f32
    %183 = vector.broadcast %cst_60 : f32 to vector<8x256xf32>
    %184 = arith.mulf %183, %182 : vector<8x256xf32>
    %cst_61 = arith.constant 4.471500e-02 : f32
    %185 = vector.broadcast %cst_61 : f32 to vector<8x256xf32>
    %186 = arith.mulf %185, %182 : vector<8x256xf32>
    %187 = arith.mulf %186, %182 : vector<8x256xf32>
    %188 = arith.mulf %187, %182 : vector<8x256xf32>
    %189 = arith.addf %182, %188 : vector<8x256xf32>
    %cst_62 = arith.constant 0.797884583 : f32
    %190 = vector.broadcast %cst_62 : f32 to vector<8x256xf32>
    %191 = arith.mulf %190, %189 : vector<8x256xf32>
    %192 = math.tanh %191 : vector<8x256xf32>
    %cst_63 = arith.constant 1.000000e+00 : f32
    %193 = vector.broadcast %cst_63 : f32 to vector<8x256xf32>
    %194 = arith.addf %193, %192 : vector<8x256xf32>
    %195 = arith.mulf %184, %194 : vector<8x256xf32>
    %196 = arith.truncf %195 : vector<8x256xf32> to vector<8x256xbf16>
    %c0_64 = arith.constant 0 : index
    %c0_65 = arith.constant 0 : index
    %197 = vector.load %arg11[%c0_64, %c0_65] : memref<256x64xbf16, #tpu.memory_space<vmem>>, vector<256x64xbf16>
    %cst_66 = arith.constant dense<0.000000e+00> : vector<8x64xf32>
    %198 = tpu.matmul %196, %197, %cst_66 {dimension_numbers = #tpu.dot_dimension_numbers<[1], [0], [0], [1], [0, 0, 1, 1], [], []>} : vector<8x256xbf16>, vector<256x64xbf16>, vector<8x64xf32> -> vector<8x64xf32>
    %c0_67 = arith.constant 0 : index
    %c0_68 = arith.constant 0 : index
    %199 = vector.load %arg12[%c0_67, %c0_68] : memref<1x64xbf16, #tpu.memory_space<vmem>>, vector<1x64xbf16>
    %200 = arith.extf %199 : vector<1x64xbf16> to vector<1x64xf32>
    %201 = vector.broadcast %200 : vector<1x64xf32> to vector<8x64xf32>
    %202 = arith.addf %198, %201 : vector<8x64xf32>
    %203 = arith.addf %202, %175 : vector<8x64xf32>
    %c0_69 = arith.constant 0 : index
    %c0_70 = arith.constant 0 : index
    %204 = vector.load %arg13[%c0_69, %c0_70] : memref<1x64xbf16, #tpu.memory_space<vmem>>, vector<1x64xbf16>
    %205 = arith.extf %204 : vector<1x64xbf16> to vector<1x64xf32>
    %c0_71 = arith.constant 0 : index
    %c0_72 = arith.constant 0 : index
    %206 = vector.load %arg14[%c0_71, %c0_72] : memref<1x64xbf16, #tpu.memory_space<vmem>>, vector<1x64xbf16>
    %207 = arith.extf %206 : vector<1x64xbf16> to vector<1x64xf32>
    %cst_73 = arith.constant dense<0.000000e+00> : vector<8xf32>
    %208 = vector.multi_reduction <add>, %203, %cst_73 [1] : vector<8x64xf32> to vector<8xf32>
    %209 = vector.shape_cast %208 : vector<8xf32> to vector<8x1xf32>
    %cst_74 = arith.constant 6.400000e+01 : f32
    %210 = vector.broadcast %cst_74 : f32 to vector<8x1xf32>
    %211 = arith.divf %209, %210 : vector<8x1xf32>
    %212 = vector.broadcast %211 : vector<8x1xf32> to vector<8x64xf32>
    %213 = arith.subf %203, %212 : vector<8x64xf32>
    %214 = arith.mulf %213, %213 : vector<8x64xf32>
    %cst_75 = arith.constant dense<0.000000e+00> : vector<8xf32>
    %215 = vector.multi_reduction <add>, %214, %cst_75 [1] : vector<8x64xf32> to vector<8xf32>
    %216 = vector.shape_cast %215 : vector<8xf32> to vector<8x1xf32>
    %cst_76 = arith.constant 6.400000e+01 : f32
    %217 = vector.broadcast %cst_76 : f32 to vector<8x1xf32>
    %218 = arith.divf %216, %217 : vector<8x1xf32>
    %219 = vector.broadcast %211 : vector<8x1xf32> to vector<8x64xf32>
    %220 = arith.subf %203, %219 : vector<8x64xf32>
    %cst_77 = arith.constant 9.99999974E-6 : f32
    %221 = vector.broadcast %cst_77 : f32 to vector<8x1xf32>
    %222 = arith.addf %218, %221 : vector<8x1xf32>
    %223 = math.rsqrt %222 : vector<8x1xf32>
    %224 = vector.broadcast %223 : vector<8x1xf32> to vector<8x64xf32>
    %225 = arith.mulf %220, %224 : vector<8x64xf32>
    %226 = vector.broadcast %205 : vector<1x64xf32> to vector<8x64xf32>
    %227 = arith.mulf %225, %226 : vector<8x64xf32>
    %228 = vector.broadcast %207 : vector<1x64xf32> to vector<8x64xf32>
    %229 = arith.addf %227, %228 : vector<8x64xf32>
    %230 = arith.truncf %229 : vector<8x64xf32> to vector<8x64xbf16>
    %c0_78 = arith.constant 0 : index
    %c0_79 = arith.constant 0 : index
    %c0_80 = arith.constant 0 : index
    %231 = vector.load %arg15[%c0_78, %c0_79, %c0_80] : memref<1x8x64xbf16, #tpu.memory_space<vmem>>, vector<1x8x64xbf16>
    %232 = vector.shape_cast %231 : vector<1x8x64xbf16> to vector<8x64xbf16>
    %233 = vector.shape_cast %230 : vector<8x64xbf16> to vector<1x8x64xbf16>
    tpu.vector_store %arg15[%c0_78, %c0_79, %c0_80], %233 {strides = array<i32>} : memref<1x8x64xbf16, #tpu.memory_space<vmem>>, vector<1x8x64xbf16>,
    return
  }
  func.func @transform_0(%arg0: i32) -> (i32, i32, i32) {
    %c0_i32 = arith.constant 0 : i32
    %c0_i32_0 = arith.constant 0 : i32
    %c0_i32_1 = arith.constant 0 : i32
    %c0_i32_2 = arith.constant 0 : i32
    return %c0_i32, %c0_i32_0, %c0_i32_1 : i32, i32, i32
  }
  func.func @transform_1(%arg0: i32) -> (i32, i32, i32) {
    %c0_i32 = arith.constant 0 : i32
    %c0_i32_0 = arith.constant 0 : i32
    %c0_i32_1 = arith.constant 0 : i32
    return %arg0, %c0_i32, %c0_i32_0 : i32, i32, i32
  }
  func.func @transform_2(%arg0: i32) -> (i32, i32) {
    %c0_i32 = arith.constant 0 : i32
    %c0_i32_0 = arith.constant 0 : i32
    %c0_i32_1 = arith.constant 0 : i32
    return %c0_i32, %c0_i32_0 : i32, i32
  }
  func.func @transform_3(%arg0: i32) -> (i32, i32) {
    %c0_i32 = arith.constant 0 : i32
    %c0_i32_0 = arith.constant 0 : i32
    %c0_i32_1 = arith.constant 0 : i32
    return %c0_i32, %c0_i32_0 : i32, i32
  }
  func.func @transform_4(%arg0: i32) -> (i32, i32) {
    %c0_i32 = arith.constant 0 : i32
    %c0_i32_0 = arith.constant 0 : i32
    %c0_i32_1 = arith.constant 0 : i32
    return %c0_i32, %c0_i32_0 : i32, i32
  }
  func.func @transform_5(%arg0: i32) -> (i32, i32) {
    %c0_i32 = arith.constant 0 : i32
    %c0_i32_0 = arith.constant 0 : i32
    %c0_i32_1 = arith.constant 0 : i32
    return %c0_i32, %c0_i32_0 : i32, i32
  }
  func.func @transform_6(%arg0: i32) -> (i32, i32) {
    %c0_i32 = arith.constant 0 : i32
    %c0_i32_0 = arith.constant 0 : i32
    %c0_i32_1 = arith.constant 0 : i32
    return %c0_i32, %c0_i32_0 : i32, i32
  }
  func.func @transform_7(%arg0: i32) -> (i32, i32) {
    %c0_i32 = arith.constant 0 : i32
    %c0_i32_0 = arith.constant 0 : i32
    %c0_i32_1 = arith.constant 0 : i32
    return %c0_i32, %c0_i32_0 : i32, i32
  }
  func.func @transform_8(%arg0: i32) -> (i32, i32) {
    %c0_i32 = arith.constant 0 : i32
    %c0_i32_0 = arith.constant 0 : i32
    %c0_i32_1 = arith.constant 0 : i32
    return %c0_i32, %c0_i32_0 : i32, i32
  }
  func.func @transform_9(%arg0: i32) -> (i32, i32) {
    %c0_i32 = arith.constant 0 : i32
    %c0_i32_0 = arith.constant 0 : i32
    %c0_i32_1 = arith.constant 0 : i32
    return %c0_i32, %c0_i32_0 : i32, i32
  }
  func.func @transform_10(%arg0: i32) -> (i32, i32) {
    %c0_i32 = arith.constant 0 : i32
    %c0_i32_0 = arith.constant 0 : i32
    %c0_i32_1 = arith.constant 0 : i32
    return %c0_i32, %c0_i32_0 : i32, i32
  }
  func.func @transform_11(%arg0: i32) -> (i32, i32) {
    %c0_i32 = arith.constant 0 : i32
    %c0_i32_0 = arith.constant 0 : i32
    %c0_i32_1 = arith.constant 0 : i32
    return %c0_i32, %c0_i32_0 : i32, i32
  }
  func.func @transform_12(%arg0: i32) -> (i32, i32) {
    %c0_i32 = arith.constant 0 : i32
    %c0_i32_0 = arith.constant 0 : i32
    %c0_i32_1 = arith.constant 0 : i32
    return %c0_i32, %c0_i32_0 : i32, i32
  }
  func.func @transform_13(%arg0: i32) -> (i32, i32) {
    %c0_i32 = arith.constant 0 : i32
    %c0_i32_0 = arith.constant 0 : i32
    %c0_i32_1 = arith.constant 0 : i32
    return %c0_i32, %c0_i32_0 : i32, i32
  }
  func.func @transform_14(%arg0: i32) -> (i32, i32, i32) {
    %c0_i32 = arith.constant 0 : i32
    %c0_i32_0 = arith.constant 0 : i32
    %c0_i32_1 = arith.constant 0 : i32
    return %arg0, %c0_i32, %c0_i32_0 : i32, i32, i32
  }
}

module attributes {stable_mosaic.version = 11 : i64} {
  func.func @_fused_block_kernel(%arg0: i32, %arg1: memref<1x1x64xbf16, #tpu.memory_space<vmem>>, %arg2: memref<1x16x64xbf16, #tpu.memory_space<vmem>>, %arg3: memref<64x64xbf16, #tpu.memory_space<vmem>>, %arg4: memref<1x64xbf16, #tpu.memory_space<vmem>>, %arg5: memref<64x128xbf16, #tpu.memory_space<vmem>>, %arg6: memref<1x128xbf16, #tpu.memory_space<vmem>>, %arg7: memref<64x64xbf16, #tpu.memory_space<vmem>>, %arg8: memref<1x64xbf16, #tpu.memory_space<vmem>>, %arg9: memref<1x64xbf16, #tpu.memory_space<vmem>>, %arg10: memref<1x64xbf16, #tpu.memory_space<vmem>>, %arg11: memref<64x256xbf16, #tpu.memory_space<vmem>>, %arg12: memref<1x256xbf16, #tpu.memory_space<vmem>>, %arg13: memref<256x64xbf16, #tpu.memory_space<vmem>>, %arg14: memref<1x64xbf16, #tpu.memory_space<vmem>>, %arg15: memref<1x64xbf16, #tpu.memory_space<vmem>>, %arg16: memref<1x64xbf16, #tpu.memory_space<vmem>>, %arg17: memref<1x1x64xbf16, #tpu.memory_space<vmem>>) attributes {dimension_semantics = [#tpu.dimension_semantics<parallel>], iteration_bounds = array<i64: 2>, scalar_prefetch = 0 : i64, scratch_operands = 0 : i64, tpu.core_type = #tpu.core_type<tc>, window_params = [{transform_indices = @transform_0, window_bounds = array<i64: 1, 1, 64>}, {transform_indices = @transform_1, window_bounds = array<i64: 1, 16, 64>}, {pipeline_mode = #tpu.pipeline_mode<synchronous>, transform_indices = @transform_2, window_bounds = array<i64: 64, 64>}, {pipeline_mode = #tpu.pipeline_mode<synchronous>, transform_indices = @transform_3, window_bounds = array<i64: 1, 64>}, {pipeline_mode = #tpu.pipeline_mode<synchronous>, transform_indices = @transform_4, window_bounds = array<i64: 64, 128>}, {pipeline_mode = #tpu.pipeline_mode<synchronous>, transform_indices = @transform_5, window_bounds = array<i64: 1, 128>}, {pipeline_mode = #tpu.pipeline_mode<synchronous>, transform_indices = @transform_6, window_bounds = array<i64: 64, 64>}, {pipeline_mode = #tpu.pipeline_mode<synchronous>, transform_indices = @transform_7, window_bounds = array<i64: 1, 64>}, {pipeline_mode = #tpu.pipeline_mode<synchronous>, transform_indices = @transform_8, window_bounds = array<i64: 1, 64>}, {pipeline_mode = #tpu.pipeline_mode<synchronous>, transform_indices = @transform_9, window_bounds = array<i64: 1, 64>}, {pipeline_mode = #tpu.pipeline_mode<synchronous>, transform_indices = @transform_10, window_bounds = array<i64: 64, 256>}, {pipeline_mode = #tpu.pipeline_mode<synchronous>, transform_indices = @transform_11, window_bounds = array<i64: 1, 256>}, {pipeline_mode = #tpu.pipeline_mode<synchronous>, transform_indices = @transform_12, window_bounds = array<i64: 256, 64>}, {pipeline_mode = #tpu.pipeline_mode<synchronous>, transform_indices = @transform_13, window_bounds = array<i64: 1, 64>}, {pipeline_mode = #tpu.pipeline_mode<synchronous>, transform_indices = @transform_14, window_bounds = array<i64: 1, 64>}, {pipeline_mode = #tpu.pipeline_mode<synchronous>, transform_indices = @transform_15, window_bounds = array<i64: 1, 64>}, {transform_indices = @transform_16, window_bounds = array<i64: 1, 1, 64>}]} {
    %c0 = arith.constant 0 : index
    %c0_0 = arith.constant 0 : index
    %c0_1 = arith.constant 0 : index
    %0 = vector.load %arg2[%c0, %c0_0, %c0_1] : memref<1x16x64xbf16, #tpu.memory_space<vmem>>, vector<1x16x64xbf16>
    %1 = vector.shape_cast %0 : vector<1x16x64xbf16> to vector<16x64xbf16>
    %c0_2 = arith.constant 0 : index
    %c0_3 = arith.constant 0 : index
    %c0_4 = arith.constant 0 : index
    %2 = vector.load %arg1[%c0_2, %c0_3, %c0_4] : memref<1x1x64xbf16, #tpu.memory_space<vmem>>, vector<1x1x64xbf16>
    %3 = vector.shape_cast %2 : vector<1x1x64xbf16> to vector<1x64xbf16>
    %c0_5 = arith.constant 0 : index
    %c0_6 = arith.constant 0 : index
    %4 = vector.load %arg3[%c0_5, %c0_6] : memref<64x64xbf16, #tpu.memory_space<vmem>>, vector<64x64xbf16>
    %cst = arith.constant dense<0.000000e+00> : vector<1x64xf32>
    %5 = tpu.matmul %3, %4, %cst {dimension_numbers = #tpu.dot_dimension_numbers<[1], [0], [0], [1], [0, 0, 1, 1], [], []>} : vector<1x64xbf16>, vector<64x64xbf16>, vector<1x64xf32> -> vector<1x64xf32>
    %c0_7 = arith.constant 0 : index
    %c0_8 = arith.constant 0 : index
    %6 = vector.load %arg4[%c0_7, %c0_8] : memref<1x64xbf16, #tpu.memory_space<vmem>>, vector<1x64xbf16>
    %7 = arith.extf %6 : vector<1x64xbf16> to vector<1x64xf32>
    %8 = arith.addf %5, %7 : vector<1x64xf32>
    %cst_9 = arith.constant 0.353553385 : f32
    %9 = vector.broadcast %cst_9 : f32 to vector<1x64xf32>
    %10 = arith.mulf %8, %9 : vector<1x64xf32>
    %11 = arith.truncf %10 : vector<1x64xf32> to vector<1x64xbf16>
    %c0_10 = arith.constant 0 : index
    %c0_11 = arith.constant 0 : index
    %12 = vector.load %arg5[%c0_10, %c0_11] : memref<64x128xbf16, #tpu.memory_space<vmem>>, vector<64x128xbf16>
    %cst_12 = arith.constant dense<0.000000e+00> : vector<16x128xf32>
    %13 = tpu.matmul %1, %12, %cst_12 {dimension_numbers = #tpu.dot_dimension_numbers<[1], [0], [0], [1], [0, 0, 1, 1], [], []>} : vector<16x64xbf16>, vector<64x128xbf16>, vector<16x128xf32> -> vector<16x128xf32>
    %c0_13 = arith.constant 0 : index
    %c0_14 = arith.constant 0 : index
    %14 = vector.load %arg6[%c0_13, %c0_14] : memref<1x128xbf16, #tpu.memory_space<vmem>>, vector<1x128xbf16>
    %15 = arith.extf %14 : vector<1x128xbf16> to vector<1x128xf32>
    %16 = vector.broadcast %15 : vector<1x128xf32> to vector<16x128xf32>
    %17 = arith.addf %13, %16 : vector<16x128xf32>
    %18 = vector.extract_strided_slice %17 {offsets = [0, 0], sizes = [16, 64], strides = [1, 1]} : vector<16x128xf32> to vector<16x64xf32>
    %19 = arith.truncf %18 : vector<16x64xf32> to vector<16x64xbf16>
    %20 = vector.extract_strided_slice %17 {offsets = [0, 64], sizes = [16, 64], strides = [1, 1]} : vector<16x128xf32> to vector<16x64xf32>
    %21 = arith.truncf %20 : vector<16x64xf32> to vector<16x64xbf16>
    %22 = vector.extract_strided_slice %11 {offsets = [0, 0], sizes = [1, 8], strides = [1, 1]} : vector<1x64xbf16> to vector<1x8xbf16>
    %23 = vector.extract_strided_slice %19 {offsets = [0, 0], sizes = [16, 8], strides = [1, 1]} : vector<16x64xbf16> to vector<16x8xbf16>
    %cst_15 = arith.constant dense<0.000000e+00> : vector<1x16xf32>
    %24 = tpu.matmul %22, %23, %cst_15 {dimension_numbers = #tpu.dot_dimension_numbers<[1], [1], [0], [0], [0, 0, 1, 0], [], []>} : vector<1x8xbf16>, vector<16x8xbf16>, vector<1x16xf32> -> vector<1x16xf32>
    %cst_16 = arith.constant dense<0xFF800000> : vector<1xf32>
    %25 = vector.multi_reduction <maximumf>, %24, %cst_16 [1] : vector<1x16xf32> to vector<1xf32>
    %26 = vector.shape_cast %25 : vector<1xf32> to vector<1x1xf32>
    %27 = vector.broadcast %26 : vector<1x1xf32> to vector<1x16xf32>
    %28 = arith.subf %24, %27 : vector<1x16xf32>
    %29 = math.exp %28 : vector<1x16xf32>
    %cst_17 = arith.constant dense<0.000000e+00> : vector<1xf32>
    %30 = vector.multi_reduction <add>, %29, %cst_17 [1] : vector<1x16xf32> to vector<1xf32>
    %31 = vector.shape_cast %30 : vector<1xf32> to vector<1x1xf32>
    %32 = tpu.reciprocal %31 : vector<1x1xf32> -> vector<1x1xf32>
    %33 = vector.broadcast %32 : vector<1x1xf32> to vector<1x16xf32>
    %34 = arith.mulf %29, %33 : vector<1x16xf32>
    %35 = arith.truncf %34 : vector<1x16xf32> to vector<1x16xbf16>
    %36 = vector.extract_strided_slice %21 {offsets = [0, 0], sizes = [16, 8], strides = [1, 1]} : vector<16x64xbf16> to vector<16x8xbf16>
    %cst_18 = arith.constant dense<0.000000e+00> : vector<1x8xf32>
    %37 = tpu.matmul %35, %36, %cst_18 {dimension_numbers = #tpu.dot_dimension_numbers<[1], [0], [0], [1], [0, 0, 1, 1], [], []>} : vector<1x16xbf16>, vector<16x8xbf16>, vector<1x8xf32> -> vector<1x8xf32>
    %38 = vector.extract_strided_slice %11 {offsets = [0, 8], sizes = [1, 8], strides = [1, 1]} : vector<1x64xbf16> to vector<1x8xbf16>
    %39 = vector.extract_strided_slice %19 {offsets = [0, 8], sizes = [16, 8], strides = [1, 1]} : vector<16x64xbf16> to vector<16x8xbf16>
    %cst_19 = arith.constant dense<0.000000e+00> : vector<1x16xf32>
    %40 = tpu.matmul %38, %39, %cst_19 {dimension_numbers = #tpu.dot_dimension_numbers<[1], [1], [0], [0], [0, 0, 1, 0], [], []>} : vector<1x8xbf16>, vector<16x8xbf16>, vector<1x16xf32> -> vector<1x16xf32>
    %cst_20 = arith.constant dense<0xFF800000> : vector<1xf32>
    %41 = vector.multi_reduction <maximumf>, %40, %cst_20 [1] : vector<1x16xf32> to vector<1xf32>
    %42 = vector.shape_cast %41 : vector<1xf32> to vector<1x1xf32>
    %43 = vector.broadcast %42 : vector<1x1xf32> to vector<1x16xf32>
    %44 = arith.subf %40, %43 : vector<1x16xf32>
    %45 = math.exp %44 : vector<1x16xf32>
    %cst_21 = arith.constant dense<0.000000e+00> : vector<1xf32>
    %46 = vector.multi_reduction <add>, %45, %cst_21 [1] : vector<1x16xf32> to vector<1xf32>
    %47 = vector.shape_cast %46 : vector<1xf32> to vector<1x1xf32>
    %48 = tpu.reciprocal %47 : vector<1x1xf32> -> vector<1x1xf32>
    %49 = vector.broadcast %48 : vector<1x1xf32> to vector<1x16xf32>
    %50 = arith.mulf %45, %49 : vector<1x16xf32>
    %51 = arith.truncf %50 : vector<1x16xf32> to vector<1x16xbf16>
    %52 = vector.extract_strided_slice %21 {offsets = [0, 8], sizes = [16, 8], strides = [1, 1]} : vector<16x64xbf16> to vector<16x8xbf16>
    %cst_22 = arith.constant dense<0.000000e+00> : vector<1x8xf32>
    %53 = tpu.matmul %51, %52, %cst_22 {dimension_numbers = #tpu.dot_dimension_numbers<[1], [0], [0], [1], [0, 0, 1, 1], [], []>} : vector<1x16xbf16>, vector<16x8xbf16>, vector<1x8xf32> -> vector<1x8xf32>
    %54 = vector.extract_strided_slice %11 {offsets = [0, 16], sizes = [1, 8], strides = [1, 1]} : vector<1x64xbf16> to vector<1x8xbf16>
    %55 = vector.extract_strided_slice %19 {offsets = [0, 16], sizes = [16, 8], strides = [1, 1]} : vector<16x64xbf16> to vector<16x8xbf16>
    %cst_23 = arith.constant dense<0.000000e+00> : vector<1x16xf32>
    %56 = tpu.matmul %54, %55, %cst_23 {dimension_numbers = #tpu.dot_dimension_numbers<[1], [1], [0], [0], [0, 0, 1, 0], [], []>} : vector<1x8xbf16>, vector<16x8xbf16>, vector<1x16xf32> -> vector<1x16xf32>
    %cst_24 = arith.constant dense<0xFF800000> : vector<1xf32>
    %57 = vector.multi_reduction <maximumf>, %56, %cst_24 [1] : vector<1x16xf32> to vector<1xf32>
    %58 = vector.shape_cast %57 : vector<1xf32> to vector<1x1xf32>
    %59 = vector.broadcast %58 : vector<1x1xf32> to vector<1x16xf32>
    %60 = arith.subf %56, %59 : vector<1x16xf32>
    %61 = math.exp %60 : vector<1x16xf32>
    %cst_25 = arith.constant dense<0.000000e+00> : vector<1xf32>
    %62 = vector.multi_reduction <add>, %61, %cst_25 [1] : vector<1x16xf32> to vector<1xf32>
    %63 = vector.shape_cast %62 : vector<1xf32> to vector<1x1xf32>
    %64 = tpu.reciprocal %63 : vector<1x1xf32> -> vector<1x1xf32>
    %65 = vector.broadcast %64 : vector<1x1xf32> to vector<1x16xf32>
    %66 = arith.mulf %61, %65 : vector<1x16xf32>
    %67 = arith.truncf %66 : vector<1x16xf32> to vector<1x16xbf16>
    %68 = vector.extract_strided_slice %21 {offsets = [0, 16], sizes = [16, 8], strides = [1, 1]} : vector<16x64xbf16> to vector<16x8xbf16>
    %cst_26 = arith.constant dense<0.000000e+00> : vector<1x8xf32>
    %69 = tpu.matmul %67, %68, %cst_26 {dimension_numbers = #tpu.dot_dimension_numbers<[1], [0], [0], [1], [0, 0, 1, 1], [], []>} : vector<1x16xbf16>, vector<16x8xbf16>, vector<1x8xf32> -> vector<1x8xf32>
    %70 = vector.extract_strided_slice %11 {offsets = [0, 24], sizes = [1, 8], strides = [1, 1]} : vector<1x64xbf16> to vector<1x8xbf16>
    %71 = vector.extract_strided_slice %19 {offsets = [0, 24], sizes = [16, 8], strides = [1, 1]} : vector<16x64xbf16> to vector<16x8xbf16>
    %cst_27 = arith.constant dense<0.000000e+00> : vector<1x16xf32>
    %72 = tpu.matmul %70, %71, %cst_27 {dimension_numbers = #tpu.dot_dimension_numbers<[1], [1], [0], [0], [0, 0, 1, 0], [], []>} : vector<1x8xbf16>, vector<16x8xbf16>, vector<1x16xf32> -> vector<1x16xf32>
    %cst_28 = arith.constant dense<0xFF800000> : vector<1xf32>
    %73 = vector.multi_reduction <maximumf>, %72, %cst_28 [1] : vector<1x16xf32> to vector<1xf32>
    %74 = vector.shape_cast %73 : vector<1xf32> to vector<1x1xf32>
    %75 = vector.broadcast %74 : vector<1x1xf32> to vector<1x16xf32>
    %76 = arith.subf %72, %75 : vector<1x16xf32>
    %77 = math.exp %76 : vector<1x16xf32>
    %cst_29 = arith.constant dense<0.000000e+00> : vector<1xf32>
    %78 = vector.multi_reduction <add>, %77, %cst_29 [1] : vector<1x16xf32> to vector<1xf32>
    %79 = vector.shape_cast %78 : vector<1xf32> to vector<1x1xf32>
    %80 = tpu.reciprocal %79 : vector<1x1xf32> -> vector<1x1xf32>
    %81 = vector.broadcast %80 : vector<1x1xf32> to vector<1x16xf32>
    %82 = arith.mulf %77, %81 : vector<1x16xf32>
    %83 = arith.truncf %82 : vector<1x16xf32> to vector<1x16xbf16>
    %84 = vector.extract_strided_slice %21 {offsets = [0, 24], sizes = [16, 8], strides = [1, 1]} : vector<16x64xbf16> to vector<16x8xbf16>
    %cst_30 = arith.constant dense<0.000000e+00> : vector<1x8xf32>
    %85 = tpu.matmul %83, %84, %cst_30 {dimension_numbers = #tpu.dot_dimension_numbers<[1], [0], [0], [1], [0, 0, 1, 1], [], []>} : vector<1x16xbf16>, vector<16x8xbf16>, vector<1x8xf32> -> vector<1x8xf32>
    %86 = vector.extract_strided_slice %11 {offsets = [0, 32], sizes = [1, 8], strides = [1, 1]} : vector<1x64xbf16> to vector<1x8xbf16>
    %87 = vector.extract_strided_slice %19 {offsets = [0, 32], sizes = [16, 8], strides = [1, 1]} : vector<16x64xbf16> to vector<16x8xbf16>
    %cst_31 = arith.constant dense<0.000000e+00> : vector<1x16xf32>
    %88 = tpu.matmul %86, %87, %cst_31 {dimension_numbers = #tpu.dot_dimension_numbers<[1], [1], [0], [0], [0, 0, 1, 0], [], []>} : vector<1x8xbf16>, vector<16x8xbf16>, vector<1x16xf32> -> vector<1x16xf32>
    %cst_32 = arith.constant dense<0xFF800000> : vector<1xf32>
    %89 = vector.multi_reduction <maximumf>, %88, %cst_32 [1] : vector<1x16xf32> to vector<1xf32>
    %90 = vector.shape_cast %89 : vector<1xf32> to vector<1x1xf32>
    %91 = vector.broadcast %90 : vector<1x1xf32> to vector<1x16xf32>
    %92 = arith.subf %88, %91 : vector<1x16xf32>
    %93 = math.exp %92 : vector<1x16xf32>
    %cst_33 = arith.constant dense<0.000000e+00> : vector<1xf32>
    %94 = vector.multi_reduction <add>, %93, %cst_33 [1] : vector<1x16xf32> to vector<1xf32>
    %95 = vector.shape_cast %94 : vector<1xf32> to vector<1x1xf32>
    %96 = tpu.reciprocal %95 : vector<1x1xf32> -> vector<1x1xf32>
    %97 = vector.broadcast %96 : vector<1x1xf32> to vector<1x16xf32>
    %98 = arith.mulf %93, %97 : vector<1x16xf32>
    %99 = arith.truncf %98 : vector<1x16xf32> to vector<1x16xbf16>
    %100 = vector.extract_strided_slice %21 {offsets = [0, 32], sizes = [16, 8], strides = [1, 1]} : vector<16x64xbf16> to vector<16x8xbf16>
    %cst_34 = arith.constant dense<0.000000e+00> : vector<1x8xf32>
    %101 = tpu.matmul %99, %100, %cst_34 {dimension_numbers = #tpu.dot_dimension_numbers<[1], [0], [0], [1], [0, 0, 1, 1], [], []>} : vector<1x16xbf16>, vector<16x8xbf16>, vector<1x8xf32> -> vector<1x8xf32>
    %102 = vector.extract_strided_slice %11 {offsets = [0, 40], sizes = [1, 8], strides = [1, 1]} : vector<1x64xbf16> to vector<1x8xbf16>
    %103 = vector.extract_strided_slice %19 {offsets = [0, 40], sizes = [16, 8], strides = [1, 1]} : vector<16x64xbf16> to vector<16x8xbf16>
    %cst_35 = arith.constant dense<0.000000e+00> : vector<1x16xf32>
    %104 = tpu.matmul %102, %103, %cst_35 {dimension_numbers = #tpu.dot_dimension_numbers<[1], [1], [0], [0], [0, 0, 1, 0], [], []>} : vector<1x8xbf16>, vector<16x8xbf16>, vector<1x16xf32> -> vector<1x16xf32>
    %cst_36 = arith.constant dense<0xFF800000> : vector<1xf32>
    %105 = vector.multi_reduction <maximumf>, %104, %cst_36 [1] : vector<1x16xf32> to vector<1xf32>
    %106 = vector.shape_cast %105 : vector<1xf32> to vector<1x1xf32>
    %107 = vector.broadcast %106 : vector<1x1xf32> to vector<1x16xf32>
    %108 = arith.subf %104, %107 : vector<1x16xf32>
    %109 = math.exp %108 : vector<1x16xf32>
    %cst_37 = arith.constant dense<0.000000e+00> : vector<1xf32>
    %110 = vector.multi_reduction <add>, %109, %cst_37 [1] : vector<1x16xf32> to vector<1xf32>
    %111 = vector.shape_cast %110 : vector<1xf32> to vector<1x1xf32>
    %112 = tpu.reciprocal %111 : vector<1x1xf32> -> vector<1x1xf32>
    %113 = vector.broadcast %112 : vector<1x1xf32> to vector<1x16xf32>
    %114 = arith.mulf %109, %113 : vector<1x16xf32>
    %115 = arith.truncf %114 : vector<1x16xf32> to vector<1x16xbf16>
    %116 = vector.extract_strided_slice %21 {offsets = [0, 40], sizes = [16, 8], strides = [1, 1]} : vector<16x64xbf16> to vector<16x8xbf16>
    %cst_38 = arith.constant dense<0.000000e+00> : vector<1x8xf32>
    %117 = tpu.matmul %115, %116, %cst_38 {dimension_numbers = #tpu.dot_dimension_numbers<[1], [0], [0], [1], [0, 0, 1, 1], [], []>} : vector<1x16xbf16>, vector<16x8xbf16>, vector<1x8xf32> -> vector<1x8xf32>
    %118 = vector.extract_strided_slice %11 {offsets = [0, 48], sizes = [1, 8], strides = [1, 1]} : vector<1x64xbf16> to vector<1x8xbf16>
    %119 = vector.extract_strided_slice %19 {offsets = [0, 48], sizes = [16, 8], strides = [1, 1]} : vector<16x64xbf16> to vector<16x8xbf16>
    %cst_39 = arith.constant dense<0.000000e+00> : vector<1x16xf32>
    %120 = tpu.matmul %118, %119, %cst_39 {dimension_numbers = #tpu.dot_dimension_numbers<[1], [1], [0], [0], [0, 0, 1, 0], [], []>} : vector<1x8xbf16>, vector<16x8xbf16>, vector<1x16xf32> -> vector<1x16xf32>
    %cst_40 = arith.constant dense<0xFF800000> : vector<1xf32>
    %121 = vector.multi_reduction <maximumf>, %120, %cst_40 [1] : vector<1x16xf32> to vector<1xf32>
    %122 = vector.shape_cast %121 : vector<1xf32> to vector<1x1xf32>
    %123 = vector.broadcast %122 : vector<1x1xf32> to vector<1x16xf32>
    %124 = arith.subf %120, %123 : vector<1x16xf32>
    %125 = math.exp %124 : vector<1x16xf32>
    %cst_41 = arith.constant dense<0.000000e+00> : vector<1xf32>
    %126 = vector.multi_reduction <add>, %125, %cst_41 [1] : vector<1x16xf32> to vector<1xf32>
    %127 = vector.shape_cast %126 : vector<1xf32> to vector<1x1xf32>
    %128 = tpu.reciprocal %127 : vector<1x1xf32> -> vector<1x1xf32>
    %129 = vector.broadcast %128 : vector<1x1xf32> to vector<1x16xf32>
    %130 = arith.mulf %125, %129 : vector<1x16xf32>
    %131 = arith.truncf %130 : vector<1x16xf32> to vector<1x16xbf16>
    %132 = vector.extract_strided_slice %21 {offsets = [0, 48], sizes = [16, 8], strides = [1, 1]} : vector<16x64xbf16> to vector<16x8xbf16>
    %cst_42 = arith.constant dense<0.000000e+00> : vector<1x8xf32>
    %133 = tpu.matmul %131, %132, %cst_42 {dimension_numbers = #tpu.dot_dimension_numbers<[1], [0], [0], [1], [0, 0, 1, 1], [], []>} : vector<1x16xbf16>, vector<16x8xbf16>, vector<1x8xf32> -> vector<1x8xf32>
    %134 = vector.extract_strided_slice %11 {offsets = [0, 56], sizes = [1, 8], strides = [1, 1]} : vector<1x64xbf16> to vector<1x8xbf16>
    %135 = vector.extract_strided_slice %19 {offsets = [0, 56], sizes = [16, 8], strides = [1, 1]} : vector<16x64xbf16> to vector<16x8xbf16>
    %cst_43 = arith.constant dense<0.000000e+00> : vector<1x16xf32>
    %136 = tpu.matmul %134, %135, %cst_43 {dimension_numbers = #tpu.dot_dimension_numbers<[1], [1], [0], [0], [0, 0, 1, 0], [], []>} : vector<1x8xbf16>, vector<16x8xbf16>, vector<1x16xf32> -> vector<1x16xf32>
    %cst_44 = arith.constant dense<0xFF800000> : vector<1xf32>
    %137 = vector.multi_reduction <maximumf>, %136, %cst_44 [1] : vector<1x16xf32> to vector<1xf32>
    %138 = vector.shape_cast %137 : vector<1xf32> to vector<1x1xf32>
    %139 = vector.broadcast %138 : vector<1x1xf32> to vector<1x16xf32>
    %140 = arith.subf %136, %139 : vector<1x16xf32>
    %141 = math.exp %140 : vector<1x16xf32>
    %cst_45 = arith.constant dense<0.000000e+00> : vector<1xf32>
    %142 = vector.multi_reduction <add>, %141, %cst_45 [1] : vector<1x16xf32> to vector<1xf32>
    %143 = vector.shape_cast %142 : vector<1xf32> to vector<1x1xf32>
    %144 = tpu.reciprocal %143 : vector<1x1xf32> -> vector<1x1xf32>
    %145 = vector.broadcast %144 : vector<1x1xf32> to vector<1x16xf32>
    %146 = arith.mulf %141, %145 : vector<1x16xf32>
    %147 = arith.truncf %146 : vector<1x16xf32> to vector<1x16xbf16>
    %148 = vector.extract_strided_slice %21 {offsets = [0, 56], sizes = [16, 8], strides = [1, 1]} : vector<16x64xbf16> to vector<16x8xbf16>
    %cst_46 = arith.constant dense<0.000000e+00> : vector<1x8xf32>
    %149 = tpu.matmul %147, %148, %cst_46 {dimension_numbers = #tpu.dot_dimension_numbers<[1], [0], [0], [1], [0, 0, 1, 1], [], []>} : vector<1x16xbf16>, vector<16x8xbf16>, vector<1x8xf32> -> vector<1x8xf32>
    %150 = tpu.concatenate %37, %53, %69, %85, %101, %117, %133, %149 in 1 : vector<1x8xf32>, vector<1x8xf32>, vector<1x8xf32>, vector<1x8xf32>, vector<1x8xf32>, vector<1x8xf32>, vector<1x8xf32>, vector<1x8xf32> -> vector<1x64xf32>
    %151 = arith.truncf %150 : vector<1x64xf32> to vector<1x64xbf16>
    %c0_47 = arith.constant 0 : index
    %c0_48 = arith.constant 0 : index
    %152 = vector.load %arg7[%c0_47, %c0_48] : memref<64x64xbf16, #tpu.memory_space<vmem>>, vector<64x64xbf16>
    %cst_49 = arith.constant dense<0.000000e+00> : vector<1x64xf32>
    %153 = tpu.matmul %151, %152, %cst_49 {dimension_numbers = #tpu.dot_dimension_numbers<[1], [0], [0], [1], [0, 0, 1, 1], [], []>} : vector<1x64xbf16>, vector<64x64xbf16>, vector<1x64xf32> -> vector<1x64xf32>
    %c0_50 = arith.constant 0 : index
    %c0_51 = arith.constant 0 : index
    %154 = vector.load %arg8[%c0_50, %c0_51] : memref<1x64xbf16, #tpu.memory_space<vmem>>, vector<1x64xbf16>
    %155 = arith.extf %154 : vector<1x64xbf16> to vector<1x64xf32>
    %156 = arith.addf %153, %155 : vector<1x64xf32>
    %157 = arith.extf %3 : vector<1x64xbf16> to vector<1x64xf32>
    %158 = arith.addf %156, %157 : vector<1x64xf32>
    %c0_52 = arith.constant 0 : index
    %c0_53 = arith.constant 0 : index
    %159 = vector.load %arg9[%c0_52, %c0_53] : memref<1x64xbf16, #tpu.memory_space<vmem>>, vector<1x64xbf16>
    %160 = arith.extf %159 : vector<1x64xbf16> to vector<1x64xf32>
    %c0_54 = arith.constant 0 : index
    %c0_55 = arith.constant 0 : index
    %161 = vector.load %arg10[%c0_54, %c0_55] : memref<1x64xbf16, #tpu.memory_space<vmem>>, vector<1x64xbf16>
    %162 = arith.extf %161 : vector<1x64xbf16> to vector<1x64xf32>
    %cst_56 = arith.constant dense<0.000000e+00> : vector<1xf32>
    %163 = vector.multi_reduction <add>, %158, %cst_56 [1] : vector<1x64xf32> to vector<1xf32>
    %164 = vector.shape_cast %163 : vector<1xf32> to vector<1x1xf32>
    %cst_57 = arith.constant 6.400000e+01 : f32
    %165 = vector.broadcast %cst_57 : f32 to vector<1x1xf32>
    %166 = arith.divf %164, %165 : vector<1x1xf32>
    %167 = vector.broadcast %166 : vector<1x1xf32> to vector<1x64xf32>
    %168 = arith.subf %158, %167 : vector<1x64xf32>
    %169 = arith.mulf %168, %168 : vector<1x64xf32>
    %cst_58 = arith.constant dense<0.000000e+00> : vector<1xf32>
    %170 = vector.multi_reduction <add>, %169, %cst_58 [1] : vector<1x64xf32> to vector<1xf32>
    %171 = vector.shape_cast %170 : vector<1xf32> to vector<1x1xf32>
    %cst_59 = arith.constant 6.400000e+01 : f32
    %172 = vector.broadcast %cst_59 : f32 to vector<1x1xf32>
    %173 = arith.divf %171, %172 : vector<1x1xf32>
    %174 = vector.broadcast %166 : vector<1x1xf32> to vector<1x64xf32>
    %175 = arith.subf %158, %174 : vector<1x64xf32>
    %cst_60 = arith.constant 9.99999974E-6 : f32
    %176 = vector.broadcast %cst_60 : f32 to vector<1x1xf32>
    %177 = arith.addf %173, %176 : vector<1x1xf32>
    %178 = math.rsqrt %177 : vector<1x1xf32>
    %179 = vector.broadcast %178 : vector<1x1xf32> to vector<1x64xf32>
    %180 = arith.mulf %175, %179 : vector<1x64xf32>
    %181 = arith.mulf %180, %160 : vector<1x64xf32>
    %182 = arith.addf %181, %162 : vector<1x64xf32>
    %183 = arith.truncf %182 : vector<1x64xf32> to vector<1x64xbf16>
    %c0_61 = arith.constant 0 : index
    %c0_62 = arith.constant 0 : index
    %184 = vector.load %arg11[%c0_61, %c0_62] : memref<64x256xbf16, #tpu.memory_space<vmem>>, vector<64x256xbf16>
    %cst_63 = arith.constant dense<0.000000e+00> : vector<1x256xf32>
    %185 = tpu.matmul %183, %184, %cst_63 {dimension_numbers = #tpu.dot_dimension_numbers<[1], [0], [0], [1], [0, 0, 1, 1], [], []>} : vector<1x64xbf16>, vector<64x256xbf16>, vector<1x256xf32> -> vector<1x256xf32>
    %c0_64 = arith.constant 0 : index
    %c0_65 = arith.constant 0 : index
    %186 = vector.load %arg12[%c0_64, %c0_65] : memref<1x256xbf16, #tpu.memory_space<vmem>>, vector<1x256xbf16>
    %187 = arith.extf %186 : vector<1x256xbf16> to vector<1x256xf32>
    %188 = arith.addf %185, %187 : vector<1x256xf32>
    %cst_66 = arith.constant 5.000000e-01 : f32
    %189 = vector.broadcast %cst_66 : f32 to vector<1x256xf32>
    %190 = arith.mulf %189, %188 : vector<1x256xf32>
    %cst_67 = arith.constant 4.471500e-02 : f32
    %191 = vector.broadcast %cst_67 : f32 to vector<1x256xf32>
    %192 = arith.mulf %191, %188 : vector<1x256xf32>
    %193 = arith.mulf %192, %188 : vector<1x256xf32>
    %194 = arith.mulf %193, %188 : vector<1x256xf32>
    %195 = arith.addf %188, %194 : vector<1x256xf32>
    %cst_68 = arith.constant 0.797884583 : f32
    %196 = vector.broadcast %cst_68 : f32 to vector<1x256xf32>
    %197 = arith.mulf %196, %195 : vector<1x256xf32>
    %198 = math.tanh %197 : vector<1x256xf32>
    %cst_69 = arith.constant 1.000000e+00 : f32
    %199 = vector.broadcast %cst_69 : f32 to vector<1x256xf32>
    %200 = arith.addf %199, %198 : vector<1x256xf32>
    %201 = arith.mulf %190, %200 : vector<1x256xf32>
    %202 = arith.truncf %201 : vector<1x256xf32> to vector<1x256xbf16>
    %c0_70 = arith.constant 0 : index
    %c0_71 = arith.constant 0 : index
    %203 = vector.load %arg13[%c0_70, %c0_71] : memref<256x64xbf16, #tpu.memory_space<vmem>>, vector<256x64xbf16>
    %cst_72 = arith.constant dense<0.000000e+00> : vector<1x64xf32>
    %204 = tpu.matmul %202, %203, %cst_72 {dimension_numbers = #tpu.dot_dimension_numbers<[1], [0], [0], [1], [0, 0, 1, 1], [], []>} : vector<1x256xbf16>, vector<256x64xbf16>, vector<1x64xf32> -> vector<1x64xf32>
    %c0_73 = arith.constant 0 : index
    %c0_74 = arith.constant 0 : index
    %205 = vector.load %arg14[%c0_73, %c0_74] : memref<1x64xbf16, #tpu.memory_space<vmem>>, vector<1x64xbf16>
    %206 = arith.extf %205 : vector<1x64xbf16> to vector<1x64xf32>
    %207 = arith.addf %204, %206 : vector<1x64xf32>
    %208 = arith.addf %207, %182 : vector<1x64xf32>
    %c0_75 = arith.constant 0 : index
    %c0_76 = arith.constant 0 : index
    %209 = vector.load %arg15[%c0_75, %c0_76] : memref<1x64xbf16, #tpu.memory_space<vmem>>, vector<1x64xbf16>
    %210 = arith.extf %209 : vector<1x64xbf16> to vector<1x64xf32>
    %c0_77 = arith.constant 0 : index
    %c0_78 = arith.constant 0 : index
    %211 = vector.load %arg16[%c0_77, %c0_78] : memref<1x64xbf16, #tpu.memory_space<vmem>>, vector<1x64xbf16>
    %212 = arith.extf %211 : vector<1x64xbf16> to vector<1x64xf32>
    %cst_79 = arith.constant dense<0.000000e+00> : vector<1xf32>
    %213 = vector.multi_reduction <add>, %208, %cst_79 [1] : vector<1x64xf32> to vector<1xf32>
    %214 = vector.shape_cast %213 : vector<1xf32> to vector<1x1xf32>
    %cst_80 = arith.constant 6.400000e+01 : f32
    %215 = vector.broadcast %cst_80 : f32 to vector<1x1xf32>
    %216 = arith.divf %214, %215 : vector<1x1xf32>
    %217 = vector.broadcast %216 : vector<1x1xf32> to vector<1x64xf32>
    %218 = arith.subf %208, %217 : vector<1x64xf32>
    %219 = arith.mulf %218, %218 : vector<1x64xf32>
    %cst_81 = arith.constant dense<0.000000e+00> : vector<1xf32>
    %220 = vector.multi_reduction <add>, %219, %cst_81 [1] : vector<1x64xf32> to vector<1xf32>
    %221 = vector.shape_cast %220 : vector<1xf32> to vector<1x1xf32>
    %cst_82 = arith.constant 6.400000e+01 : f32
    %222 = vector.broadcast %cst_82 : f32 to vector<1x1xf32>
    %223 = arith.divf %221, %222 : vector<1x1xf32>
    %224 = vector.broadcast %216 : vector<1x1xf32> to vector<1x64xf32>
    %225 = arith.subf %208, %224 : vector<1x64xf32>
    %cst_83 = arith.constant 9.99999974E-6 : f32
    %226 = vector.broadcast %cst_83 : f32 to vector<1x1xf32>
    %227 = arith.addf %223, %226 : vector<1x1xf32>
    %228 = math.rsqrt %227 : vector<1x1xf32>
    %229 = vector.broadcast %228 : vector<1x1xf32> to vector<1x64xf32>
    %230 = arith.mulf %225, %229 : vector<1x64xf32>
    %231 = arith.mulf %230, %210 : vector<1x64xf32>
    %232 = arith.addf %231, %212 : vector<1x64xf32>
    %233 = arith.truncf %232 : vector<1x64xf32> to vector<1x64xbf16>
    %c0_84 = arith.constant 0 : index
    %c0_85 = arith.constant 0 : index
    %c0_86 = arith.constant 0 : index
    %234 = vector.load %arg17[%c0_84, %c0_85, %c0_86] : memref<1x1x64xbf16, #tpu.memory_space<vmem>>, vector<1x1x64xbf16>
    %235 = vector.shape_cast %234 : vector<1x1x64xbf16> to vector<1x64xbf16>
    %236 = vector.shape_cast %233 : vector<1x64xbf16> to vector<1x1x64xbf16>
    tpu.vector_store %arg17[%c0_84, %c0_85, %c0_86], %236 {strides = array<i32>} : memref<1x1x64xbf16, #tpu.memory_space<vmem>>, vector<1x1x64xbf16>,
    return
  }
  func.func @transform_0(%arg0: i32) -> (i32, i32, i32) {
    %c0_i32 = arith.constant 0 : i32
    %c0_i32_0 = arith.constant 0 : i32
    %c0_i32_1 = arith.constant 0 : i32
    return %arg0, %c0_i32, %c0_i32_0 : i32, i32, i32
  }
  func.func @transform_1(%arg0: i32) -> (i32, i32, i32) {
    %c0_i32 = arith.constant 0 : i32
    %c0_i32_0 = arith.constant 0 : i32
    %c0_i32_1 = arith.constant 0 : i32
    return %arg0, %c0_i32, %c0_i32_0 : i32, i32, i32
  }
  func.func @transform_2(%arg0: i32) -> (i32, i32) {
    %c0_i32 = arith.constant 0 : i32
    %c0_i32_0 = arith.constant 0 : i32
    %c0_i32_1 = arith.constant 0 : i32
    return %c0_i32, %c0_i32_0 : i32, i32
  }
  func.func @transform_3(%arg0: i32) -> (i32, i32) {
    %c0_i32 = arith.constant 0 : i32
    %c0_i32_0 = arith.constant 0 : i32
    %c0_i32_1 = arith.constant 0 : i32
    return %c0_i32, %c0_i32_0 : i32, i32
  }
  func.func @transform_4(%arg0: i32) -> (i32, i32) {
    %c0_i32 = arith.constant 0 : i32
    %c0_i32_0 = arith.constant 0 : i32
    %c0_i32_1 = arith.constant 0 : i32
    return %c0_i32, %c0_i32_0 : i32, i32
  }
  func.func @transform_5(%arg0: i32) -> (i32, i32) {
    %c0_i32 = arith.constant 0 : i32
    %c0_i32_0 = arith.constant 0 : i32
    %c0_i32_1 = arith.constant 0 : i32
    return %c0_i32, %c0_i32_0 : i32, i32
  }
  func.func @transform_6(%arg0: i32) -> (i32, i32) {
    %c0_i32 = arith.constant 0 : i32
    %c0_i32_0 = arith.constant 0 : i32
    %c0_i32_1 = arith.constant 0 : i32
    return %c0_i32, %c0_i32_0 : i32, i32
  }
  func.func @transform_7(%arg0: i32) -> (i32, i32) {
    %c0_i32 = arith.constant 0 : i32
    %c0_i32_0 = arith.constant 0 : i32
    %c0_i32_1 = arith.constant 0 : i32
    return %c0_i32, %c0_i32_0 : i32, i32
  }
  func.func @transform_8(%arg0: i32) -> (i32, i32) {
    %c0_i32 = arith.constant 0 : i32
    %c0_i32_0 = arith.constant 0 : i32
    %c0_i32_1 = arith.constant 0 : i32
    return %c0_i32, %c0_i32_0 : i32, i32
  }
  func.func @transform_9(%arg0: i32) -> (i32, i32) {
    %c0_i32 = arith.constant 0 : i32
    %c0_i32_0 = arith.constant 0 : i32
    %c0_i32_1 = arith.constant 0 : i32
    return %c0_i32, %c0_i32_0 : i32, i32
  }
  func.func @transform_10(%arg0: i32) -> (i32, i32) {
    %c0_i32 = arith.constant 0 : i32
    %c0_i32_0 = arith.constant 0 : i32
    %c0_i32_1 = arith.constant 0 : i32
    return %c0_i32, %c0_i32_0 : i32, i32
  }
  func.func @transform_11(%arg0: i32) -> (i32, i32) {
    %c0_i32 = arith.constant 0 : i32
    %c0_i32_0 = arith.constant 0 : i32
    %c0_i32_1 = arith.constant 0 : i32
    return %c0_i32, %c0_i32_0 : i32, i32
  }
  func.func @transform_12(%arg0: i32) -> (i32, i32) {
    %c0_i32 = arith.constant 0 : i32
    %c0_i32_0 = arith.constant 0 : i32
    %c0_i32_1 = arith.constant 0 : i32
    return %c0_i32, %c0_i32_0 : i32, i32
  }
  func.func @transform_13(%arg0: i32) -> (i32, i32) {
    %c0_i32 = arith.constant 0 : i32
    %c0_i32_0 = arith.constant 0 : i32
    %c0_i32_1 = arith.constant 0 : i32
    return %c0_i32, %c0_i32_0 : i32, i32
  }
  func.func @transform_14(%arg0: i32) -> (i32, i32) {
    %c0_i32 = arith.constant 0 : i32
    %c0_i32_0 = arith.constant 0 : i32
    %c0_i32_1 = arith.constant 0 : i32
    return %c0_i32, %c0_i32_0 : i32, i32
  }
  func.func @transform_15(%arg0: i32) -> (i32, i32) {
    %c0_i32 = arith.constant 0 : i32
    %c0_i32_0 = arith.constant 0 : i32
    %c0_i32_1 = arith.constant 0 : i32
    return %c0_i32, %c0_i32_0 : i32, i32
  }
  func.func @transform_16(%arg0: i32) -> (i32, i32, i32) {
    %c0_i32 = arith.constant 0 : i32
    %c0_i32_0 = arith.constant 0 : i32
    %c0_i32_1 = arith.constant 0 : i32
    return %arg0, %c0_i32, %c0_i32_0 : i32, i32, i32
  }
}

module attributes {stable_mosaic.version = 11 : i64} {
  func.func @_fused_block_kernel(%arg0: i32, %arg1: memref<1x1x64xbf16, #tpu.memory_space<vmem>>, %arg2: memref<1x8x64xbf16, #tpu.memory_space<vmem>>, %arg3: memref<64x64xbf16, #tpu.memory_space<vmem>>, %arg4: memref<1x64xbf16, #tpu.memory_space<vmem>>, %arg5: memref<64x128xbf16, #tpu.memory_space<vmem>>, %arg6: memref<1x128xbf16, #tpu.memory_space<vmem>>, %arg7: memref<64x64xbf16, #tpu.memory_space<vmem>>, %arg8: memref<1x64xbf16, #tpu.memory_space<vmem>>, %arg9: memref<1x64xbf16, #tpu.memory_space<vmem>>, %arg10: memref<1x64xbf16, #tpu.memory_space<vmem>>, %arg11: memref<64x256xbf16, #tpu.memory_space<vmem>>, %arg12: memref<1x256xbf16, #tpu.memory_space<vmem>>, %arg13: memref<256x64xbf16, #tpu.memory_space<vmem>>, %arg14: memref<1x64xbf16, #tpu.memory_space<vmem>>, %arg15: memref<1x64xbf16, #tpu.memory_space<vmem>>, %arg16: memref<1x64xbf16, #tpu.memory_space<vmem>>, %arg17: memref<1x1x64xbf16, #tpu.memory_space<vmem>>) attributes {dimension_semantics = [#tpu.dimension_semantics<parallel>], iteration_bounds = array<i64: 2>, scalar_prefetch = 0 : i64, scratch_operands = 0 : i64, tpu.core_type = #tpu.core_type<tc>, window_params = [{transform_indices = @transform_0, window_bounds = array<i64: 1, 1, 64>}, {transform_indices = @transform_1, window_bounds = array<i64: 1, 8, 64>}, {pipeline_mode = #tpu.pipeline_mode<synchronous>, transform_indices = @transform_2, window_bounds = array<i64: 64, 64>}, {pipeline_mode = #tpu.pipeline_mode<synchronous>, transform_indices = @transform_3, window_bounds = array<i64: 1, 64>}, {pipeline_mode = #tpu.pipeline_mode<synchronous>, transform_indices = @transform_4, window_bounds = array<i64: 64, 128>}, {pipeline_mode = #tpu.pipeline_mode<synchronous>, transform_indices = @transform_5, window_bounds = array<i64: 1, 128>}, {pipeline_mode = #tpu.pipeline_mode<synchronous>, transform_indices = @transform_6, window_bounds = array<i64: 64, 64>}, {pipeline_mode = #tpu.pipeline_mode<synchronous>, transform_indices = @transform_7, window_bounds = array<i64: 1, 64>}, {pipeline_mode = #tpu.pipeline_mode<synchronous>, transform_indices = @transform_8, window_bounds = array<i64: 1, 64>}, {pipeline_mode = #tpu.pipeline_mode<synchronous>, transform_indices = @transform_9, window_bounds = array<i64: 1, 64>}, {pipeline_mode = #tpu.pipeline_mode<synchronous>, transform_indices = @transform_10, window_bounds = array<i64: 64, 256>}, {pipeline_mode = #tpu.pipeline_mode<synchronous>, transform_indices = @transform_11, window_bounds = array<i64: 1, 256>}, {pipeline_mode = #tpu.pipeline_mode<synchronous>, transform_indices = @transform_12, window_bounds = array<i64: 256, 64>}, {pipeline_mode = #tpu.pipeline_mode<synchronous>, transform_indices = @transform_13, window_bounds = array<i64: 1, 64>}, {pipeline_mode = #tpu.pipeline_mode<synchronous>, transform_indices = @transform_14, window_bounds = array<i64: 1, 64>}, {pipeline_mode = #tpu.pipeline_mode<synchronous>, transform_indices = @transform_15, window_bounds = array<i64: 1, 64>}, {transform_indices = @transform_16, window_bounds = array<i64: 1, 1, 64>}]} {
    %c0 = arith.constant 0 : index
    %c0_0 = arith.constant 0 : index
    %c0_1 = arith.constant 0 : index
    %0 = vector.load %arg2[%c0, %c0_0, %c0_1] : memref<1x8x64xbf16, #tpu.memory_space<vmem>>, vector<1x8x64xbf16>
    %1 = vector.shape_cast %0 : vector<1x8x64xbf16> to vector<8x64xbf16>
    %c0_2 = arith.constant 0 : index
    %c0_3 = arith.constant 0 : index
    %c0_4 = arith.constant 0 : index
    %2 = vector.load %arg1[%c0_2, %c0_3, %c0_4] : memref<1x1x64xbf16, #tpu.memory_space<vmem>>, vector<1x1x64xbf16>
    %3 = vector.shape_cast %2 : vector<1x1x64xbf16> to vector<1x64xbf16>
    %c0_5 = arith.constant 0 : index
    %c0_6 = arith.constant 0 : index
    %4 = vector.load %arg3[%c0_5, %c0_6] : memref<64x64xbf16, #tpu.memory_space<vmem>>, vector<64x64xbf16>
    %cst = arith.constant dense<0.000000e+00> : vector<1x64xf32>
    %5 = tpu.matmul %3, %4, %cst {dimension_numbers = #tpu.dot_dimension_numbers<[1], [0], [0], [1], [0, 0, 1, 1], [], []>} : vector<1x64xbf16>, vector<64x64xbf16>, vector<1x64xf32> -> vector<1x64xf32>
    %c0_7 = arith.constant 0 : index
    %c0_8 = arith.constant 0 : index
    %6 = vector.load %arg4[%c0_7, %c0_8] : memref<1x64xbf16, #tpu.memory_space<vmem>>, vector<1x64xbf16>
    %7 = arith.extf %6 : vector<1x64xbf16> to vector<1x64xf32>
    %8 = arith.addf %5, %7 : vector<1x64xf32>
    %cst_9 = arith.constant 0.353553385 : f32
    %9 = vector.broadcast %cst_9 : f32 to vector<1x64xf32>
    %10 = arith.mulf %8, %9 : vector<1x64xf32>
    %11 = arith.truncf %10 : vector<1x64xf32> to vector<1x64xbf16>
    %c0_10 = arith.constant 0 : index
    %c0_11 = arith.constant 0 : index
    %12 = vector.load %arg5[%c0_10, %c0_11] : memref<64x128xbf16, #tpu.memory_space<vmem>>, vector<64x128xbf16>
    %cst_12 = arith.constant dense<0.000000e+00> : vector<8x128xf32>
    %13 = tpu.matmul %1, %12, %cst_12 {dimension_numbers = #tpu.dot_dimension_numbers<[1], [0], [0], [1], [0, 0, 1, 1], [], []>} : vector<8x64xbf16>, vector<64x128xbf16>, vector<8x128xf32> -> vector<8x128xf32>
    %c0_13 = arith.constant 0 : index
    %c0_14 = arith.constant 0 : index
    %14 = vector.load %arg6[%c0_13, %c0_14] : memref<1x128xbf16, #tpu.memory_space<vmem>>, vector<1x128xbf16>
    %15 = arith.extf %14 : vector<1x128xbf16> to vector<1x128xf32>
    %16 = vector.broadcast %15 : vector<1x128xf32> to vector<8x128xf32>
    %17 = arith.addf %13, %16 : vector<8x128xf32>
    %18 = vector.extract_strided_slice %17 {offsets = [0, 0], sizes = [8, 64], strides = [1, 1]} : vector<8x128xf32> to vector<8x64xf32>
    %19 = arith.truncf %18 : vector<8x64xf32> to vector<8x64xbf16>
    %20 = vector.extract_strided_slice %17 {offsets = [0, 64], sizes = [8, 64], strides = [1, 1]} : vector<8x128xf32> to vector<8x64xf32>
    %21 = arith.truncf %20 : vector<8x64xf32> to vector<8x64xbf16>
    %22 = vector.extract_strided_slice %11 {offsets = [0, 0], sizes = [1, 8], strides = [1, 1]} : vector<1x64xbf16> to vector<1x8xbf16>
    %23 = vector.extract_strided_slice %19 {offsets = [0, 0], sizes = [8, 8], strides = [1, 1]} : vector<8x64xbf16> to vector<8x8xbf16>
    %cst_15 = arith.constant dense<0.000000e+00> : vector<1x8xf32>
    %24 = tpu.matmul %22, %23, %cst_15 {dimension_numbers = #tpu.dot_dimension_numbers<[1], [1], [0], [0], [0, 0, 1, 0], [], []>} : vector<1x8xbf16>, vector<8x8xbf16>, vector<1x8xf32> -> vector<1x8xf32>
    %cst_16 = arith.constant dense<0xFF800000> : vector<1xf32>
    %25 = vector.multi_reduction <maximumf>, %24, %cst_16 [1] : vector<1x8xf32> to vector<1xf32>
    %26 = vector.shape_cast %25 : vector<1xf32> to vector<1x1xf32>
    %27 = vector.broadcast %26 : vector<1x1xf32> to vector<1x8xf32>
    %28 = arith.subf %24, %27 : vector<1x8xf32>
    %29 = math.exp %28 : vector<1x8xf32>
    %cst_17 = arith.constant dense<0.000000e+00> : vector<1xf32>
    %30 = vector.multi_reduction <add>, %29, %cst_17 [1] : vector<1x8xf32> to vector<1xf32>
    %31 = vector.shape_cast %30 : vector<1xf32> to vector<1x1xf32>
    %32 = tpu.reciprocal %31 : vector<1x1xf32> -> vector<1x1xf32>
    %33 = vector.broadcast %32 : vector<1x1xf32> to vector<1x8xf32>
    %34 = arith.mulf %29, %33 : vector<1x8xf32>
    %35 = arith.truncf %34 : vector<1x8xf32> to vector<1x8xbf16>
    %36 = vector.extract_strided_slice %21 {offsets = [0, 0], sizes = [8, 8], strides = [1, 1]} : vector<8x64xbf16> to vector<8x8xbf16>
    %cst_18 = arith.constant dense<0.000000e+00> : vector<1x8xf32>
    %37 = tpu.matmul %35, %36, %cst_18 {dimension_numbers = #tpu.dot_dimension_numbers<[1], [0], [0], [1], [0, 0, 1, 1], [], []>} : vector<1x8xbf16>, vector<8x8xbf16>, vector<1x8xf32> -> vector<1x8xf32>
    %38 = vector.extract_strided_slice %11 {offsets = [0, 8], sizes = [1, 8], strides = [1, 1]} : vector<1x64xbf16> to vector<1x8xbf16>
    %39 = vector.extract_strided_slice %19 {offsets = [0, 8], sizes = [8, 8], strides = [1, 1]} : vector<8x64xbf16> to vector<8x8xbf16>
    %cst_19 = arith.constant dense<0.000000e+00> : vector<1x8xf32>
    %40 = tpu.matmul %38, %39, %cst_19 {dimension_numbers = #tpu.dot_dimension_numbers<[1], [1], [0], [0], [0, 0, 1, 0], [], []>} : vector<1x8xbf16>, vector<8x8xbf16>, vector<1x8xf32> -> vector<1x8xf32>
    %cst_20 = arith.constant dense<0xFF800000> : vector<1xf32>
    %41 = vector.multi_reduction <maximumf>, %40, %cst_20 [1] : vector<1x8xf32> to vector<1xf32>
    %42 = vector.shape_cast %41 : vector<1xf32> to vector<1x1xf32>
    %43 = vector.broadcast %42 : vector<1x1xf32> to vector<1x8xf32>
    %44 = arith.subf %40, %43 : vector<1x8xf32>
    %45 = math.exp %44 : vector<1x8xf32>
    %cst_21 = arith.constant dense<0.000000e+00> : vector<1xf32>
    %46 = vector.multi_reduction <add>, %45, %cst_21 [1] : vector<1x8xf32> to vector<1xf32>
    %47 = vector.shape_cast %46 : vector<1xf32> to vector<1x1xf32>
    %48 = tpu.reciprocal %47 : vector<1x1xf32> -> vector<1x1xf32>
    %49 = vector.broadcast %48 : vector<1x1xf32> to vector<1x8xf32>
    %50 = arith.mulf %45, %49 : vector<1x8xf32>
    %51 = arith.truncf %50 : vector<1x8xf32> to vector<1x8xbf16>
    %52 = vector.extract_strided_slice %21 {offsets = [0, 8], sizes = [8, 8], strides = [1, 1]} : vector<8x64xbf16> to vector<8x8xbf16>
    %cst_22 = arith.constant dense<0.000000e+00> : vector<1x8xf32>
    %53 = tpu.matmul %51, %52, %cst_22 {dimension_numbers = #tpu.dot_dimension_numbers<[1], [0], [0], [1], [0, 0, 1, 1], [], []>} : vector<1x8xbf16>, vector<8x8xbf16>, vector<1x8xf32> -> vector<1x8xf32>
    %54 = vector.extract_strided_slice %11 {offsets = [0, 16], sizes = [1, 8], strides = [1, 1]} : vector<1x64xbf16> to vector<1x8xbf16>
    %55 = vector.extract_strided_slice %19 {offsets = [0, 16], sizes = [8, 8], strides = [1, 1]} : vector<8x64xbf16> to vector<8x8xbf16>
    %cst_23 = arith.constant dense<0.000000e+00> : vector<1x8xf32>
    %56 = tpu.matmul %54, %55, %cst_23 {dimension_numbers = #tpu.dot_dimension_numbers<[1], [1], [0], [0], [0, 0, 1, 0], [], []>} : vector<1x8xbf16>, vector<8x8xbf16>, vector<1x8xf32> -> vector<1x8xf32>
    %cst_24 = arith.constant dense<0xFF800000> : vector<1xf32>
    %57 = vector.multi_reduction <maximumf>, %56, %cst_24 [1] : vector<1x8xf32> to vector<1xf32>
    %58 = vector.shape_cast %57 : vector<1xf32> to vector<1x1xf32>
    %59 = vector.broadcast %58 : vector<1x1xf32> to vector<1x8xf32>
    %60 = arith.subf %56, %59 : vector<1x8xf32>
    %61 = math.exp %60 : vector<1x8xf32>
    %cst_25 = arith.constant dense<0.000000e+00> : vector<1xf32>
    %62 = vector.multi_reduction <add>, %61, %cst_25 [1] : vector<1x8xf32> to vector<1xf32>
    %63 = vector.shape_cast %62 : vector<1xf32> to vector<1x1xf32>
    %64 = tpu.reciprocal %63 : vector<1x1xf32> -> vector<1x1xf32>
    %65 = vector.broadcast %64 : vector<1x1xf32> to vector<1x8xf32>
    %66 = arith.mulf %61, %65 : vector<1x8xf32>
    %67 = arith.truncf %66 : vector<1x8xf32> to vector<1x8xbf16>
    %68 = vector.extract_strided_slice %21 {offsets = [0, 16], sizes = [8, 8], strides = [1, 1]} : vector<8x64xbf16> to vector<8x8xbf16>
    %cst_26 = arith.constant dense<0.000000e+00> : vector<1x8xf32>
    %69 = tpu.matmul %67, %68, %cst_26 {dimension_numbers = #tpu.dot_dimension_numbers<[1], [0], [0], [1], [0, 0, 1, 1], [], []>} : vector<1x8xbf16>, vector<8x8xbf16>, vector<1x8xf32> -> vector<1x8xf32>
    %70 = vector.extract_strided_slice %11 {offsets = [0, 24], sizes = [1, 8], strides = [1, 1]} : vector<1x64xbf16> to vector<1x8xbf16>
    %71 = vector.extract_strided_slice %19 {offsets = [0, 24], sizes = [8, 8], strides = [1, 1]} : vector<8x64xbf16> to vector<8x8xbf16>
    %cst_27 = arith.constant dense<0.000000e+00> : vector<1x8xf32>
    %72 = tpu.matmul %70, %71, %cst_27 {dimension_numbers = #tpu.dot_dimension_numbers<[1], [1], [0], [0], [0, 0, 1, 0], [], []>} : vector<1x8xbf16>, vector<8x8xbf16>, vector<1x8xf32> -> vector<1x8xf32>
    %cst_28 = arith.constant dense<0xFF800000> : vector<1xf32>
    %73 = vector.multi_reduction <maximumf>, %72, %cst_28 [1] : vector<1x8xf32> to vector<1xf32>
    %74 = vector.shape_cast %73 : vector<1xf32> to vector<1x1xf32>
    %75 = vector.broadcast %74 : vector<1x1xf32> to vector<1x8xf32>
    %76 = arith.subf %72, %75 : vector<1x8xf32>
    %77 = math.exp %76 : vector<1x8xf32>
    %cst_29 = arith.constant dense<0.000000e+00> : vector<1xf32>
    %78 = vector.multi_reduction <add>, %77, %cst_29 [1] : vector<1x8xf32> to vector<1xf32>
    %79 = vector.shape_cast %78 : vector<1xf32> to vector<1x1xf32>
    %80 = tpu.reciprocal %79 : vector<1x1xf32> -> vector<1x1xf32>
    %81 = vector.broadcast %80 : vector<1x1xf32> to vector<1x8xf32>
    %82 = arith.mulf %77, %81 : vector<1x8xf32>
    %83 = arith.truncf %82 : vector<1x8xf32> to vector<1x8xbf16>
    %84 = vector.extract_strided_slice %21 {offsets = [0, 24], sizes = [8, 8], strides = [1, 1]} : vector<8x64xbf16> to vector<8x8xbf16>
    %cst_30 = arith.constant dense<0.000000e+00> : vector<1x8xf32>
    %85 = tpu.matmul %83, %84, %cst_30 {dimension_numbers = #tpu.dot_dimension_numbers<[1], [0], [0], [1], [0, 0, 1, 1], [], []>} : vector<1x8xbf16>, vector<8x8xbf16>, vector<1x8xf32> -> vector<1x8xf32>
    %86 = vector.extract_strided_slice %11 {offsets = [0, 32], sizes = [1, 8], strides = [1, 1]} : vector<1x64xbf16> to vector<1x8xbf16>
    %87 = vector.extract_strided_slice %19 {offsets = [0, 32], sizes = [8, 8], strides = [1, 1]} : vector<8x64xbf16> to vector<8x8xbf16>
    %cst_31 = arith.constant dense<0.000000e+00> : vector<1x8xf32>
    %88 = tpu.matmul %86, %87, %cst_31 {dimension_numbers = #tpu.dot_dimension_numbers<[1], [1], [0], [0], [0, 0, 1, 0], [], []>} : vector<1x8xbf16>, vector<8x8xbf16>, vector<1x8xf32> -> vector<1x8xf32>
    %cst_32 = arith.constant dense<0xFF800000> : vector<1xf32>
    %89 = vector.multi_reduction <maximumf>, %88, %cst_32 [1] : vector<1x8xf32> to vector<1xf32>
    %90 = vector.shape_cast %89 : vector<1xf32> to vector<1x1xf32>
    %91 = vector.broadcast %90 : vector<1x1xf32> to vector<1x8xf32>
    %92 = arith.subf %88, %91 : vector<1x8xf32>
    %93 = math.exp %92 : vector<1x8xf32>
    %cst_33 = arith.constant dense<0.000000e+00> : vector<1xf32>
    %94 = vector.multi_reduction <add>, %93, %cst_33 [1] : vector<1x8xf32> to vector<1xf32>
    %95 = vector.shape_cast %94 : vector<1xf32> to vector<1x1xf32>
    %96 = tpu.reciprocal %95 : vector<1x1xf32> -> vector<1x1xf32>
    %97 = vector.broadcast %96 : vector<1x1xf32> to vector<1x8xf32>
    %98 = arith.mulf %93, %97 : vector<1x8xf32>
    %99 = arith.truncf %98 : vector<1x8xf32> to vector<1x8xbf16>
    %100 = vector.extract_strided_slice %21 {offsets = [0, 32], sizes = [8, 8], strides = [1, 1]} : vector<8x64xbf16> to vector<8x8xbf16>
    %cst_34 = arith.constant dense<0.000000e+00> : vector<1x8xf32>
    %101 = tpu.matmul %99, %100, %cst_34 {dimension_numbers = #tpu.dot_dimension_numbers<[1], [0], [0], [1], [0, 0, 1, 1], [], []>} : vector<1x8xbf16>, vector<8x8xbf16>, vector<1x8xf32> -> vector<1x8xf32>
    %102 = vector.extract_strided_slice %11 {offsets = [0, 40], sizes = [1, 8], strides = [1, 1]} : vector<1x64xbf16> to vector<1x8xbf16>
    %103 = vector.extract_strided_slice %19 {offsets = [0, 40], sizes = [8, 8], strides = [1, 1]} : vector<8x64xbf16> to vector<8x8xbf16>
    %cst_35 = arith.constant dense<0.000000e+00> : vector<1x8xf32>
    %104 = tpu.matmul %102, %103, %cst_35 {dimension_numbers = #tpu.dot_dimension_numbers<[1], [1], [0], [0], [0, 0, 1, 0], [], []>} : vector<1x8xbf16>, vector<8x8xbf16>, vector<1x8xf32> -> vector<1x8xf32>
    %cst_36 = arith.constant dense<0xFF800000> : vector<1xf32>
    %105 = vector.multi_reduction <maximumf>, %104, %cst_36 [1] : vector<1x8xf32> to vector<1xf32>
    %106 = vector.shape_cast %105 : vector<1xf32> to vector<1x1xf32>
    %107 = vector.broadcast %106 : vector<1x1xf32> to vector<1x8xf32>
    %108 = arith.subf %104, %107 : vector<1x8xf32>
    %109 = math.exp %108 : vector<1x8xf32>
    %cst_37 = arith.constant dense<0.000000e+00> : vector<1xf32>
    %110 = vector.multi_reduction <add>, %109, %cst_37 [1] : vector<1x8xf32> to vector<1xf32>
    %111 = vector.shape_cast %110 : vector<1xf32> to vector<1x1xf32>
    %112 = tpu.reciprocal %111 : vector<1x1xf32> -> vector<1x1xf32>
    %113 = vector.broadcast %112 : vector<1x1xf32> to vector<1x8xf32>
    %114 = arith.mulf %109, %113 : vector<1x8xf32>
    %115 = arith.truncf %114 : vector<1x8xf32> to vector<1x8xbf16>
    %116 = vector.extract_strided_slice %21 {offsets = [0, 40], sizes = [8, 8], strides = [1, 1]} : vector<8x64xbf16> to vector<8x8xbf16>
    %cst_38 = arith.constant dense<0.000000e+00> : vector<1x8xf32>
    %117 = tpu.matmul %115, %116, %cst_38 {dimension_numbers = #tpu.dot_dimension_numbers<[1], [0], [0], [1], [0, 0, 1, 1], [], []>} : vector<1x8xbf16>, vector<8x8xbf16>, vector<1x8xf32> -> vector<1x8xf32>
    %118 = vector.extract_strided_slice %11 {offsets = [0, 48], sizes = [1, 8], strides = [1, 1]} : vector<1x64xbf16> to vector<1x8xbf16>
    %119 = vector.extract_strided_slice %19 {offsets = [0, 48], sizes = [8, 8], strides = [1, 1]} : vector<8x64xbf16> to vector<8x8xbf16>
    %cst_39 = arith.constant dense<0.000000e+00> : vector<1x8xf32>
    %120 = tpu.matmul %118, %119, %cst_39 {dimension_numbers = #tpu.dot_dimension_numbers<[1], [1], [0], [0], [0, 0, 1, 0], [], []>} : vector<1x8xbf16>, vector<8x8xbf16>, vector<1x8xf32> -> vector<1x8xf32>
    %cst_40 = arith.constant dense<0xFF800000> : vector<1xf32>
    %121 = vector.multi_reduction <maximumf>, %120, %cst_40 [1] : vector<1x8xf32> to vector<1xf32>
    %122 = vector.shape_cast %121 : vector<1xf32> to vector<1x1xf32>
    %123 = vector.broadcast %122 : vector<1x1xf32> to vector<1x8xf32>
    %124 = arith.subf %120, %123 : vector<1x8xf32>
    %125 = math.exp %124 : vector<1x8xf32>
    %cst_41 = arith.constant dense<0.000000e+00> : vector<1xf32>
    %126 = vector.multi_reduction <add>, %125, %cst_41 [1] : vector<1x8xf32> to vector<1xf32>
    %127 = vector.shape_cast %126 : vector<1xf32> to vector<1x1xf32>
    %128 = tpu.reciprocal %127 : vector<1x1xf32> -> vector<1x1xf32>
    %129 = vector.broadcast %128 : vector<1x1xf32> to vector<1x8xf32>
    %130 = arith.mulf %125, %129 : vector<1x8xf32>
    %131 = arith.truncf %130 : vector<1x8xf32> to vector<1x8xbf16>
    %132 = vector.extract_strided_slice %21 {offsets = [0, 48], sizes = [8, 8], strides = [1, 1]} : vector<8x64xbf16> to vector<8x8xbf16>
    %cst_42 = arith.constant dense<0.000000e+00> : vector<1x8xf32>
    %133 = tpu.matmul %131, %132, %cst_42 {dimension_numbers = #tpu.dot_dimension_numbers<[1], [0], [0], [1], [0, 0, 1, 1], [], []>} : vector<1x8xbf16>, vector<8x8xbf16>, vector<1x8xf32> -> vector<1x8xf32>
    %134 = vector.extract_strided_slice %11 {offsets = [0, 56], sizes = [1, 8], strides = [1, 1]} : vector<1x64xbf16> to vector<1x8xbf16>
    %135 = vector.extract_strided_slice %19 {offsets = [0, 56], sizes = [8, 8], strides = [1, 1]} : vector<8x64xbf16> to vector<8x8xbf16>
    %cst_43 = arith.constant dense<0.000000e+00> : vector<1x8xf32>
    %136 = tpu.matmul %134, %135, %cst_43 {dimension_numbers = #tpu.dot_dimension_numbers<[1], [1], [0], [0], [0, 0, 1, 0], [], []>} : vector<1x8xbf16>, vector<8x8xbf16>, vector<1x8xf32> -> vector<1x8xf32>
    %cst_44 = arith.constant dense<0xFF800000> : vector<1xf32>
    %137 = vector.multi_reduction <maximumf>, %136, %cst_44 [1] : vector<1x8xf32> to vector<1xf32>
    %138 = vector.shape_cast %137 : vector<1xf32> to vector<1x1xf32>
    %139 = vector.broadcast %138 : vector<1x1xf32> to vector<1x8xf32>
    %140 = arith.subf %136, %139 : vector<1x8xf32>
    %141 = math.exp %140 : vector<1x8xf32>
    %cst_45 = arith.constant dense<0.000000e+00> : vector<1xf32>
    %142 = vector.multi_reduction <add>, %141, %cst_45 [1] : vector<1x8xf32> to vector<1xf32>
    %143 = vector.shape_cast %142 : vector<1xf32> to vector<1x1xf32>
    %144 = tpu.reciprocal %143 : vector<1x1xf32> -> vector<1x1xf32>
    %145 = vector.broadcast %144 : vector<1x1xf32> to vector<1x8xf32>
    %146 = arith.mulf %141, %145 : vector<1x8xf32>
    %147 = arith.truncf %146 : vector<1x8xf32> to vector<1x8xbf16>
    %148 = vector.extract_strided_slice %21 {offsets = [0, 56], sizes = [8, 8], strides = [1, 1]} : vector<8x64xbf16> to vector<8x8xbf16>
    %cst_46 = arith.constant dense<0.000000e+00> : vector<1x8xf32>
    %149 = tpu.matmul %147, %148, %cst_46 {dimension_numbers = #tpu.dot_dimension_numbers<[1], [0], [0], [1], [0, 0, 1, 1], [], []>} : vector<1x8xbf16>, vector<8x8xbf16>, vector<1x8xf32> -> vector<1x8xf32>
    %150 = tpu.concatenate %37, %53, %69, %85, %101, %117, %133, %149 in 1 : vector<1x8xf32>, vector<1x8xf32>, vector<1x8xf32>, vector<1x8xf32>, vector<1x8xf32>, vector<1x8xf32>, vector<1x8xf32>, vector<1x8xf32> -> vector<1x64xf32>
    %151 = arith.truncf %150 : vector<1x64xf32> to vector<1x64xbf16>
    %c0_47 = arith.constant 0 : index
    %c0_48 = arith.constant 0 : index
    %152 = vector.load %arg7[%c0_47, %c0_48] : memref<64x64xbf16, #tpu.memory_space<vmem>>, vector<64x64xbf16>
    %cst_49 = arith.constant dense<0.000000e+00> : vector<1x64xf32>
    %153 = tpu.matmul %151, %152, %cst_49 {dimension_numbers = #tpu.dot_dimension_numbers<[1], [0], [0], [1], [0, 0, 1, 1], [], []>} : vector<1x64xbf16>, vector<64x64xbf16>, vector<1x64xf32> -> vector<1x64xf32>
    %c0_50 = arith.constant 0 : index
    %c0_51 = arith.constant 0 : index
    %154 = vector.load %arg8[%c0_50, %c0_51] : memref<1x64xbf16, #tpu.memory_space<vmem>>, vector<1x64xbf16>
    %155 = arith.extf %154 : vector<1x64xbf16> to vector<1x64xf32>
    %156 = arith.addf %153, %155 : vector<1x64xf32>
    %157 = arith.extf %3 : vector<1x64xbf16> to vector<1x64xf32>
    %158 = arith.addf %156, %157 : vector<1x64xf32>
    %c0_52 = arith.constant 0 : index
    %c0_53 = arith.constant 0 : index
    %159 = vector.load %arg9[%c0_52, %c0_53] : memref<1x64xbf16, #tpu.memory_space<vmem>>, vector<1x64xbf16>
    %160 = arith.extf %159 : vector<1x64xbf16> to vector<1x64xf32>
    %c0_54 = arith.constant 0 : index
    %c0_55 = arith.constant 0 : index
    %161 = vector.load %arg10[%c0_54, %c0_55] : memref<1x64xbf16, #tpu.memory_space<vmem>>, vector<1x64xbf16>
    %162 = arith.extf %161 : vector<1x64xbf16> to vector<1x64xf32>
    %cst_56 = arith.constant dense<0.000000e+00> : vector<1xf32>
    %163 = vector.multi_reduction <add>, %158, %cst_56 [1] : vector<1x64xf32> to vector<1xf32>
    %164 = vector.shape_cast %163 : vector<1xf32> to vector<1x1xf32>
    %cst_57 = arith.constant 6.400000e+01 : f32
    %165 = vector.broadcast %cst_57 : f32 to vector<1x1xf32>
    %166 = arith.divf %164, %165 : vector<1x1xf32>
    %167 = vector.broadcast %166 : vector<1x1xf32> to vector<1x64xf32>
    %168 = arith.subf %158, %167 : vector<1x64xf32>
    %169 = arith.mulf %168, %168 : vector<1x64xf32>
    %cst_58 = arith.constant dense<0.000000e+00> : vector<1xf32>
    %170 = vector.multi_reduction <add>, %169, %cst_58 [1] : vector<1x64xf32> to vector<1xf32>
    %171 = vector.shape_cast %170 : vector<1xf32> to vector<1x1xf32>
    %cst_59 = arith.constant 6.400000e+01 : f32
    %172 = vector.broadcast %cst_59 : f32 to vector<1x1xf32>
    %173 = arith.divf %171, %172 : vector<1x1xf32>
    %174 = vector.broadcast %166 : vector<1x1xf32> to vector<1x64xf32>
    %175 = arith.subf %158, %174 : vector<1x64xf32>
    %cst_60 = arith.constant 9.99999974E-6 : f32
    %176 = vector.broadcast %cst_60 : f32 to vector<1x1xf32>
    %177 = arith.addf %173, %176 : vector<1x1xf32>
    %178 = math.rsqrt %177 : vector<1x1xf32>
    %179 = vector.broadcast %178 : vector<1x1xf32> to vector<1x64xf32>
    %180 = arith.mulf %175, %179 : vector<1x64xf32>
    %181 = arith.mulf %180, %160 : vector<1x64xf32>
    %182 = arith.addf %181, %162 : vector<1x64xf32>
    %183 = arith.truncf %182 : vector<1x64xf32> to vector<1x64xbf16>
    %c0_61 = arith.constant 0 : index
    %c0_62 = arith.constant 0 : index
    %184 = vector.load %arg11[%c0_61, %c0_62] : memref<64x256xbf16, #tpu.memory_space<vmem>>, vector<64x256xbf16>
    %cst_63 = arith.constant dense<0.000000e+00> : vector<1x256xf32>
    %185 = tpu.matmul %183, %184, %cst_63 {dimension_numbers = #tpu.dot_dimension_numbers<[1], [0], [0], [1], [0, 0, 1, 1], [], []>} : vector<1x64xbf16>, vector<64x256xbf16>, vector<1x256xf32> -> vector<1x256xf32>
    %c0_64 = arith.constant 0 : index
    %c0_65 = arith.constant 0 : index
    %186 = vector.load %arg12[%c0_64, %c0_65] : memref<1x256xbf16, #tpu.memory_space<vmem>>, vector<1x256xbf16>
    %187 = arith.extf %186 : vector<1x256xbf16> to vector<1x256xf32>
    %188 = arith.addf %185, %187 : vector<1x256xf32>
    %cst_66 = arith.constant 5.000000e-01 : f32
    %189 = vector.broadcast %cst_66 : f32 to vector<1x256xf32>
    %190 = arith.mulf %189, %188 : vector<1x256xf32>
    %cst_67 = arith.constant 4.471500e-02 : f32
    %191 = vector.broadcast %cst_67 : f32 to vector<1x256xf32>
    %192 = arith.mulf %191, %188 : vector<1x256xf32>
    %193 = arith.mulf %192, %188 : vector<1x256xf32>
    %194 = arith.mulf %193, %188 : vector<1x256xf32>
    %195 = arith.addf %188, %194 : vector<1x256xf32>
    %cst_68 = arith.constant 0.797884583 : f32
    %196 = vector.broadcast %cst_68 : f32 to vector<1x256xf32>
    %197 = arith.mulf %196, %195 : vector<1x256xf32>
    %198 = math.tanh %197 : vector<1x256xf32>
    %cst_69 = arith.constant 1.000000e+00 : f32
    %199 = vector.broadcast %cst_69 : f32 to vector<1x256xf32>
    %200 = arith.addf %199, %198 : vector<1x256xf32>
    %201 = arith.mulf %190, %200 : vector<1x256xf32>
    %202 = arith.truncf %201 : vector<1x256xf32> to vector<1x256xbf16>
    %c0_70 = arith.constant 0 : index
    %c0_71 = arith.constant 0 : index
    %203 = vector.load %arg13[%c0_70, %c0_71] : memref<256x64xbf16, #tpu.memory_space<vmem>>, vector<256x64xbf16>
    %cst_72 = arith.constant dense<0.000000e+00> : vector<1x64xf32>
    %204 = tpu.matmul %202, %203, %cst_72 {dimension_numbers = #tpu.dot_dimension_numbers<[1], [0], [0], [1], [0, 0, 1, 1], [], []>} : vector<1x256xbf16>, vector<256x64xbf16>, vector<1x64xf32> -> vector<1x64xf32>
    %c0_73 = arith.constant 0 : index
    %c0_74 = arith.constant 0 : index
    %205 = vector.load %arg14[%c0_73, %c0_74] : memref<1x64xbf16, #tpu.memory_space<vmem>>, vector<1x64xbf16>
    %206 = arith.extf %205 : vector<1x64xbf16> to vector<1x64xf32>
    %207 = arith.addf %204, %206 : vector<1x64xf32>
    %208 = arith.addf %207, %182 : vector<1x64xf32>
    %c0_75 = arith.constant 0 : index
    %c0_76 = arith.constant 0 : index
    %209 = vector.load %arg15[%c0_75, %c0_76] : memref<1x64xbf16, #tpu.memory_space<vmem>>, vector<1x64xbf16>
    %210 = arith.extf %209 : vector<1x64xbf16> to vector<1x64xf32>
    %c0_77 = arith.constant 0 : index
    %c0_78 = arith.constant 0 : index
    %211 = vector.load %arg16[%c0_77, %c0_78] : memref<1x64xbf16, #tpu.memory_space<vmem>>, vector<1x64xbf16>
    %212 = arith.extf %211 : vector<1x64xbf16> to vector<1x64xf32>
    %cst_79 = arith.constant dense<0.000000e+00> : vector<1xf32>
    %213 = vector.multi_reduction <add>, %208, %cst_79 [1] : vector<1x64xf32> to vector<1xf32>
    %214 = vector.shape_cast %213 : vector<1xf32> to vector<1x1xf32>
    %cst_80 = arith.constant 6.400000e+01 : f32
    %215 = vector.broadcast %cst_80 : f32 to vector<1x1xf32>
    %216 = arith.divf %214, %215 : vector<1x1xf32>
    %217 = vector.broadcast %216 : vector<1x1xf32> to vector<1x64xf32>
    %218 = arith.subf %208, %217 : vector<1x64xf32>
    %219 = arith.mulf %218, %218 : vector<1x64xf32>
    %cst_81 = arith.constant dense<0.000000e+00> : vector<1xf32>
    %220 = vector.multi_reduction <add>, %219, %cst_81 [1] : vector<1x64xf32> to vector<1xf32>
    %221 = vector.shape_cast %220 : vector<1xf32> to vector<1x1xf32>
    %cst_82 = arith.constant 6.400000e+01 : f32
    %222 = vector.broadcast %cst_82 : f32 to vector<1x1xf32>
    %223 = arith.divf %221, %222 : vector<1x1xf32>
    %224 = vector.broadcast %216 : vector<1x1xf32> to vector<1x64xf32>
    %225 = arith.subf %208, %224 : vector<1x64xf32>
    %cst_83 = arith.constant 9.99999974E-6 : f32
    %226 = vector.broadcast %cst_83 : f32 to vector<1x1xf32>
    %227 = arith.addf %223, %226 : vector<1x1xf32>
    %228 = math.rsqrt %227 : vector<1x1xf32>
    %229 = vector.broadcast %228 : vector<1x1xf32> to vector<1x64xf32>
    %230 = arith.mulf %225, %229 : vector<1x64xf32>
    %231 = arith.mulf %230, %210 : vector<1x64xf32>
    %232 = arith.addf %231, %212 : vector<1x64xf32>
    %233 = arith.truncf %232 : vector<1x64xf32> to vector<1x64xbf16>
    %c0_84 = arith.constant 0 : index
    %c0_85 = arith.constant 0 : index
    %c0_86 = arith.constant 0 : index
    %234 = vector.load %arg17[%c0_84, %c0_85, %c0_86] : memref<1x1x64xbf16, #tpu.memory_space<vmem>>, vector<1x1x64xbf16>
    %235 = vector.shape_cast %234 : vector<1x1x64xbf16> to vector<1x64xbf16>
    %236 = vector.shape_cast %233 : vector<1x64xbf16> to vector<1x1x64xbf16>
    tpu.vector_store %arg17[%c0_84, %c0_85, %c0_86], %236 {strides = array<i32>} : memref<1x1x64xbf16, #tpu.memory_space<vmem>>, vector<1x1x64xbf16>,
    return
  }
  func.func @transform_0(%arg0: i32) -> (i32, i32, i32) {
    %c0_i32 = arith.constant 0 : i32
    %c0_i32_0 = arith.constant 0 : i32
    %c0_i32_1 = arith.constant 0 : i32
    return %arg0, %c0_i32, %c0_i32_0 : i32, i32, i32
  }
  func.func @transform_1(%arg0: i32) -> (i32, i32, i32) {
    %c0_i32 = arith.constant 0 : i32
    %c0_i32_0 = arith.constant 0 : i32
    %c0_i32_1 = arith.constant 0 : i32
    return %arg0, %c0_i32, %c0_i32_0 : i32, i32, i32
  }
  func.func @transform_2(%arg0: i32) -> (i32, i32) {
    %c0_i32 = arith.constant 0 : i32
    %c0_i32_0 = arith.constant 0 : i32
    %c0_i32_1 = arith.constant 0 : i32
    return %c0_i32, %c0_i32_0 : i32, i32
  }
  func.func @transform_3(%arg0: i32) -> (i32, i32) {
    %c0_i32 = arith.constant 0 : i32
    %c0_i32_0 = arith.constant 0 : i32
    %c0_i32_1 = arith.constant 0 : i32
    return %c0_i32, %c0_i32_0 : i32, i32
  }
  func.func @transform_4(%arg0: i32) -> (i32, i32) {
    %c0_i32 = arith.constant 0 : i32
    %c0_i32_0 = arith.constant 0 : i32
    %c0_i32_1 = arith.constant 0 : i32
    return %c0_i32, %c0_i32_0 : i32, i32
  }
  func.func @transform_5(%arg0: i32) -> (i32, i32) {
    %c0_i32 = arith.constant 0 : i32
    %c0_i32_0 = arith.constant 0 : i32
    %c0_i32_1 = arith.constant 0 : i32
    return %c0_i32, %c0_i32_0 : i32, i32
  }
  func.func @transform_6(%arg0: i32) -> (i32, i32) {
    %c0_i32 = arith.constant 0 : i32
    %c0_i32_0 = arith.constant 0 : i32
    %c0_i32_1 = arith.constant 0 : i32
    return %c0_i32, %c0_i32_0 : i32, i32
  }
  func.func @transform_7(%arg0: i32) -> (i32, i32) {
    %c0_i32 = arith.constant 0 : i32
    %c0_i32_0 = arith.constant 0 : i32
    %c0_i32_1 = arith.constant 0 : i32
    return %c0_i32, %c0_i32_0 : i32, i32
  }
  func.func @transform_8(%arg0: i32) -> (i32, i32) {
    %c0_i32 = arith.constant 0 : i32
    %c0_i32_0 = arith.constant 0 : i32
    %c0_i32_1 = arith.constant 0 : i32
    return %c0_i32, %c0_i32_0 : i32, i32
  }
  func.func @transform_9(%arg0: i32) -> (i32, i32) {
    %c0_i32 = arith.constant 0 : i32
    %c0_i32_0 = arith.constant 0 : i32
    %c0_i32_1 = arith.constant 0 : i32
    return %c0_i32, %c0_i32_0 : i32, i32
  }
  func.func @transform_10(%arg0: i32) -> (i32, i32) {
    %c0_i32 = arith.constant 0 : i32
    %c0_i32_0 = arith.constant 0 : i32
    %c0_i32_1 = arith.constant 0 : i32
    return %c0_i32, %c0_i32_0 : i32, i32
  }
  func.func @transform_11(%arg0: i32) -> (i32, i32) {
    %c0_i32 = arith.constant 0 : i32
    %c0_i32_0 = arith.constant 0 : i32
    %c0_i32_1 = arith.constant 0 : i32
    return %c0_i32, %c0_i32_0 : i32, i32
  }
  func.func @transform_12(%arg0: i32) -> (i32, i32) {
    %c0_i32 = arith.constant 0 : i32
    %c0_i32_0 = arith.constant 0 : i32
    %c0_i32_1 = arith.constant 0 : i32
    return %c0_i32, %c0_i32_0 : i32, i32
  }
  func.func @transform_13(%arg0: i32) -> (i32, i32) {
    %c0_i32 = arith.constant 0 : i32
    %c0_i32_0 = arith.constant 0 : i32
    %c0_i32_1 = arith.constant 0 : i32
    return %c0_i32, %c0_i32_0 : i32, i32
  }
  func.func @transform_14(%arg0: i32) -> (i32, i32) {
    %c0_i32 = arith.constant 0 : i32
    %c0_i32_0 = arith.constant 0 : i32
    %c0_i32_1 = arith.constant 0 : i32
    return %c0_i32, %c0_i32_0 : i32, i32
  }
  func.func @transform_15(%arg0: i32) -> (i32, i32) {
    %c0_i32 = arith.constant 0 : i32
    %c0_i32_0 = arith.constant 0 : i32
    %c0_i32_1 = arith.constant 0 : i32
    return %c0_i32, %c0_i32_0 : i32, i32
  }
  func.func @transform_16(%arg0: i32) -> (i32, i32, i32) {
    %c0_i32 = arith.constant 0 : i32
    %c0_i32_0 = arith.constant 0 : i32
    %c0_i32_1 = arith.constant 0 : i32
    return %arg0, %c0_i32, %c0_i32_0 : i32, i32, i32
  }
}

module attributes {stable_mosaic.version = 11 : i64} {
  func.func @_output_head_kernel(%arg0: i32, %arg1: memref<1x8x64xbf16, #tpu.memory_space<vmem>>, %arg2: memref<1x1x64xbf16, #tpu.memory_space<vmem>>, %arg3: memref<8x64xf32, #tpu.memory_space<vmem>>, %arg4: memref<64x64xbf16, #tpu.memory_space<vmem>>, %arg5: memref<1x64xbf16, #tpu.memory_space<vmem>>, %arg6: memref<64x64xbf16, #tpu.memory_space<vmem>>, %arg7: memref<1x64xbf16, #tpu.memory_space<vmem>>, %arg8: memref<64x8xbf16, #tpu.memory_space<vmem>>, %arg9: memref<1x8xbf16, #tpu.memory_space<vmem>>, %arg10: memref<1x1x8xf32, #tpu.memory_space<vmem>>, %arg11: memref<1x1x8xf32, #tpu.memory_space<vmem>>, %arg12: memref<1x1x8xf32, #tpu.memory_space<vmem>>) attributes {dimension_semantics = [#tpu.dimension_semantics<parallel>], iteration_bounds = array<i64: 2>, scalar_prefetch = 0 : i64, scratch_operands = 0 : i64, tpu.core_type = #tpu.core_type<tc>, window_params = [{transform_indices = @transform_0, window_bounds = array<i64: 1, 8, 64>}, {transform_indices = @transform_1, window_bounds = array<i64: 1, 1, 64>}, {pipeline_mode = #tpu.pipeline_mode<synchronous>, transform_indices = @transform_2, window_bounds = array<i64: 8, 64>}, {pipeline_mode = #tpu.pipeline_mode<synchronous>, transform_indices = @transform_3, window_bounds = array<i64: 64, 64>}, {pipeline_mode = #tpu.pipeline_mode<synchronous>, transform_indices = @transform_4, window_bounds = array<i64: 1, 64>}, {pipeline_mode = #tpu.pipeline_mode<synchronous>, transform_indices = @transform_5, window_bounds = array<i64: 64, 64>}, {pipeline_mode = #tpu.pipeline_mode<synchronous>, transform_indices = @transform_6, window_bounds = array<i64: 1, 64>}, {pipeline_mode = #tpu.pipeline_mode<synchronous>, transform_indices = @transform_7, window_bounds = array<i64: 64, 8>}, {pipeline_mode = #tpu.pipeline_mode<synchronous>, transform_indices = @transform_8, window_bounds = array<i64: 1, 8>}, {transform_indices = @transform_9, window_bounds = array<i64: 1, 1, 8>}, {transform_indices = @transform_10, window_bounds = array<i64: 1, 1, 8>}, {transform_indices = @transform_11, window_bounds = array<i64: 1, 1, 8>}]} {
    %c0 = arith.constant 0 : index
    %c0_0 = arith.constant 0 : index
    %c0_1 = arith.constant 0 : index
    %0 = vector.load %arg1[%c0, %c0_0, %c0_1] : memref<1x8x64xbf16, #tpu.memory_space<vmem>>, vector<1x8x64xbf16>
    %1 = vector.shape_cast %0 : vector<1x8x64xbf16> to vector<8x64xbf16>
    %c0_2 = arith.constant 0 : index
    %c0_3 = arith.constant 0 : index
    %c0_4 = arith.constant 0 : index
    %2 = vector.load %arg2[%c0_2, %c0_3, %c0_4] : memref<1x1x64xbf16, #tpu.memory_space<vmem>>, vector<1x1x64xbf16>
    %3 = vector.shape_cast %2 : vector<1x1x64xbf16> to vector<1x64xbf16>
    %c0_5 = arith.constant 0 : index
    %c0_6 = arith.constant 0 : index
    %4 = vector.load %arg3[%c0_5, %c0_6] : memref<8x64xf32, #tpu.memory_space<vmem>>, vector<8x64xf32>
    %c0_7 = arith.constant 0 : index
    %c0_8 = arith.constant 0 : index
    %5 = vector.load %arg4[%c0_7, %c0_8] : memref<64x64xbf16, #tpu.memory_space<vmem>>, vector<64x64xbf16>
    %cst = arith.constant dense<0.000000e+00> : vector<8x64xf32>
    %6 = tpu.matmul %1, %5, %cst {dimension_numbers = #tpu.dot_dimension_numbers<[1], [0], [0], [1], [0, 0, 1, 1], [], []>} : vector<8x64xbf16>, vector<64x64xbf16>, vector<8x64xf32> -> vector<8x64xf32>
    %c0_9 = arith.constant 0 : index
    %c0_10 = arith.constant 0 : index
    %7 = vector.load %arg5[%c0_9, %c0_10] : memref<1x64xbf16, #tpu.memory_space<vmem>>, vector<1x64xbf16>
    %8 = arith.extf %7 : vector<1x64xbf16> to vector<1x64xf32>
    %9 = vector.broadcast %8 : vector<1x64xf32> to vector<8x64xf32>
    %10 = arith.addf %6, %9 : vector<8x64xf32>
    %c0_11 = arith.constant 0 : index
    %c0_12 = arith.constant 0 : index
    %11 = vector.load %arg6[%c0_11, %c0_12] : memref<64x64xbf16, #tpu.memory_space<vmem>>, vector<64x64xbf16>
    %cst_13 = arith.constant dense<0.000000e+00> : vector<1x64xf32>
    %12 = tpu.matmul %3, %11, %cst_13 {dimension_numbers = #tpu.dot_dimension_numbers<[1], [0], [0], [1], [0, 0, 1, 1], [], []>} : vector<1x64xbf16>, vector<64x64xbf16>, vector<1x64xf32> -> vector<1x64xf32>
    %c0_14 = arith.constant 0 : index
    %c0_15 = arith.constant 0 : index
    %13 = vector.load %arg7[%c0_14, %c0_15] : memref<1x64xbf16, #tpu.memory_space<vmem>>, vector<1x64xbf16>
    %14 = arith.extf %13 : vector<1x64xbf16> to vector<1x64xf32>
    %15 = arith.addf %12, %14 : vector<1x64xf32>
    %16 = arith.mulf %10, %10 : vector<8x64xf32>
    %cst_16 = arith.constant dense<0.000000e+00> : vector<8xf32>
    %17 = vector.multi_reduction <add>, %16, %cst_16 [1] : vector<8x64xf32> to vector<8xf32>
    %18 = vector.shape_cast %17 : vector<8xf32> to vector<8x1xf32>
    %cst_17 = arith.constant 9.99999996E-13 : f32
    %19 = vector.broadcast %cst_17 : f32 to vector<8x1xf32>
    %20 = arith.addf %18, %19 : vector<8x1xf32>
    %21 = math.rsqrt %20 : vector<8x1xf32>
    %22 = vector.broadcast %21 : vector<8x1xf32> to vector<8x64xf32>
    %23 = arith.mulf %10, %22 : vector<8x64xf32>
    %24 = arith.mulf %15, %15 : vector<1x64xf32>
    %cst_18 = arith.constant dense<0.000000e+00> : vector<1xf32>
    %25 = vector.multi_reduction <add>, %24, %cst_18 [1] : vector<1x64xf32> to vector<1xf32>
    %26 = vector.shape_cast %25 : vector<1xf32> to vector<1x1xf32>
    %cst_19 = arith.constant 9.99999996E-13 : f32
    %27 = vector.broadcast %cst_19 : f32 to vector<1x1xf32>
    %28 = arith.addf %26, %27 : vector<1x1xf32>
    %29 = math.rsqrt %28 : vector<1x1xf32>
    %30 = vector.broadcast %29 : vector<1x1xf32> to vector<1x64xf32>
    %31 = arith.mulf %15, %30 : vector<1x64xf32>
    %cst_20 = arith.constant dense<0.000000e+00> : vector<8x8xf32>
    %32 = tpu.matmul %23, %4, %cst_20 {dimension_numbers = #tpu.dot_dimension_numbers<[1], [1], [0], [0], [0, 0, 1, 0], [], []>} : vector<8x64xf32>, vector<8x64xf32>, vector<8x8xf32> -> vector<8x8xf32>
    %33 = tpu.iota {dimensions = array<i32: 0>} : vector<8x8xi32>
    %34 = tpu.iota {dimensions = array<i32: 1>} : vector<8x8xi32>
    %35 = arith.cmpi eq, %33, %34 : vector<8x8xi32>
    %cst_21 = arith.constant 0.000000e+00 : f32
    %36 = vector.broadcast %cst_21 : f32 to vector<8x8xf32>
    %37 = arith.select %35, %32, %36 : vector<8x8xi1>, vector<8x8xf32>
    %cst_22 = arith.constant dense<0.000000e+00> : vector<8xf32>
    %38 = vector.multi_reduction <add>, %37, %cst_22 [0] : vector<8x8xf32> to vector<8xf32>
    %39 = vector.shape_cast %38 : vector<8xf32> to vector<1x8xf32>
    %cst_23 = arith.constant 1.000000e+02 : f32
    %40 = vector.broadcast %cst_23 : f32 to vector<1x8xf32>
    %41 = arith.mulf %40, %39 : vector<1x8xf32>
    %c0_24 = arith.constant 0 : index
    %c0_25 = arith.constant 0 : index
    %c0_26 = arith.constant 0 : index
    %42 = vector.load %arg11[%c0_24, %c0_25, %c0_26] : memref<1x1x8xf32, #tpu.memory_space<vmem>>, vector<1x1x8xf32>
    %43 = vector.shape_cast %42 : vector<1x1x8xf32> to vector<1x8xf32>
    %44 = vector.shape_cast %41 : vector<1x8xf32> to vector<1x1x8xf32>
    tpu.vector_store %arg11[%c0_24, %c0_25, %c0_26], %44 {strides = array<i32>} : memref<1x1x8xf32, #tpu.memory_space<vmem>>, vector<1x1x8xf32>,
    %cst_27 = arith.constant dense<0.000000e+00> : vector<1x8xf32>
    %45 = tpu.matmul %31, %4, %cst_27 {dimension_numbers = #tpu.dot_dimension_numbers<[1], [1], [0], [0], [0, 0, 1, 0], [], []>} : vector<1x64xf32>, vector<8x64xf32>, vector<1x8xf32> -> vector<1x8xf32>
    %cst_28 = arith.constant 1.000000e+02 : f32
    %46 = vector.broadcast %cst_28 : f32 to vector<1x8xf32>
    %47 = arith.mulf %46, %45 : vector<1x8xf32>
    %c0_29 = arith.constant 0 : index
    %c0_30 = arith.constant 0 : index
    %c0_31 = arith.constant 0 : index
    %48 = vector.load %arg12[%c0_29, %c0_30, %c0_31] : memref<1x1x8xf32, #tpu.memory_space<vmem>>, vector<1x1x8xf32>
    %49 = vector.shape_cast %48 : vector<1x1x8xf32> to vector<1x8xf32>
    %50 = vector.shape_cast %47 : vector<1x8xf32> to vector<1x1x8xf32>
    tpu.vector_store %arg12[%c0_29, %c0_30, %c0_31], %50 {strides = array<i32>} : memref<1x1x8xf32, #tpu.memory_space<vmem>>, vector<1x1x8xf32>,
    %c0_32 = arith.constant 0 : index
    %c0_33 = arith.constant 0 : index
    %51 = vector.load %arg8[%c0_32, %c0_33] : memref<64x8xbf16, #tpu.memory_space<vmem>>, vector<64x8xbf16>
    %cst_34 = arith.constant dense<0.000000e+00> : vector<1x8xf32>
    %52 = tpu.matmul %3, %51, %cst_34 {dimension_numbers = #tpu.dot_dimension_numbers<[1], [0], [0], [1], [0, 0, 1, 1], [], []>} : vector<1x64xbf16>, vector<64x8xbf16>, vector<1x8xf32> -> vector<1x8xf32>
    %c0_35 = arith.constant 0 : index
    %c0_36 = arith.constant 0 : index
    %53 = vector.load %arg9[%c0_35, %c0_36] : memref<1x8xbf16, #tpu.memory_space<vmem>>, vector<1x8xbf16>
    %54 = arith.extf %53 : vector<1x8xbf16> to vector<1x8xf32>
    %55 = arith.addf %52, %54 : vector<1x8xf32>
    %c0_37 = arith.constant 0 : index
    %c0_38 = arith.constant 0 : index
    %c0_39 = arith.constant 0 : index
    %56 = vector.load %arg10[%c0_37, %c0_38, %c0_39] : memref<1x1x8xf32, #tpu.memory_space<vmem>>, vector<1x1x8xf32>
    %57 = vector.shape_cast %56 : vector<1x1x8xf32> to vector<1x8xf32>
    %58 = vector.shape_cast %55 : vector<1x8xf32> to vector<1x1x8xf32>
    tpu.vector_store %arg10[%c0_37, %c0_38, %c0_39], %58 {strides = array<i32>} : memref<1x1x8xf32, #tpu.memory_space<vmem>>, vector<1x1x8xf32>,
    return
  }
  func.func @transform_0(%arg0: i32) -> (i32, i32, i32) {
    %c0_i32 = arith.constant 0 : i32
    %c0_i32_0 = arith.constant 0 : i32
    %c0_i32_1 = arith.constant 0 : i32
    return %arg0, %c0_i32, %c0_i32_0 : i32, i32, i32
  }
  func.func @transform_1(%arg0: i32) -> (i32, i32, i32) {
    %c0_i32 = arith.constant 0 : i32
    %c0_i32_0 = arith.constant 0 : i32
    %c0_i32_1 = arith.constant 0 : i32
    return %arg0, %c0_i32, %c0_i32_0 : i32, i32, i32
  }
  func.func @transform_2(%arg0: i32) -> (i32, i32) {
    %c0_i32 = arith.constant 0 : i32
    %c0_i32_0 = arith.constant 0 : i32
    %c0_i32_1 = arith.constant 0 : i32
    return %c0_i32, %c0_i32_0 : i32, i32
  }
  func.func @transform_3(%arg0: i32) -> (i32, i32) {
    %c0_i32 = arith.constant 0 : i32
    %c0_i32_0 = arith.constant 0 : i32
    %c0_i32_1 = arith.constant 0 : i32
    return %c0_i32, %c0_i32_0 : i32, i32
  }
  func.func @transform_4(%arg0: i32) -> (i32, i32) {
    %c0_i32 = arith.constant 0 : i32
    %c0_i32_0 = arith.constant 0 : i32
    %c0_i32_1 = arith.constant 0 : i32
    return %c0_i32, %c0_i32_0 : i32, i32
  }
  func.func @transform_5(%arg0: i32) -> (i32, i32) {
    %c0_i32 = arith.constant 0 : i32
    %c0_i32_0 = arith.constant 0 : i32
    %c0_i32_1 = arith.constant 0 : i32
    return %c0_i32, %c0_i32_0 : i32, i32
  }
  func.func @transform_6(%arg0: i32) -> (i32, i32) {
    %c0_i32 = arith.constant 0 : i32
    %c0_i32_0 = arith.constant 0 : i32
    %c0_i32_1 = arith.constant 0 : i32
    return %c0_i32, %c0_i32_0 : i32, i32
  }
  func.func @transform_7(%arg0: i32) -> (i32, i32) {
    %c0_i32 = arith.constant 0 : i32
    %c0_i32_0 = arith.constant 0 : i32
    %c0_i32_1 = arith.constant 0 : i32
    return %c0_i32, %c0_i32_0 : i32, i32
  }
  func.func @transform_8(%arg0: i32) -> (i32, i32) {
    %c0_i32 = arith.constant 0 : i32
    %c0_i32_0 = arith.constant 0 : i32
    %c0_i32_1 = arith.constant 0 : i32
    return %c0_i32, %c0_i32_0 : i32, i32
  }
  func.func @transform_9(%arg0: i32) -> (i32, i32, i32) {
    %c0_i32 = arith.constant 0 : i32
    %c0_i32_0 = arith.constant 0 : i32
    %c0_i32_1 = arith.constant 0 : i32
    return %arg0, %c0_i32, %c0_i32_0 : i32, i32, i32
  }
  func.func @transform_10(%arg0: i32) -> (i32, i32, i32) {
    %c0_i32 = arith.constant 0 : i32
    %c0_i32_0 = arith.constant 0 : i32
    %c0_i32_1 = arith.constant 0 : i32
    return %arg0, %c0_i32, %c0_i32_0 : i32, i32, i32
  }
  func.func @transform_11(%arg0: i32) -> (i32, i32, i32) {
    %c0_i32 = arith.constant 0 : i32
    %c0_i32_0 = arith.constant 0 : i32
    %c0_i32_1 = arith.constant 0 : i32
    return %arg0, %c0_i32, %c0_i32_0 : i32, i32, i32
  }
}

</mosaic_0001>

<llo_original>
// kernel: osfa_forward.11
$region0: #{osfa_forward.11}
  #allocation0 [shape = 'u32[]', space=smem, size = 0x4, offset = 0x4, fixed_abs, tag = 'smem constant byte address 0x4 - core index']
  #allocation1 [shape = 'u32[144,128]{1,0:T(1,128)}', space=vmem, size = 0x12000, scoped, tag = 'internal scratch']
  %s0 = inlined_call_operand.vmem [shape: f32[2,64,16], index: 0, kind: input, shape index: {}]
  %s1 = inlined_call_operand.vmem [shape: bf16[64,64], index: 1, kind: input, shape index: {}]
  %s2 = inlined_call_operand.vmem [shape: bf16[1,64], index: 2, kind: input, shape index: {}]
  %s3 = inlined_call_operand.vmem [shape: bf16[2,16,64], index: 3, kind: output, shape index: {}]
  %s4 = sld [smem:[#allocation0]]
  $region45: #{osfa_forward.11} parent=0
    _
  %s6 = ssub.s32 1, %s4
  %s7 = scalar_select 0, %s6, %s4
  loop: start=0, step=1, limit=4
  $region2: #{osfa_forward.11} parent=0 // loop_pre_header
    _
  $region3: #{osfa_forward.11} parent=0 // loop_header
    %s9 = sphi 0, %s13
    %p10 = scmp.ge.s32.totalorder %s9, 4
    %s19 = sphi 0, %s21
    %s22 = sphi 0, %s19
    %s23 = sphi 0, %s22
    %s39 = sphi 0, %s23
    %s43 = sphi 0, %s43
    %s45 = sphi 0, %s43
    %s46 = sphi 0, %s45
    %s60 = sphi 0, %s46
    %s64 = sphi 0, %s64
    %s66 = sphi 0, %s64
    %s67 = sphi 0, %s66
    %s81 = sphi 0, %s67
    %s87 = sphi 0, %s89
    %s90 = sphi 0, %s87
    %s91 = sphi 0, %s90
    %s107 = sphi 0, %s91
  $region4: #{osfa_forward.11} parent=0 // loop_header_branch
    %12 = sbr.rel (%p10) target = $region8
  $region5: #{osfa_forward.11} parent=0 // loop_body
    %s14 = ssub.s32 %s9, 1
    %s15 = ssub.s32 %s9, 2
    %s16 = sadd.s32 %s9, 1
    %s17 = ssub.s32 %s9, %s16
    %p18 = scmp.eq.s32.totalorder %s17, 0
    %s20 = sadd.s32 %s19, 1
    %s21 = scalar_select %p18, %s19, %s20
    %p24 = pneg %p18
    %p25 = scmp.eq.s32.totalorder %s9, 1
    %p26 = por %p24, %p25
    %p27 = scmp.ne.s32.totalorder %s19, %s22
    %p28 = scmp.eq.s32.totalorder %s9, 0
    %p29 = por %p27, %p28
    %p30 = scmp.ne.s32.totalorder %s19, %s22
    %p31 = scmp.eq.s32.totalorder %s14, 1
    %p32 = por %p30, %p31
    %p33 = scmp.ne.s32.totalorder %s22, %s23
    %p34 = scmp.eq.s32.totalorder %s14, 0
    %p35 = por %p33, %p34
    %p36 = scmp.ne.s32.totalorder %s22, %s23
    %p37 = scmp.eq.s32.totalorder %s15, 1
    %p38 = por %p36, %p37
    %p40 = scmp.ne.s32.totalorder %s23, %s39
    %p41 = scmp.eq.s32.totalorder %s15, 0
    %p42 = por %p40, %p41
    %s44 = sadd.s32 %s43, 1
    %p47 = scmp.eq.s32.totalorder %s9, 1
    %p48 = scmp.ne.s32.totalorder %s43, %s45
    %p49 = scmp.eq.s32.totalorder %s9, 0
    %p50 = por %p48, %p49
    %p51 = scmp.ne.s32.totalorder %s43, %s45
    %p52 = scmp.eq.s32.totalorder %s14, 1
    %p53 = por %p51, %p52
    %p54 = scmp.ne.s32.totalorder %s45, %s46
    %p55 = scmp.eq.s32.totalorder %s14, 0
    %p56 = por %p54, %p55
    %p57 = scmp.ne.s32.totalorder %s45, %s46
    %p58 = scmp.eq.s32.totalorder %s15, 1
    %p59 = por %p57, %p58
    %p61 = scmp.ne.s32.totalorder %s46, %s60
    %p62 = scmp.eq.s32.totalorder %s15, 0
    %p63 = por %p61, %p62
    %s65 = sadd.s32 %s64, 1
    %p68 = scmp.eq.s32.totalorder %s9, 1
    %p69 = scmp.ne.s32.totalorder %s64, %s66
    %p70 = scmp.eq.s32.totalorder %s9, 0
    %p71 = por %p69, %p70
    %p72 = scmp.ne.s32.totalorder %s64, %s66
    %p73 = scmp.eq.s32.totalorder %s14, 1
    %p74 = por %p72, %p73
    %p75 = scmp.ne.s32.totalorder %s66, %s67
    %p76 = scmp.eq.s32.totalorder %s14, 0
    %p77 = por %p75, %p76
    %p78 = scmp.ne.s32.totalorder %s66, %s67
    %p79 = scmp.eq.s32.totalorder %s15, 1
    %p80 = por %p78, %p79
    %p82 = scmp.ne.s32.totalorder %s67, %s81
    %p83 = scmp.eq.s32.totalorder %s15, 0
    %p84 = por %p82, %p83
    %s85 = ssub.s32 %s9, %s16
    %p86 = scmp.eq.s32.totalorder %s85, 0
    %s88 = sadd.s32 %s87, 1
    %s89 = scalar_select %p86, %s87, %s88
    %p92 = pneg %p86
    %p93 = scmp.eq.s32.totalorder %s9, 1
    %p94 = por %p92, %p93
    %p95 = scmp.ne.s32.totalorder %s87, %s90
    %p96 = scmp.eq.s32.totalorder %s9, 0
    %p97 = por %p95, %p96
    %p98 = scmp.ne.s32.totalorder %s87, %s90
    %p99 = scmp.eq.s32.totalorder %s14, 1
    %p100 = por %p98, %p99
    %p101 = scmp.ne.s32.totalorder %s90, %s91
    %p102 = scmp.eq.s32.totalorder %s14, 0
    %p103 = por %p101, %p102
    %p104 = scmp.ne.s32.totalorder %s90, %s91
    %p105 = scmp.eq.s32.totalorder %s15, 1
    %p106 = por %p104, %p105
    %p108 = scmp.ne.s32.totalorder %s91, %s107
    %p109 = scmp.eq.s32.totalorder %s15, 0
    %p110 = por %p108, %p109
    %p111 = scmp.le.s32.totalorder 1, %s9
    %p112 = scmp.lt.s32.totalorder %s9, 3
    %p113 = pnand %p111, %p112
    %p114 = pneg %p113
    // Predicated region
    $region9: #{osfa_forward.11} parent=5 // pred_check
      _
    $region10: #{osfa_forward.11} parent=5 // pred_check_branch
      %116 = sbr.rel (%p113) target = $region12
    $region11: #{osfa_forward.11} parent=5 // pred_region
      %s117 = ssub.s32 %s9, 1
      // Predicated region
      $region13: #{osfa_forward.11} parent=11 // pred_check
        %p118 = pneg %p56
      $region14: #{osfa_forward.11} parent=11 // pred_check_branch
        %120 = sbr.rel (%p118) target = $region16
      $region15: #{osfa_forward.11} parent=11 // pred_region
        _
      $region16: #{osfa_forward.11} parent=11 // pred_fallthru
        _
      // Predicated region
      $region17: #{osfa_forward.11} parent=11 // pred_check
        %p121 = pneg %p77
      $region18: #{osfa_forward.11} parent=11 // pred_check_branch
        %123 = sbr.rel (%p121) target = $region20
      $region19: #{osfa_forward.11} parent=11 // pred_region
        _
      $region20: #{osfa_forward.11} parent=11 // pred_fallthru
        _
    $region12: #{osfa_forward.11} parent=5 // pred_fallthru
      _
    %p124 = scmp.lt.s32.totalorder %s9, 2
    // Predicated region
    $region21: #{osfa_forward.11} parent=5 // pred_check
      %p125 = pneg %p124
    $region22: #{osfa_forward.11} parent=5 // pred_check_branch
      %127 = sbr.rel (%p125) target = $region24
    $region23: #{osfa_forward.11} parent=5 // pred_region
      // Predicated region
      $region25: #{osfa_forward.11} parent=23 // pred_check
        %p128 = pneg %p29
      $region26: #{osfa_forward.11} parent=23 // pred_check_branch
        %130 = sbr.rel (%p128) target = $region28
      $region27: #{osfa_forward.11} parent=23 // pred_region
        %p131 = scmp.lt.s32.totalorder %s9, 1
        %s132 = scalar_select %p131, %s9, 1
        %s133 = smul.addr %s132, 8
        %s134 = smul.addr %s133, 8
        %s135 = scalar_lea.vmem %s0, %s134
      $region28: #{osfa_forward.11} parent=23 // pred_fallthru
        _
    $region24: #{osfa_forward.11} parent=5 // pred_fallthru
      _
    %p136 = scmp.le.s32.totalorder 1, %s9
    %p137 = scmp.lt.s32.totalorder %s9, 3
    %p138 = pnand %p136, %p137
    %p139 = pneg %p138
    // Predicated region
    $region29: #{osfa_forward.11} parent=5 // pred_check
      _
    $region30: #{osfa_forward.11} parent=5 // pred_check_branch
      %141 = sbr.rel (%p138) target = $region32
    $region31: #{osfa_forward.11} parent=5 // pred_region
      %s142 = ssub.s32 %s9, 1
      %p143 = scmp.lt.s32.totalorder %s14, 1
      %s144 = scalar_select %p143, %s14, 1
      %s145 = smul.addr %s144, 8
      %s146 = smul.addr %s145, 8
      %s147 = scalar_lea.vmem %s0, %s146
      %p148 = pneg %p35
      %p149 = pneg %p32
      %p150 = pneg %p56
      %p151 = pneg %p53
      %p152 = pneg %p77
      %p153 = pneg %p74
      %p154 = pneg %p103
      %p155 = pneg %p100
      %p156 = scmp.lt.s32.totalorder %s14, 1
      %s157 = scalar_select %p156, %s14, 1
      %s158 = smul.addr %s157, 2
      %s159 = smul.addr %s158, 4
      %s160 = scalar_lea.vmem %s3, %s159
      %p161 = scmp.lt.s32.totalorder %s14, 1
      %s162 = scalar_select %p161, %s14, 1
      %s163 = smul.addr %s162, 8
      %s164 = smul.addr %s163, 8
      %s165 = scalar_lea.vmem %s0, %s164
      %p166 = scmp.lt.s32.totalorder %s14, 1
      %s167 = scalar_select %p166, %s14, 1
      %s168 = smul.addr %s167, 2
      %s169 = smul.addr %s168, 4
      %s170 = scalar_lea.vmem %s3, %s169
      %v172 = vld [vmem:[%s165] sm:$0xff]
      %v173 = vld [vmem:[%s165 + $0x8] sm:$0xff]
      %v174 = vld [vmem:[%s165 + $0x10] sm:$0xff]
      %v175 = vld [vmem:[%s165 + $0x18] sm:$0xff]
      %v176 = vld [vmem:[%s165 + $0x20] sm:$0xff]
      %v177 = vld [vmem:[%s165 + $0x28] sm:$0xff]
      %v178 = vld [vmem:[%s165 + $0x30] sm:$0xff]
      %v179 = vld [vmem:[%s165 + $0x38] sm:$0xff]
      %v180 = vpack.c.bf16 %v173, %v172
      %v181 = vpack.c.bf16 %v175, %v174
      %v182 = vpack.c.bf16 %v177, %v176
      %v183 = vpack.c.bf16 %v179, %v178
      %v184 = vld [vmem:[%s1] sm:$0xf]
      %v185 = vld [vmem:[%s1 + $0x4] sm:$0xf]
      %v186 = vld [vmem:[%s1 + $0x8] sm:$0xf]
      %v187 = vld [vmem:[%s1 + $0xc] sm:$0xf]
      %v188 = vld [vmem:[%s1 + $0x10] sm:$0xf]
      %v189 = vld [vmem:[%s1 + $0x14] sm:$0xf]
      %v190 = vld [vmem:[%s1 + $0x18] sm:$0xf]
      %v191 = vld [vmem:[%s1 + $0x1c] sm:$0xf]
      %v192 = vld [vmem:[%s2] sm:$0x1]
      %v193 = vunpack.c.l.bf16 %v192
      %v194 = vlaneseq
      %v195 = vshrl.u32 %v194, 7
      %v196 = vsub.s32 0, %v195
      %v197 = vrot.slane %v193, %v196
      %198 = vxpose.xlu0.c.b16.start [1/8] %v180, 128
      %199 = vxpose.xlu0.c.b16.cont [2/8] %v181, 128
      %200 = vxpose.xlu0.c.b16.cont [3/8] %v182, 128
      %201 = vxpose.xlu0.c.b16.cont [4/8] %v183, 128
      %202 = vxpose.xlu0.c.b16.cont [5/8] 0, 128
      %203 = vxpose.xlu0.c.b16.cont [6/8] 0, 128
      %204 = vxpose.xlu0.c.b16.cont [7/8] 0, 128
      %205 = vxpose.xlu0.c.b16.end [8/8] 0, 128
      %v206 = vpop.trf.xlu0
      %v207 = vpop.trf.xlu0
      %v208 = vpop.trf.xlu0
      %v209 = vpop.trf.xlu0
      %v210 = vpop.trf.xlu0
      %v211 = vpop.trf.xlu0
      %v212 = vpop.trf.xlu0
      %v213 = vpop.trf.xlu0
      %v222 = vunpack.c.l.b16 %v184
      %v223 = vunpack.c.l.b16 %v185
      %v224 = vunpack.c.l.b16 %v186
      %v225 = vunpack.c.l.b16 %v187
      %v226 = vunpack.c.l.b16 %v188
      %v227 = vunpack.c.l.b16 %v189
      %v228 = vunpack.c.l.b16 %v190
      %v229 = vunpack.c.l.b16 %v191
      %v230 = vpack.c.b16 %v223, %v222
      %v231 = vpack.c.b16 %v225, %v224
      %v232 = vpack.c.b16 %v227, %v226
      %v233 = vpack.c.b16 %v229, %v228
      %vm238 = vcmask 523264
      %v240 = vsel %vm238, %v206, 0
      %242 = vmatprep.subr.bf16.mxu0 0
      %243 = vmatpush1.bf16.msra.mxu0 %v230
      %244 = vmatprep.subr.bf16.mxu0 0
      %245 = vmatpush1.bf16.msra.mxu0 %v231
      %246 = vmatprep.subr.bf16.mxu0 0
      %247 = vmatpush1.bf16.msra.mxu0 %v232
      %248 = vmatprep.subr.bf16.mxu0 0
      %249 = vmatpush1.bf16.msra.mxu0 %v233
      %250 = vmatprep.subr.bf16.mxu0 0
      %251 = vmatpush1.bf16.msra.mxu0 0
      %252 = vmatprep.subr.bf16.mxu0 0
      %253 = vmatpush1.bf16.msra.mxu0 0
      %254 = vmatprep.subr.bf16.mxu0 0
      %255 = vmatpush1.bf16.msra.mxu0 0
      %256 = vmatprep.subr.bf16.mxu0 0
      %257 = vmatpush1.bf16.msra.mxu0 0
      %258 = vmatprep.subr.bf16.mxu0 0
      %259 = vmatpush1.bf16.msra.mxu0 0
      %260 = vmatprep.subr.bf16.mxu0 0
      %261 = vmatpush1.bf16.msra.mxu0 0
      %262 = vmatprep.subr.bf16.mxu0 0
      %263 = vmatpush1.bf16.msra.mxu0 0
      %264 = vmatprep.subr.bf16.mxu0 0
      %265 = vmatpush1.bf16.msra.mxu0 0
      %266 = vmatprep.subr.bf16.mxu0 0
      %267 = vmatpush1.bf16.msra.mxu0 0
      %268 = vmatprep.subr.bf16.mxu0 0
      %269 = vmatpush1.bf16.msra.mxu0 0
      %270 = vmatprep.subr.bf16.mxu0 0
      %271 = vmatpush1.bf16.msra.mxu0 0
      %272 = vmatprep.subr.bf16.mxu0 0
      %273 = vmatpush1.bf16.msra.mxu0 0
      %274 = vmatprep.mubr.bf16.mxu0 0
      %275 = vmatmul.mubr.bf16.gmra.mrb[0].mxu0 %v240
      %v276 = vpop.f32.mrb[0].mxu0
      %v277 = vadd.f32 %v197, %v276
      %v278 = vpop.f32.mrb[0].mxu0
      %v279 = vpop.f32.mrb[0].mxu0
      %v280 = vadd.f32 %v197, %v279
      %v281 = vpop.f32.mrb[0].mxu0
      %282 = vdwg.mxu0
      %v283 = vpack.c.bf16 %v280, %v277
      %v285 = vunpack.c.l.b16 %v283
      %v286 = vunpack.c.h.b16 %v283
      %v287 = vpack.c.b16 %v285, %v285
      %v288 = vpack.c.b16 %v286, %v286
      %vm291 = vcmask 519168
      %292 = vst.msk [vmem:[%s170] sm:$0xf] %vm291, %v287
      %293 = vst.msk [vmem:[%s170 + $0x4] sm:$0xf] %vm291, %v288
      %p294 = scmp.lt.s32.totalorder %s14, 1
      %s295 = scalar_select %p294, %s14, 1
      %s296 = smul.addr %s295, 2
      %s297 = smul.addr %s296, 4
      %s298 = scalar_lea.vmem %s3, %s297
      // Predicated region
      $region33: #{osfa_forward.11} parent=31 // pred_check
        %p299 = pneg %p100
      $region34: #{osfa_forward.11} parent=31 // pred_check_branch
        %301 = sbr.rel (%p299) target = $region36
      $region35: #{osfa_forward.11} parent=31 // pred_region
        _
      $region36: #{osfa_forward.11} parent=31 // pred_fallthru
        _
    $region32: #{osfa_forward.11} parent=5 // pred_fallthru
      _
    %p302 = scmp.le.s32.totalorder 2, %s9
    // Predicated region
    $region37: #{osfa_forward.11} parent=5 // pred_check
      %p303 = pneg %p302
    $region38: #{osfa_forward.11} parent=5 // pred_check_branch
      %305 = sbr.rel (%p303) target = $region40
    $region39: #{osfa_forward.11} parent=5 // pred_region
      %s306 = ssub.s32 %s9, 2
      // Predicated region
      $region41: #{osfa_forward.11} parent=39 // pred_check
        %p307 = pneg %p106
      $region42: #{osfa_forward.11} parent=39 // pred_check_branch
        %309 = sbr.rel (%p307) target = $region44
      $region43: #{osfa_forward.11} parent=39 // pred_region
        %p310 = scmp.lt.s32.totalorder %s15, 1
        %s311 = scalar_select %p310, %s15, 1
        %s312 = smul.addr %s311, 2
        %s313 = smul.addr %s312, 4
        %s314 = scalar_lea.vmem %s3, %s313
      $region44: #{osfa_forward.11} parent=39 // pred_fallthru
        _
    $region40: #{osfa_forward.11} parent=5 // pred_fallthru
      _
  $region6: #{osfa_forward.11} parent=0 // loop_footer
    %s13 = sadd.s32 1, %s9
  $region7: #{osfa_forward.11} parent=0 // loop_footer_branch
    %8 = sbr.rel target = $region3
  $region8: #{osfa_forward.11} parent=0 // loop_exit
    _

// kernel: osfa_forward.10
$region0: #{osfa_forward.10}
  #allocation0 [shape = 'u32[]', space=smem, size = 0x4, offset = 0x4, fixed_abs, tag = 'smem constant byte address 0x4 - core index']
  #allocation1 [shape = 'u32[144,128]{1,0:T(1,128)}', space=vmem, size = 0x12000, scoped, tag = 'internal scratch']
  %s0 = inlined_call_operand.vmem [shape: f32[8,64], index: 0, kind: input, shape index: {}]
  %s1 = inlined_call_operand.vmem [shape: bf16[64,64], index: 1, kind: input, shape index: {}]
  %s2 = inlined_call_operand.vmem [shape: bf16[1,64], index: 2, kind: input, shape index: {}]
  %s3 = inlined_call_operand.vmem [shape: bf16[8,64], index: 3, kind: output, shape index: {}]
  %s4 = sld [smem:[#allocation0]]
  $region22: #{osfa_forward.10} parent=0
    _
  %s6 = ssub.s32 1, %s4
  %s7 = scalar_select 0, %s6, %s4
  // Predicated region
  $region2: #{osfa_forward.10} parent=0 // pred_check
    _
  $region3: #{osfa_forward.10} parent=0 // pred_check_branch
    %9 = sbr.rel (0) target = $region5
  $region4: #{osfa_forward.10} parent=0 // pred_region
    _
  $region5: #{osfa_forward.10} parent=0 // pred_fallthru
    _
  // Predicated region
  $region6: #{osfa_forward.10} parent=0 // pred_check
    _
  $region7: #{osfa_forward.10} parent=0 // pred_check_branch
    %11 = sbr.rel (0) target = $region9
  $region8: #{osfa_forward.10} parent=0 // pred_region
    _
  $region9: #{osfa_forward.10} parent=0 // pred_fallthru
    _
  // Predicated region
  $region10: #{osfa_forward.10} parent=0 // pred_check
    _
  $region11: #{osfa_forward.10} parent=0 // pred_check_branch
    %13 = sbr.rel (0) target = $region13
  $region12: #{osfa_forward.10} parent=0 // pred_region
    _
  $region13: #{osfa_forward.10} parent=0 // pred_fallthru
    _
  %v15 = vld [vmem:[%s0] sm:$0xff]
  %v16 = vpack.c.bf16 %v15, %v15
  %v17 = vld [vmem:[%s1] sm:$0xf]
  %v18 = vld [vmem:[%s1 + $0x4] sm:$0xf]
  %v19 = vld [vmem:[%s1 + $0x8] sm:$0xf]
  %v20 = vld [vmem:[%s1 + $0xc] sm:$0xf]
  %v21 = vld [vmem:[%s1 + $0x10] sm:$0xf]
  %v22 = vld [vmem:[%s1 + $0x14] sm:$0xf]
  %v23 = vld [vmem:[%s1 + $0x18] sm:$0xf]
  %v24 = vld [vmem:[%s1 + $0x1c] sm:$0xf]
  %v25 = vld [vmem:[%s2] sm:$0x1]
  %v26 = vunpack.c.l.bf16 %v25
  %v27 = vlaneseq
  %v28 = vshrl.u32 %v27, 7
  %v29 = vsub.s32 0, %v28
  %v30 = vrot.slane %v26, %v29
  %v39 = vunpack.c.l.b16 %v17
  %v40 = vunpack.c.l.b16 %v18
  %v41 = vunpack.c.l.b16 %v19
  %v42 = vunpack.c.l.b16 %v20
  %v43 = vunpack.c.l.b16 %v21
  %v44 = vunpack.c.l.b16 %v22
  %v45 = vunpack.c.l.b16 %v23
  %v46 = vunpack.c.l.b16 %v24
  %v47 = vpack.c.b16 %v40, %v39
  %v48 = vpack.c.b16 %v42, %v41
  %v49 = vpack.c.b16 %v44, %v43
  %v50 = vpack.c.b16 %v46, %v45
  %vm55 = vcmask 523264
  %v57 = vsel %vm55, %v16, 0
  %59 = vmatprep.subr.bf16.mxu0 0
  %60 = vmatpush1.bf16.msra.mxu0 %v47
  %61 = vmatprep.subr.bf16.mxu0 0
  %62 = vmatpush1.bf16.msra.mxu0 %v48
  %63 = vmatprep.subr.bf16.mxu0 0
  %64 = vmatpush1.bf16.msra.mxu0 %v49
  %65 = vmatprep.subr.bf16.mxu0 0
  %66 = vmatpush1.bf16.msra.mxu0 %v50
  %67 = vmatprep.subr.bf16.mxu0 0
  %68 = vmatpush1.bf16.msra.mxu0 0
  %69 = vmatprep.subr.bf16.mxu0 0
  %70 = vmatpush1.bf16.msra.mxu0 0
  %71 = vmatprep.subr.bf16.mxu0 0
  %72 = vmatpush1.bf16.msra.mxu0 0
  %73 = vmatprep.subr.bf16.mxu0 0
  %74 = vmatpush1.bf16.msra.mxu0 0
  %75 = vmatprep.subr.bf16.mxu0 0
  %76 = vmatpush1.bf16.msra.mxu0 0
  %77 = vmatprep.subr.bf16.mxu0 0
  %78 = vmatpush1.bf16.msra.mxu0 0
  %79 = vmatprep.subr.bf16.mxu0 0
  %80 = vmatpush1.bf16.msra.mxu0 0
  %81 = vmatprep.subr.bf16.mxu0 0
  %82 = vmatpush1.bf16.msra.mxu0 0
  %83 = vmatprep.subr.bf16.mxu0 0
  %84 = vmatpush1.bf16.msra.mxu0 0
  %85 = vmatprep.subr.bf16.mxu0 0
  %86 = vmatpush1.bf16.msra.mxu0 0
  %87 = vmatprep.subr.bf16.mxu0 0
  %88 = vmatpush1.bf16.msra.mxu0 0
  %89 = vmatprep.subr.bf16.mxu0 0
  %90 = vmatpush1.bf16.msra.mxu0 0
  %91 = vmatprep.mubr.bf16.mxu0 0
  %92 = vmatmul.mubr.bf16.gmra.mrb[0].mxu0 %v57
  %v93 = vpop.f32.mrb[0].mxu0
  %v94 = vadd.f32 %v30, %v93
  %v95 = vpop.f32.mrb[0].mxu0
  %v96 = vpop.f32.mrb[0].mxu0
  %v97 = vpop.f32.mrb[0].mxu0
  %98 = vdwg.mxu0
  %v99 = vpack.c.bf16 %v94, %v94
  %vm100 = vcmask 519168
  %101 = vst.msk [vmem:[%s3] sm:$0xf] %vm100, %v99
  // Predicated region
  $region14: #{osfa_forward.10} parent=0 // pred_check
    _
  $region15: #{osfa_forward.10} parent=0 // pred_check_branch
    %103 = sbr.rel (0) target = $region17
  $region16: #{osfa_forward.10} parent=0 // pred_region
    _
  $region17: #{osfa_forward.10} parent=0 // pred_fallthru
    _
  // Predicated region
  $region18: #{osfa_forward.10} parent=0 // pred_check
    _
  $region19: #{osfa_forward.10} parent=0 // pred_check_branch
    %105 = sbr.rel (0) target = $region21
  $region20: #{osfa_forward.10} parent=0 // pred_region
    _
  $region21: #{osfa_forward.10} parent=0 // pred_fallthru
    _

// kernel: osfa_forward.14
$region0: #{osfa_forward.14}
  #allocation0 [shape = 'u32[]', space=smem, size = 0x4, offset = 0x4, fixed_abs, tag = 'smem constant byte address 0x4 - core index']
  #allocation1 [shape = 'u32[144,128]{1,0:T(1,128)}', space=vmem, size = 0x12000, scoped, tag = 'internal scratch']
  %s0 = inlined_call_operand.vmem [shape: bf16[8,64], index: 0, kind: input, shape index: {}]
  %s1 = inlined_call_operand.vmem [shape: bf16[64,64], index: 1, kind: input, shape index: {}]
  %s2 = inlined_call_operand.vmem [shape: bf16[1,64], index: 2, kind: input, shape index: {}]
  %s3 = inlined_call_operand.vmem [shape: bf16[8,64], index: 3, kind: output, shape index: {}]
  %s4 = sld [smem:[#allocation0]]
  $region22: #{osfa_forward.14} parent=0
    _
  %s6 = ssub.s32 1, %s4
  %s7 = scalar_select 0, %s6, %s4
  // Predicated region
  $region2: #{osfa_forward.14} parent=0 // pred_check
    _
  $region3: #{osfa_forward.14} parent=0 // pred_check_branch
    %9 = sbr.rel (0) target = $region5
  $region4: #{osfa_forward.14} parent=0 // pred_region
    _
  $region5: #{osfa_forward.14} parent=0 // pred_fallthru
    _
  // Predicated region
  $region6: #{osfa_forward.14} parent=0 // pred_check
    _
  $region7: #{osfa_forward.14} parent=0 // pred_check_branch
    %11 = sbr.rel (0) target = $region9
  $region8: #{osfa_forward.14} parent=0 // pred_region
    _
  $region9: #{osfa_forward.14} parent=0 // pred_fallthru
    _
  // Predicated region
  $region10: #{osfa_forward.14} parent=0 // pred_check
    _
  $region11: #{osfa_forward.14} parent=0 // pred_check_branch
    %13 = sbr.rel (0) target = $region13
  $region12: #{osfa_forward.14} parent=0 // pred_region
    _
  $region13: #{osfa_forward.14} parent=0 // pred_fallthru
    _
  %v15 = vld [vmem:[%s0] sm:$0xf]
  %v16 = vld [vmem:[%s1] sm:$0xf]
  %v17 = vld [vmem:[%s1 + $0x4] sm:$0xf]
  %v18 = vld [vmem:[%s1 + $0x8] sm:$0xf]
  %v19 = vld [vmem:[%s1 + $0xc] sm:$0xf]
  %v20 = vld [vmem:[%s1 + $0x10] sm:$0xf]
  %v21 = vld [vmem:[%s1 + $0x14] sm:$0xf]
  %v22 = vld [vmem:[%s1 + $0x18] sm:$0xf]
  %v23 = vld [vmem:[%s1 + $0x1c] sm:$0xf]
  %v24 = vld [vmem:[%s2] sm:$0x1]
  %v25 = vunpack.c.l.bf16 %v24
  %v26 = vlaneseq
  %v27 = vshrl.u32 %v26, 7
  %v28 = vsub.s32 0, %v27
  %v29 = vrot.slane %v25, %v28
  %v38 = vunpack.c.l.b16 %v16
  %v39 = vunpack.c.l.b16 %v17
  %v40 = vunpack.c.l.b16 %v18
  %v41 = vunpack.c.l.b16 %v19
  %v42 = vunpack.c.l.b16 %v20
  %v43 = vunpack.c.l.b16 %v21
  %v44 = vunpack.c.l.b16 %v22
  %v45 = vunpack.c.l.b16 %v23
  %v46 = vpack.c.b16 %v39, %v38
  %v47 = vpack.c.b16 %v41, %v40
  %v48 = vpack.c.b16 %v43, %v42
  %v49 = vpack.c.b16 %v45, %v44
  %vm54 = vcmask 523264
  %v56 = vsel %vm54, %v15, 0
  %58 = vmatprep.subr.bf16.mxu0 0
  %59 = vmatpush1.bf16.msra.mxu0 %v46
  %60 = vmatprep.subr.bf16.mxu0 0
  %61 = vmatpush1.bf16.msra.mxu0 %v47
  %62 = vmatprep.subr.bf16.mxu0 0
  %63 = vmatpush1.bf16.msra.mxu0 %v48
  %64 = vmatprep.subr.bf16.mxu0 0
  %65 = vmatpush1.bf16.msra.mxu0 %v49
  %66 = vmatprep.subr.bf16.mxu0 0
  %67 = vmatpush1.bf16.msra.mxu0 0
  %68 = vmatprep.subr.bf16.mxu0 0
  %69 = vmatpush1.bf16.msra.mxu0 0
  %70 = vmatprep.subr.bf16.mxu0 0
  %71 = vmatpush1.bf16.msra.mxu0 0
  %72 = vmatprep.subr.bf16.mxu0 0
  %73 = vmatpush1.bf16.msra.mxu0 0
  %74 = vmatprep.subr.bf16.mxu0 0
  %75 = vmatpush1.bf16.msra.mxu0 0
  %76 = vmatprep.subr.bf16.mxu0 0
  %77 = vmatpush1.bf16.msra.mxu0 0
  %78 = vmatprep.subr.bf16.mxu0 0
  %79 = vmatpush1.bf16.msra.mxu0 0
  %80 = vmatprep.subr.bf16.mxu0 0
  %81 = vmatpush1.bf16.msra.mxu0 0
  %82 = vmatprep.subr.bf16.mxu0 0
  %83 = vmatpush1.bf16.msra.mxu0 0
  %84 = vmatprep.subr.bf16.mxu0 0
  %85 = vmatpush1.bf16.msra.mxu0 0
  %86 = vmatprep.subr.bf16.mxu0 0
  %87 = vmatpush1.bf16.msra.mxu0 0
  %88 = vmatprep.subr.bf16.mxu0 0
  %89 = vmatpush1.bf16.msra.mxu0 0
  %90 = vmatprep.mubr.bf16.mxu0 0
  %91 = vmatmul.mubr.bf16.gmra.mrb[0].mxu0 %v56
  %v92 = vpop.f32.mrb[0].mxu0
  %v93 = vadd.f32 %v29, %v92
  %v94 = vpop.f32.mrb[0].mxu0
  %v95 = vpop.f32.mrb[0].mxu0
  %v96 = vpop.f32.mrb[0].mxu0
  %97 = vdwg.mxu0
  %v98 = vmul.f32 %v93, 0.35355338
  %v99 = vpack.c.bf16 %v98, %v98
  %vm100 = vcmask 519168
  %101 = vst.msk [vmem:[%s3] sm:$0xf] %vm100, %v99
  // Predicated region
  $region14: #{osfa_forward.14} parent=0 // pred_check
    _
  $region15: #{osfa_forward.14} parent=0 // pred_check_branch
    %103 = sbr.rel (0) target = $region17
  $region16: #{osfa_forward.14} parent=0 // pred_region
    _
  $region17: #{osfa_forward.14} parent=0 // pred_fallthru
    _
  // Predicated region
  $region18: #{osfa_forward.14} parent=0 // pred_check
    _
  $region19: #{osfa_forward.14} parent=0 // pred_check_branch
    %105 = sbr.rel (0) target = $region21
  $region20: #{osfa_forward.14} parent=0 // pred_region
    _
  $region21: #{osfa_forward.14} parent=0 // pred_fallthru
    _

// kernel: osfa_forward.9
$region0: #{osfa_forward.9}
  #allocation0 [shape = 'u32[]', space=smem, size = 0x4, offset = 0x4, fixed_abs, tag = 'smem constant byte address 0x4 - core index']
  #allocation1 [shape = 'u32[144,128]{1,0:T(1,128)}', space=vmem, size = 0x12000, scoped, tag = 'internal scratch']
  %s0 = inlined_call_operand.vmem [shape: f32[2,64], index: 0, kind: input, shape index: {}]
  %s1 = inlined_call_operand.vmem [shape: bf16[64,64], index: 1, kind: input, shape index: {}]
  %s2 = inlined_call_operand.vmem [shape: bf16[1,64], index: 2, kind: input, shape index: {}]
  %s3 = inlined_call_operand.vmem [shape: bf16[2,64], index: 3, kind: output, shape index: {}]
  %s4 = sld [smem:[#allocation0]]
  $region22: #{osfa_forward.9} parent=0
    _
  %s6 = ssub.s32 1, %s4
  %s7 = scalar_select 0, %s6, %s4
  // Predicated region
  $region2: #{osfa_forward.9} parent=0 // pred_check
    _
  $region3: #{osfa_forward.9} parent=0 // pred_check_branch
    %9 = sbr.rel (0) target = $region5
  $region4: #{osfa_forward.9} parent=0 // pred_region
    _
  $region5: #{osfa_forward.9} parent=0 // pred_fallthru
    _
  // Predicated region
  $region6: #{osfa_forward.9} parent=0 // pred_check
    _
  $region7: #{osfa_forward.9} parent=0 // pred_check_branch
    %11 = sbr.rel (0) target = $region9
  $region8: #{osfa_forward.9} parent=0 // pred_region
    _
  $region9: #{osfa_forward.9} parent=0 // pred_fallthru
    _
  // Predicated region
  $region10: #{osfa_forward.9} parent=0 // pred_check
    _
  $region11: #{osfa_forward.9} parent=0 // pred_check_branch
    %13 = sbr.rel (0) target = $region13
  $region12: #{osfa_forward.9} parent=0 // pred_region
    _
  $region13: #{osfa_forward.9} parent=0 // pred_fallthru
    _
  %v15 = vld [vmem:[%s0] sm:$0x3]
  %v16 = vpack.c.bf16 %v15, %v15
  %v17 = vld [vmem:[%s1] sm:$0xf]
  %v18 = vld [vmem:[%s1 + $0x4] sm:$0xf]
  %v19 = vld [vmem:[%s1 + $0x8] sm:$0xf]
  %v20 = vld [vmem:[%s1 + $0xc] sm:$0xf]
  %v21 = vld [vmem:[%s1 + $0x10] sm:$0xf]
  %v22 = vld [vmem:[%s1 + $0x14] sm:$0xf]
  %v23 = vld [vmem:[%s1 + $0x18] sm:$0xf]
  %v24 = vld [vmem:[%s1 + $0x1c] sm:$0xf]
  %v25 = vld [vmem:[%s2] sm:$0x1]
  %v26 = vunpack.c.l.bf16 %v25
  %v27 = vlaneseq
  %v28 = vshrl.u32 %v27, 7
  %v29 = vsub.s32 0, %v28
  %v30 = vrot.slane %v26, %v29
  %v39 = vunpack.c.l.b16 %v17
  %v40 = vunpack.c.l.b16 %v18
  %v41 = vunpack.c.l.b16 %v19
  %v42 = vunpack.c.l.b16 %v20
  %v43 = vunpack.c.l.b16 %v21
  %v44 = vunpack.c.l.b16 %v22
  %v45 = vunpack.c.l.b16 %v23
  %v46 = vunpack.c.l.b16 %v24
  %v47 = vpack.c.b16 %v40, %v39
  %v48 = vpack.c.b16 %v42, %v41
  %v49 = vpack.c.b16 %v44, %v43
  %v50 = vpack.c.b16 %v46, %v45
  %vm55 = vcmask 523264
  %v57 = vsel %vm55, %v16, 0
  %59 = vmatprep.subr.bf16.mxu0 0
  %60 = vmatpush1.bf16.msra.mxu0 %v47
  %61 = vmatprep.subr.bf16.mxu0 0
  %62 = vmatpush1.bf16.msra.mxu0 %v48
  %63 = vmatprep.subr.bf16.mxu0 0
  %64 = vmatpush1.bf16.msra.mxu0 %v49
  %65 = vmatprep.subr.bf16.mxu0 0
  %66 = vmatpush1.bf16.msra.mxu0 %v50
  %67 = vmatprep.subr.bf16.mxu0 0
  %68 = vmatpush1.bf16.msra.mxu0 0
  %69 = vmatprep.subr.bf16.mxu0 0
  %70 = vmatpush1.bf16.msra.mxu0 0
  %71 = vmatprep.subr.bf16.mxu0 0
  %72 = vmatpush1.bf16.msra.mxu0 0
  %73 = vmatprep.subr.bf16.mxu0 0
  %74 = vmatpush1.bf16.msra.mxu0 0
  %75 = vmatprep.subr.bf16.mxu0 0
  %76 = vmatpush1.bf16.msra.mxu0 0
  %77 = vmatprep.subr.bf16.mxu0 0
  %78 = vmatpush1.bf16.msra.mxu0 0
  %79 = vmatprep.subr.bf16.mxu0 0
  %80 = vmatpush1.bf16.msra.mxu0 0
  %81 = vmatprep.subr.bf16.mxu0 0
  %82 = vmatpush1.bf16.msra.mxu0 0
  %83 = vmatprep.subr.bf16.mxu0 0
  %84 = vmatpush1.bf16.msra.mxu0 0
  %85 = vmatprep.subr.bf16.mxu0 0
  %86 = vmatpush1.bf16.msra.mxu0 0
  %87 = vmatprep.subr.bf16.mxu0 0
  %88 = vmatpush1.bf16.msra.mxu0 0
  %89 = vmatprep.subr.bf16.mxu0 0
  %90 = vmatpush1.bf16.msra.mxu0 0
  %91 = vmatprep.mubr.bf16.mxu0 0
  %92 = vmatmul.mubr.bf16.gmra.mrb[0].mxu0 %v57
  %v93 = vpop.f32.mrb[0].mxu0
  %v94 = vadd.f32 %v30, %v93
  %v95 = vpop.f32.mrb[0].mxu0
  %v96 = vpop.f32.mrb[0].mxu0
  %v97 = vpop.f32.mrb[0].mxu0
  %98 = vdwg.mxu0
  %v99 = vpack.c.bf16 %v94, %v94
  %vm100 = vcmask 516096
  %101 = vst.msk [vmem:[%s3] sm:$0x1] %vm100, %v99
  // Predicated region
  $region14: #{osfa_forward.9} parent=0 // pred_check
    _
  $region15: #{osfa_forward.9} parent=0 // pred_check_branch
    %103 = sbr.rel (0) target = $region17
  $region16: #{osfa_forward.9} parent=0 // pred_region
    _
  $region17: #{osfa_forward.9} parent=0 // pred_fallthru
    _
  // Predicated region
  $region18: #{osfa_forward.9} parent=0 // pred_check
    _
  $region19: #{osfa_forward.9} parent=0 // pred_check_branch
    %105 = sbr.rel (0) target = $region21
  $region20: #{osfa_forward.9} parent=0 // pred_region
    _
  $region21: #{osfa_forward.9} parent=0 // pred_fallthru
    _

// kernel: osfa_forward.12
$region0: #{osfa_forward.12}
  #allocation0 [shape = 'u32[]', space=smem, size = 0x4, offset = 0x4, fixed_abs, tag = 'smem constant byte address 0x4 - core index']
  #allocation1 [shape = 'u32[144,128]{1,0:T(1,128)}', space=vmem, size = 0x12000, scoped, tag = 'internal scratch']
  %s0 = inlined_call_operand.vmem [shape: bf16[2,64], index: 0, kind: input, shape index: {}]
  %s1 = inlined_call_operand.vmem [shape: bf16[2,16,64], index: 1, kind: input, shape index: {}]
  %s2 = inlined_call_operand.vmem [shape: bf16[64,256], index: 2, kind: input, shape index: {}]
  %s3 = inlined_call_operand.vmem [shape: bf16[1,256], index: 3, kind: input, shape index: {}]
  %s4 = inlined_call_operand.vmem [shape: bf16[256,64], index: 4, kind: input, shape index: {}]
  %s5 = inlined_call_operand.vmem [shape: bf16[1,64], index: 5, kind: input, shape index: {}]
  %s6 = inlined_call_operand.vmem [shape: bf16[1,64], index: 6, kind: input, shape index: {}]
  %s7 = inlined_call_operand.vmem [shape: bf16[1,64], index: 7, kind: input, shape index: {}]
  %s8 = inlined_call_operand.vmem [shape: bf16[2,64], index: 8, kind: output, shape index: {}]
  %s9 = sld [smem:[#allocation0]]
  $region42: #{osfa_forward.12} parent=0
    _
  %s11 = ssub.s32 1, %s9
  %s12 = scalar_select 0, %s11, %s9
  // Predicated region
  $region2: #{osfa_forward.12} parent=0 // pred_check
    _
  $region3: #{osfa_forward.12} parent=0 // pred_check_branch
    %14 = sbr.rel (0) target = $region5
  $region4: #{osfa_forward.12} parent=0 // pred_region
    _
  $region5: #{osfa_forward.12} parent=0 // pred_fallthru
    _
  // Predicated region
  $region6: #{osfa_forward.12} parent=0 // pred_check
    _
  $region7: #{osfa_forward.12} parent=0 // pred_check_branch
    %16 = sbr.rel (0) target = $region9
  $region8: #{osfa_forward.12} parent=0 // pred_region
    _
  $region9: #{osfa_forward.12} parent=0 // pred_fallthru
    _
  // Predicated region
  $region10: #{osfa_forward.12} parent=0 // pred_check
    _
  $region11: #{osfa_forward.12} parent=0 // pred_check_branch
    %18 = sbr.rel (0) target = $region13
  $region12: #{osfa_forward.12} parent=0 // pred_region
    _
  $region13: #{osfa_forward.12} parent=0 // pred_fallthru
    _
  // Predicated region
  $region14: #{osfa_forward.12} parent=0 // pred_check
    _
  $region15: #{osfa_forward.12} parent=0 // pred_check_branch
    %20 = sbr.rel (0) target = $region17
  $region16: #{osfa_forward.12} parent=0 // pred_region
    _
  $region17: #{osfa_forward.12} parent=0 // pred_fallthru
    _
  // Predicated region
  $region18: #{osfa_forward.12} parent=0 // pred_check
    _
  $region19: #{osfa_forward.12} parent=0 // pred_check_branch
    %22 = sbr.rel (0) target = $region21
  $region20: #{osfa_forward.12} parent=0 // pred_region
    _
  $region21: #{osfa_forward.12} parent=0 // pred_fallthru
    _
  // Predicated region
  $region22: #{osfa_forward.12} parent=0 // pred_check
    _
  $region23: #{osfa_forward.12} parent=0 // pred_check_branch
    %24 = sbr.rel (0) target = $region25
  $region24: #{osfa_forward.12} parent=0 // pred_region
    _
  $region25: #{osfa_forward.12} parent=0 // pred_fallthru
    _
  // Predicated region
  $region26: #{osfa_forward.12} parent=0 // pred_check
    _
  $region27: #{osfa_forward.12} parent=0 // pred_check_branch
    %26 = sbr.rel (0) target = $region29
  $region28: #{osfa_forward.12} parent=0 // pred_region
    _
  $region29: #{osfa_forward.12} parent=0 // pred_fallthru
    _
  // Predicated region
  $region30: #{osfa_forward.12} parent=0 // pred_check
    _
  $region31: #{osfa_forward.12} parent=0 // pred_check_branch
    %28 = sbr.rel (0) target = $region33
  $region32: #{osfa_forward.12} parent=0 // pred_region
    _
  $region33: #{osfa_forward.12} parent=0 // pred_fallthru
    _
  %v30 = vld [vmem:[%s1] sm:$0xf]
  %v31 = vld [vmem:[%s1 + $0x4] sm:$0xf]
  %v32 = vld [vmem:[%s1 + $0x8] sm:$0xf]
  %v33 = vld [vmem:[%s1 + $0xc] sm:$0xf]
  %v34 = vunpack.c.l.bf16 %v30
  %v35 = vunpack.c.l.bf16 %v31
  %v36 = vunpack.c.l.bf16 %v32
  %v37 = vunpack.c.l.bf16 %v33
  %vm38 = vcmask 523264
  %v39 = vsel %vm38, %v34, 0.0
  %v40 = vsel %vm38, %v35, 0.0
  %v41 = vadd.f32 %v39, %v40
  %v42 = vrot.slane %v41, 4
  %v43 = vadd.f32 %v41, %v42
  %v44 = vrot.slane %v43, 2
  %v45 = vadd.f32 %v43, %v44
  %v46 = vrot.slane %v45, 1
  %v47 = vadd.f32 %v45, %v46
  %v48 = vsel %vm38, %v36, 0.0
  %v49 = vsel %vm38, %v37, 0.0
  %v50 = vadd.f32 %v48, %v49
  %v51 = vrot.slane %v50, 4
  %v52 = vadd.f32 %v50, %v51
  %v53 = vrot.slane %v52, 2
  %v54 = vadd.f32 %v52, %v53
  %v55 = vrot.slane %v54, 1
  %v56 = vadd.f32 %v54, %v55
  %v57 = vrcp.pop 16.0
  %v58 = vmul.f32 %v47, %v57
  %v59 = vmul.f32 %v56, %v57
  %v60 = vld [vmem:[%s0] sm:$0x1]
  %v61 = vunpack.c.l.bf16 %v60
  %v65 = vunpack.c.l.s4 1983009808
  %v66 = vunpack.c.0.s8 %v65
  %v67 = vlaneseq
  %v68 = vshrl.u32 %v67, 7
  %v69 = vsub.s32 %v66, %v68
  %v70 = vrot.slane %v58, %v69
  %v72 = vunpack.c.l.s4 1983009808
  %v73 = vunpack.c.0.s8 %v72
  %v74 = vlaneseq
  %v75 = vshrl.u32 %v74, 7
  %v76 = vsub.s32 %v73, %v75
  %v77 = vrot.slane %v59, %v76
  %vm78 = vcmask 1044484
  %v79 = vsel %vm78, %v70, %v70
  %vm80 = vcmask 1046534
  %v81 = vsel %vm80, %v70, %v79
  %v82 = vrot.slane %v77, 7
  %vm83 = vcmask 1041409
  %v84 = vsel %vm83, %v82, %v81
  %vm85 = vcmask 1043459
  %v86 = vsel %vm85, %v82, %v84
  %vm87 = vcmask 1045509
  %v88 = vsel %vm87, %v82, %v86
  %vm89 = vcmask 1047559
  %v90 = vsel %vm89, %v82, %v88
  %v92 = vadd.f32 %v61, %v90
  %v93 = vpack.c.bf16 %v92, %v92
  %v94 = vld [vmem:[%s2] sm:$0xff]
  %v95 = vld [vmem:[%s2 + $0x8] sm:$0xff]
  %v96 = vld [vmem:[%s2 + $0x10] sm:$0xff]
  %v97 = vld [vmem:[%s2 + $0x18] sm:$0xff]
  %v98 = vld [vmem:[%s2 + $0x20] sm:$0xff]
  %v99 = vld [vmem:[%s2 + $0x28] sm:$0xff]
  %v100 = vld [vmem:[%s2 + $0x30] sm:$0xff]
  %v101 = vld [vmem:[%s2 + $0x38] sm:$0xff]
  %v102 = vld [vmem:[%s3] sm:$0x3]
  %v103 = vunpack.c.l.bf16 %v102
  %v105 = vlaneseq
  %v106 = vshrl.u32 %v105, 7
  %v107 = vsub.s32 0, %v106
  %v108 = vrot.slane %v103, %v107
  %v109 = vlaneseq
  %v110 = vshrl.u32 %v109, 7
  %v111 = vsub.s32 2, %v110
  %v112 = vrot.slane %v103, %v111
  %v115 = vlaneseq
  %v116 = vshrl.u32 %v115, 7
  %v117 = vsub.s32 0, %v116
  %v118 = vrot.slane %v108, %v117
  %v119 = vlaneseq
  %v120 = vshrl.u32 %v119, 7
  %v121 = vsub.s32 0, %v120
  %v122 = vrot.slane %v112, %v121
  %v131 = vunpack.c.l.b16 %v94
  %v132 = vunpack.c.h.b16 %v94
  %v133 = vunpack.c.l.b16 %v95
  %v134 = vunpack.c.h.b16 %v95
  %v135 = vunpack.c.l.b16 %v96
  %v136 = vunpack.c.h.b16 %v96
  %v137 = vunpack.c.l.b16 %v97
  %v138 = vunpack.c.h.b16 %v97
  %v139 = vunpack.c.l.b16 %v98
  %v140 = vunpack.c.h.b16 %v98
  %v141 = vunpack.c.l.b16 %v99
  %v142 = vunpack.c.h.b16 %v99
  %v143 = vunpack.c.l.b16 %v100
  %v144 = vunpack.c.h.b16 %v100
  %v145 = vunpack.c.l.b16 %v101
  %v146 = vunpack.c.h.b16 %v101
  %v147 = vpack.c.b16 %v133, %v131
  %v148 = vpack.c.b16 %v134, %v132
  %v149 = vpack.c.b16 %v137, %v135
  %v150 = vpack.c.b16 %v138, %v136
  %v151 = vpack.c.b16 %v141, %v139
  %v152 = vpack.c.b16 %v142, %v140
  %v153 = vpack.c.b16 %v145, %v143
  %v154 = vpack.c.b16 %v146, %v144
  %v164 = vsel %vm38, %v93, 0
  %166 = vmatprep.subr.bf16.mxu0 %v148
  %167 = vmatpush1.bf16.msra.mxu0 %v147
  %168 = vmatprep.subr.bf16.mxu0 %v150
  %169 = vmatpush1.bf16.msra.mxu0 %v149
  %170 = vmatprep.subr.bf16.mxu0 %v152
  %171 = vmatpush1.bf16.msra.mxu0 %v151
  %172 = vmatprep.subr.bf16.mxu0 %v154
  %173 = vmatpush1.bf16.msra.mxu0 %v153
  %174 = vmatprep.subr.bf16.mxu0 0
  %175 = vmatpush1.bf16.msra.mxu0 0
  %176 = vmatprep.subr.bf16.mxu0 0
  %177 = vmatpush1.bf16.msra.mxu0 0
  %178 = vmatprep.subr.bf16.mxu0 0
  %179 = vmatpush1.bf16.msra.mxu0 0
  %180 = vmatprep.subr.bf16.mxu0 0
  %181 = vmatpush1.bf16.msra.mxu0 0
  %182 = vmatprep.subr.bf16.mxu0 0
  %183 = vmatpush1.bf16.msra.mxu0 0
  %184 = vmatprep.subr.bf16.mxu0 0
  %185 = vmatpush1.bf16.msra.mxu0 0
  %186 = vmatprep.subr.bf16.mxu0 0
  %187 = vmatpush1.bf16.msra.mxu0 0
  %188 = vmatprep.subr.bf16.mxu0 0
  %189 = vmatpush1.bf16.msra.mxu0 0
  %190 = vmatprep.subr.bf16.mxu0 0
  %191 = vmatpush1.bf16.msra.mxu0 0
  %192 = vmatprep.subr.bf16.mxu0 0
  %193 = vmatpush1.bf16.msra.mxu0 0
  %194 = vmatprep.subr.bf16.mxu0 0
  %195 = vmatpush1.bf16.msra.mxu0 0
  %196 = vmatprep.subr.bf16.mxu0 0
  %197 = vmatpush1.bf16.msra.mxu0 0
  %198 = vmatprep.mubr.bf16.mxu0 0
  %199 = vmatmul.mubr.bf16.gmra.mrb[0].mxu0 %v164
  %v200 = vpop.f32.mrb[0].mxu0
  %v201 = vadd.f32 %v118, %v200
  %v202 = vpop.f32.mrb[0].mxu0
  %v203 = vadd.f32 %v122, %v202
  %v204 = vpop.f32.mrb[0].mxu0
  %v205 = vpop.f32.mrb[0].mxu0
  %206 = vdwg.mxu0
  %v207 = vmul.f32 %v201, 0.5
  %v208 = vmul.f32 %v203, 0.5
  %v209 = vmul.f32 %v201, 0.044715
  %v210 = vmul.f32 %v203, 0.044715
  %v211 = vmul.f32 %v209, %v201
  %v212 = vmul.f32 %v210, %v203
  %v213 = vmul.f32 %v211, %v201
  %v214 = vmul.f32 %v212, %v203
  %v215 = vadd.f32 %v201, %v213
  %v216 = vadd.f32 %v203, %v214
  %v217 = vmul.f32 %v215, 0.7978846
  %v218 = vmul.f32 %v216, 0.7978846
  %v219 = vtanh.pop %v217
  %v220 = vtanh.pop %v218
  %v221 = vadd.f32 %v219, 1.0
  %v222 = vadd.f32 %v220, 1.0
  %v223 = vmul.f32 %v207, %v221
  %v224 = vmul.f32 %v208, %v222
  %v225 = vpack.c.bf16 %v223, %v223
  %v226 = vpack.c.bf16 %v224, %v224
  %v227 = vld [vmem:[%s4] sm:$0xf]
  %v228 = vld [vmem:[%s4 + $0x4] sm:$0xf]
  %v229 = vld [vmem:[%s4 + $0x8] sm:$0xf]
  %v230 = vld [vmem:[%s4 + $0xc] sm:$0xf]
  %v231 = vld [vmem:[%s4 + $0x10] sm:$0xf]
  %v232 = vld [vmem:[%s4 + $0x14] sm:$0xf]
  %v233 = vld [vmem:[%s4 + $0x18] sm:$0xf]
  %v234 = vld [vmem:[%s4 + $0x1c] sm:$0xf]
  %v235 = vld [vmem:[%s4 + $0x20] sm:$0xf]
  %v236 = vld [vmem:[%s4 + $0x24] sm:$0xf]
  %v237 = vld [vmem:[%s4 + $0x28] sm:$0xf]
  %v238 = vld [vmem:[%s4 + $0x2c] sm:$0xf]
  %v239 = vld [vmem:[%s4 + $0x30] sm:$0xf]
  %v240 = vld [vmem:[%s4 + $0x34] sm:$0xf]
  %v241 = vld [vmem:[%s4 + $0x38] sm:$0xf]
  %v242 = vld [vmem:[%s4 + $0x3c] sm:$0xf]
  %v243 = vld [vmem:[%s4 + $0x40] sm:$0xf]
  %v244 = vld [vmem:[%s4 + $0x44] sm:$0xf]
  %v245 = vld [vmem:[%s4 + $0x48] sm:$0xf]
  %v246 = vld [vmem:[%s4 + $0x4c] sm:$0xf]
  %v247 = vld [vmem:[%s4 + $0x50] sm:$0xf]
  %v248 = vld [vmem:[%s4 + $0x54] sm:$0xf]
  %v249 = vld [vmem:[%s4 + $0x58] sm:$0xf]
  %v250 = vld [vmem:[%s4 + $0x5c] sm:$0xf]
  %v251 = vld [vmem:[%s4 + $0x60] sm:$0xf]
  %v252 = vld [vmem:[%s4 + $0x64] sm:$0xf]
  %v253 = vld [vmem:[%s4 + $0x68] sm:$0xf]
  %v254 = vld [vmem:[%s4 + $0x6c] sm:$0xf]
  %v255 = vld [vmem:[%s4 + $0x70] sm:$0xf]
  %v256 = vld [vmem:[%s4 + $0x74] sm:$0xf]
  %v257 = vld [vmem:[%s4 + $0x78] sm:$0xf]
  %v258 = vld [vmem:[%s4 + $0x7c] sm:$0xf]
  %v259 = vld [vmem:[%s5] sm:$0x1]
  %v260 = vunpack.c.l.bf16 %v259
  %v261 = vlaneseq
  %v262 = vshrl.u32 %v261, 7
  %v263 = vsub.s32 0, %v262
  %v264 = vrot.slane %v260, %v263
  %v297 = vunpack.c.l.b16 %v227
  %v298 = vunpack.c.l.b16 %v228
  %v299 = vunpack.c.l.b16 %v229
  %v300 = vunpack.c.l.b16 %v230
  %v301 = vunpack.c.l.b16 %v231
  %v302 = vunpack.c.l.b16 %v232
  %v303 = vunpack.c.l.b16 %v233
  %v304 = vunpack.c.l.b16 %v234
  %v305 = vunpack.c.l.b16 %v235
  %v306 = vunpack.c.l.b16 %v236
  %v307 = vunpack.c.l.b16 %v237
  %v308 = vunpack.c.l.b16 %v238
  %v309 = vunpack.c.l.b16 %v239
  %v310 = vunpack.c.l.b16 %v240
  %v311 = vunpack.c.l.b16 %v241
  %v312 = vunpack.c.l.b16 %v242
  %v313 = vunpack.c.l.b16 %v243
  %v314 = vunpack.c.l.b16 %v244
  %v315 = vunpack.c.l.b16 %v245
  %v316 = vunpack.c.l.b16 %v246
  %v317 = vunpack.c.l.b16 %v247
  %v318 = vunpack.c.l.b16 %v248
  %v319 = vunpack.c.l.b16 %v249
  %v320 = vunpack.c.l.b16 %v250
  %v321 = vunpack.c.l.b16 %v251
  %v322 = vunpack.c.l.b16 %v252
  %v323 = vunpack.c.l.b16 %v253
  %v324 = vunpack.c.l.b16 %v254
  %v325 = vunpack.c.l.b16 %v255
  %v326 = vunpack.c.l.b16 %v256
  %v327 = vunpack.c.l.b16 %v257
  %v328 = vunpack.c.l.b16 %v258
  %v329 = vpack.c.b16 %v298, %v297
  %v330 = vpack.c.b16 %v300, %v299
  %v331 = vpack.c.b16 %v302, %v301
  %v332 = vpack.c.b16 %v304, %v303
  %v333 = vpack.c.b16 %v306, %v305
  %v334 = vpack.c.b16 %v308, %v307
  %v335 = vpack.c.b16 %v310, %v309
  %v336 = vpack.c.b16 %v312, %v311
  %v337 = vpack.c.b16 %v314, %v313
  %v338 = vpack.c.b16 %v316, %v315
  %v339 = vpack.c.b16 %v318, %v317
  %v340 = vpack.c.b16 %v320, %v319
  %v341 = vpack.c.b16 %v322, %v321
  %v342 = vpack.c.b16 %v324, %v323
  %v343 = vpack.c.b16 %v326, %v325
  %v344 = vpack.c.b16 %v328, %v327
  %361 = vmatprep.subr.bf16.mxu0 0
  %362 = vmatpush1.bf16.msra.mxu0 %v329
  %363 = vmatprep.subr.bf16.mxu0 0
  %364 = vmatpush1.bf16.msra.mxu0 %v330
  %365 = vmatprep.subr.bf16.mxu0 0
  %366 = vmatpush1.bf16.msra.mxu0 %v331
  %367 = vmatprep.subr.bf16.mxu0 0
  %368 = vmatpush1.bf16.msra.mxu0 %v332
  %369 = vmatprep.subr.bf16.mxu0 0
  %370 = vmatpush1.bf16.msra.mxu0 %v333
  %371 = vmatprep.subr.bf16.mxu0 0
  %372 = vmatpush1.bf16.msra.mxu0 %v334
  %373 = vmatprep.subr.bf16.mxu0 0
  %374 = vmatpush1.bf16.msra.mxu0 %v335
  %375 = vmatprep.subr.bf16.mxu0 0
  %376 = vmatpush1.bf16.msra.mxu0 %v336
  %377 = vmatprep.subr.bf16.mxu0 0
  %378 = vmatpush1.bf16.msra.mxu0 %v337
  %379 = vmatprep.subr.bf16.mxu0 0
  %380 = vmatpush1.bf16.msra.mxu0 %v338
  %381 = vmatprep.subr.bf16.mxu0 0
  %382 = vmatpush1.bf16.msra.mxu0 %v339
  %383 = vmatprep.subr.bf16.mxu0 0
  %384 = vmatpush1.bf16.msra.mxu0 %v340
  %385 = vmatprep.subr.bf16.mxu0 0
  %386 = vmatpush1.bf16.msra.mxu0 %v341
  %387 = vmatprep.subr.bf16.mxu0 0
  %388 = vmatpush1.bf16.msra.mxu0 %v342
  %389 = vmatprep.subr.bf16.mxu0 0
  %390 = vmatpush1.bf16.msra.mxu0 %v343
  %391 = vmatprep.subr.bf16.mxu0 0
  %392 = vmatpush1.bf16.msra.mxu0 %v344
  %393 = vmatprep.mubr.bf16.mxu0 %v226
  %394 = vmatmul.mubr.bf16.gmra.mrb[0].mxu0 %v225
  %v395 = vpop.f32.mrb[0].mxu0
  %v396 = vadd.f32 %v264, %v395
  %v397 = vpop.f32.mrb[0].mxu0
  %v398 = vpop.f32.mrb[0].mxu0
  %v399 = vpop.f32.mrb[0].mxu0
  %400 = vdwg.mxu0
  %v401 = vld [vmem:[%s6] sm:$0x1]
  %v402 = vunpack.c.l.bf16 %v401
  %v403 = vld [vmem:[%s7] sm:$0x1]
  %v404 = vunpack.c.l.bf16 %v403
  %vm405 = vcmask 517120
  %v406 = vsel %vm405, %v396, 0.0
  %407 = vadd.xlane.f32.xlu0 %v406
  %v408 = vpop.xlane.xlu0 %407
  %v409 = vrcp.pop 64.0
  %v410 = vmul.f32 %v408, %v409
  %v411 = vsub.f32 %v396, %v410
  %v412 = vmul.f32 %v411, %v411
  %v413 = vsel %vm405, %v412, 0.0
  %414 = vadd.xlane.f32.xlu0 %v413
  %v415 = vpop.xlane.xlu0 %414
  %v416 = vmul.f32 %v415, %v409
  %v417 = vadd.f32 %v416, 1e-05
  %v418 = vrsqrt.pop %v417
  %v419 = vmul.f32 %v411, %v418
  %v420 = vlaneseq
  %v421 = vshrl.u32 %v420, 7
  %v422 = vsub.s32 0, %v421
  %v423 = vrot.slane %v402, %v422
  %v424 = vmul.f32 %v419, %v423
  %v425 = vlaneseq
  %v426 = vshrl.u32 %v425, 7
  %v427 = vsub.s32 0, %v426
  %v428 = vrot.slane %v404, %v427
  %v429 = vadd.f32 %v424, %v428
  %v430 = vpack.c.bf16 %v429, %v429
  %vm431 = vcmask 516096
  %432 = vst.msk [vmem:[%s8] sm:$0x1] %vm431, %v430
  // Predicated region
  $region34: #{osfa_forward.12} parent=0 // pred_check
    _
  $region35: #{osfa_forward.12} parent=0 // pred_check_branch
    %434 = sbr.rel (0) target = $region37
  $region36: #{osfa_forward.12} parent=0 // pred_region
    _
  $region37: #{osfa_forward.12} parent=0 // pred_fallthru
    _
  // Predicated region
  $region38: #{osfa_forward.12} parent=0 // pred_check
    _
  $region39: #{osfa_forward.12} parent=0 // pred_check_branch
    %436 = sbr.rel (0) target = $region41
  $region40: #{osfa_forward.12} parent=0 // pred_region
    _
  $region41: #{osfa_forward.12} parent=0 // pred_fallthru
    _

// kernel: osfa_forward.15
$region0: #{osfa_forward.15}
  #allocation0 [shape = 'u32[]', space=smem, size = 0x4, offset = 0x4, fixed_abs, tag = 'smem constant byte address 0x4 - core index']
  #allocation1 [shape = 'u32[144,128]{1,0:T(1,128)}', space=vmem, size = 0x12000, scoped, tag = 'internal scratch']
  %s0 = inlined_call_operand.vmem [shape: bf16[1,8,64], index: 0, kind: input, shape index: {}]
  %s1 = inlined_call_operand.vmem [shape: bf16[2,16,64], index: 1, kind: input, shape index: {}]
  %s2 = inlined_call_operand.vmem [shape: bf16[64,128], index: 2, kind: input, shape index: {}]
  %s3 = inlined_call_operand.vmem [shape: bf16[1,128], index: 3, kind: input, shape index: {}]
  %s4 = inlined_call_operand.vmem [shape: bf16[64,64], index: 4, kind: input, shape index: {}]
  %s5 = inlined_call_operand.vmem [shape: bf16[1,64], index: 5, kind: input, shape index: {}]
  %s6 = inlined_call_operand.vmem [shape: bf16[1,64], index: 6, kind: input, shape index: {}]
  %s7 = inlined_call_operand.vmem [shape: bf16[1,64], index: 7, kind: input, shape index: {}]
  %s8 = inlined_call_operand.vmem [shape: bf16[64,256], index: 8, kind: input, shape index: {}]
  %s9 = inlined_call_operand.vmem [shape: bf16[1,256], index: 9, kind: input, shape index: {}]
  %s10 = inlined_call_operand.vmem [shape: bf16[256,64], index: 10, kind: input, shape index: {}]
  %s11 = inlined_call_operand.vmem [shape: bf16[1,64], index: 11, kind: input, shape index: {}]
  %s12 = inlined_call_operand.vmem [shape: bf16[1,64], index: 12, kind: input, shape index: {}]
  %s13 = inlined_call_operand.vmem [shape: bf16[1,64], index: 13, kind: input, shape index: {}]
  %s14 = inlined_call_operand.vmem [shape: bf16[2,8,64], index: 14, kind: output, shape index: {}]
  %s15 = sld [smem:[#allocation0]]
  $region89: #{osfa_forward.15} parent=0
    _
  %s17 = ssub.s32 1, %s15
  %s18 = scalar_select 0, %s17, %s15
  loop: start=0, step=1, limit=4
  $region2: #{osfa_forward.15} parent=0 // loop_pre_header
    _
  $region3: #{osfa_forward.15} parent=0 // loop_header
    %s20 = sphi 0, %s24
    %p21 = scmp.ge.s32.totalorder %s20, 4
    %s28 = sphi 0, %s28
    %s30 = sphi 0, %s28
    %s31 = sphi 0, %s30
    %s45 = sphi 0, %s31
    %s51 = sphi 0, %s53
    %s54 = sphi 0, %s51
    %s55 = sphi 0, %s54
    %s71 = sphi 0, %s55
    %s75 = sphi 0, %s75
    %s77 = sphi 0, %s75
    %s78 = sphi 0, %s77
    %s92 = sphi 0, %s78
    %s96 = sphi 0, %s96
    %s98 = sphi 0, %s96
    %s99 = sphi 0, %s98
    %s113 = sphi 0, %s99
    %s117 = sphi 0, %s117
    %s119 = sphi 0, %s117
    %s120 = sphi 0, %s119
    %s134 = sphi 0, %s120
    %s138 = sphi 0, %s138
    %s140 = sphi 0, %s138
    %s141 = sphi 0, %s140
    %s155 = sphi 0, %s141
    %s159 = sphi 0, %s159
    %s161 = sphi 0, %s159
    %s162 = sphi 0, %s161
    %s176 = sphi 0, %s162
    %s180 = sphi 0, %s180
    %s182 = sphi 0, %s180
    %s183 = sphi 0, %s182
    %s197 = sphi 0, %s183
    %s201 = sphi 0, %s201
    %s203 = sphi 0, %s201
    %s204 = sphi 0, %s203
    %s218 = sphi 0, %s204
    %s222 = sphi 0, %s222
    %s224 = sphi 0, %s222
    %s225 = sphi 0, %s224
    %s239 = sphi 0, %s225
    %s243 = sphi 0, %s243
    %s245 = sphi 0, %s243
    %s246 = sphi 0, %s245
    %s260 = sphi 0, %s246
    %s264 = sphi 0, %s264
    %s266 = sphi 0, %s264
    %s267 = sphi 0, %s266
    %s281 = sphi 0, %s267
    %s285 = sphi 0, %s285
    %s287 = sphi 0, %s285
    %s288 = sphi 0, %s287
    %s302 = sphi 0, %s288
    %s306 = sphi 0, %s306
    %s308 = sphi 0, %s306
    %s309 = sphi 0, %s308
    %s323 = sphi 0, %s309
    %s329 = sphi 0, %s331
    %s332 = sphi 0, %s329
    %s333 = sphi 0, %s332
    %s349 = sphi 0, %s333
  $region4: #{osfa_forward.15} parent=0 // loop_header_branch
    %23 = sbr.rel (%p21) target = $region8
  $region5: #{osfa_forward.15} parent=0 // loop_body
    %s25 = ssub.s32 %s20, 1
    %s26 = ssub.s32 %s20, 2
    %s27 = sadd.s32 %s20, 1
    %s29 = sadd.s32 %s28, 1
    %p32 = scmp.eq.s32.totalorder %s20, 1
    %p33 = scmp.ne.s32.totalorder %s28, %s30
    %p34 = scmp.eq.s32.totalorder %s20, 0
    %p35 = por %p33, %p34
    %p36 = scmp.ne.s32.totalorder %s28, %s30
    %p37 = scmp.eq.s32.totalorder %s25, 1
    %p38 = por %p36, %p37
    %p39 = scmp.ne.s32.totalorder %s30, %s31
    %p40 = scmp.eq.s32.totalorder %s25, 0
    %p41 = por %p39, %p40
    %p42 = scmp.ne.s32.totalorder %s30, %s31
    %p43 = scmp.eq.s32.totalorder %s26, 1
    %p44 = por %p42, %p43
    %p46 = scmp.ne.s32.totalorder %s31, %s45
    %p47 = scmp.eq.s32.totalorder %s26, 0
    %p48 = por %p46, %p47
    %s49 = ssub.s32 %s20, %s27
    %p50 = scmp.eq.s32.totalorder %s49, 0
    %s52 = sadd.s32 %s51, 1
    %s53 = scalar_select %p50, %s51, %s52
    %p56 = pneg %p50
    %p57 = scmp.eq.s32.totalorder %s20, 1
    %p58 = por %p56, %p57
    %p59 = scmp.ne.s32.totalorder %s51, %s54
    %p60 = scmp.eq.s32.totalorder %s20, 0
    %p61 = por %p59, %p60
    %p62 = scmp.ne.s32.totalorder %s51, %s54
    %p63 = scmp.eq.s32.totalorder %s25, 1
    %p64 = por %p62, %p63
    %p65 = scmp.ne.s32.totalorder %s54, %s55
    %p66 = scmp.eq.s32.totalorder %s25, 0
    %p67 = por %p65, %p66
    %p68 = scmp.ne.s32.totalorder %s54, %s55
    %p69 = scmp.eq.s32.totalorder %s26, 1
    %p70 = por %p68, %p69
    %p72 = scmp.ne.s32.totalorder %s55, %s71
    %p73 = scmp.eq.s32.totalorder %s26, 0
    %p74 = por %p72, %p73
    %s76 = sadd.s32 %s75, 1
    %p79 = scmp.eq.s32.totalorder %s20, 1
    %p80 = scmp.ne.s32.totalorder %s75, %s77
    %p81 = scmp.eq.s32.totalorder %s20, 0
    %p82 = por %p80, %p81
    %p83 = scmp.ne.s32.totalorder %s75, %s77
    %p84 = scmp.eq.s32.totalorder %s25, 1
    %p85 = por %p83, %p84
    %p86 = scmp.ne.s32.totalorder %s77, %s78
    %p87 = scmp.eq.s32.totalorder %s25, 0
    %p88 = por %p86, %p87
    %p89 = scmp.ne.s32.totalorder %s77, %s78
    %p90 = scmp.eq.s32.totalorder %s26, 1
    %p91 = por %p89, %p90
    %p93 = scmp.ne.s32.totalorder %s78, %s92
    %p94 = scmp.eq.s32.totalorder %s26, 0
    %p95 = por %p93, %p94
    %s97 = sadd.s32 %s96, 1
    %p100 = scmp.eq.s32.totalorder %s20, 1
    %p101 = scmp.ne.s32.totalorder %s96, %s98
    %p102 = scmp.eq.s32.totalorder %s20, 0
    %p103 = por %p101, %p102
    %p104 = scmp.ne.s32.totalorder %s96, %s98
    %p105 = scmp.eq.s32.totalorder %s25, 1
    %p106 = por %p104, %p105
    %p107 = scmp.ne.s32.totalorder %s98, %s99
    %p108 = scmp.eq.s32.totalorder %s25, 0
    %p109 = por %p107, %p108
    %p110 = scmp.ne.s32.totalorder %s98, %s99
    %p111 = scmp.eq.s32.totalorder %s26, 1
    %p112 = por %p110, %p111
    %p114 = scmp.ne.s32.totalorder %s99, %s113
    %p115 = scmp.eq.s32.totalorder %s26, 0
    %p116 = por %p114, %p115
    %s118 = sadd.s32 %s117, 1
    %p121 = scmp.eq.s32.totalorder %s20, 1
    %p122 = scmp.ne.s32.totalorder %s117, %s119
    %p123 = scmp.eq.s32.totalorder %s20, 0
    %p124 = por %p122, %p123
    %p125 = scmp.ne.s32.totalorder %s117, %s119
    %p126 = scmp.eq.s32.totalorder %s25, 1
    %p127 = por %p125, %p126
    %p128 = scmp.ne.s32.totalorder %s119, %s120
    %p129 = scmp.eq.s32.totalorder %s25, 0
    %p130 = por %p128, %p129
    %p131 = scmp.ne.s32.totalorder %s119, %s120
    %p132 = scmp.eq.s32.totalorder %s26, 1
    %p133 = por %p131, %p132
    %p135 = scmp.ne.s32.totalorder %s120, %s134
    %p136 = scmp.eq.s32.totalorder %s26, 0
    %p137 = por %p135, %p136
    %s139 = sadd.s32 %s138, 1
    %p142 = scmp.eq.s32.totalorder %s20, 1
    %p143 = scmp.ne.s32.totalorder %s138, %s140
    %p144 = scmp.eq.s32.totalorder %s20, 0
    %p145 = por %p143, %p144
    %p146 = scmp.ne.s32.totalorder %s138, %s140
    %p147 = scmp.eq.s32.totalorder %s25, 1
    %p148 = por %p146, %p147
    %p149 = scmp.ne.s32.totalorder %s140, %s141
    %p150 = scmp.eq.s32.totalorder %s25, 0
    %p151 = por %p149, %p150
    %p152 = scmp.ne.s32.totalorder %s140, %s141
    %p153 = scmp.eq.s32.totalorder %s26, 1
    %p154 = por %p152, %p153
    %p156 = scmp.ne.s32.totalorder %s141, %s155
    %p157 = scmp.eq.s32.totalorder %s26, 0
    %p158 = por %p156, %p157
    %s160 = sadd.s32 %s159, 1
    %p163 = scmp.eq.s32.totalorder %s20, 1
    %p164 = scmp.ne.s32.totalorder %s159, %s161
    %p165 = scmp.eq.s32.totalorder %s20, 0
    %p166 = por %p164, %p165
    %p167 = scmp.ne.s32.totalorder %s159, %s161
    %p168 = scmp.eq.s32.totalorder %s25, 1
    %p169 = por %p167, %p168
    %p170 = scmp.ne.s32.totalorder %s161, %s162
    %p171 = scmp.eq.s32.totalorder %s25, 0
    %p172 = por %p170, %p171
    %p173 = scmp.ne.s32.totalorder %s161, %s162
    %p174 = scmp.eq.s32.totalorder %s26, 1
    %p175 = por %p173, %p174
    %p177 = scmp.ne.s32.totalorder %s162, %s176
    %p178 = scmp.eq.s32.totalorder %s26, 0
    %p179 = por %p177, %p178
    %s181 = sadd.s32 %s180, 1
    %p184 = scmp.eq.s32.totalorder %s20, 1
    %p185 = scmp.ne.s32.totalorder %s180, %s182
    %p186 = scmp.eq.s32.totalorder %s20, 0
    %p187 = por %p185, %p186
    %p188 = scmp.ne.s32.totalorder %s180, %s182
    %p189 = scmp.eq.s32.totalorder %s25, 1
    %p190 = por %p188, %p189
    %p191 = scmp.ne.s32.totalorder %s182, %s183
    %p192 = scmp.eq.s32.totalorder %s25, 0
    %p193 = por %p191, %p192
    %p194 = scmp.ne.s32.totalorder %s182, %s183
    %p195 = scmp.eq.s32.totalorder %s26, 1
    %p196 = por %p194, %p195
    %p198 = scmp.ne.s32.totalorder %s183, %s197
    %p199 = scmp.eq.s32.totalorder %s26, 0
    %p200 = por %p198, %p199
    %s202 = sadd.s32 %s201, 1
    %p205 = scmp.eq.s32.totalorder %s20, 1
    %p206 = scmp.ne.s32.totalorder %s201, %s203
    %p207 = scmp.eq.s32.totalorder %s20, 0
    %p208 = por %p206, %p207
    %p209 = scmp.ne.s32.totalorder %s201, %s203
    %p210 = scmp.eq.s32.totalorder %s25, 1
    %p211 = por %p209, %p210
    %p212 = scmp.ne.s32.totalorder %s203, %s204
    %p213 = scmp.eq.s32.totalorder %s25, 0
    %p214 = por %p212, %p213
    %p215 = scmp.ne.s32.totalorder %s203, %s204
    %p216 = scmp.eq.s32.totalorder %s26, 1
    %p217 = por %p215, %p216
    %p219 = scmp.ne.s32.totalorder %s204, %s218
    %p220 = scmp.eq.s32.totalorder %s26, 0
    %p221 = por %p219, %p220
    %s223 = sadd.s32 %s222, 1
    %p226 = scmp.eq.s32.totalorder %s20, 1
    %p227 = scmp.ne.s32.totalorder %s222, %s224
    %p228 = scmp.eq.s32.totalorder %s20, 0
    %p229 = por %p227, %p228
    %p230 = scmp.ne.s32.totalorder %s222, %s224
    %p231 = scmp.eq.s32.totalorder %s25, 1
    %p232 = por %p230, %p231
    %p233 = scmp.ne.s32.totalorder %s224, %s225
    %p234 = scmp.eq.s32.totalorder %s25, 0
    %p235 = por %p233, %p234
    %p236 = scmp.ne.s32.totalorder %s224, %s225
    %p237 = scmp.eq.s32.totalorder %s26, 1
    %p238 = por %p236, %p237
    %p240 = scmp.ne.s32.totalorder %s225, %s239
    %p241 = scmp.eq.s32.totalorder %s26, 0
    %p242 = por %p240, %p241
    %s244 = sadd.s32 %s243, 1
    %p247 = scmp.eq.s32.totalorder %s20, 1
    %p248 = scmp.ne.s32.totalorder %s243, %s245
    %p249 = scmp.eq.s32.totalorder %s20, 0
    %p250 = por %p248, %p249
    %p251 = scmp.ne.s32.totalorder %s243, %s245
    %p252 = scmp.eq.s32.totalorder %s25, 1
    %p253 = por %p251, %p252
    %p254 = scmp.ne.s32.totalorder %s245, %s246
    %p255 = scmp.eq.s32.totalorder %s25, 0
    %p256 = por %p254, %p255
    %p257 = scmp.ne.s32.totalorder %s245, %s246
    %p258 = scmp.eq.s32.totalorder %s26, 1
    %p259 = por %p257, %p258
    %p261 = scmp.ne.s32.totalorder %s246, %s260
    %p262 = scmp.eq.s32.totalorder %s26, 0
    %p263 = por %p261, %p262
    %s265 = sadd.s32 %s264, 1
    %p268 = scmp.eq.s32.totalorder %s20, 1
    %p269 = scmp.ne.s32.totalorder %s264, %s266
    %p270 = scmp.eq.s32.totalorder %s20, 0
    %p271 = por %p269, %p270
    %p272 = scmp.ne.s32.totalorder %s264, %s266
    %p273 = scmp.eq.s32.totalorder %s25, 1
    %p274 = por %p272, %p273
    %p275 = scmp.ne.s32.totalorder %s266, %s267
    %p276 = scmp.eq.s32.totalorder %s25, 0
    %p277 = por %p275, %p276
    %p278 = scmp.ne.s32.totalorder %s266, %s267
    %p279 = scmp.eq.s32.totalorder %s26, 1
    %p280 = por %p278, %p279
    %p282 = scmp.ne.s32.totalorder %s267, %s281
    %p283 = scmp.eq.s32.totalorder %s26, 0
    %p284 = por %p282, %p283
    %s286 = sadd.s32 %s285, 1
    %p289 = scmp.eq.s32.totalorder %s20, 1
    %p290 = scmp.ne.s32.totalorder %s285, %s287
    %p291 = scmp.eq.s32.totalorder %s20, 0
    %p292 = por %p290, %p291
    %p293 = scmp.ne.s32.totalorder %s285, %s287
    %p294 = scmp.eq.s32.totalorder %s25, 1
    %p295 = por %p293, %p294
    %p296 = scmp.ne.s32.totalorder %s287, %s288
    %p297 = scmp.eq.s32.totalorder %s25, 0
    %p298 = por %p296, %p297
    %p299 = scmp.ne.s32.totalorder %s287, %s288
    %p300 = scmp.eq.s32.totalorder %s26, 1
    %p301 = por %p299, %p300
    %p303 = scmp.ne.s32.totalorder %s288, %s302
    %p304 = scmp.eq.s32.totalorder %s26, 0
    %p305 = por %p303, %p304
    %s307 = sadd.s32 %s306, 1
    %p310 = scmp.eq.s32.totalorder %s20, 1
    %p311 = scmp.ne.s32.totalorder %s306, %s308
    %p312 = scmp.eq.s32.totalorder %s20, 0
    %p313 = por %p311, %p312
    %p314 = scmp.ne.s32.totalorder %s306, %s308
    %p315 = scmp.eq.s32.totalorder %s25, 1
    %p316 = por %p314, %p315
    %p317 = scmp.ne.s32.totalorder %s308, %s309
    %p318 = scmp.eq.s32.totalorder %s25, 0
    %p319 = por %p317, %p318
    %p320 = scmp.ne.s32.totalorder %s308, %s309
    %p321 = scmp.eq.s32.totalorder %s26, 1
    %p322 = por %p320, %p321
    %p324 = scmp.ne.s32.totalorder %s309, %s323
    %p325 = scmp.eq.s32.totalorder %s26, 0
    %p326 = por %p324, %p325
    %s327 = ssub.s32 %s20, %s27
    %p328 = scmp.eq.s32.totalorder %s327, 0
    %s330 = sadd.s32 %s329, 1
    %s331 = scalar_select %p328, %s329, %s330
    %p334 = pneg %p328
    %p335 = scmp.eq.s32.totalorder %s20, 1
    %p336 = por %p334, %p335
    %p337 = scmp.ne.s32.totalorder %s329, %s332
    %p338 = scmp.eq.s32.totalorder %s20, 0
    %p339 = por %p337, %p338
    %p340 = scmp.ne.s32.totalorder %s329, %s332
    %p341 = scmp.eq.s32.totalorder %s25, 1
    %p342 = por %p340, %p341
    %p343 = scmp.ne.s32.totalorder %s332, %s333
    %p344 = scmp.eq.s32.totalorder %s25, 0
    %p345 = por %p343, %p344
    %p346 = scmp.ne.s32.totalorder %s332, %s333
    %p347 = scmp.eq.s32.totalorder %s26, 1
    %p348 = por %p346, %p347
    %p350 = scmp.ne.s32.totalorder %s333, %s349
    %p351 = scmp.eq.s32.totalorder %s26, 0
    %p352 = por %p350, %p351
    %p353 = scmp.le.s32.totalorder 1, %s20
    %p354 = scmp.lt.s32.totalorder %s20, 3
    %p355 = pnand %p353, %p354
    %p356 = pneg %p355
    // Predicated region
    $region9: #{osfa_forward.15} parent=5 // pred_check
      _
    $region10: #{osfa_forward.15} parent=5 // pred_check_branch
      %358 = sbr.rel (%p355) target = $region12
    $region11: #{osfa_forward.15} parent=5 // pred_region
      %s359 = ssub.s32 %s20, 1
      // Predicated region
      $region13: #{osfa_forward.15} parent=11 // pred_check
        %p360 = pneg %p41
      $region14: #{osfa_forward.15} parent=11 // pred_check_branch
        %362 = sbr.rel (%p360) target = $region16
      $region15: #{osfa_forward.15} parent=11 // pred_region
        _
      $region16: #{osfa_forward.15} parent=11 // pred_fallthru
        _
      // Predicated region
      $region17: #{osfa_forward.15} parent=11 // pred_check
        %p363 = pneg %p88
      $region18: #{osfa_forward.15} parent=11 // pred_check_branch
        %365 = sbr.rel (%p363) target = $region20
      $region19: #{osfa_forward.15} parent=11 // pred_region
        _
      $region20: #{osfa_forward.15} parent=11 // pred_fallthru
        _
      // Predicated region
      $region21: #{osfa_forward.15} parent=11 // pred_check
        %p366 = pneg %p109
      $region22: #{osfa_forward.15} parent=11 // pred_check_branch
        %368 = sbr.rel (%p366) target = $region24
      $region23: #{osfa_forward.15} parent=11 // pred_region
        _
      $region24: #{osfa_forward.15} parent=11 // pred_fallthru
        _
      // Predicated region
      $region25: #{osfa_forward.15} parent=11 // pred_check
        %p369 = pneg %p130
      $region26: #{osfa_forward.15} parent=11 // pred_check_branch
        %371 = sbr.rel (%p369) target = $region28
      $region27: #{osfa_forward.15} parent=11 // pred_region
        _
      $region28: #{osfa_forward.15} parent=11 // pred_fallthru
        _
      // Predicated region
      $region29: #{osfa_forward.15} parent=11 // pred_check
        %p372 = pneg %p151
      $region30: #{osfa_forward.15} parent=11 // pred_check_branch
        %374 = sbr.rel (%p372) target = $region32
      $region31: #{osfa_forward.15} parent=11 // pred_region
        _
      $region32: #{osfa_forward.15} parent=11 // pred_fallthru
        _
      // Predicated region
      $region33: #{osfa_forward.15} parent=11 // pred_check
        %p375 = pneg %p172
      $region34: #{osfa_forward.15} parent=11 // pred_check_branch
        %377 = sbr.rel (%p375) target = $region36
      $region35: #{osfa_forward.15} parent=11 // pred_region
        _
      $region36: #{osfa_forward.15} parent=11 // pred_fallthru
        _
      // Predicated region
      $region37: #{osfa_forward.15} parent=11 // pred_check
        %p378 = pneg %p193
      $region38: #{osfa_forward.15} parent=11 // pred_check_branch
        %380 = sbr.rel (%p378) target = $region40
      $region39: #{osfa_forward.15} parent=11 // pred_region
        _
      $region40: #{osfa_forward.15} parent=11 // pred_fallthru
        _
      // Predicated region
      $region41: #{osfa_forward.15} parent=11 // pred_check
        %p381 = pneg %p214
      $region42: #{osfa_forward.15} parent=11 // pred_check_branch
        %383 = sbr.rel (%p381) target = $region44
      $region43: #{osfa_forward.15} parent=11 // pred_region
        _
      $region44: #{osfa_forward.15} parent=11 // pred_fallthru
        _
      // Predicated region
      $region45: #{osfa_forward.15} parent=11 // pred_check
        %p384 = pneg %p235
      $region46: #{osfa_forward.15} parent=11 // pred_check_branch
        %386 = sbr.rel (%p384) target = $region48
      $region47: #{osfa_forward.15} parent=11 // pred_region
        _
      $region48: #{osfa_forward.15} parent=11 // pred_fallthru
        _
      // Predicated region
      $region49: #{osfa_forward.15} parent=11 // pred_check
        %p387 = pneg %p256
      $region50: #{osfa_forward.15} parent=11 // pred_check_branch
        %389 = sbr.rel (%p387) target = $region52
      $region51: #{osfa_forward.15} parent=11 // pred_region
        _
      $region52: #{osfa_forward.15} parent=11 // pred_fallthru
        _
      // Predicated region
      $region53: #{osfa_forward.15} parent=11 // pred_check
        %p390 = pneg %p277
      $region54: #{osfa_forward.15} parent=11 // pred_check_branch
        %392 = sbr.rel (%p390) target = $region56
      $region55: #{osfa_forward.15} parent=11 // pred_region
        _
      $region56: #{osfa_forward.15} parent=11 // pred_fallthru
        _
      // Predicated region
      $region57: #{osfa_forward.15} parent=11 // pred_check
        %p393 = pneg %p298
      $region58: #{osfa_forward.15} parent=11 // pred_check_branch
        %395 = sbr.rel (%p393) target = $region60
      $region59: #{osfa_forward.15} parent=11 // pred_region
        _
      $region60: #{osfa_forward.15} parent=11 // pred_fallthru
        _
      // Predicated region
      $region61: #{osfa_forward.15} parent=11 // pred_check
        %p396 = pneg %p319
      $region62: #{osfa_forward.15} parent=11 // pred_check_branch
        %398 = sbr.rel (%p396) target = $region64
      $region63: #{osfa_forward.15} parent=11 // pred_region
        _
      $region64: #{osfa_forward.15} parent=11 // pred_fallthru
        _
    $region12: #{osfa_forward.15} parent=5 // pred_fallthru
      _
    %p399 = scmp.lt.s32.totalorder %s20, 2
    // Predicated region
    $region65: #{osfa_forward.15} parent=5 // pred_check
      %p400 = pneg %p399
    $region66: #{osfa_forward.15} parent=5 // pred_check_branch
      %402 = sbr.rel (%p400) target = $region68
    $region67: #{osfa_forward.15} parent=5 // pred_region
      // Predicated region
      $region69: #{osfa_forward.15} parent=67 // pred_check
        %p403 = pneg %p61
      $region70: #{osfa_forward.15} parent=67 // pred_check_branch
        %405 = sbr.rel (%p403) target = $region72
      $region71: #{osfa_forward.15} parent=67 // pred_region
        %p406 = scmp.lt.s32.totalorder %s20, 1
        %s407 = scalar_select %p406, %s20, 1
        %s408 = smul.addr %s407, 2
        %s409 = smul.addr %s408, 4
        %s410 = scalar_lea.vmem %s1, %s409
      $region72: #{osfa_forward.15} parent=67 // pred_fallthru
        _
    $region68: #{osfa_forward.15} parent=5 // pred_fallthru
      _
    %p411 = scmp.le.s32.totalorder 1, %s20
    %p412 = scmp.lt.s32.totalorder %s20, 3
    %p413 = pnand %p411, %p412
    %p414 = pneg %p413
    // Predicated region
    $region73: #{osfa_forward.15} parent=5 // pred_check
      _
    $region74: #{osfa_forward.15} parent=5 // pred_check_branch
      %416 = sbr.rel (%p413) target = $region76
    $region75: #{osfa_forward.15} parent=5 // pred_region
      %s417 = ssub.s32 %s20, 1
      %p418 = pneg %p41
      %p419 = pneg %p38
      %p420 = scmp.lt.s32.totalorder %s25, 1
      %s421 = scalar_select %p420, %s25, 1
      %s422 = smul.addr %s421, 2
      %s423 = smul.addr %s422, 4
      %s424 = scalar_lea.vmem %s1, %s423
      %p425 = pneg %p67
      %p426 = pneg %p64
      %p427 = pneg %p88
      %p428 = pneg %p85
      %p429 = pneg %p109
      %p430 = pneg %p106
      %p431 = pneg %p130
      %p432 = pneg %p127
      %p433 = pneg %p151
      %p434 = pneg %p148
      %p435 = pneg %p172
      %p436 = pneg %p169
      %p437 = pneg %p193
      %p438 = pneg %p190
      %p439 = pneg %p214
      %p440 = pneg %p211
      %p441 = pneg %p235
      %p442 = pneg %p232
      %p443 = pneg %p256
      %p444 = pneg %p253
      %p445 = pneg %p277
      %p446 = pneg %p274
      %p447 = pneg %p298
      %p448 = pneg %p295
      %p449 = pneg %p319
      %p450 = pneg %p316
      %p451 = pneg %p345
      %p452 = pneg %p342
      %p453 = scmp.lt.s32.totalorder %s25, 1
      %s454 = scalar_select %p453, %s25, 1
      %s455 = smul.addr %s454, 4
      %s456 = scalar_lea.vmem %s14, %s455
      %p457 = scmp.lt.s32.totalorder %s25, 1
      %s458 = scalar_select %p457, %s25, 1
      %s459 = smul.addr %s458, 2
      %s460 = smul.addr %s459, 4
      %s461 = scalar_lea.vmem %s1, %s460
      %p462 = scmp.lt.s32.totalorder %s25, 1
      %s463 = scalar_select %p462, %s25, 1
      %s464 = smul.addr %s463, 4
      %s465 = scalar_lea.vmem %s14, %s464
      %v467 = vld [vmem:[%s461] sm:$0xf]
      %v468 = vld [vmem:[%s461 + $0x4] sm:$0xf]
      %v469 = vld [vmem:[%s0] sm:$0xf]
      %v470 = vld [vmem:[%s2] sm:$0xf]
      %v471 = vld [vmem:[%s2 + $0x4] sm:$0xf]
      %v472 = vld [vmem:[%s2 + $0x8] sm:$0xf]
      %v473 = vld [vmem:[%s2 + $0xc] sm:$0xf]
      %v474 = vld [vmem:[%s2 + $0x10] sm:$0xf]
      %v475 = vld [vmem:[%s2 + $0x14] sm:$0xf]
      %v476 = vld [vmem:[%s2 + $0x18] sm:$0xf]
      %v477 = vld [vmem:[%s2 + $0x1c] sm:$0xf]
      %v478 = vld [vmem:[%s3] sm:$0x1]
      %v479 = vunpack.c.l.bf16 %v478
      %v480 = vlaneseq
      %v481 = vshrl.u32 %v480, 7
      %v482 = vsub.s32 0, %v481
      %v483 = vrot.slane %v479, %v482
      %v486 = vunpack.c.l.b16 %v467
      %v487 = vunpack.c.l.b16 %v468
      %v488 = vpack.c.b16 %v487, %v486
      %v497 = vunpack.c.l.b16 %v470
      %v498 = vunpack.c.l.b16 %v471
      %v499 = vunpack.c.l.b16 %v472
      %v500 = vunpack.c.l.b16 %v473
      %v501 = vunpack.c.l.b16 %v474
      %v502 = vunpack.c.l.b16 %v475
      %v503 = vunpack.c.l.b16 %v476
      %v504 = vunpack.c.l.b16 %v477
      %v505 = vpack.c.b16 %v498, %v497
      %v506 = vpack.c.b16 %v500, %v499
      %v507 = vpack.c.b16 %v502, %v501
      %v508 = vpack.c.b16 %v504, %v503
      %vm513 = vcmask 523264
      %v515 = vsel %vm513, %v488, 0
      %517 = vmatprep.subr.bf16.mxu0 0
      %518 = vmatpush1.bf16.msra.mxu0 %v505
      %519 = vmatprep.subr.bf16.mxu0 0
      %520 = vmatpush1.bf16.msra.mxu0 %v506
      %521 = vmatprep.subr.bf16.mxu0 0
      %522 = vmatpush1.bf16.msra.mxu0 %v507
      %523 = vmatprep.subr.bf16.mxu0 0
      %524 = vmatpush1.bf16.msra.mxu0 %v508
      %525 = vmatprep.subr.bf16.mxu0 0
      %526 = vmatpush1.bf16.msra.mxu0 0
      %527 = vmatprep.subr.bf16.mxu0 0
      %528 = vmatpush1.bf16.msra.mxu0 0
      %529 = vmatprep.subr.bf16.mxu0 0
      %530 = vmatpush1.bf16.msra.mxu0 0
      %531 = vmatprep.subr.bf16.mxu0 0
      %532 = vmatpush1.bf16.msra.mxu0 0
      %533 = vmatprep.subr.bf16.mxu0 0
      %534 = vmatpush1.bf16.msra.mxu0 0
      %535 = vmatprep.subr.bf16.mxu0 0
      %536 = vmatpush1.bf16.msra.mxu0 0
      %537 = vmatprep.subr.bf16.mxu0 0
      %538 = vmatpush1.bf16.msra.mxu0 0
      %539 = vmatprep.subr.bf16.mxu0 0
      %540 = vmatpush1.bf16.msra.mxu0 0
      %541 = vmatprep.subr.bf16.mxu0 0
      %542 = vmatpush1.bf16.msra.mxu0 0
      %543 = vmatprep.subr.bf16.mxu0 0
      %544 = vmatpush1.bf16.msra.mxu0 0
      %545 = vmatprep.subr.bf16.mxu0 0
      %546 = vmatpush1.bf16.msra.mxu0 0
      %547 = vmatprep.subr.bf16.mxu0 0
      %548 = vmatpush1.bf16.msra.mxu0 0
      %549 = vmatprep.mubr.bf16.mxu0 0
      %550 = vmatmul.mubr.bf16.gmra.mrb[0].mxu0 %v515
      %v551 = vpop.f32.mrb[0].mxu0
      %v552 = vadd.f32 %v483, %v551
      %v553 = vpop.f32.mrb[0].mxu0
      %v554 = vpop.f32.mrb[0].mxu0
      %v555 = vadd.f32 %v483, %v554
      %v556 = vpop.f32.mrb[0].mxu0
      %557 = vdwg.mxu0
      %v558 = vpack.c.bf16 %v555, %v552
      %vm559 = vcmask 64512
      %v561 = vsel %vm559, %v469, 0
      %v564 = vsel %vm559, %v558, 0
      %566 = vmatprep.subr.bf16.mxu0 0
      %567 = vmatpush1.bf16.xpose.msra.mxu0 %v564
      %568 = vmatprep.subr.bf16.mxu0 0
      %569 = vmatpush1.bf16.xpose.msra.mxu0 0
      %570 = vmatprep.subr.bf16.mxu0 0
      %571 = vmatpush1.bf16.xpose.msra.mxu0 0
      %572 = vmatprep.subr.bf16.mxu0 0
      %573 = vmatpush1.bf16.xpose.msra.mxu0 0
      %574 = vmatprep.subr.bf16.mxu0 0
      %575 = vmatpush1.bf16.xpose.msra.mxu0 0
      %576 = vmatprep.subr.bf16.mxu0 0
      %577 = vmatpush1.bf16.xpose.msra.mxu0 0
      %578 = vmatprep.subr.bf16.mxu0 0
      %579 = vmatpush1.bf16.xpose.msra.mxu0 0
      %580 = vmatprep.subr.bf16.mxu0 0
      %581 = vmatpush1.bf16.xpose.msra.mxu0 0
      %582 = vmatprep.subr.bf16.mxu0 0
      %583 = vmatpush1.bf16.xpose.msra.mxu0 0
      %584 = vmatprep.subr.bf16.mxu0 0
      %585 = vmatpush1.bf16.xpose.msra.mxu0 0
      %586 = vmatprep.subr.bf16.mxu0 0
      %587 = vmatpush1.bf16.xpose.msra.mxu0 0
      %588 = vmatprep.subr.bf16.mxu0 0
      %589 = vmatpush1.bf16.xpose.msra.mxu0 0
      %590 = vmatprep.subr.bf16.mxu0 0
      %591 = vmatpush1.bf16.xpose.msra.mxu0 0
      %592 = vmatprep.subr.bf16.mxu0 0
      %593 = vmatpush1.bf16.xpose.msra.mxu0 0
      %594 = vmatprep.subr.bf16.mxu0 0
      %595 = vmatpush1.bf16.xpose.msra.mxu0 0
      %596 = vmatprep.subr.bf16.mxu0 0
      %597 = vmatpush1.bf16.xpose.msra.mxu0 0
      %598 = vmatprep.mubr.bf16.mxu0 0
      %599 = vmatmul.mubr.bf16.gmra.mrb[0].mxu0 %v561
      %v600 = vpop.f32.mrb[0].mxu0
      %v601 = vadd.f32 0.0, %v600
      %v602 = vpop.f32.mrb[0].mxu0
      %v603 = vpop.f32.mrb[0].mxu0
      %v604 = vpop.f32.mrb[0].mxu0
      %605 = vdwg.mxu0
      %vm606 = vcmask 130048
      %v607 = vsel %vm606, %v601, -inf
      %608 = vmax.xlane.f32.xlu0 %v607
      %v609 = vpop.xlane.xlu0 %608
      %v610 = vsub.f32 %v601, %v609
      %v611 = vmul.f32 %v610, 1.442695
      %v612 = vpow.pop %v611
      %v613 = vsel %vm606, %v612, 0.0
      %614 = vadd.xlane.f32.xlu0 %v613
      %v615 = vpop.xlane.xlu0 %614
      %v616 = vrcp.pop %v615
      %v617 = vmul.f32 %v612, %v616
      %v618 = vpack.c.bf16 %v617, %v617
      %620 = vrot.lane.b32.xlu0 %v558, 64
      %v621 = vpop.permute.xlu0 %620
      %v624 = vsel %vm606, %v618, 0
      %626 = vmatprep.subr.bf16.mxu0 0
      %627 = vmatpush1.bf16.msra.mxu0 %v621
      %628 = vmatprep.subr.bf16.mxu0 0
      %629 = vmatpush1.bf16.msra.mxu0 0
      %630 = vmatprep.subr.bf16.mxu0 0
      %631 = vmatpush1.bf16.msra.mxu0 0
      %632 = vmatprep.subr.bf16.mxu0 0
      %633 = vmatpush1.bf16.msra.mxu0 0
      %634 = vmatprep.subr.bf16.mxu0 0
      %635 = vmatpush1.bf16.msra.mxu0 0
      %636 = vmatprep.subr.bf16.mxu0 0
      %637 = vmatpush1.bf16.msra.mxu0 0
      %638 = vmatprep.subr.bf16.mxu0 0
      %639 = vmatpush1.bf16.msra.mxu0 0
      %640 = vmatprep.subr.bf16.mxu0 0
      %641 = vmatpush1.bf16.msra.mxu0 0
      %642 = vmatprep.subr.bf16.mxu0 0
      %643 = vmatpush1.bf16.msra.mxu0 0
      %644 = vmatprep.subr.bf16.mxu0 0
      %645 = vmatpush1.bf16.msra.mxu0 0
      %646 = vmatprep.subr.bf16.mxu0 0
      %647 = vmatpush1.bf16.msra.mxu0 0
      %648 = vmatprep.subr.bf16.mxu0 0
      %649 = vmatpush1.bf16.msra.mxu0 0
      %650 = vmatprep.subr.bf16.mxu0 0
      %651 = vmatpush1.bf16.msra.mxu0 0
      %652 = vmatprep.subr.bf16.mxu0 0
      %653 = vmatpush1.bf16.msra.mxu0 0
      %654 = vmatprep.subr.bf16.mxu0 0
      %655 = vmatpush1.bf16.msra.mxu0 0
      %656 = vmatprep.subr.bf16.mxu0 0
      %657 = vmatpush1.bf16.msra.mxu0 0
      %658 = vmatprep.mubr.bf16.mxu0 0
      %659 = vmatmul.mubr.bf16.gmra.mrb[0].mxu0 %v624
      %v660 = vpop.f32.mrb[0].mxu0
      %v661 = vadd.f32 0.0, %v660
      %v662 = vpop.f32.mrb[0].mxu0
      %v663 = vpop.f32.mrb[0].mxu0
      %v664 = vpop.f32.mrb[0].mxu0
      %665 = vdwg.mxu0
      %v667 = vunpack.c.l.b16 %v469
      %v668 = vpack.c.b16 %v667, %v667
      %669 = vrot.lane.b32.xlu0 %v668, 120
      %v670 = vpop.permute.xlu0 %669
      %671 = vrot.lane.b32.xlu0 %v558, 120
      %v672 = vpop.permute.xlu0 %671
      %v674 = vsel %vm559, %v670, 0
      %v677 = vsel %vm559, %v672, 0
      %679 = vmatprep.subr.bf16.mxu0 0
      %680 = vmatpush1.bf16.xpose.msra.mxu0 %v677
      %681 = vmatprep.subr.bf16.mxu0 0
      %682 = vmatpush1.bf16.xpose.msra.mxu0 0
      %683 = vmatprep.subr.bf16.mxu0 0
      %684 = vmatpush1.bf16.xpose.msra.mxu0 0
      %685 = vmatprep.subr.bf16.mxu0 0
      %686 = vmatpush1.bf16.xpose.msra.mxu0 0
      %687 = vmatprep.subr.bf16.mxu0 0
      %688 = vmatpush1.bf16.xpose.msra.mxu0 0
      %689 = vmatprep.subr.bf16.mxu0 0
      %690 = vmatpush1.bf16.xpose.msra.mxu0 0
      %691 = vmatprep.subr.bf16.mxu0 0
      %692 = vmatpush1.bf16.xpose.msra.mxu0 0
      %693 = vmatprep.subr.bf16.mxu0 0
      %694 = vmatpush1.bf16.xpose.msra.mxu0 0
      %695 = vmatprep.subr.bf16.mxu0 0
      %696 = vmatpush1.bf16.xpose.msra.mxu0 0
      %697 = vmatprep.subr.bf16.mxu0 0
      %698 = vmatpush1.bf16.xpose.msra.mxu0 0
      %699 = vmatprep.subr.bf16.mxu0 0
      %700 = vmatpush1.bf16.xpose.msra.mxu0 0
      %701 = vmatprep.subr.bf16.mxu0 0
      %702 = vmatpush1.bf16.xpose.msra.mxu0 0
      %703 = vmatprep.subr.bf16.mxu0 0
      %704 = vmatpush1.bf16.xpose.msra.mxu0 0
      %705 = vmatprep.subr.bf16.mxu0 0
      %706 = vmatpush1.bf16.xpose.msra.mxu0 0
      %707 = vmatprep.subr.bf16.mxu0 0
      %708 = vmatpush1.bf16.xpose.msra.mxu0 0
      %709 = vmatprep.subr.bf16.mxu0 0
      %710 = vmatpush1.bf16.xpose.msra.mxu0 0
      %711 = vmatprep.mubr.bf16.mxu0 0
      %712 = vmatmul.mubr.bf16.gmra.mrb[0].mxu0 %v674
      %v713 = vpop.f32.mrb[0].mxu0
      %v714 = vadd.f32 0.0, %v713
      %v715 = vpop.f32.mrb[0].mxu0
      %v716 = vpop.f32.mrb[0].mxu0
      %v717 = vpop.f32.mrb[0].mxu0
      %718 = vdwg.mxu0
      %v719 = vsel %vm606, %v714, -inf
      %720 = vmax.xlane.f32.xlu0 %v719
      %v721 = vpop.xlane.xlu0 %720
      %v722 = vsub.f32 %v714, %v721
      %v723 = vmul.f32 %v722, 1.442695
      %v724 = vpow.pop %v723
      %v725 = vsel %vm606, %v724, 0.0
      %726 = vadd.xlane.f32.xlu0 %v725
      %v727 = vpop.xlane.xlu0 %726
      %v728 = vrcp.pop %v727
      %v729 = vmul.f32 %v724, %v728
      %v730 = vpack.c.bf16 %v729, %v729
      %731 = vrot.lane.b32.xlu0 %v558, 56
      %v732 = vpop.permute.xlu0 %731
      %v735 = vsel %vm606, %v730, 0
      %737 = vmatprep.subr.bf16.mxu0 0
      %738 = vmatpush1.bf16.msra.mxu0 %v732
      %739 = vmatprep.subr.bf16.mxu0 0
      %740 = vmatpush1.bf16.msra.mxu0 0
      %741 = vmatprep.subr.bf16.mxu0 0
      %742 = vmatpush1.bf16.msra.mxu0 0
      %743 = vmatprep.subr.bf16.mxu0 0
      %744 = vmatpush1.bf16.msra.mxu0 0
      %745 = vmatprep.subr.bf16.mxu0 0
      %746 = vmatpush1.bf16.msra.mxu0 0
      %747 = vmatprep.subr.bf16.mxu0 0
      %748 = vmatpush1.bf16.msra.mxu0 0
      %749 = vmatprep.subr.bf16.mxu0 0
      %750 = vmatpush1.bf16.msra.mxu0 0
      %751 = vmatprep.subr.bf16.mxu0 0
      %752 = vmatpush1.bf16.msra.mxu0 0
      %753 = vmatprep.subr.bf16.mxu0 0
      %754 = vmatpush1.bf16.msra.mxu0 0
      %755 = vmatprep.subr.bf16.mxu0 0
      %756 = vmatpush1.bf16.msra.mxu0 0
      %757 = vmatprep.subr.bf16.mxu0 0
      %758 = vmatpush1.bf16.msra.mxu0 0
      %759 = vmatprep.subr.bf16.mxu0 0
      %760 = vmatpush1.bf16.msra.mxu0 0
      %761 = vmatprep.subr.bf16.mxu0 0
      %762 = vmatpush1.bf16.msra.mxu0 0
      %763 = vmatprep.subr.bf16.mxu0 0
      %764 = vmatpush1.bf16.msra.mxu0 0
      %765 = vmatprep.subr.bf16.mxu0 0
      %766 = vmatpush1.bf16.msra.mxu0 0
      %767 = vmatprep.subr.bf16.mxu0 0
      %768 = vmatpush1.bf16.msra.mxu0 0
      %769 = vmatprep.mubr.bf16.mxu0 0
      %770 = vmatmul.mubr.bf16.gmra.mrb[0].mxu0 %v735
      %v771 = vpop.f32.mrb[0].mxu0
      %v772 = vadd.f32 0.0, %v771
      %v773 = vpop.f32.mrb[0].mxu0
      %v774 = vpop.f32.mrb[0].mxu0
      %v775 = vpop.f32.mrb[0].mxu0
      %776 = vdwg.mxu0
      %777 = vrot.lane.b32.xlu0 %v668, 112
      %v778 = vpop.permute.xlu0 %777
      %779 = vrot.lane.b32.xlu0 %v558, 112
      %v780 = vpop.permute.xlu0 %779
      %v782 = vsel %vm559, %v778, 0
      %v785 = vsel %vm559, %v780, 0
      %787 = vmatprep.subr.bf16.mxu0 0
      %788 = vmatpush1.bf16.xpose.msra.mxu0 %v785
      %789 = vmatprep.subr.bf16.mxu0 0
      %790 = vmatpush1.bf16.xpose.msra.mxu0 0
      %791 = vmatprep.subr.bf16.mxu0 0
      %792 = vmatpush1.bf16.xpose.msra.mxu0 0
      %793 = vmatprep.subr.bf16.mxu0 0
      %794 = vmatpush1.bf16.xpose.msra.mxu0 0
      %795 = vmatprep.subr.bf16.mxu0 0
      %796 = vmatpush1.bf16.xpose.msra.mxu0 0
      %797 = vmatprep.subr.bf16.mxu0 0
      %798 = vmatpush1.bf16.xpose.msra.mxu0 0
      %799 = vmatprep.subr.bf16.mxu0 0
      %800 = vmatpush1.bf16.xpose.msra.mxu0 0
      %801 = vmatprep.subr.bf16.mxu0 0
      %802 = vmatpush1.bf16.xpose.msra.mxu0 0
      %803 = vmatprep.subr.bf16.mxu0 0
      %804 = vmatpush1.bf16.xpose.msra.mxu0 0
      %805 = vmatprep.subr.bf16.mxu0 0
      %806 = vmatpush1.bf16.xpose.msra.mxu0 0
      %807 = vmatprep.subr.bf16.mxu0 0
      %808 = vmatpush1.bf16.xpose.msra.mxu0 0
      %809 = vmatprep.subr.bf16.mxu0 0
      %810 = vmatpush1.bf16.xpose.msra.mxu0 0
      %811 = vmatprep.subr.bf16.mxu0 0
      %812 = vmatpush1.bf16.xpose.msra.mxu0 0
      %813 = vmatprep.subr.bf16.mxu0 0
      %814 = vmatpush1.bf16.xpose.msra.mxu0 0
      %815 = vmatprep.subr.bf16.mxu0 0
      %816 = vmatpush1.bf16.xpose.msra.mxu0 0
      %817 = vmatprep.subr.bf16.mxu0 0
      %818 = vmatpush1.bf16.xpose.msra.mxu0 0
      %819 = vmatprep.mubr.bf16.mxu0 0
      %820 = vmatmul.mubr.bf16.gmra.mrb[0].mxu0 %v782
      %v821 = vpop.f32.mrb[0].mxu0
      %v822 = vadd.f32 0.0, %v821
      %v823 = vpop.f32.mrb[0].mxu0
      %v824 = vpop.f32.mrb[0].mxu0
      %v825 = vpop.f32.mrb[0].mxu0
      %826 = vdwg.mxu0
      %v827 = vsel %vm606, %v822, -inf
      %828 = vmax.xlane.f32.xlu0 %v827
      %v829 = vpop.xlane.xlu0 %828
      %v830 = vsub.f32 %v822, %v829
      %v831 = vmul.f32 %v830, 1.442695
      %v832 = vpow.pop %v831
      %v833 = vsel %vm606, %v832, 0.0
      %834 = vadd.xlane.f32.xlu0 %v833
      %v835 = vpop.xlane.xlu0 %834
      %v836 = vrcp.pop %v835
      %v837 = vmul.f32 %v832, %v836
      %v838 = vpack.c.bf16 %v837, %v837
      %839 = vrot.lane.b32.xlu0 %v558, 48
      %v840 = vpop.permute.xlu0 %839
      %v843 = vsel %vm606, %v838, 0
      %845 = vmatprep.subr.bf16.mxu0 0
      %846 = vmatpush1.bf16.msra.mxu0 %v840
      %847 = vmatprep.subr.bf16.mxu0 0
      %848 = vmatpush1.bf16.msra.mxu0 0
      %849 = vmatprep.subr.bf16.mxu0 0
      %850 = vmatpush1.bf16.msra.mxu0 0
      %851 = vmatprep.subr.bf16.mxu0 0
      %852 = vmatpush1.bf16.msra.mxu0 0
      %853 = vmatprep.subr.bf16.mxu0 0
      %854 = vmatpush1.bf16.msra.mxu0 0
      %855 = vmatprep.subr.bf16.mxu0 0
      %856 = vmatpush1.bf16.msra.mxu0 0
      %857 = vmatprep.subr.bf16.mxu0 0
      %858 = vmatpush1.bf16.msra.mxu0 0
      %859 = vmatprep.subr.bf16.mxu0 0
      %860 = vmatpush1.bf16.msra.mxu0 0
      %861 = vmatprep.subr.bf16.mxu0 0
      %862 = vmatpush1.bf16.msra.mxu0 0
      %863 = vmatprep.subr.bf16.mxu0 0
      %864 = vmatpush1.bf16.msra.mxu0 0
      %865 = vmatprep.subr.bf16.mxu0 0
      %866 = vmatpush1.bf16.msra.mxu0 0
      %867 = vmatprep.subr.bf16.mxu0 0
      %868 = vmatpush1.bf16.msra.mxu0 0
      %869 = vmatprep.subr.bf16.mxu0 0
      %870 = vmatpush1.bf16.msra.mxu0 0
      %871 = vmatprep.subr.bf16.mxu0 0
      %872 = vmatpush1.bf16.msra.mxu0 0
      %873 = vmatprep.subr.bf16.mxu0 0
      %874 = vmatpush1.bf16.msra.mxu0 0
      %875 = vmatprep.subr.bf16.mxu0 0
      %876 = vmatpush1.bf16.msra.mxu0 0
      %877 = vmatprep.mubr.bf16.mxu0 0
      %878 = vmatmul.mubr.bf16.gmra.mrb[0].mxu0 %v843
      %v879 = vpop.f32.mrb[0].mxu0
      %v880 = vadd.f32 0.0, %v879
      %v881 = vpop.f32.mrb[0].mxu0
      %v882 = vpop.f32.mrb[0].mxu0
      %v883 = vpop.f32.mrb[0].mxu0
      %884 = vdwg.mxu0
      %885 = vrot.lane.b32.xlu0 %v668, 104
      %v886 = vpop.permute.xlu0 %885
      %887 = vrot.lane.b32.xlu0 %v558, 104
      %v888 = vpop.permute.xlu0 %887
      %v890 = vsel %vm559, %v886, 0
      %v893 = vsel %vm559, %v888, 0
      %895 = vmatprep.subr.bf16.mxu0 0
      %896 = vmatpush1.bf16.xpose.msra.mxu0 %v893
      %897 = vmatprep.subr.bf16.mxu0 0
      %898 = vmatpush1.bf16.xpose.msra.mxu0 0
      %899 = vmatprep.subr.bf16.mxu0 0
      %900 = vmatpush1.bf16.xpose.msra.mxu0 0
      %901 = vmatprep.subr.bf16.mxu0 0
      %902 = vmatpush1.bf16.xpose.msra.mxu0 0
      %903 = vmatprep.subr.bf16.mxu0 0
      %904 = vmatpush1.bf16.xpose.msra.mxu0 0
      %905 = vmatprep.subr.bf16.mxu0 0
      %906 = vmatpush1.bf16.xpose.msra.mxu0 0
      %907 = vmatprep.subr.bf16.mxu0 0
      %908 = vmatpush1.bf16.xpose.msra.mxu0 0
      %909 = vmatprep.subr.bf16.mxu0 0
      %910 = vmatpush1.bf16.xpose.msra.mxu0 0
      %911 = vmatprep.subr.bf16.mxu0 0
      %912 = vmatpush1.bf16.xpose.msra.mxu0 0
      %913 = vmatprep.subr.bf16.mxu0 0
      %914 = vmatpush1.bf16.xpose.msra.mxu0 0
      %915 = vmatprep.subr.bf16.mxu0 0
      %916 = vmatpush1.bf16.xpose.msra.mxu0 0
      %917 = vmatprep.subr.bf16.mxu0 0
      %918 = vmatpush1.bf16.xpose.msra.mxu0 0
      %919 = vmatprep.subr.bf16.mxu0 0
      %920 = vmatpush1.bf16.xpose.msra.mxu0 0
      %921 = vmatprep.subr.bf16.mxu0 0
      %922 = vmatpush1.bf16.xpose.msra.mxu0 0
      %923 = vmatprep.subr.bf16.mxu0 0
      %924 = vmatpush1.bf16.xpose.msra.mxu0 0
      %925 = vmatprep.subr.bf16.mxu0 0
      %926 = vmatpush1.bf16.xpose.msra.mxu0 0
      %927 = vmatprep.mubr.bf16.mxu0 0
      %928 = vmatmul.mubr.bf16.gmra.mrb[0].mxu0 %v890
      %v929 = vpop.f32.mrb[0].mxu0
      %v930 = vadd.f32 0.0, %v929
      %v931 = vpop.f32.mrb[0].mxu0
      %v932 = vpop.f32.mrb[0].mxu0
      %v933 = vpop.f32.mrb[0].mxu0
      %934 = vdwg.mxu0
      %v935 = vsel %vm606, %v930, -inf
      %936 = vmax.xlane.f32.xlu0 %v935
      %v937 = vpop.xlane.xlu0 %936
      %v938 = vsub.f32 %v930, %v937
      %v939 = vmul.f32 %v938, 1.442695
      %v940 = vpow.pop %v939
      %v941 = vsel %vm606, %v940, 0.0
      %942 = vadd.xlane.f32.xlu0 %v941
      %v943 = vpop.xlane.xlu0 %942
      %v944 = vrcp.pop %v943
      %v945 = vmul.f32 %v940, %v944
      %v946 = vpack.c.bf16 %v945, %v945
      %947 = vrot.lane.b32.xlu0 %v558, 40
      %v948 = vpop.permute.xlu0 %947
      %v951 = vsel %vm606, %v946, 0
      %953 = vmatprep.subr.bf16.mxu0 0
      %954 = vmatpush1.bf16.msra.mxu0 %v948
      %955 = vmatprep.subr.bf16.mxu0 0
      %956 = vmatpush1.bf16.msra.mxu0 0
      %957 = vmatprep.subr.bf16.mxu0 0
      %958 = vmatpush1.bf16.msra.mxu0 0
      %959 = vmatprep.subr.bf16.mxu0 0
      %960 = vmatpush1.bf16.msra.mxu0 0
      %961 = vmatprep.subr.bf16.mxu0 0
      %962 = vmatpush1.bf16.msra.mxu0 0
      %963 = vmatprep.subr.bf16.mxu0 0
      %964 = vmatpush1.bf16.msra.mxu0 0
      %965 = vmatprep.subr.bf16.mxu0 0
      %966 = vmatpush1.bf16.msra.mxu0 0
      %967 = vmatprep.subr.bf16.mxu0 0
      %968 = vmatpush1.bf16.msra.mxu0 0
      %969 = vmatprep.subr.bf16.mxu0 0
      %970 = vmatpush1.bf16.msra.mxu0 0
      %971 = vmatprep.subr.bf16.mxu0 0
      %972 = vmatpush1.bf16.msra.mxu0 0
      %973 = vmatprep.subr.bf16.mxu0 0
      %974 = vmatpush1.bf16.msra.mxu0 0
      %975 = vmatprep.subr.bf16.mxu0 0
      %976 = vmatpush1.bf16.msra.mxu0 0
      %977 = vmatprep.subr.bf16.mxu0 0
      %978 = vmatpush1.bf16.msra.mxu0 0
      %979 = vmatprep.subr.bf16.mxu0 0
      %980 = vmatpush1.bf16.msra.mxu0 0
      %981 = vmatprep.subr.bf16.mxu0 0
      %982 = vmatpush1.bf16.msra.mxu0 0
      %983 = vmatprep.subr.bf16.mxu0 0
      %984 = vmatpush1.bf16.msra.mxu0 0
      %985 = vmatprep.mubr.bf16.mxu0 0
      %986 = vmatmul.mubr.bf16.gmra.mrb[0].mxu0 %v951
      %v987 = vpop.f32.mrb[0].mxu0
      %v988 = vadd.f32 0.0, %v987
      %v989 = vpop.f32.mrb[0].mxu0
      %v990 = vpop.f32.mrb[0].mxu0
      %v991 = vpop.f32.mrb[0].mxu0
      %992 = vdwg.mxu0
      %993 = vrot.lane.b32.xlu0 %v668, 96
      %v994 = vpop.permute.xlu0 %993
      %995 = vrot.lane.b32.xlu0 %v558, 96
      %v996 = vpop.permute.xlu0 %995
      %v998 = vsel %vm559, %v994, 0
      %v1001 = vsel %vm559, %v996, 0
      %1003 = vmatprep.subr.bf16.mxu0 0
      %1004 = vmatpush1.bf16.xpose.msra.mxu0 %v1001
      %1005 = vmatprep.subr.bf16.mxu0 0
      %1006 = vmatpush1.bf16.xpose.msra.mxu0 0
      %1007 = vmatprep.subr.bf16.mxu0 0
      %1008 = vmatpush1.bf16.xpose.msra.mxu0 0
      %1009 = vmatprep.subr.bf16.mxu0 0
      %1010 = vmatpush1.bf16.xpose.msra.mxu0 0
      %1011 = vmatprep.subr.bf16.mxu0 0
      %1012 = vmatpush1.bf16.xpose.msra.mxu0 0
      %1013 = vmatprep.subr.bf16.mxu0 0
      %1014 = vmatpush1.bf16.xpose.msra.mxu0 0
      %1015 = vmatprep.subr.bf16.mxu0 0
      %1016 = vmatpush1.bf16.xpose.msra.mxu0 0
      %1017 = vmatprep.subr.bf16.mxu0 0
      %1018 = vmatpush1.bf16.xpose.msra.mxu0 0
      %1019 = vmatprep.subr.bf16.mxu0 0
      %1020 = vmatpush1.bf16.xpose.msra.mxu0 0
      %1021 = vmatprep.subr.bf16.mxu0 0
      %1022 = vmatpush1.bf16.xpose.msra.mxu0 0
      %1023 = vmatprep.subr.bf16.mxu0 0
      %1024 = vmatpush1.bf16.xpose.msra.mxu0 0
      %1025 = vmatprep.subr.bf16.mxu0 0
      %1026 = vmatpush1.bf16.xpose.msra.mxu0 0
      %1027 = vmatprep.subr.bf16.mxu0 0
      %1028 = vmatpush1.bf16.xpose.msra.mxu0 0
      %1029 = vmatprep.subr.bf16.mxu0 0
      %1030 = vmatpush1.bf16.xpose.msra.mxu0 0
      %1031 = vmatprep.subr.bf16.mxu0 0
      %1032 = vmatpush1.bf16.xpose.msra.mxu0 0
      %1033 = vmatprep.subr.bf16.mxu0 0
      %1034 = vmatpush1.bf16.xpose.msra.mxu0 0
      %1035 = vmatprep.mubr.bf16.mxu0 0
      %1036 = vmatmul.mubr.bf16.gmra.mrb[0].mxu0 %v998
      %v1037 = vpop.f32.mrb[0].mxu0
      %v1038 = vadd.f32 0.0, %v1037
      %v1039 = vpop.f32.mrb[0].mxu0
      %v1040 = vpop.f32.mrb[0].mxu0
      %v1041 = vpop.f32.mrb[0].mxu0
      %1042 = vdwg.mxu0
      %v1043 = vsel %vm606, %v1038, -inf
      %1044 = vmax.xlane.f32.xlu0 %v1043
      %v1045 = vpop.xlane.xlu0 %1044
      %v1046 = vsub.f32 %v1038, %v1045
      %v1047 = vmul.f32 %v1046, 1.442695
      %v1048 = vpow.pop %v1047
      %v1049 = vsel %vm606, %v1048, 0.0
      %1050 = vadd.xlane.f32.xlu0 %v1049
      %v1051 = vpop.xlane.xlu0 %1050
      %v1052 = vrcp.pop %v1051
      %v1053 = vmul.f32 %v1048, %v1052
      %v1054 = vpack.c.bf16 %v1053, %v1053
      %1055 = vrot.lane.b32.xlu0 %v558, 32
      %v1056 = vpop.permute.xlu0 %1055
      %v1059 = vsel %vm606, %v1054, 0
      %1061 = vmatprep.subr.bf16.mxu0 0
      %1062 = vmatpush1.bf16.msra.mxu0 %v1056
      %1063 = vmatprep.subr.bf16.mxu0 0
      %1064 = vmatpush1.bf16.msra.mxu0 0
      %1065 = vmatprep.subr.bf16.mxu0 0
      %1066 = vmatpush1.bf16.msra.mxu0 0
      %1067 = vmatprep.subr.bf16.mxu0 0
      %1068 = vmatpush1.bf16.msra.mxu0 0
      %1069 = vmatprep.subr.bf16.mxu0 0
      %1070 = vmatpush1.bf16.msra.mxu0 0
      %1071 = vmatprep.subr.bf16.mxu0 0
      %1072 = vmatpush1.bf16.msra.mxu0 0
      %1073 = vmatprep.subr.bf16.mxu0 0
      %1074 = vmatpush1.bf16.msra.mxu0 0
      %1075 = vmatprep.subr.bf16.mxu0 0
      %1076 = vmatpush1.bf16.msra.mxu0 0
      %1077 = vmatprep.subr.bf16.mxu0 0
      %1078 = vmatpush1.bf16.msra.mxu0 0
      %1079 = vmatprep.subr.bf16.mxu0 0
      %1080 = vmatpush1.bf16.msra.mxu0 0
      %1081 = vmatprep.subr.bf16.mxu0 0
      %1082 = vmatpush1.bf16.msra.mxu0 0
      %1083 = vmatprep.subr.bf16.mxu0 0
      %1084 = vmatpush1.bf16.msra.mxu0 0
      %1085 = vmatprep.subr.bf16.mxu0 0
      %1086 = vmatpush1.bf16.msra.mxu0 0
      %1087 = vmatprep.subr.bf16.mxu0 0
      %1088 = vmatpush1.bf16.msra.mxu0 0
      %1089 = vmatprep.subr.bf16.mxu0 0
      %1090 = vmatpush1.bf16.msra.mxu0 0
      %1091 = vmatprep.subr.bf16.mxu0 0
      %1092 = vmatpush1.bf16.msra.mxu0 0
      %1093 = vmatprep.mubr.bf16.mxu0 0
      %1094 = vmatmul.mubr.bf16.gmra.mrb[0].mxu0 %v1059
      %v1095 = vpop.f32.mrb[0].mxu0
      %v1096 = vadd.f32 0.0, %v1095
      %v1097 = vpop.f32.mrb[0].mxu0
      %v1098 = vpop.f32.mrb[0].mxu0
      %v1099 = vpop.f32.mrb[0].mxu0
      %1100 = vdwg.mxu0
      %1101 = vrot.lane.b32.xlu0 %v668, 88
      %v1102 = vpop.permute.xlu0 %1101
      %1103 = vrot.lane.b32.xlu0 %v558, 88
      %v1104 = vpop.permute.xlu0 %1103
      %v1106 = vsel %vm559, %v1102, 0
      %v1109 = vsel %vm559, %v1104, 0
      %1111 = vmatprep.subr.bf16.mxu0 0
      %1112 = vmatpush1.bf16.xpose.msra.mxu0 %v1109
      %1113 = vmatprep.subr.bf16.mxu0 0
      %1114 = vmatpush1.bf16.xpose.msra.mxu0 0
      %1115 = vmatprep.subr.bf16.mxu0 0
      %1116 = vmatpush1.bf16.xpose.msra.mxu0 0
      %1117 = vmatprep.subr.bf16.mxu0 0
      %1118 = vmatpush1.bf16.xpose.msra.mxu0 0
      %1119 = vmatprep.subr.bf16.mxu0 0
      %1120 = vmatpush1.bf16.xpose.msra.mxu0 0
      %1121 = vmatprep.subr.bf16.mxu0 0
      %1122 = vmatpush1.bf16.xpose.msra.mxu0 0
      %1123 = vmatprep.subr.bf16.mxu0 0
      %1124 = vmatpush1.bf16.xpose.msra.mxu0 0
      %1125 = vmatprep.subr.bf16.mxu0 0
      %1126 = vmatpush1.bf16.xpose.msra.mxu0 0
      %1127 = vmatprep.subr.bf16.mxu0 0
      %1128 = vmatpush1.bf16.xpose.msra.mxu0 0
      %1129 = vmatprep.subr.bf16.mxu0 0
      %1130 = vmatpush1.bf16.xpose.msra.mxu0 0
      %1131 = vmatprep.subr.bf16.mxu0 0
      %1132 = vmatpush1.bf16.xpose.msra.mxu0 0
      %1133 = vmatprep.subr.bf16.mxu0 0
      %1134 = vmatpush1.bf16.xpose.msra.mxu0 0
      %1135 = vmatprep.subr.bf16.mxu0 0
      %1136 = vmatpush1.bf16.xpose.msra.mxu0 0
      %1137 = vmatprep.subr.bf16.mxu0 0
      %1138 = vmatpush1.bf16.xpose.msra.mxu0 0
      %1139 = vmatprep.subr.bf16.mxu0 0
      %1140 = vmatpush1.bf16.xpose.msra.mxu0 0
      %1141 = vmatprep.subr.bf16.mxu0 0
      %1142 = vmatpush1.bf16.xpose.msra.mxu0 0
      %1143 = vmatprep.mubr.bf16.mxu0 0
      %1144 = vmatmul.mubr.bf16.gmra.mrb[0].mxu0 %v1106
      %v1145 = vpop.f32.mrb[0].mxu0
      %v1146 = vadd.f32 0.0, %v1145
      %v1147 = vpop.f32.mrb[0].mxu0
      %v1148 = vpop.f32.mrb[0].mxu0
      %v1149 = vpop.f32.mrb[0].mxu0
      %1150 = vdwg.mxu0
      %v1151 = vsel %vm606, %v1146, -inf
      %1152 = vmax.xlane.f32.xlu0 %v1151
      %v1153 = vpop.xlane.xlu0 %1152
      %v1154 = vsub.f32 %v1146, %v1153
      %v1155 = vmul.f32 %v1154, 1.442695
      %v1156 = vpow.pop %v1155
      %v1157 = vsel %vm606, %v1156, 0.0
      %1158 = vadd.xlane.f32.xlu0 %v1157
      %v1159 = vpop.xlane.xlu0 %1158
      %v1160 = vrcp.pop %v1159
      %v1161 = vmul.f32 %v1156, %v1160
      %v1162 = vpack.c.bf16 %v1161, %v1161
      %1163 = vrot.lane.b32.xlu0 %v558, 24
      %v1164 = vpop.permute.xlu0 %1163
      %v1167 = vsel %vm606, %v1162, 0
      %1169 = vmatprep.subr.bf16.mxu0 0
      %1170 = vmatpush1.bf16.msra.mxu0 %v1164
      %1171 = vmatprep.subr.bf16.mxu0 0
      %1172 = vmatpush1.bf16.msra.mxu0 0
      %1173 = vmatprep.subr.bf16.mxu0 0
      %1174 = vmatpush1.bf16.msra.mxu0 0
      %1175 = vmatprep.subr.bf16.mxu0 0
      %1176 = vmatpush1.bf16.msra.mxu0 0
      %1177 = vmatprep.subr.bf16.mxu0 0
      %1178 = vmatpush1.bf16.msra.mxu0 0
      %1179 = vmatprep.subr.bf16.mxu0 0
      %1180 = vmatpush1.bf16.msra.mxu0 0
      %1181 = vmatprep.subr.bf16.mxu0 0
      %1182 = vmatpush1.bf16.msra.mxu0 0
      %1183 = vmatprep.subr.bf16.mxu0 0
      %1184 = vmatpush1.bf16.msra.mxu0 0
      %1185 = vmatprep.subr.bf16.mxu0 0
      %1186 = vmatpush1.bf16.msra.mxu0 0
      %1187 = vmatprep.subr.bf16.mxu0 0
      %1188 = vmatpush1.bf16.msra.mxu0 0
      %1189 = vmatprep.subr.bf16.mxu0 0
      %1190 = vmatpush1.bf16.msra.mxu0 0
      %1191 = vmatprep.subr.bf16.mxu0 0
      %1192 = vmatpush1.bf16.msra.mxu0 0
      %1193 = vmatprep.subr.bf16.mxu0 0
      %1194 = vmatpush1.bf16.msra.mxu0 0
      %1195 = vmatprep.subr.bf16.mxu0 0
      %1196 = vmatpush1.bf16.msra.mxu0 0
      %1197 = vmatprep.subr.bf16.mxu0 0
      %1198 = vmatpush1.bf16.msra.mxu0 0
      %1199 = vmatprep.subr.bf16.mxu0 0
      %1200 = vmatpush1.bf16.msra.mxu0 0
      %1201 = vmatprep.mubr.bf16.mxu0 0
      %1202 = vmatmul.mubr.bf16.gmra.mrb[0].mxu0 %v1167
      %v1203 = vpop.f32.mrb[0].mxu0
      %v1204 = vadd.f32 0.0, %v1203
      %v1205 = vpop.f32.mrb[0].mxu0
      %v1206 = vpop.f32.mrb[0].mxu0
      %v1207 = vpop.f32.mrb[0].mxu0
      %1208 = vdwg.mxu0
      %1209 = vrot.lane.b32.xlu0 %v668, 80
      %v1210 = vpop.permute.xlu0 %1209
      %1211 = vrot.lane.b32.xlu0 %v558, 80
      %v1212 = vpop.permute.xlu0 %1211
      %v1214 = vsel %vm559, %v1210, 0
      %v1217 = vsel %vm559, %v1212, 0
      %1219 = vmatprep.subr.bf16.mxu0 0
      %1220 = vmatpush1.bf16.xpose.msra.mxu0 %v1217
      %1221 = vmatprep.subr.bf16.mxu0 0
      %1222 = vmatpush1.bf16.xpose.msra.mxu0 0
      %1223 = vmatprep.subr.bf16.mxu0 0
      %1224 = vmatpush1.bf16.xpose.msra.mxu0 0
      %1225 = vmatprep.subr.bf16.mxu0 0
      %1226 = vmatpush1.bf16.xpose.msra.mxu0 0
      %1227 = vmatprep.subr.bf16.mxu0 0
      %1228 = vmatpush1.bf16.xpose.msra.mxu0 0
      %1229 = vmatprep.subr.bf16.mxu0 0
      %1230 = vmatpush1.bf16.xpose.msra.mxu0 0
      %1231 = vmatprep.subr.bf16.mxu0 0
      %1232 = vmatpush1.bf16.xpose.msra.mxu0 0
      %1233 = vmatprep.subr.bf16.mxu0 0
      %1234 = vmatpush1.bf16.xpose.msra.mxu0 0
      %1235 = vmatprep.subr.bf16.mxu0 0
      %1236 = vmatpush1.bf16.xpose.msra.mxu0 0
      %1237 = vmatprep.subr.bf16.mxu0 0
      %1238 = vmatpush1.bf16.xpose.msra.mxu0 0
      %1239 = vmatprep.subr.bf16.mxu0 0
      %1240 = vmatpush1.bf16.xpose.msra.mxu0 0
      %1241 = vmatprep.subr.bf16.mxu0 0
      %1242 = vmatpush1.bf16.xpose.msra.mxu0 0
      %1243 = vmatprep.subr.bf16.mxu0 0
      %1244 = vmatpush1.bf16.xpose.msra.mxu0 0
      %1245 = vmatprep.subr.bf16.mxu0 0
      %1246 = vmatpush1.bf16.xpose.msra.mxu0 0
      %1247 = vmatprep.subr.bf16.mxu0 0
      %1248 = vmatpush1.bf16.xpose.msra.mxu0 0
      %1249 = vmatprep.subr.bf16.mxu0 0
      %1250 = vmatpush1.bf16.xpose.msra.mxu0 0
      %1251 = vmatprep.mubr.bf16.mxu0 0
      %1252 = vmatmul.mubr.bf16.gmra.mrb[0].mxu0 %v1214
      %v1253 = vpop.f32.mrb[0].mxu0
      %v1254 = vadd.f32 0.0, %v1253
      %v1255 = vpop.f32.mrb[0].mxu0
      %v1256 = vpop.f32.mrb[0].mxu0
      %v1257 = vpop.f32.mrb[0].mxu0
      %1258 = vdwg.mxu0
      %v1259 = vsel %vm606, %v1254, -inf
      %1260 = vmax.xlane.f32.xlu0 %v1259
      %v1261 = vpop.xlane.xlu0 %1260
      %v1262 = vsub.f32 %v1254, %v1261
      %v1263 = vmul.f32 %v1262, 1.442695
      %v1264 = vpow.pop %v1263
      %v1265 = vsel %vm606, %v1264, 0.0
      %1266 = vadd.xlane.f32.xlu0 %v1265
      %v1267 = vpop.xlane.xlu0 %1266
      %v1268 = vrcp.pop %v1267
      %v1269 = vmul.f32 %v1264, %v1268
      %v1270 = vpack.c.bf16 %v1269, %v1269
      %1271 = vrot.lane.b32.xlu0 %v558, 16
      %v1272 = vpop.permute.xlu0 %1271
      %v1275 = vsel %vm606, %v1270, 0
      %1277 = vmatprep.subr.bf16.mxu0 0
      %1278 = vmatpush1.bf16.msra.mxu0 %v1272
      %1279 = vmatprep.subr.bf16.mxu0 0
      %1280 = vmatpush1.bf16.msra.mxu0 0
      %1281 = vmatprep.subr.bf16.mxu0 0
      %1282 = vmatpush1.bf16.msra.mxu0 0
      %1283 = vmatprep.subr.bf16.mxu0 0
      %1284 = vmatpush1.bf16.msra.mxu0 0
      %1285 = vmatprep.subr.bf16.mxu0 0
      %1286 = vmatpush1.bf16.msra.mxu0 0
      %1287 = vmatprep.subr.bf16.mxu0 0
      %1288 = vmatpush1.bf16.msra.mxu0 0
      %1289 = vmatprep.subr.bf16.mxu0 0
      %1290 = vmatpush1.bf16.msra.mxu0 0
      %1291 = vmatprep.subr.bf16.mxu0 0
      %1292 = vmatpush1.bf16.msra.mxu0 0
      %1293 = vmatprep.subr.bf16.mxu0 0
      %1294 = vmatpush1.bf16.msra.mxu0 0
      %1295 = vmatprep.subr.bf16.mxu0 0
      %1296 = vmatpush1.bf16.msra.mxu0 0
      %1297 = vmatprep.subr.bf16.mxu0 0
      %1298 = vmatpush1.bf16.msra.mxu0 0
      %1299 = vmatprep.subr.bf16.mxu0 0
      %1300 = vmatpush1.bf16.msra.mxu0 0
      %1301 = vmatprep.subr.bf16.mxu0 0
      %1302 = vmatpush1.bf16.msra.mxu0 0
      %1303 = vmatprep.subr.bf16.mxu0 0
      %1304 = vmatpush1.bf16.msra.mxu0 0
      %1305 = vmatprep.subr.bf16.mxu0 0
      %1306 = vmatpush1.bf16.msra.mxu0 0
      %1307 = vmatprep.subr.bf16.mxu0 0
      %1308 = vmatpush1.bf16.msra.mxu0 0
      %1309 = vmatprep.mubr.bf16.mxu0 0
      %1310 = vmatmul.mubr.bf16.gmra.mrb[0].mxu0 %v1275
      %v1311 = vpop.f32.mrb[0].mxu0
      %v1312 = vadd.f32 0.0, %v1311
      %v1313 = vpop.f32.mrb[0].mxu0
      %v1314 = vpop.f32.mrb[0].mxu0
      %v1315 = vpop.f32.mrb[0].mxu0
      %1316 = vdwg.mxu0
      %1317 = vrot.lane.b32.xlu0 %v668, 72
      %v1318 = vpop.permute.xlu0 %1317
      %1319 = vrot.lane.b32.xlu0 %v558, 72
      %v1320 = vpop.permute.xlu0 %1319
      %v1322 = vsel %vm559, %v1318, 0
      %v1325 = vsel %vm559, %v1320, 0
      %1327 = vmatprep.subr.bf16.mxu0 0
      %1328 = vmatpush1.bf16.xpose.msra.mxu0 %v1325
      %1329 = vmatprep.subr.bf16.mxu0 0
      %1330 = vmatpush1.bf16.xpose.msra.mxu0 0
      %1331 = vmatprep.subr.bf16.mxu0 0
      %1332 = vmatpush1.bf16.xpose.msra.mxu0 0
      %1333 = vmatprep.subr.bf16.mxu0 0
      %1334 = vmatpush1.bf16.xpose.msra.mxu0 0
      %1335 = vmatprep.subr.bf16.mxu0 0
      %1336 = vmatpush1.bf16.xpose.msra.mxu0 0
      %1337 = vmatprep.subr.bf16.mxu0 0
      %1338 = vmatpush1.bf16.xpose.msra.mxu0 0
      %1339 = vmatprep.subr.bf16.mxu0 0
      %1340 = vmatpush1.bf16.xpose.msra.mxu0 0
      %1341 = vmatprep.subr.bf16.mxu0 0
      %1342 = vmatpush1.bf16.xpose.msra.mxu0 0
      %1343 = vmatprep.subr.bf16.mxu0 0
      %1344 = vmatpush1.bf16.xpose.msra.mxu0 0
      %1345 = vmatprep.subr.bf16.mxu0 0
      %1346 = vmatpush1.bf16.xpose.msra.mxu0 0
      %1347 = vmatprep.subr.bf16.mxu0 0
      %1348 = vmatpush1.bf16.xpose.msra.mxu0 0
      %1349 = vmatprep.subr.bf16.mxu0 0
      %1350 = vmatpush1.bf16.xpose.msra.mxu0 0
      %1351 = vmatprep.subr.bf16.mxu0 0
      %1352 = vmatpush1.bf16.xpose.msra.mxu0 0
      %1353 = vmatprep.subr.bf16.mxu0 0
      %1354 = vmatpush1.bf16.xpose.msra.mxu0 0
      %1355 = vmatprep.subr.bf16.mxu0 0
      %1356 = vmatpush1.bf16.xpose.msra.mxu0 0
      %1357 = vmatprep.subr.bf16.mxu0 0
      %1358 = vmatpush1.bf16.xpose.msra.mxu0 0
      %1359 = vmatprep.mubr.bf16.mxu0 0
      %1360 = vmatmul.mubr.bf16.gmra.mrb[0].mxu0 %v1322
      %v1361 = vpop.f32.mrb[0].mxu0
      %v1362 = vadd.f32 0.0, %v1361
      %v1363 = vpop.f32.mrb[0].mxu0
      %v1364 = vpop.f32.mrb[0].mxu0
      %v1365 = vpop.f32.mrb[0].mxu0
      %1366 = vdwg.mxu0
      %v1367 = vsel %vm606, %v1362, -inf
      %1368 = vmax.xlane.f32.xlu0 %v1367
      %v1369 = vpop.xlane.xlu0 %1368
      %v1370 = vsub.f32 %v1362, %v1369
      %v1371 = vmul.f32 %v1370, 1.442695
      %v1372 = vpow.pop %v1371
      %v1373 = vsel %vm606, %v1372, 0.0
      %1374 = vadd.xlane.f32.xlu0 %v1373
      %v1375 = vpop.xlane.xlu0 %1374
      %v1376 = vrcp.pop %v1375
      %v1377 = vmul.f32 %v1372, %v1376
      %v1378 = vpack.c.bf16 %v1377, %v1377
      %1379 = vrot.lane.b32.xlu0 %v558, 8
      %v1380 = vpop.permute.xlu0 %1379
      %v1383 = vsel %vm606, %v1378, 0
      %1385 = vmatprep.subr.bf16.mxu0 0
      %1386 = vmatpush1.bf16.msra.mxu0 %v1380
      %1387 = vmatprep.subr.bf16.mxu0 0
      %1388 = vmatpush1.bf16.msra.mxu0 0
      %1389 = vmatprep.subr.bf16.mxu0 0
      %1390 = vmatpush1.bf16.msra.mxu0 0
      %1391 = vmatprep.subr.bf16.mxu0 0
      %1392 = vmatpush1.bf16.msra.mxu0 0
      %1393 = vmatprep.subr.bf16.mxu0 0
      %1394 = vmatpush1.bf16.msra.mxu0 0
      %1395 = vmatprep.subr.bf16.mxu0 0
      %1396 = vmatpush1.bf16.msra.mxu0 0
      %1397 = vmatprep.subr.bf16.mxu0 0
      %1398 = vmatpush1.bf16.msra.mxu0 0
      %1399 = vmatprep.subr.bf16.mxu0 0
      %1400 = vmatpush1.bf16.msra.mxu0 0
      %1401 = vmatprep.subr.bf16.mxu0 0
      %1402 = vmatpush1.bf16.msra.mxu0 0
      %1403 = vmatprep.subr.bf16.mxu0 0
      %1404 = vmatpush1.bf16.msra.mxu0 0
      %1405 = vmatprep.subr.bf16.mxu0 0
      %1406 = vmatpush1.bf16.msra.mxu0 0
      %1407 = vmatprep.subr.bf16.mxu0 0
      %1408 = vmatpush1.bf16.msra.mxu0 0
      %1409 = vmatprep.subr.bf16.mxu0 0
      %1410 = vmatpush1.bf16.msra.mxu0 0
      %1411 = vmatprep.subr.bf16.mxu0 0
      %1412 = vmatpush1.bf16.msra.mxu0 0
      %1413 = vmatprep.subr.bf16.mxu0 0
      %1414 = vmatpush1.bf16.msra.mxu0 0
      %1415 = vmatprep.subr.bf16.mxu0 0
      %1416 = vmatpush1.bf16.msra.mxu0 0
      %1417 = vmatprep.mubr.bf16.mxu0 0
      %1418 = vmatmul.mubr.bf16.gmra.mrb[0].mxu0 %v1383
      %v1419 = vpop.f32.mrb[0].mxu0
      %v1420 = vadd.f32 0.0, %v1419
      %v1421 = vpop.f32.mrb[0].mxu0
      %v1422 = vpop.f32.mrb[0].mxu0
      %v1423 = vpop.f32.mrb[0].mxu0
      %1424 = vdwg.mxu0
      %1426 = vrot.lane.b32.xlu0 %v772, 8
      %v1427 = vpop.permute.xlu0 %1426
      %1430 = vrot.lane.b32.xlu0 %v880, 16
      %v1431 = vpop.permute.xlu0 %1430
      %1434 = vrot.lane.b32.xlu0 %v988, 24
      %v1435 = vpop.permute.xlu0 %1434
      %1438 = vrot.lane.b32.xlu0 %v1096, 32
      %v1439 = vpop.permute.xlu0 %1438
      %1442 = vrot.lane.b32.xlu0 %v1204, 40
      %v1443 = vpop.permute.xlu0 %1442
      %1446 = vrot.lane.b32.xlu0 %v1312, 48
      %v1447 = vpop.permute.xlu0 %1446
      %1450 = vrot.lane.b32.xlu0 %v1420, 56
      %v1451 = vpop.permute.xlu0 %1450
      %v1453 = vsel %vm559, %v661, %v1427
      %v1454 = vsel %vm606, %v1453, %v1431
      %vm1455 = vcmask 195584
      %v1456 = vsel %vm1455, %v1454, %v1435
      %vm1457 = vcmask 261120
      %v1458 = vsel %vm1457, %v1456, %v1439
      %vm1459 = vcmask 326656
      %v1460 = vsel %vm1459, %v1458, %v1443
      %vm1461 = vcmask 392192
      %v1462 = vsel %vm1461, %v1460, %v1447
      %vm1463 = vcmask 457728
      %v1464 = vsel %vm1463, %v1462, %v1451
      %v1465 = vpack.c.bf16 %v1464, %v1464
      %v1466 = vld [vmem:[%s4] sm:$0xf]
      %v1467 = vld [vmem:[%s4 + $0x4] sm:$0xf]
      %v1468 = vld [vmem:[%s4 + $0x8] sm:$0xf]
      %v1469 = vld [vmem:[%s4 + $0xc] sm:$0xf]
      %v1470 = vld [vmem:[%s4 + $0x10] sm:$0xf]
      %v1471 = vld [vmem:[%s4 + $0x14] sm:$0xf]
      %v1472 = vld [vmem:[%s4 + $0x18] sm:$0xf]
      %v1473 = vld [vmem:[%s4 + $0x1c] sm:$0xf]
      %v1474 = vld [vmem:[%s5] sm:$0x1]
      %v1475 = vunpack.c.l.bf16 %v1474
      %v1476 = vlaneseq
      %v1477 = vshrl.u32 %v1476, 7
      %v1478 = vsub.s32 0, %v1477
      %v1479 = vrot.slane %v1475, %v1478
      %v1488 = vunpack.c.l.b16 %v1466
      %v1489 = vunpack.c.l.b16 %v1467
      %v1490 = vunpack.c.l.b16 %v1468
      %v1491 = vunpack.c.l.b16 %v1469
      %v1492 = vunpack.c.l.b16 %v1470
      %v1493 = vunpack.c.l.b16 %v1471
      %v1494 = vunpack.c.l.b16 %v1472
      %v1495 = vunpack.c.l.b16 %v1473
      %v1496 = vpack.c.b16 %v1489, %v1488
      %v1497 = vpack.c.b16 %v1491, %v1490
      %v1498 = vpack.c.b16 %v1493, %v1492
      %v1499 = vpack.c.b16 %v1495, %v1494
      %v1505 = vsel %vm513, %v1465, 0
      %1507 = vmatprep.subr.bf16.mxu0 0
      %1508 = vmatpush1.bf16.msra.mxu0 %v1496
      %1509 = vmatprep.subr.bf16.mxu0 0
      %1510 = vmatpush1.bf16.msra.mxu0 %v1497
      %1511 = vmatprep.subr.bf16.mxu0 0
      %1512 = vmatpush1.bf16.msra.mxu0 %v1498
      %1513 = vmatprep.subr.bf16.mxu0 0
      %1514 = vmatpush1.bf16.msra.mxu0 %v1499
      %1515 = vmatprep.subr.bf16.mxu0 0
      %1516 = vmatpush1.bf16.msra.mxu0 0
      %1517 = vmatprep.subr.bf16.mxu0 0
      %1518 = vmatpush1.bf16.msra.mxu0 0
      %1519 = vmatprep.subr.bf16.mxu0 0
      %1520 = vmatpush1.bf16.msra.mxu0 0
      %1521 = vmatprep.subr.bf16.mxu0 0
      %1522 = vmatpush1.bf16.msra.mxu0 0
      %1523 = vmatprep.subr.bf16.mxu0 0
      %1524 = vmatpush1.bf16.msra.mxu0 0
      %1525 = vmatprep.subr.bf16.mxu0 0
      %1526 = vmatpush1.bf16.msra.mxu0 0
      %1527 = vmatprep.subr.bf16.mxu0 0
      %1528 = vmatpush1.bf16.msra.mxu0 0
      %1529 = vmatprep.subr.bf16.mxu0 0
      %1530 = vmatpush1.bf16.msra.mxu0 0
      %1531 = vmatprep.subr.bf16.mxu0 0
      %1532 = vmatpush1.bf16.msra.mxu0 0
      %1533 = vmatprep.subr.bf16.mxu0 0
      %1534 = vmatpush1.bf16.msra.mxu0 0
      %1535 = vmatprep.subr.bf16.mxu0 0
      %1536 = vmatpush1.bf16.msra.mxu0 0
      %1537 = vmatprep.subr.bf16.mxu0 0
      %1538 = vmatpush1.bf16.msra.mxu0 0
      %1539 = vmatprep.mubr.bf16.mxu0 0
      %1540 = vmatmul.mubr.bf16.gmra.mrb[0].mxu0 %v1505
      %v1541 = vpop.f32.mrb[0].mxu0
      %v1542 = vadd.f32 %v1479, %v1541
      %v1543 = vpop.f32.mrb[0].mxu0
      %v1544 = vpop.f32.mrb[0].mxu0
      %v1545 = vpop.f32.mrb[0].mxu0
      %1546 = vdwg.mxu0
      %v1547 = vld [vmem:[%s6] sm:$0x1]
      %v1548 = vunpack.c.l.bf16 %v1547
      %v1549 = vld [vmem:[%s7] sm:$0x1]
      %v1550 = vunpack.c.l.bf16 %v1549
      %v1551 = vsel %vm513, %v1542, 0.0
      %1552 = vadd.xlane.f32.xlu0 %v1551
      %v1553 = vpop.xlane.xlu0 %1552
      %v1554 = vrcp.pop 64.0
      %v1555 = vmul.f32 %v1553, %v1554
      %v1556 = vsub.f32 %v1542, %v1555
      %v1557 = vmul.f32 %v1556, %v1556
      %v1558 = vsel %vm513, %v1557, 0.0
      %1559 = vadd.xlane.f32.xlu0 %v1558
      %v1560 = vpop.xlane.xlu0 %1559
      %v1561 = vmul.f32 %v1560, %v1554
      %v1562 = vadd.f32 %v1561, 1e-05
      %v1563 = vrsqrt.pop %v1562
      %v1564 = vmul.f32 %v1556, %v1563
      %v1565 = vlaneseq
      %v1566 = vshrl.u32 %v1565, 7
      %v1567 = vsub.s32 0, %v1566
      %v1568 = vrot.slane %v1548, %v1567
      %v1569 = vmul.f32 %v1564, %v1568
      %v1570 = vlaneseq
      %v1571 = vshrl.u32 %v1570, 7
      %v1572 = vsub.s32 0, %v1571
      %v1573 = vrot.slane %v1550, %v1572
      %v1574 = vadd.f32 %v1569, %v1573
      %v1575 = vpack.c.bf16 %v1574, %v1574
      %v1576 = vld [vmem:[%s8] sm:$0xff]
      %v1577 = vld [vmem:[%s8 + $0x8] sm:$0xff]
      %v1578 = vld [vmem:[%s8 + $0x10] sm:$0xff]
      %v1579 = vld [vmem:[%s8 + $0x18] sm:$0xff]
      %v1580 = vld [vmem:[%s8 + $0x20] sm:$0xff]
      %v1581 = vld [vmem:[%s8 + $0x28] sm:$0xff]
      %v1582 = vld [vmem:[%s8 + $0x30] sm:$0xff]
      %v1583 = vld [vmem:[%s8 + $0x38] sm:$0xff]
      %v1584 = vld [vmem:[%s9] sm:$0x3]
      %v1585 = vunpack.c.l.bf16 %v1584
      %v1587 = vlaneseq
      %v1588 = vshrl.u32 %v1587, 7
      %v1589 = vsub.s32 0, %v1588
      %v1590 = vrot.slane %v1585, %v1589
      %v1591 = vlaneseq
      %v1592 = vshrl.u32 %v1591, 7
      %v1593 = vsub.s32 2, %v1592
      %v1594 = vrot.slane %v1585, %v1593
      %v1597 = vlaneseq
      %v1598 = vshrl.u32 %v1597, 7
      %v1599 = vsub.s32 0, %v1598
      %v1600 = vrot.slane %v1590, %v1599
      %v1601 = vlaneseq
      %v1602 = vshrl.u32 %v1601, 7
      %v1603 = vsub.s32 0, %v1602
      %v1604 = vrot.slane %v1594, %v1603
      %v1613 = vunpack.c.l.b16 %v1576
      %v1614 = vunpack.c.h.b16 %v1576
      %v1615 = vunpack.c.l.b16 %v1577
      %v1616 = vunpack.c.h.b16 %v1577
      %v1617 = vunpack.c.l.b16 %v1578
      %v1618 = vunpack.c.h.b16 %v1578
      %v1619 = vunpack.c.l.b16 %v1579
      %v1620 = vunpack.c.h.b16 %v1579
      %v1621 = vunpack.c.l.b16 %v1580
      %v1622 = vunpack.c.h.b16 %v1580
      %v1623 = vunpack.c.l.b16 %v1581
      %v1624 = vunpack.c.h.b16 %v1581
      %v1625 = vunpack.c.l.b16 %v1582
      %v1626 = vunpack.c.h.b16 %v1582
      %v1627 = vunpack.c.l.b16 %v1583
      %v1628 = vunpack.c.h.b16 %v1583
      %v1629 = vpack.c.b16 %v1615, %v1613
      %v1630 = vpack.c.b16 %v1616, %v1614
      %v1631 = vpack.c.b16 %v1619, %v1617
      %v1632 = vpack.c.b16 %v1620, %v1618
      %v1633 = vpack.c.b16 %v1623, %v1621
      %v1634 = vpack.c.b16 %v1624, %v1622
      %v1635 = vpack.c.b16 %v1627, %v1625
      %v1636 = vpack.c.b16 %v1628, %v1626
      %v1646 = vsel %vm513, %v1575, 0
      %1648 = vmatprep.subr.bf16.mxu0 %v1630
      %1649 = vmatpush1.bf16.msra.mxu0 %v1629
      %1650 = vmatprep.subr.bf16.mxu0 %v1632
      %1651 = vmatpush1.bf16.msra.mxu0 %v1631
      %1652 = vmatprep.subr.bf16.mxu0 %v1634
      %1653 = vmatpush1.bf16.msra.mxu0 %v1633
      %1654 = vmatprep.subr.bf16.mxu0 %v1636
      %1655 = vmatpush1.bf16.msra.mxu0 %v1635
      %1656 = vmatprep.subr.bf16.mxu0 0
      %1657 = vmatpush1.bf16.msra.mxu0 0
      %1658 = vmatprep.subr.bf16.mxu0 0
      %1659 = vmatpush1.bf16.msra.mxu0 0
      %1660 = vmatprep.subr.bf16.mxu0 0
      %1661 = vmatpush1.bf16.msra.mxu0 0
      %1662 = vmatprep.subr.bf16.mxu0 0
      %1663 = vmatpush1.bf16.msra.mxu0 0
      %1664 = vmatprep.subr.bf16.mxu0 0
      %1665 = vmatpush1.bf16.msra.mxu0 0
      %1666 = vmatprep.subr.bf16.mxu0 0
      %1667 = vmatpush1.bf16.msra.mxu0 0
      %1668 = vmatprep.subr.bf16.mxu0 0
      %1669 = vmatpush1.bf16.msra.mxu0 0
      %1670 = vmatprep.subr.bf16.mxu0 0
      %1671 = vmatpush1.bf16.msra.mxu0 0
      %1672 = vmatprep.subr.bf16.mxu0 0
      %1673 = vmatpush1.bf16.msra.mxu0 0
      %1674 = vmatprep.subr.bf16.mxu0 0
      %1675 = vmatpush1.bf16.msra.mxu0 0
      %1676 = vmatprep.subr.bf16.mxu0 0
      %1677 = vmatpush1.bf16.msra.mxu0 0
      %1678 = vmatprep.subr.bf16.mxu0 0
      %1679 = vmatpush1.bf16.msra.mxu0 0
      %1680 = vmatprep.mubr.bf16.mxu0 0
      %1681 = vmatmul.mubr.bf16.gmra.mrb[0].mxu0 %v1646
      %v1682 = vpop.f32.mrb[0].mxu0
      %v1683 = vadd.f32 %v1600, %v1682
      %v1684 = vpop.f32.mrb[0].mxu0
      %v1685 = vadd.f32 %v1604, %v1684
      %v1686 = vpop.f32.mrb[0].mxu0
      %v1687 = vpop.f32.mrb[0].mxu0
      %1688 = vdwg.mxu0
      %v1689 = vmul.f32 %v1683, 0.5
      %v1690 = vmul.f32 %v1685, 0.5
      %v1691 = vmul.f32 %v1683, 0.044715
      %v1692 = vmul.f32 %v1685, 0.044715
      %v1693 = vmul.f32 %v1691, %v1683
      %v1694 = vmul.f32 %v1692, %v1685
      %v1695 = vmul.f32 %v1693, %v1683
      %v1696 = vmul.f32 %v1694, %v1685
      %v1697 = vadd.f32 %v1683, %v1695
      %v1698 = vadd.f32 %v1685, %v1696
      %v1699 = vmul.f32 %v1697, 0.7978846
      %v1700 = vmul.f32 %v1698, 0.7978846
      %v1701 = vtanh.pop %v1699
      %v1702 = vtanh.pop %v1700
      %v1703 = vadd.f32 %v1701, 1.0
      %v1704 = vadd.f32 %v1702, 1.0
      %v1705 = vmul.f32 %v1689, %v1703
      %v1706 = vmul.f32 %v1690, %v1704
      %v1707 = vpack.c.bf16 %v1705, %v1705
      %v1708 = vpack.c.bf16 %v1706, %v1706
      %v1709 = vld [vmem:[%s10] sm:$0xf]
      %v1710 = vld [vmem:[%s10 + $0x4] sm:$0xf]
      %v1711 = vld [vmem:[%s10 + $0x8] sm:$0xf]
      %v1712 = vld [vmem:[%s10 + $0xc] sm:$0xf]
      %v1713 = vld [vmem:[%s10 + $0x10] sm:$0xf]
      %v1714 = vld [vmem:[%s10 + $0x14] sm:$0xf]
      %v1715 = vld [vmem:[%s10 + $0x18] sm:$0xf]
      %v1716 = vld [vmem:[%s10 + $0x1c] sm:$0xf]
      %v1717 = vld [vmem:[%s10 + $0x20] sm:$0xf]
      %v1718 = vld [vmem:[%s10 + $0x24] sm:$0xf]
      %v1719 = vld [vmem:[%s10 + $0x28] sm:$0xf]
      %v1720 = vld [vmem:[%s10 + $0x2c] sm:$0xf]
      %v1721 = vld [vmem:[%s10 + $0x30] sm:$0xf]
      %v1722 = vld [vmem:[%s10 + $0x34] sm:$0xf]
      %v1723 = vld [vmem:[%s10 + $0x38] sm:$0xf]
      %v1724 = vld [vmem:[%s10 + $0x3c] sm:$0xf]
      %v1725 = vld [vmem:[%s10 + $0x40] sm:$0xf]
      %v1726 = vld [vmem:[%s10 + $0x44] sm:$0xf]
      %v1727 = vld [vmem:[%s10 + $0x48] sm:$0xf]
      %v1728 = vld [vmem:[%s10 + $0x4c] sm:$0xf]
      %v1729 = vld [vmem:[%s10 + $0x50] sm:$0xf]
      %v1730 = vld [vmem:[%s10 + $0x54] sm:$0xf]
      %v1731 = vld [vmem:[%s10 + $0x58] sm:$0xf]
      %v1732 = vld [vmem:[%s10 + $0x5c] sm:$0xf]
      %v1733 = vld [vmem:[%s10 + $0x60] sm:$0xf]
      %v1734 = vld [vmem:[%s10 + $0x64] sm:$0xf]
      %v1735 = vld [vmem:[%s10 + $0x68] sm:$0xf]
      %v1736 = vld [vmem:[%s10 + $0x6c] sm:$0xf]
      %v1737 = vld [vmem:[%s10 + $0x70] sm:$0xf]
      %v1738 = vld [vmem:[%s10 + $0x74] sm:$0xf]
      %v1739 = vld [vmem:[%s10 + $0x78] sm:$0xf]
      %v1740 = vld [vmem:[%s10 + $0x7c] sm:$0xf]
      %v1741 = vld [vmem:[%s11] sm:$0x1]
      %v1742 = vunpack.c.l.bf16 %v1741
      %v1743 = vlaneseq
      %v1744 = vshrl.u32 %v1743, 7
      %v1745 = vsub.s32 0, %v1744
      %v1746 = vrot.slane %v1742, %v1745
      %v1779 = vunpack.c.l.b16 %v1709
      %v1780 = vunpack.c.l.b16 %v1710
      %v1781 = vunpack.c.l.b16 %v1711
      %v1782 = vunpack.c.l.b16 %v1712
      %v1783 = vunpack.c.l.b16 %v1713
      %v1784 = vunpack.c.l.b16 %v1714
      %v1785 = vunpack.c.l.b16 %v1715
      %v1786 = vunpack.c.l.b16 %v1716
      %v1787 = vunpack.c.l.b16 %v1717
      %v1788 = vunpack.c.l.b16 %v1718
      %v1789 = vunpack.c.l.b16 %v1719
      %v1790 = vunpack.c.l.b16 %v1720
      %v1791 = vunpack.c.l.b16 %v1721
      %v1792 = vunpack.c.l.b16 %v1722
      %v1793 = vunpack.c.l.b16 %v1723
      %v1794 = vunpack.c.l.b16 %v1724
      %v1795 = vunpack.c.l.b16 %v1725
      %v1796 = vunpack.c.l.b16 %v1726
      %v1797 = vunpack.c.l.b16 %v1727
      %v1798 = vunpack.c.l.b16 %v1728
      %v1799 = vunpack.c.l.b16 %v1729
      %v1800 = vunpack.c.l.b16 %v1730
      %v1801 = vunpack.c.l.b16 %v1731
      %v1802 = vunpack.c.l.b16 %v1732
      %v1803 = vunpack.c.l.b16 %v1733
      %v1804 = vunpack.c.l.b16 %v1734
      %v1805 = vunpack.c.l.b16 %v1735
      %v1806 = vunpack.c.l.b16 %v1736
      %v1807 = vunpack.c.l.b16 %v1737
      %v1808 = vunpack.c.l.b16 %v1738
      %v1809 = vunpack.c.l.b16 %v1739
      %v1810 = vunpack.c.l.b16 %v1740
      %v1811 = vpack.c.b16 %v1780, %v1779
      %v1812 = vpack.c.b16 %v1782, %v1781
      %v1813 = vpack.c.b16 %v1784, %v1783
      %v1814 = vpack.c.b16 %v1786, %v1785
      %v1815 = vpack.c.b16 %v1788, %v1787
      %v1816 = vpack.c.b16 %v1790, %v1789
      %v1817 = vpack.c.b16 %v1792, %v1791
      %v1818 = vpack.c.b16 %v1794, %v1793
      %v1819 = vpack.c.b16 %v1796, %v1795
      %v1820 = vpack.c.b16 %v1798, %v1797
      %v1821 = vpack.c.b16 %v1800, %v1799
      %v1822 = vpack.c.b16 %v1802, %v1801
      %v1823 = vpack.c.b16 %v1804, %v1803
      %v1824 = vpack.c.b16 %v1806, %v1805
      %v1825 = vpack.c.b16 %v1808, %v1807
      %v1826 = vpack.c.b16 %v1810, %v1809
      %1843 = vmatprep.subr.bf16.mxu0 0
      %1844 = vmatpush1.bf16.msra.mxu0 %v1811
      %1845 = vmatprep.subr.bf16.mxu0 0
      %1846 = vmatpush1.bf16.msra.mxu0 %v1812
      %1847 = vmatprep.subr.bf16.mxu0 0
      %1848 = vmatpush1.bf16.msra.mxu0 %v1813
      %1849 = vmatprep.subr.bf16.mxu0 0
      %1850 = vmatpush1.bf16.msra.mxu0 %v1814
      %1851 = vmatprep.subr.bf16.mxu0 0
      %1852 = vmatpush1.bf16.msra.mxu0 %v1815
      %1853 = vmatprep.subr.bf16.mxu0 0
      %1854 = vmatpush1.bf16.msra.mxu0 %v1816
      %1855 = vmatprep.subr.bf16.mxu0 0
      %1856 = vmatpush1.bf16.msra.mxu0 %v1817
      %1857 = vmatprep.subr.bf16.mxu0 0
      %1858 = vmatpush1.bf16.msra.mxu0 %v1818
      %1859 = vmatprep.subr.bf16.mxu0 0
      %1860 = vmatpush1.bf16.msra.mxu0 %v1819
      %1861 = vmatprep.subr.bf16.mxu0 0
      %1862 = vmatpush1.bf16.msra.mxu0 %v1820
      %1863 = vmatprep.subr.bf16.mxu0 0
      %1864 = vmatpush1.bf16.msra.mxu0 %v1821
      %1865 = vmatprep.subr.bf16.mxu0 0
      %1866 = vmatpush1.bf16.msra.mxu0 %v1822
      %1867 = vmatprep.subr.bf16.mxu0 0
      %1868 = vmatpush1.bf16.msra.mxu0 %v1823
      %1869 = vmatprep.subr.bf16.mxu0 0
      %1870 = vmatpush1.bf16.msra.mxu0 %v1824
      %1871 = vmatprep.subr.bf16.mxu0 0
      %1872 = vmatpush1.bf16.msra.mxu0 %v1825
      %1873 = vmatprep.subr.bf16.mxu0 0
      %1874 = vmatpush1.bf16.msra.mxu0 %v1826
      %1875 = vmatprep.mubr.bf16.mxu0 %v1708
      %1876 = vmatmul.mubr.bf16.gmra.mrb[0].mxu0 %v1707
      %v1877 = vpop.f32.mrb[0].mxu0
      %v1878 = vadd.f32 %v1746, %v1877
      %v1879 = vpop.f32.mrb[0].mxu0
      %v1880 = vpop.f32.mrb[0].mxu0
      %v1881 = vpop.f32.mrb[0].mxu0
      %1882 = vdwg.mxu0
      %v1883 = vadd.f32 %v1878, %v1574
      %v1884 = vld [vmem:[%s12] sm:$0x1]
      %v1885 = vunpack.c.l.bf16 %v1884
      %v1886 = vld [vmem:[%s13] sm:$0x1]
      %v1887 = vunpack.c.l.bf16 %v1886
      %v1888 = vsel %vm513, %v1883, 0.0
      %1889 = vadd.xlane.f32.xlu0 %v1888
      %v1890 = vpop.xlane.xlu0 %1889
      %v1891 = vmul.f32 %v1890, %v1554
      %v1892 = vsub.f32 %v1883, %v1891
      %v1893 = vmul.f32 %v1892, %v1892
      %v1894 = vsel %vm513, %v1893, 0.0
      %1895 = vadd.xlane.f32.xlu0 %v1894
      %v1896 = vpop.xlane.xlu0 %1895
      %v1897 = vmul.f32 %v1896, %v1554
      %v1898 = vadd.f32 %v1897, 1e-05
      %v1899 = vrsqrt.pop %v1898
      %v1900 = vmul.f32 %v1892, %v1899
      %v1901 = vlaneseq
      %v1902 = vshrl.u32 %v1901, 7
      %v1903 = vsub.s32 0, %v1902
      %v1904 = vrot.slane %v1885, %v1903
      %v1905 = vmul.f32 %v1900, %v1904
      %v1906 = vlaneseq
      %v1907 = vshrl.u32 %v1906, 7
      %v1908 = vsub.s32 0, %v1907
      %v1909 = vrot.slane %v1887, %v1908
      %v1910 = vadd.f32 %v1905, %v1909
      %v1911 = vpack.c.bf16 %v1910, %v1910
      %vm1912 = vcmask 519168
      %1913 = vst.msk [vmem:[%s465] sm:$0xf] %vm1912, %v1911
      %p1914 = scmp.lt.s32.totalorder %s25, 1
      %s1915 = scalar_select %p1914, %s25, 1
      %s1916 = smul.addr %s1915, 4
      %s1917 = scalar_lea.vmem %s14, %s1916
      // Predicated region
      $region77: #{osfa_forward.15} parent=75 // pred_check
        %p1918 = pneg %p342
      $region78: #{osfa_forward.15} parent=75 // pred_check_branch
        %1920 = sbr.rel (%p1918) target = $region80
      $region79: #{osfa_forward.15} parent=75 // pred_region
        _
      $region80: #{osfa_forward.15} parent=75 // pred_fallthru
        _
    $region76: #{osfa_forward.15} parent=5 // pred_fallthru
      _
    %p1921 = scmp.le.s32.totalorder 2, %s20
    // Predicated region
    $region81: #{osfa_forward.15} parent=5 // pred_check
      %p1922 = pneg %p1921
    $region82: #{osfa_forward.15} parent=5 // pred_check_branch
      %1924 = sbr.rel (%p1922) target = $region84
    $region83: #{osfa_forward.15} parent=5 // pred_region
      %s1925 = ssub.s32 %s20, 2
      // Predicated region
      $region85: #{osfa_forward.15} parent=83 // pred_check
        %p1926 = pneg %p348
      $region86: #{osfa_forward.15} parent=83 // pred_check_branch
        %1928 = sbr.rel (%p1926) target = $region88
      $region87: #{osfa_forward.15} parent=83 // pred_region
        %p1929 = scmp.lt.s32.totalorder %s26, 1
        %s1930 = scalar_select %p1929, %s26, 1
        %s1931 = smul.addr %s1930, 4
        %s1932 = scalar_lea.vmem %s14, %s1931
      $region88: #{osfa_forward.15} parent=83 // pred_fallthru
        _
    $region84: #{osfa_forward.15} parent=5 // pred_fallthru
      _
  $region6: #{osfa_forward.15} parent=0 // loop_footer
    %s24 = sadd.s32 1, %s20
  $region7: #{osfa_forward.15} parent=0 // loop_footer_branch
    %19 = sbr.rel target = $region3
  $region8: #{osfa_forward.15} parent=0 // loop_exit
    _

// kernel: osfa_forward.17
$region0: #{osfa_forward.17}
  #allocation0 [shape = 'u32[]', space=smem, size = 0x4, offset = 0x4, fixed_abs, tag = 'smem constant byte address 0x4 - core index']
  #allocation1 [shape = 'u32[144,128]{1,0:T(1,128)}', space=vmem, size = 0x12000, scoped, tag = 'internal scratch']
  %s0 = inlined_call_operand.vmem [shape: bf16[2,8,64], index: 0, kind: input, shape index: {}]
  %s1 = inlined_call_operand.vmem [shape: bf16[2,1,64], index: 1, kind: input, shape index: {}]
  %s2 = inlined_call_operand.vmem [shape: f32[8,64], index: 2, kind: input, shape index: {}]
  %s3 = inlined_call_operand.vmem [shape: bf16[64,64], index: 3, kind: input, shape index: {}]
  %s4 = inlined_call_operand.vmem [shape: bf16[1,64], index: 4, kind: input, shape index: {}]
  %s5 = inlined_call_operand.vmem [shape: bf16[64,64], index: 5, kind: input, shape index: {}]
  %s6 = inlined_call_operand.vmem [shape: bf16[1,64], index: 6, kind: input, shape index: {}]
  %s7 = inlined_call_operand.vmem [shape: bf16[64,8], index: 7, kind: input, shape index: {}]
  %s8 = inlined_call_operand.vmem [shape: bf16[1,8], index: 8, kind: input, shape index: {}]
  %s9 = inlined_call_operand.hbm [shape: f32[2,1,8], index: 9, kind: output, shape index: {0}]
  %s10 = inlined_call_operand.hbm [shape: f32[2,1,8], index: 10, kind: output, shape index: {1}]
  %s11 = inlined_call_operand.hbm [shape: f32[2,1,8], index: 11, kind: output, shape index: {2}]
  %12 = xla_tuple %s9, %s10, %s11
  %s13 = sld [smem:[#allocation0]]
  $region85: #{osfa_forward.17} parent=0
    _
  %s15 = ssub.s32 1, %s13
  %s16 = scalar_select 0, %s15, %s13
  $region1: #{osfa_forward.17} parent=0
    #allocation2 [shape = 'u8[1024]{0}', space=vmem, size = 0x400, scoped, tag = 'output window, operand 0']
    #allocation3 [shape = 's32[2]{0}', space=sflag, size = 0x8, scoped, tag = 'scoped memory for osfa_forward.17']
    #allocation4 [shape = 'u8[1024]{0}', space=vmem, size = 0x400, scoped, tag = 'output window, operand 1']
    #allocation5 [shape = 's32[2]{0}', space=sflag, size = 0x8, scoped, tag = 'scoped memory for osfa_forward.17']
    #allocation6 [shape = 'u8[1024]{0}', space=vmem, size = 0x400, scoped, tag = 'output window, operand 2']
    %17 = vsyncpa [#allocation3], 0
    %s18 = scalar_lea.sflag [#allocation3], 1
    %19 = vsyncpa %s18, 0
    %20 = vsyncpa [#allocation5], 0
    %s21 = scalar_lea.sflag [#allocation5], 1
    %22 = vsyncpa %s21, 0
    loop: start=0, step=1, limit=4
    $region2: #{osfa_forward.17} parent=1 // loop_pre_header
      _
    $region3: #{osfa_forward.17} parent=1 // loop_header
      %s24 = sphi 0, %s28
      %p25 = scmp.ge.s32.totalorder %s24, 4
      %s34 = sphi 0, %s36
      %s37 = sphi 0, %s34
      %s38 = sphi 0, %s37
      %s54 = sphi 0, %s38
      %s60 = sphi 0, %s62
      %s63 = sphi 0, %s60
      %s64 = sphi 0, %s63
      %s80 = sphi 0, %s64
      %s84 = sphi 0, %s84
      %s86 = sphi 0, %s84
      %s87 = sphi 0, %s86
      %s101 = sphi 0, %s87
      %s105 = sphi 0, %s105
      %s107 = sphi 0, %s105
      %s108 = sphi 0, %s107
      %s122 = sphi 0, %s108
      %s126 = sphi 0, %s126
      %s128 = sphi 0, %s126
      %s129 = sphi 0, %s128
      %s143 = sphi 0, %s129
      %s147 = sphi 0, %s147
      %s149 = sphi 0, %s147
      %s150 = sphi 0, %s149
      %s164 = sphi 0, %s150
      %s168 = sphi 0, %s168
      %s170 = sphi 0, %s168
      %s171 = sphi 0, %s170
      %s185 = sphi 0, %s171
      %s189 = sphi 0, %s189
      %s191 = sphi 0, %s189
      %s192 = sphi 0, %s191
      %s206 = sphi 0, %s192
      %s210 = sphi 0, %s210
      %s212 = sphi 0, %s210
      %s213 = sphi 0, %s212
      %s227 = sphi 0, %s213
      %s233 = sphi 0, %s235
      %s236 = sphi 0, %s233
      %s237 = sphi 0, %s236
      %s253 = sphi 0, %s237
      %s259 = sphi 0, %s261
      %s262 = sphi 0, %s259
      %s263 = sphi 0, %s262
      %s279 = sphi 0, %s263
      %s285 = sphi 0, %s287
      %s288 = sphi 0, %s285
      %s289 = sphi 0, %s288
      %s305 = sphi 0, %s289
    $region4: #{osfa_forward.17} parent=1 // loop_header_branch
      %27 = sbr.rel (%p25) target = $region8
    $region5: #{osfa_forward.17} parent=1 // loop_body
      %s29 = ssub.s32 %s24, 1
      %s30 = ssub.s32 %s24, 2
      %s31 = sadd.s32 %s24, 1
      %s32 = ssub.s32 %s24, %s31
      %p33 = scmp.eq.s32.totalorder %s32, 0
      %s35 = sadd.s32 %s34, 1
      %s36 = scalar_select %p33, %s34, %s35
      %p39 = pneg %p33
      %p40 = scmp.eq.s32.totalorder %s24, 1
      %p41 = por %p39, %p40
      %p42 = scmp.ne.s32.totalorder %s34, %s37
      %p43 = scmp.eq.s32.totalorder %s24, 0
      %p44 = por %p42, %p43
      %p45 = scmp.ne.s32.totalorder %s34, %s37
      %p46 = scmp.eq.s32.totalorder %s29, 1
      %p47 = por %p45, %p46
      %p48 = scmp.ne.s32.totalorder %s37, %s38
      %p49 = scmp.eq.s32.totalorder %s29, 0
      %p50 = por %p48, %p49
      %p51 = scmp.ne.s32.totalorder %s37, %s38
      %p52 = scmp.eq.s32.totalorder %s30, 1
      %p53 = por %p51, %p52
      %p55 = scmp.ne.s32.totalorder %s38, %s54
      %p56 = scmp.eq.s32.totalorder %s30, 0
      %p57 = por %p55, %p56
      %s58 = ssub.s32 %s24, %s31
      %p59 = scmp.eq.s32.totalorder %s58, 0
      %s61 = sadd.s32 %s60, 1
      %s62 = scalar_select %p59, %s60, %s61
      %p65 = pneg %p59
      %p66 = scmp.eq.s32.totalorder %s24, 1
      %p67 = por %p65, %p66
      %p68 = scmp.ne.s32.totalorder %s60, %s63
      %p69 = scmp.eq.s32.totalorder %s24, 0
      %p70 = por %p68, %p69
      %p71 = scmp.ne.s32.totalorder %s60, %s63
      %p72 = scmp.eq.s32.totalorder %s29, 1
      %p73 = por %p71, %p72
      %p74 = scmp.ne.s32.totalorder %s63, %s64
      %p75 = scmp.eq.s32.totalorder %s29, 0
      %p76 = por %p74, %p75
      %p77 = scmp.ne.s32.totalorder %s63, %s64
      %p78 = scmp.eq.s32.totalorder %s30, 1
      %p79 = por %p77, %p78
      %p81 = scmp.ne.s32.totalorder %s64, %s80
      %p82 = scmp.eq.s32.totalorder %s30, 0
      %p83 = por %p81, %p82
      %s85 = sadd.s32 %s84, 1
      %p88 = scmp.eq.s32.totalorder %s24, 1
      %p89 = scmp.ne.s32.totalorder %s84, %s86
      %p90 = scmp.eq.s32.totalorder %s24, 0
      %p91 = por %p89, %p90
      %p92 = scmp.ne.s32.totalorder %s84, %s86
      %p93 = scmp.eq.s32.totalorder %s29, 1
      %p94 = por %p92, %p93
      %p95 = scmp.ne.s32.totalorder %s86, %s87
      %p96 = scmp.eq.s32.totalorder %s29, 0
      %p97 = por %p95, %p96
      %p98 = scmp.ne.s32.totalorder %s86, %s87
      %p99 = scmp.eq.s32.totalorder %s30, 1
      %p100 = por %p98, %p99
      %p102 = scmp.ne.s32.totalorder %s87, %s101
      %p103 = scmp.eq.s32.totalorder %s30, 0
      %p104 = por %p102, %p103
      %s106 = sadd.s32 %s105, 1
      %p109 = scmp.eq.s32.totalorder %s24, 1
      %p110 = scmp.ne.s32.totalorder %s105, %s107
      %p111 = scmp.eq.s32.totalorder %s24, 0
      %p112 = por %p110, %p111
      %p113 = scmp.ne.s32.totalorder %s105, %s107
      %p114 = scmp.eq.s32.totalorder %s29, 1
      %p115 = por %p113, %p114
      %p116 = scmp.ne.s32.totalorder %s107, %s108
      %p117 = scmp.eq.s32.totalorder %s29, 0
      %p118 = por %p116, %p117
      %p119 = scmp.ne.s32.totalorder %s107, %s108
      %p120 = scmp.eq.s32.totalorder %s30, 1
      %p121 = por %p119, %p120
      %p123 = scmp.ne.s32.totalorder %s108, %s122
      %p124 = scmp.eq.s32.totalorder %s30, 0
      %p125 = por %p123, %p124
      %s127 = sadd.s32 %s126, 1
      %p130 = scmp.eq.s32.totalorder %s24, 1
      %p131 = scmp.ne.s32.totalorder %s126, %s128
      %p132 = scmp.eq.s32.totalorder %s24, 0
      %p133 = por %p131, %p132
      %p134 = scmp.ne.s32.totalorder %s126, %s128
      %p135 = scmp.eq.s32.totalorder %s29, 1
      %p136 = por %p134, %p135
      %p137 = scmp.ne.s32.totalorder %s128, %s129
      %p138 = scmp.eq.s32.totalorder %s29, 0
      %p139 = por %p137, %p138
      %p140 = scmp.ne.s32.totalorder %s128, %s129
      %p141 = scmp.eq.s32.totalorder %s30, 1
      %p142 = por %p140, %p141
      %p144 = scmp.ne.s32.totalorder %s129, %s143
      %p145 = scmp.eq.s32.totalorder %s30, 0
      %p146 = por %p144, %p145
      %s148 = sadd.s32 %s147, 1
      %p151 = scmp.eq.s32.totalorder %s24, 1
      %p152 = scmp.ne.s32.totalorder %s147, %s149
      %p153 = scmp.eq.s32.totalorder %s24, 0
      %p154 = por %p152, %p153
      %p155 = scmp.ne.s32.totalorder %s147, %s149
      %p156 = scmp.eq.s32.totalorder %s29, 1
      %p157 = por %p155, %p156
      %p158 = scmp.ne.s32.totalorder %s149, %s150
      %p159 = scmp.eq.s32.totalorder %s29, 0
      %p160 = por %p158, %p159
      %p161 = scmp.ne.s32.totalorder %s149, %s150
      %p162 = scmp.eq.s32.totalorder %s30, 1
      %p163 = por %p161, %p162
      %p165 = scmp.ne.s32.totalorder %s150, %s164
      %p166 = scmp.eq.s32.totalorder %s30, 0
      %p167 = por %p165, %p166
      %s169 = sadd.s32 %s168, 1
      %p172 = scmp.eq.s32.totalorder %s24, 1
      %p173 = scmp.ne.s32.totalorder %s168, %s170
      %p174 = scmp.eq.s32.totalorder %s24, 0
      %p175 = por %p173, %p174
      %p176 = scmp.ne.s32.totalorder %s168, %s170
      %p177 = scmp.eq.s32.totalorder %s29, 1
      %p178 = por %p176, %p177
      %p179 = scmp.ne.s32.totalorder %s170, %s171
      %p180 = scmp.eq.s32.totalorder %s29, 0
      %p181 = por %p179, %p180
      %p182 = scmp.ne.s32.totalorder %s170, %s171
      %p183 = scmp.eq.s32.totalorder %s30, 1
      %p184 = por %p182, %p183
      %p186 = scmp.ne.s32.totalorder %s171, %s185
      %p187 = scmp.eq.s32.totalorder %s30, 0
      %p188 = por %p186, %p187
      %s190 = sadd.s32 %s189, 1
      %p193 = scmp.eq.s32.totalorder %s24, 1
      %p194 = scmp.ne.s32.totalorder %s189, %s191
      %p195 = scmp.eq.s32.totalorder %s24, 0
      %p196 = por %p194, %p195
      %p197 = scmp.ne.s32.totalorder %s189, %s191
      %p198 = scmp.eq.s32.totalorder %s29, 1
      %p199 = por %p197, %p198
      %p200 = scmp.ne.s32.totalorder %s191, %s192
      %p201 = scmp.eq.s32.totalorder %s29, 0
      %p202 = por %p200, %p201
      %p203 = scmp.ne.s32.totalorder %s191, %s192
      %p204 = scmp.eq.s32.totalorder %s30, 1
      %p205 = por %p203, %p204
      %p207 = scmp.ne.s32.totalorder %s192, %s206
      %p208 = scmp.eq.s32.totalorder %s30, 0
      %p209 = por %p207, %p208
      %s211 = sadd.s32 %s210, 1
      %p214 = scmp.eq.s32.totalorder %s24, 1
      %p215 = scmp.ne.s32.totalorder %s210, %s212
      %p216 = scmp.eq.s32.totalorder %s24, 0
      %p217 = por %p215, %p216
      %p218 = scmp.ne.s32.totalorder %s210, %s212
      %p219 = scmp.eq.s32.totalorder %s29, 1
      %p220 = por %p218, %p219
      %p221 = scmp.ne.s32.totalorder %s212, %s213
      %p222 = scmp.eq.s32.totalorder %s29, 0
      %p223 = por %p221, %p222
      %p224 = scmp.ne.s32.totalorder %s212, %s213
      %p225 = scmp.eq.s32.totalorder %s30, 1
      %p226 = por %p224, %p225
      %p228 = scmp.ne.s32.totalorder %s213, %s227
      %p229 = scmp.eq.s32.totalorder %s30, 0
      %p230 = por %p228, %p229
      %s231 = ssub.s32 %s24, %s31
      %p232 = scmp.eq.s32.totalorder %s231, 0
      %s234 = sadd.s32 %s233, 1
      %s235 = scalar_select %p232, %s233, %s234
      %p238 = pneg %p232
      %p239 = scmp.eq.s32.totalorder %s24, 1
      %p240 = por %p238, %p239
      %p241 = scmp.ne.s32.totalorder %s233, %s236
      %p242 = scmp.eq.s32.totalorder %s24, 0
      %p243 = por %p241, %p242
      %p244 = scmp.ne.s32.totalorder %s233, %s236
      %p245 = scmp.eq.s32.totalorder %s29, 1
      %p246 = por %p244, %p245
      %p247 = scmp.ne.s32.totalorder %s236, %s237
      %p248 = scmp.eq.s32.totalorder %s29, 0
      %p249 = por %p247, %p248
      %p250 = scmp.ne.s32.totalorder %s236, %s237
      %p251 = scmp.eq.s32.totalorder %s30, 1
      %p252 = por %p250, %p251
      %p254 = scmp.ne.s32.totalorder %s237, %s253
      %p255 = scmp.eq.s32.totalorder %s30, 0
      %p256 = por %p254, %p255
      %s257 = ssub.s32 %s24, %s31
      %p258 = scmp.eq.s32.totalorder %s257, 0
      %s260 = sadd.s32 %s259, 1
      %s261 = scalar_select %p258, %s259, %s260
      %p264 = pneg %p258
      %p265 = scmp.eq.s32.totalorder %s24, 1
      %p266 = por %p264, %p265
      %p267 = scmp.ne.s32.totalorder %s259, %s262
      %p268 = scmp.eq.s32.totalorder %s24, 0
      %p269 = por %p267, %p268
      %p270 = scmp.ne.s32.totalorder %s259, %s262
      %p271 = scmp.eq.s32.totalorder %s29, 1
      %p272 = por %p270, %p271
      %p273 = scmp.ne.s32.totalorder %s262, %s263
      %p274 = scmp.eq.s32.totalorder %s29, 0
      %p275 = por %p273, %p274
      %p276 = scmp.ne.s32.totalorder %s262, %s263
      %p277 = scmp.eq.s32.totalorder %s30, 1
      %p278 = por %p276, %p277
      %p280 = scmp.ne.s32.totalorder %s263, %s279
      %p281 = scmp.eq.s32.totalorder %s30, 0
      %p282 = por %p280, %p281
      %s283 = ssub.s32 %s24, %s31
      %p284 = scmp.eq.s32.totalorder %s283, 0
      %s286 = sadd.s32 %s285, 1
      %s287 = scalar_select %p284, %s285, %s286
      %p290 = pneg %p284
      %p291 = scmp.eq.s32.totalorder %s24, 1
      %p292 = por %p290, %p291
      %p293 = scmp.ne.s32.totalorder %s285, %s288
      %p294 = scmp.eq.s32.totalorder %s24, 0
      %p295 = por %p293, %p294
      %p296 = scmp.ne.s32.totalorder %s285, %s288
      %p297 = scmp.eq.s32.totalorder %s29, 1
      %p298 = por %p296, %p297
      %p299 = scmp.ne.s32.totalorder %s288, %s289
      %p300 = scmp.eq.s32.totalorder %s29, 0
      %p301 = por %p299, %p300
      %p302 = scmp.ne.s32.totalorder %s288, %s289
      %p303 = scmp.eq.s32.totalorder %s30, 1
      %p304 = por %p302, %p303
      %p306 = scmp.ne.s32.totalorder %s289, %s305
      %p307 = scmp.eq.s32.totalorder %s30, 0
      %p308 = por %p306, %p307
      %p309 = scmp.le.s32.totalorder 1, %s24
      %p310 = scmp.lt.s32.totalorder %s24, 3
      %p311 = pnand %p309, %p310
      %p312 = pneg %p311
      // Predicated region
      $region9: #{osfa_forward.17} parent=5 // pred_check
        _
      $region10: #{osfa_forward.17} parent=5 // pred_check_branch
        %314 = sbr.rel (%p311) target = $region12
      $region11: #{osfa_forward.17} parent=5 // pred_region
        %s315 = ssub.s32 %s24, 1
        // Predicated region
        $region13: #{osfa_forward.17} parent=11 // pred_check
          %p316 = pneg %p97
        $region14: #{osfa_forward.17} parent=11 // pred_check_branch
          %318 = sbr.rel (%p316) target = $region16
        $region15: #{osfa_forward.17} parent=11 // pred_region
          _
        $region16: #{osfa_forward.17} parent=11 // pred_fallthru
          _
        // Predicated region
        $region17: #{osfa_forward.17} parent=11 // pred_check
          %p319 = pneg %p118
        $region18: #{osfa_forward.17} parent=11 // pred_check_branch
          %321 = sbr.rel (%p319) target = $region20
        $region19: #{osfa_forward.17} parent=11 // pred_region
          _
        $region20: #{osfa_forward.17} parent=11 // pred_fallthru
          _
        // Predicated region
        $region21: #{osfa_forward.17} parent=11 // pred_check
          %p322 = pneg %p139
        $region22: #{osfa_forward.17} parent=11 // pred_check_branch
          %324 = sbr.rel (%p322) target = $region24
        $region23: #{osfa_forward.17} parent=11 // pred_region
          _
        $region24: #{osfa_forward.17} parent=11 // pred_fallthru
          _
        // Predicated region
        $region25: #{osfa_forward.17} parent=11 // pred_check
          %p325 = pneg %p160
        $region26: #{osfa_forward.17} parent=11 // pred_check_branch
          %327 = sbr.rel (%p325) target = $region28
        $region27: #{osfa_forward.17} parent=11 // pred_region
          _
        $region28: #{osfa_forward.17} parent=11 // pred_fallthru
          _
        // Predicated region
        $region29: #{osfa_forward.17} parent=11 // pred_check
          %p328 = pneg %p181
        $region30: #{osfa_forward.17} parent=11 // pred_check_branch
          %330 = sbr.rel (%p328) target = $region32
        $region31: #{osfa_forward.17} parent=11 // pred_region
          _
        $region32: #{osfa_forward.17} parent=11 // pred_fallthru
          _
        // Predicated region
        $region33: #{osfa_forward.17} parent=11 // pred_check
          %p331 = pneg %p202
        $region34: #{osfa_forward.17} parent=11 // pred_check_branch
          %333 = sbr.rel (%p331) target = $region36
        $region35: #{osfa_forward.17} parent=11 // pred_region
          _
        $region36: #{osfa_forward.17} parent=11 // pred_fallthru
          _
        // Predicated region
        $region37: #{osfa_forward.17} parent=11 // pred_check
          %p334 = pneg %p223
        $region38: #{osfa_forward.17} parent=11 // pred_check_branch
          %336 = sbr.rel (%p334) target = $region40
        $region39: #{osfa_forward.17} parent=11 // pred_region
          _
        $region40: #{osfa_forward.17} parent=11 // pred_fallthru
          _
      $region12: #{osfa_forward.17} parent=5 // pred_fallthru
        _
      %p337 = scmp.lt.s32.totalorder %s24, 2
      // Predicated region
      $region41: #{osfa_forward.17} parent=5 // pred_check
        %p338 = pneg %p337
      $region42: #{osfa_forward.17} parent=5 // pred_check_branch
        %340 = sbr.rel (%p338) target = $region44
      $region43: #{osfa_forward.17} parent=5 // pred_region
        // Predicated region
        $region45: #{osfa_forward.17} parent=43 // pred_check
          %p341 = pneg %p44
        $region46: #{osfa_forward.17} parent=43 // pred_check_branch
          %343 = sbr.rel (%p341) target = $region48
        $region47: #{osfa_forward.17} parent=43 // pred_region
          %p344 = scmp.lt.s32.totalorder %s24, 1
          %s345 = scalar_select %p344, %s24, 1
          %s346 = smul.addr %s345, 4
          %s347 = scalar_lea.vmem %s0, %s346
        $region48: #{osfa_forward.17} parent=43 // pred_fallthru
          _
        // Predicated region
        $region49: #{osfa_forward.17} parent=43 // pred_check
          %p348 = pneg %p70
        $region50: #{osfa_forward.17} parent=43 // pred_check_branch
          %350 = sbr.rel (%p348) target = $region52
        $region51: #{osfa_forward.17} parent=43 // pred_region
          %p351 = scmp.lt.s32.totalorder %s24, 1
          %s352 = scalar_select %p351, %s24, 1
          %s353 = scalar_lea.vmem %s1, %s352
        $region52: #{osfa_forward.17} parent=43 // pred_fallthru
          _
      $region44: #{osfa_forward.17} parent=5 // pred_fallthru
        _
      %p354 = scmp.le.s32.totalorder 1, %s24
      %p355 = scmp.lt.s32.totalorder %s24, 3
      %p356 = pnand %p354, %p355
      %p357 = pneg %p356
      // Predicated region
      $region53: #{osfa_forward.17} parent=5 // pred_check
        _
      $region54: #{osfa_forward.17} parent=5 // pred_check_branch
        %359 = sbr.rel (%p356) target = $region56
      $region55: #{osfa_forward.17} parent=5 // pred_region
        %s360 = ssub.s32 %s24, 1
        %p361 = scmp.lt.s32.totalorder %s29, 1
        %s362 = scalar_select %p361, %s29, 1
        %s363 = smul.addr %s362, 4
        %s364 = scalar_lea.vmem %s0, %s363
        %p365 = pneg %p50
        %p366 = pneg %p47
        %p367 = scmp.lt.s32.totalorder %s29, 1
        %s368 = scalar_select %p367, %s29, 1
        %s369 = scalar_lea.vmem %s1, %s368
        %p370 = pneg %p76
        %p371 = pneg %p73
        %p372 = pneg %p97
        %p373 = pneg %p94
        %p374 = pneg %p118
        %p375 = pneg %p115
        %p376 = pneg %p139
        %p377 = pneg %p136
        %p378 = pneg %p160
        %p379 = pneg %p157
        %p380 = pneg %p181
        %p381 = pneg %p178
        %p382 = pneg %p202
        %p383 = pneg %p199
        %p384 = pneg %p223
        %p385 = pneg %p220
        %p386 = pneg %p249
        %p387 = pneg %p246
        %s388 = sand.u32 %s236, 1
        %s389 = scalar_lea.sflag [#allocation3], %s388
        %s390 = sand.u32 %s236, 1
        %s391 = scalar_lea.vmem [#allocation2], %s390
        %p392 = pneg %p275
        %p393 = pneg %p272
        %s394 = sand.u32 %s29, 1
        %s395 = scalar_lea.sflag [#allocation5], %s394
        %s396 = sand.u32 %s262, 1
        %s397 = scalar_lea.vmem [#allocation4], %s396
        %p398 = pneg %p301
        %p399 = pneg %p298
        %s400 = sand.u32 %s29, 1
        %s401 = scalar_lea.sflag [#allocation5], %s400
        %s402 = sand.u32 %s288, 1
        %s403 = scalar_lea.vmem [#allocation6], %s402
        %p404 = scmp.lt.s32.totalorder %s29, 1
        %s405 = scalar_select %p404, %s29, 1
        %s406 = smul.addr %s405, 4
        %s407 = scalar_lea.vmem %s0, %s406
        %p408 = scmp.lt.s32.totalorder %s29, 1
        %s409 = scalar_select %p408, %s29, 1
        %s410 = scalar_lea.vmem %s1, %s409
        %v412 = vld [vmem:[%s407] sm:$0xf]
        %v413 = vld [vmem:[%s410] sm:$0x1]
        %v414 = vld [vmem:[%s2] sm:$0xff]
        %v415 = vld [vmem:[%s3] sm:$0xf]
        %v416 = vld [vmem:[%s3 + $0x4] sm:$0xf]
        %v417 = vld [vmem:[%s3 + $0x8] sm:$0xf]
        %v418 = vld [vmem:[%s3 + $0xc] sm:$0xf]
        %v419 = vld [vmem:[%s3 + $0x10] sm:$0xf]
        %v420 = vld [vmem:[%s3 + $0x14] sm:$0xf]
        %v421 = vld [vmem:[%s3 + $0x18] sm:$0xf]
        %v422 = vld [vmem:[%s3 + $0x1c] sm:$0xf]
        %v423 = vld [vmem:[%s4] sm:$0x1]
        %v424 = vunpack.c.l.bf16 %v423
        %v425 = vlaneseq
        %v426 = vshrl.u32 %v425, 7
        %v427 = vsub.s32 0, %v426
        %v428 = vrot.slane %v424, %v427
        %v437 = vunpack.c.l.b16 %v415
        %v438 = vunpack.c.l.b16 %v416
        %v439 = vunpack.c.l.b16 %v417
        %v440 = vunpack.c.l.b16 %v418
        %v441 = vunpack.c.l.b16 %v419
        %v442 = vunpack.c.l.b16 %v420
        %v443 = vunpack.c.l.b16 %v421
        %v444 = vunpack.c.l.b16 %v422
        %v445 = vpack.c.b16 %v438, %v437
        %v446 = vpack.c.b16 %v440, %v439
        %v447 = vpack.c.b16 %v442, %v441
        %v448 = vpack.c.b16 %v444, %v443
        %vm453 = vcmask 523264
        %v455 = vsel %vm453, %v412, 0
        %457 = vmatprep.subr.bf16.mxu0 0
        %458 = vmatpush1.bf16.msra.mxu0 %v445
        %459 = vmatprep.subr.bf16.mxu0 0
        %460 = vmatpush1.bf16.msra.mxu0 %v446
        %461 = vmatprep.subr.bf16.mxu0 0
        %462 = vmatpush1.bf16.msra.mxu0 %v447
        %463 = vmatprep.subr.bf16.mxu0 0
        %464 = vmatpush1.bf16.msra.mxu0 %v448
        %465 = vmatprep.subr.bf16.mxu0 0
        %466 = vmatpush1.bf16.msra.mxu0 0
        %467 = vmatprep.subr.bf16.mxu0 0
        %468 = vmatpush1.bf16.msra.mxu0 0
        %469 = vmatprep.subr.bf16.mxu0 0
        %470 = vmatpush1.bf16.msra.mxu0 0
        %471 = vmatprep.subr.bf16.mxu0 0
        %472 = vmatpush1.bf16.msra.mxu0 0
        %473 = vmatprep.subr.bf16.mxu0 0
        %474 = vmatpush1.bf16.msra.mxu0 0
        %475 = vmatprep.subr.bf16.mxu0 0
        %476 = vmatpush1.bf16.msra.mxu0 0
        %477 = vmatprep.subr.bf16.mxu0 0
        %478 = vmatpush1.bf16.msra.mxu0 0
        %479 = vmatprep.subr.bf16.mxu0 0
        %480 = vmatpush1.bf16.msra.mxu0 0
        %481 = vmatprep.subr.bf16.mxu0 0
        %482 = vmatpush1.bf16.msra.mxu0 0
        %483 = vmatprep.subr.bf16.mxu0 0
        %484 = vmatpush1.bf16.msra.mxu0 0
        %485 = vmatprep.subr.bf16.mxu0 0
        %486 = vmatpush1.bf16.msra.mxu0 0
        %487 = vmatprep.subr.bf16.mxu0 0
        %488 = vmatpush1.bf16.msra.mxu0 0
        %489 = vmatprep.mubr.bf16.mxu0 0
        %490 = vmatmul.mubr.bf16.gmra.mrb[0].mxu0 %v455
        %v491 = vpop.f32.mrb[0].mxu0
        %v492 = vadd.f32 %v428, %v491
        %v493 = vpop.f32.mrb[0].mxu0
        %v494 = vpop.f32.mrb[0].mxu0
        %v495 = vpop.f32.mrb[0].mxu0
        %496 = vdwg.mxu0
        %v497 = vld [vmem:[%s5] sm:$0xf]
        %v498 = vld [vmem:[%s5 + $0x4] sm:$0xf]
        %v499 = vld [vmem:[%s5 + $0x8] sm:$0xf]
        %v500 = vld [vmem:[%s5 + $0xc] sm:$0xf]
        %v501 = vld [vmem:[%s5 + $0x10] sm:$0xf]
        %v502 = vld [vmem:[%s5 + $0x14] sm:$0xf]
        %v503 = vld [vmem:[%s5 + $0x18] sm:$0xf]
        %v504 = vld [vmem:[%s5 + $0x1c] sm:$0xf]
        %v505 = vld [vmem:[%s6] sm:$0x1]
        %v506 = vunpack.c.l.bf16 %v505
        %v515 = vunpack.c.l.b16 %v497
        %v516 = vunpack.c.l.b16 %v498
        %v517 = vunpack.c.l.b16 %v499
        %v518 = vunpack.c.l.b16 %v500
        %v519 = vunpack.c.l.b16 %v501
        %v520 = vunpack.c.l.b16 %v502
        %v521 = vunpack.c.l.b16 %v503
        %v522 = vunpack.c.l.b16 %v504
        %v523 = vpack.c.b16 %v516, %v515
        %v524 = vpack.c.b16 %v518, %v517
        %v525 = vpack.c.b16 %v520, %v519
        %v526 = vpack.c.b16 %v522, %v521
        %v532 = vsel %vm453, %v413, 0
        %534 = vmatprep.subr.bf16.mxu0 0
        %535 = vmatpush1.bf16.msra.mxu0 %v523
        %536 = vmatprep.subr.bf16.mxu0 0
        %537 = vmatpush1.bf16.msra.mxu0 %v524
        %538 = vmatprep.subr.bf16.mxu0 0
        %539 = vmatpush1.bf16.msra.mxu0 %v525
        %540 = vmatprep.subr.bf16.mxu0 0
        %541 = vmatpush1.bf16.msra.mxu0 %v526
        %542 = vmatprep.subr.bf16.mxu0 0
        %543 = vmatpush1.bf16.msra.mxu0 0
        %544 = vmatprep.subr.bf16.mxu0 0
        %545 = vmatpush1.bf16.msra.mxu0 0
        %546 = vmatprep.subr.bf16.mxu0 0
        %547 = vmatpush1.bf16.msra.mxu0 0
        %548 = vmatprep.subr.bf16.mxu0 0
        %549 = vmatpush1.bf16.msra.mxu0 0
        %550 = vmatprep.subr.bf16.mxu0 0
        %551 = vmatpush1.bf16.msra.mxu0 0
        %552 = vmatprep.subr.bf16.mxu0 0
        %553 = vmatpush1.bf16.msra.mxu0 0
        %554 = vmatprep.subr.bf16.mxu0 0
        %555 = vmatpush1.bf16.msra.mxu0 0
        %556 = vmatprep.subr.bf16.mxu0 0
        %557 = vmatpush1.bf16.msra.mxu0 0
        %558 = vmatprep.subr.bf16.mxu0 0
        %559 = vmatpush1.bf16.msra.mxu0 0
        %560 = vmatprep.subr.bf16.mxu0 0
        %561 = vmatpush1.bf16.msra.mxu0 0
        %562 = vmatprep.subr.bf16.mxu0 0
        %563 = vmatpush1.bf16.msra.mxu0 0
        %564 = vmatprep.subr.bf16.mxu0 0
        %565 = vmatpush1.bf16.msra.mxu0 0
        %566 = vmatprep.mubr.bf16.mxu0 0
        %567 = vmatmul.mubr.bf16.gmra.mrb[0].mxu0 %v532
        %v568 = vpop.f32.mrb[0].mxu0
        %v569 = vadd.f32 %v506, %v568
        %v570 = vpop.f32.mrb[0].mxu0
        %v571 = vpop.f32.mrb[0].mxu0
        %v572 = vpop.f32.mrb[0].mxu0
        %573 = vdwg.mxu0
        %v574 = vmul.f32 %v492, %v492
        %v575 = vsel %vm453, %v574, 0.0
        %576 = vadd.xlane.f32.xlu0 %v575
        %v577 = vpop.xlane.xlu0 %576
        %v578 = vadd.f32 %v577, 1e-12
        %v579 = vrsqrt.pop %v578
        %v580 = vmul.f32 %v492, %v579
        %v581 = vmul.f32 %v569, %v569
        %vm582 = vcmask 516096
        %v583 = vsel %vm582, %v581, 0.0
        %584 = vadd.xlane.f32.xlu0 %v583
        %v585 = vpop.xlane.xlu0 %584
        %v586 = vadd.f32 %v585, 1e-12
        %v587 = vrsqrt.pop %v586
        %v588 = vmul.f32 %v569, %v587
        %v590 = vsel %vm453, %v580, 0
        %v593 = vsel %vm453, %v414, 0
        %595 = vmatprep.subr.mxu0 0.0
        %596 = vmatpush1.xpose.msra.mxu0 %v593
        %597 = vmatprep.subr.mxu0 0.0
        %598 = vmatpush1.xpose.msra.mxu0 0.0
        %599 = vmatprep.subr.mxu0 0.0
        %600 = vmatpush1.xpose.msra.mxu0 0.0
        %601 = vmatprep.subr.mxu0 0.0
        %602 = vmatpush1.xpose.msra.mxu0 0.0
        %603 = vmatprep.subr.mxu0 0.0
        %604 = vmatpush1.xpose.msra.mxu0 0.0
        %605 = vmatprep.subr.mxu0 0.0
        %606 = vmatpush1.xpose.msra.mxu0 0.0
        %607 = vmatprep.subr.mxu0 0.0
        %608 = vmatpush1.xpose.msra.mxu0 0.0
        %609 = vmatprep.subr.mxu0 0.0
        %610 = vmatpush1.xpose.msra.mxu0 0.0
        %611 = vmatprep.subr.mxu0 0.0
        %612 = vmatpush1.xpose.msra.mxu0 0.0
        %613 = vmatprep.subr.mxu0 0.0
        %614 = vmatpush1.xpose.msra.mxu0 0.0
        %615 = vmatprep.subr.mxu0 0.0
        %616 = vmatpush1.xpose.msra.mxu0 0.0
        %617 = vmatprep.subr.mxu0 0.0
        %618 = vmatpush1.xpose.msra.mxu0 0.0
        %619 = vmatprep.subr.mxu0 0.0
        %620 = vmatpush1.xpose.msra.mxu0 0.0
        %621 = vmatprep.subr.mxu0 0.0
        %622 = vmatpush1.xpose.msra.mxu0 0.0
        %623 = vmatprep.subr.mxu0 0.0
        %624 = vmatpush1.xpose.msra.mxu0 0.0
        %625 = vmatprep.subr.mxu0 0.0
        %626 = vmatpush1.xpose.msra.mxu0 0.0
        %627 = vmatprep.subr.mxu0 0.0
        %628 = vmatpush1.xpose.msra.mxu0 0.0
        %629 = vmatprep.subr.mxu0 0.0
        %630 = vmatpush1.xpose.msra.mxu0 0.0
        %631 = vmatprep.subr.mxu0 0.0
        %632 = vmatpush1.xpose.msra.mxu0 0.0
        %633 = vmatprep.subr.mxu0 0.0
        %634 = vmatpush1.xpose.msra.mxu0 0.0
        %635 = vmatprep.subr.mxu0 0.0
        %636 = vmatpush1.xpose.msra.mxu0 0.0
        %637 = vmatprep.subr.mxu0 0.0
        %638 = vmatpush1.xpose.msra.mxu0 0.0
        %639 = vmatprep.subr.mxu0 0.0
        %640 = vmatpush1.xpose.msra.mxu0 0.0
        %641 = vmatprep.subr.mxu0 0.0
        %642 = vmatpush1.xpose.msra.mxu0 0.0
        %643 = vmatprep.subr.mxu0 0.0
        %644 = vmatpush1.xpose.msra.mxu0 0.0
        %645 = vmatprep.subr.mxu0 0.0
        %646 = vmatpush1.xpose.msra.mxu0 0.0
        %647 = vmatprep.subr.mxu0 0.0
        %648 = vmatpush1.xpose.msra.mxu0 0.0
        %649 = vmatprep.subr.mxu0 0.0
        %650 = vmatpush1.xpose.msra.mxu0 0.0
        %651 = vmatprep.subr.mxu0 0.0
        %652 = vmatpush1.xpose.msra.mxu0 0.0
        %653 = vmatprep.subr.mxu0 0.0
        %654 = vmatpush1.xpose.msra.mxu0 0.0
        %655 = vmatprep.subr.mxu0 0.0
        %656 = vmatpush1.xpose.msra.mxu0 0.0
        %657 = vmatprep.subr.mxu0 0.0
        %658 = vmatpush1.xpose.msra.mxu0 0.0
        %659 = vmatprep.mubr.f32.mxu0 0.0
        %660 = vmatmul.mubr.f32.gmra.mrb[0].mxu0 %v590
        %v661 = vpop.f32.mrb[0].mxu0
        %v662 = vadd.f32 0.0, %v661
        %v663 = vpop.f32.mrb[0].mxu0
        %664 = vdwg.mxu0
        %v665 = vlaneseq
        %v666 = vshrl.u32 %v665, 7
        %v667 = vlaneseq
        %v668 = vand.u32 %v667, 127
        %vm669 = vcmp.eq.s32.totalorder %v666, %v668
        %v670 = vsel %vm669, %v662, 0.0
        %vm671 = vcmask 64512
        %v672 = vsel %vm671, %v670, 0.0
        %v673 = vrot.slane %v672, 4
        %v674 = vadd.f32 %v672, %v673
        %v675 = vrot.slane %v674, 2
        %v676 = vadd.f32 %v674, %v675
        %v677 = vrot.slane %v676, 1
        %v678 = vadd.f32 %v676, %v677
        %v679 = vmul.f32 %v678, 100.0
        %vm680 = vcmask 57344
        %681 = vst.msk [vmem:[%s397] sm:$0x1] %vm680, %v679
        %v683 = vsel %vm453, %v588, 0
        %685 = vmatprep.subr.mxu0 0.0
        %686 = vmatpush1.xpose.msra.mxu0 %v593
        %687 = vmatprep.subr.mxu0 0.0
        %688 = vmatpush1.xpose.msra.mxu0 0.0
        %689 = vmatprep.subr.mxu0 0.0
        %690 = vmatpush1.xpose.msra.mxu0 0.0
        %691 = vmatprep.subr.mxu0 0.0
        %692 = vmatpush1.xpose.msra.mxu0 0.0
        %693 = vmatprep.subr.mxu0 0.0
        %694 = vmatpush1.xpose.msra.mxu0 0.0
        %695 = vmatprep.subr.mxu0 0.0
        %696 = vmatpush1.xpose.msra.mxu0 0.0
        %697 = vmatprep.subr.mxu0 0.0
        %698 = vmatpush1.xpose.msra.mxu0 0.0
        %699 = vmatprep.subr.mxu0 0.0
        %700 = vmatpush1.xpose.msra.mxu0 0.0
        %701 = vmatprep.subr.mxu0 0.0
        %702 = vmatpush1.xpose.msra.mxu0 0.0
        %703 = vmatprep.subr.mxu0 0.0
        %704 = vmatpush1.xpose.msra.mxu0 0.0
        %705 = vmatprep.subr.mxu0 0.0
        %706 = vmatpush1.xpose.msra.mxu0 0.0
        %707 = vmatprep.subr.mxu0 0.0
        %708 = vmatpush1.xpose.msra.mxu0 0.0
        %709 = vmatprep.subr.mxu0 0.0
        %710 = vmatpush1.xpose.msra.mxu0 0.0
        %711 = vmatprep.subr.mxu0 0.0
        %712 = vmatpush1.xpose.msra.mxu0 0.0
        %713 = vmatprep.subr.mxu0 0.0
        %714 = vmatpush1.xpose.msra.mxu0 0.0
        %715 = vmatprep.subr.mxu0 0.0
        %716 = vmatpush1.xpose.msra.mxu0 0.0
        %717 = vmatprep.subr.mxu0 0.0
        %718 = vmatpush1.xpose.msra.mxu0 0.0
        %719 = vmatprep.subr.mxu0 0.0
        %720 = vmatpush1.xpose.msra.mxu0 0.0
        %721 = vmatprep.subr.mxu0 0.0
        %722 = vmatpush1.xpose.msra.mxu0 0.0
        %723 = vmatprep.subr.mxu0 0.0
        %724 = vmatpush1.xpose.msra.mxu0 0.0
        %725 = vmatprep.subr.mxu0 0.0
        %726 = vmatpush1.xpose.msra.mxu0 0.0
        %727 = vmatprep.subr.mxu0 0.0
        %728 = vmatpush1.xpose.msra.mxu0 0.0
        %729 = vmatprep.subr.mxu0 0.0
        %730 = vmatpush1.xpose.msra.mxu0 0.0
        %731 = vmatprep.subr.mxu0 0.0
        %732 = vmatpush1.xpose.msra.mxu0 0.0
        %733 = vmatprep.subr.mxu0 0.0
        %734 = vmatpush1.xpose.msra.mxu0 0.0
        %735 = vmatprep.subr.mxu0 0.0
        %736 = vmatpush1.xpose.msra.mxu0 0.0
        %737 = vmatprep.subr.mxu0 0.0
        %738 = vmatpush1.xpose.msra.mxu0 0.0
        %739 = vmatprep.subr.mxu0 0.0
        %740 = vmatpush1.xpose.msra.mxu0 0.0
        %741 = vmatprep.subr.mxu0 0.0
        %742 = vmatpush1.xpose.msra.mxu0 0.0
        %743 = vmatprep.subr.mxu0 0.0
        %744 = vmatpush1.xpose.msra.mxu0 0.0
        %745 = vmatprep.subr.mxu0 0.0
        %746 = vmatpush1.xpose.msra.mxu0 0.0
        %747 = vmatprep.subr.mxu0 0.0
        %748 = vmatpush1.xpose.msra.mxu0 0.0
        %749 = vmatprep.mubr.f32.mxu0 0.0
        %750 = vmatmul.mubr.f32.gmra.mrb[0].mxu0 %v683
        %v751 = vpop.f32.mrb[0].mxu0
        %v752 = vadd.f32 0.0, %v751
        %v753 = vpop.f32.mrb[0].mxu0
        %754 = vdwg.mxu0
        %v755 = vmul.f32 %v752, 100.0
        %756 = vst.msk [vmem:[%s403] sm:$0x1] %vm680, %v755
        %v757 = vld [vmem:[%s7] sm:$0xf]
        %v758 = vld [vmem:[%s7 + $0x4] sm:$0xf]
        %v759 = vld [vmem:[%s7 + $0x8] sm:$0xf]
        %v760 = vld [vmem:[%s7 + $0xc] sm:$0xf]
        %v761 = vld [vmem:[%s7 + $0x10] sm:$0xf]
        %v762 = vld [vmem:[%s7 + $0x14] sm:$0xf]
        %v763 = vld [vmem:[%s7 + $0x18] sm:$0xf]
        %v764 = vld [vmem:[%s7 + $0x1c] sm:$0xf]
        %v765 = vld [vmem:[%s8] sm:$0x1]
        %v766 = vunpack.c.l.bf16 %v765
        %v775 = vunpack.c.l.b16 %v757
        %v776 = vunpack.c.l.b16 %v758
        %v777 = vunpack.c.l.b16 %v759
        %v778 = vunpack.c.l.b16 %v760
        %v779 = vunpack.c.l.b16 %v761
        %v780 = vunpack.c.l.b16 %v762
        %v781 = vunpack.c.l.b16 %v763
        %v782 = vunpack.c.l.b16 %v764
        %v783 = vpack.c.b16 %v776, %v775
        %v784 = vpack.c.b16 %v778, %v777
        %v785 = vpack.c.b16 %v780, %v779
        %v786 = vpack.c.b16 %v782, %v781
        %791 = vmatprep.subr.bf16.mxu0 0
        %792 = vmatpush1.bf16.msra.mxu0 %v783
        %793 = vmatprep.subr.bf16.mxu0 0
        %794 = vmatpush1.bf16.msra.mxu0 %v784
        %795 = vmatprep.subr.bf16.mxu0 0
        %796 = vmatpush1.bf16.msra.mxu0 %v785
        %797 = vmatprep.subr.bf16.mxu0 0
        %798 = vmatpush1.bf16.msra.mxu0 %v786
        %799 = vmatprep.subr.bf16.mxu0 0
        %800 = vmatpush1.bf16.msra.mxu0 0
        %801 = vmatprep.subr.bf16.mxu0 0
        %802 = vmatpush1.bf16.msra.mxu0 0
        %803 = vmatprep.subr.bf16.mxu0 0
        %804 = vmatpush1.bf16.msra.mxu0 0
        %805 = vmatprep.subr.bf16.mxu0 0
        %806 = vmatpush1.bf16.msra.mxu0 0
        %807 = vmatprep.subr.bf16.mxu0 0
        %808 = vmatpush1.bf16.msra.mxu0 0
        %809 = vmatprep.subr.bf16.mxu0 0
        %810 = vmatpush1.bf16.msra.mxu0 0
        %811 = vmatprep.subr.bf16.mxu0 0
        %812 = vmatpush1.bf16.msra.mxu0 0
        %813 = vmatprep.subr.bf16.mxu0 0
        %814 = vmatpush1.bf16.msra.mxu0 0
        %815 = vmatprep.subr.bf16.mxu0 0
        %816 = vmatpush1.bf16.msra.mxu0 0
        %817 = vmatprep.subr.bf16.mxu0 0
        %818 = vmatpush1.bf16.msra.mxu0 0
        %819 = vmatprep.subr.bf16.mxu0 0
        %820 = vmatpush1.bf16.msra.mxu0 0
        %821 = vmatprep.subr.bf16.mxu0 0
        %822 = vmatpush1.bf16.msra.mxu0 0
        %823 = vmatprep.mubr.bf16.mxu0 0
        %824 = vmatmul.mubr.bf16.gmra.mrb[0].mxu0 %v532
        %v825 = vpop.f32.mrb[0].mxu0
        %v826 = vadd.f32 %v766, %v825
        %v827 = vpop.f32.mrb[0].mxu0
        %v828 = vpop.f32.mrb[0].mxu0
        %v829 = vpop.f32.mrb[0].mxu0
        %830 = vdwg.mxu0
        %831 = vst.msk [vmem:[%s391] sm:$0x1] %vm680, %v826
        %s832 = sand.u32 %s236, 1
        %s833 = scalar_lea.sflag [#allocation3], %s832
        %s834 = sand.u32 %s236, 1
        %s835 = scalar_lea.vmem [#allocation2], %s834
        %s836 = sand.u32 %s29, 1
        %s837 = scalar_lea.sflag [#allocation5], %s836
        %s838 = sand.u32 %s262, 1
        %s839 = scalar_lea.vmem [#allocation4], %s838
        %s840 = sand.u32 %s29, 1
        %s841 = scalar_lea.sflag [#allocation5], %s840
        %s842 = sand.u32 %s288, 1
        %s843 = scalar_lea.vmem [#allocation6], %s842
        // Predicated region
        $region57: #{osfa_forward.17} parent=55 // pred_check
          %p844 = pneg %p246
        $region58: #{osfa_forward.17} parent=55 // pred_check_branch
          %846 = sbr.rel (%p844) target = $region60
        $region59: #{osfa_forward.17} parent=55 // pred_region
          %s848 = ssub.s32 16, 16
          %849 = vsyncadd %s833, %s848
          %s850 = smul.addr %s29, 16
          %s851 = scalar_lea.hbm %s9, %s850
          %s853 = sshll.u32 %s835, 4
          %s854 = int_to_ptr.vmem [resolvable:$true] %s853
          %856 = dma.vmem_to_hbm [thread:$0]  %s854, 16, %s851, %s833
        $region60: #{osfa_forward.17} parent=55 // pred_fallthru
          _
        // Predicated region
        $region61: #{osfa_forward.17} parent=55 // pred_check
          %p857 = pneg %p272
        $region62: #{osfa_forward.17} parent=55 // pred_check_branch
          %859 = sbr.rel (%p857) target = $region64
        $region63: #{osfa_forward.17} parent=55 // pred_region
          %s861 = ssub.s32 16, 16
          %862 = vsyncadd %s837, %s861
          %s863 = smul.addr %s29, 16
          %s864 = scalar_lea.hbm %s10, %s863
          %s866 = sshll.u32 %s839, 4
          %s867 = int_to_ptr.vmem [resolvable:$true] %s866
          %869 = dma.vmem_to_hbm [thread:$0]  %s867, 16, %s864, %s837
        $region64: #{osfa_forward.17} parent=55 // pred_fallthru
          _
        // Predicated region
        $region65: #{osfa_forward.17} parent=55 // pred_check
          %p870 = pneg %p298
        $region66: #{osfa_forward.17} parent=55 // pred_check_branch
          %872 = sbr.rel (%p870) target = $region68
        $region67: #{osfa_forward.17} parent=55 // pred_region
          %s874 = ssub.s32 16, 16
          %875 = vsyncadd %s841, %s874
          %s876 = smul.addr %s29, 16
          %s877 = scalar_lea.hbm %s11, %s876
          %s879 = sshll.u32 %s843, 4
          %s880 = int_to_ptr.vmem [resolvable:$true] %s879
          %882 = dma.vmem_to_hbm [thread:$0]  %s880, 16, %s877, %s841
        $region68: #{osfa_forward.17} parent=55 // pred_fallthru
          _
      $region56: #{osfa_forward.17} parent=5 // pred_fallthru
        _
      %p883 = scmp.le.s32.totalorder 2, %s24
      // Predicated region
      $region69: #{osfa_forward.17} parent=5 // pred_check
        %p884 = pneg %p883
      $region70: #{osfa_forward.17} parent=5 // pred_check_branch
        %886 = sbr.rel (%p884) target = $region72
      $region71: #{osfa_forward.17} parent=5 // pred_region
        %s887 = ssub.s32 %s24, 2
        // Predicated region
        $region73: #{osfa_forward.17} parent=71 // pred_check
          %p888 = pneg %p252
        $region74: #{osfa_forward.17} parent=71 // pred_check_branch
          %890 = sbr.rel (%p888) target = $region76
        $region75: #{osfa_forward.17} parent=71 // pred_region
          %s891 = sand.u32 %s237, 1
          %s892 = scalar_lea.sflag [#allocation3], %s891
          %s893 = sand.u32 %s237, 1
          %s894 = scalar_lea.vmem [#allocation2], %s893
          %895 = dma.done %s892, 16
        $region76: #{osfa_forward.17} parent=71 // pred_fallthru
          _
        // Predicated region
        $region77: #{osfa_forward.17} parent=71 // pred_check
          %p896 = pneg %p278
        $region78: #{osfa_forward.17} parent=71 // pred_check_branch
          %898 = sbr.rel (%p896) target = $region80
        $region79: #{osfa_forward.17} parent=71 // pred_region
          %s899 = sand.u32 %s30, 1
          %s900 = scalar_lea.sflag [#allocation5], %s899
          %s901 = sand.u32 %s263, 1
          %s902 = scalar_lea.vmem [#allocation4], %s901
          %903 = dma.done %s900, 16
        $region80: #{osfa_forward.17} parent=71 // pred_fallthru
          _
        // Predicated region
        $region81: #{osfa_forward.17} parent=71 // pred_check
          %p904 = pneg %p304
        $region82: #{osfa_forward.17} parent=71 // pred_check_branch
          %906 = sbr.rel (%p904) target = $region84
        $region83: #{osfa_forward.17} parent=71 // pred_region
          %s907 = sand.u32 %s30, 1
          %s908 = scalar_lea.sflag [#allocation5], %s907
          %s909 = sand.u32 %s289, 1
          %s910 = scalar_lea.vmem [#allocation6], %s909
          %911 = dma.done %s908, 16
        $region84: #{osfa_forward.17} parent=71 // pred_fallthru
          _
      $region72: #{osfa_forward.17} parent=5 // pred_fallthru
        _
    $region6: #{osfa_forward.17} parent=1 // loop_footer
      %s28 = sadd.s32 1, %s24
    $region7: #{osfa_forward.17} parent=1 // loop_footer_branch
      %23 = sbr.rel target = $region3
    $region8: #{osfa_forward.17} parent=1 // loop_exit
      _
    %912 = vsyncpa [#allocation3], 1
    %s913 = scalar_lea.sflag [#allocation3], 1
    %914 = vsyncpa %s913, 1
    %915 = vsyncpa [#allocation5], 1
    %s916 = scalar_lea.sflag [#allocation5], 1
    %917 = vsyncpa %s916, 1

// kernel: osfa_forward.16
$region0: #{osfa_forward.16}
  #allocation0 [shape = 'u32[]', space=smem, size = 0x4, offset = 0x4, fixed_abs, tag = 'smem constant byte address 0x4 - core index']
  #allocation1 [shape = 'u32[144,128]{1,0:T(1,128)}', space=vmem, size = 0x12000, scoped, tag = 'internal scratch']
  %s0 = inlined_call_operand.vmem [shape: bf16[2,1,64], index: 0, kind: input, shape index: {}]
  %s1 = inlined_call_operand.vmem [shape: bf16[2,8,64], index: 1, kind: input, shape index: {}]
  %s2 = inlined_call_operand.vmem [shape: bf16[64,64], index: 2, kind: input, shape index: {}]
  %s3 = inlined_call_operand.vmem [shape: bf16[1,64], index: 3, kind: input, shape index: {}]
  %s4 = inlined_call_operand.vmem [shape: bf16[64,128], index: 4, kind: input, shape index: {}]
  %s5 = inlined_call_operand.vmem [shape: bf16[1,128], index: 5, kind: input, shape index: {}]
  %s6 = inlined_call_operand.vmem [shape: bf16[64,64], index: 6, kind: input, shape index: {}]
  %s7 = inlined_call_operand.vmem [shape: bf16[1,64], index: 7, kind: input, shape index: {}]
  %s8 = inlined_call_operand.vmem [shape: bf16[1,64], index: 8, kind: input, shape index: {}]
  %s9 = inlined_call_operand.vmem [shape: bf16[1,64], index: 9, kind: input, shape index: {}]
  %s10 = inlined_call_operand.vmem [shape: bf16[64,256], index: 10, kind: input, shape index: {}]
  %s11 = inlined_call_operand.vmem [shape: bf16[1,256], index: 11, kind: input, shape index: {}]
  %s12 = inlined_call_operand.vmem [shape: bf16[256,64], index: 12, kind: input, shape index: {}]
  %s13 = inlined_call_operand.vmem [shape: bf16[1,64], index: 13, kind: input, shape index: {}]
  %s14 = inlined_call_operand.vmem [shape: bf16[1,64], index: 14, kind: input, shape index: {}]
  %s15 = inlined_call_operand.vmem [shape: bf16[1,64], index: 15, kind: input, shape index: {}]
  %s16 = inlined_call_operand.vmem [shape: bf16[2,1,64], index: 16, kind: output, shape index: {}]
  %s17 = sld [smem:[#allocation0]]
  $region97: #{osfa_forward.16} parent=0
    _
  %s19 = ssub.s32 1, %s17
  %s20 = scalar_select 0, %s19, %s17
  loop: start=0, step=1, limit=4
  $region2: #{osfa_forward.16} parent=0 // loop_pre_header
    _
  $region3: #{osfa_forward.16} parent=0 // loop_header
    %s22 = sphi 0, %s26
    %p23 = scmp.ge.s32.totalorder %s22, 4
    %s32 = sphi 0, %s34
    %s35 = sphi 0, %s32
    %s36 = sphi 0, %s35
    %s52 = sphi 0, %s36
    %s58 = sphi 0, %s60
    %s61 = sphi 0, %s58
    %s62 = sphi 0, %s61
    %s78 = sphi 0, %s62
    %s82 = sphi 0, %s82
    %s84 = sphi 0, %s82
    %s85 = sphi 0, %s84
    %s99 = sphi 0, %s85
    %s103 = sphi 0, %s103
    %s105 = sphi 0, %s103
    %s106 = sphi 0, %s105
    %s120 = sphi 0, %s106
    %s124 = sphi 0, %s124
    %s126 = sphi 0, %s124
    %s127 = sphi 0, %s126
    %s141 = sphi 0, %s127
    %s145 = sphi 0, %s145
    %s147 = sphi 0, %s145
    %s148 = sphi 0, %s147
    %s162 = sphi 0, %s148
    %s166 = sphi 0, %s166
    %s168 = sphi 0, %s166
    %s169 = sphi 0, %s168
    %s183 = sphi 0, %s169
    %s187 = sphi 0, %s187
    %s189 = sphi 0, %s187
    %s190 = sphi 0, %s189
    %s204 = sphi 0, %s190
    %s208 = sphi 0, %s208
    %s210 = sphi 0, %s208
    %s211 = sphi 0, %s210
    %s225 = sphi 0, %s211
    %s229 = sphi 0, %s229
    %s231 = sphi 0, %s229
    %s232 = sphi 0, %s231
    %s246 = sphi 0, %s232
    %s250 = sphi 0, %s250
    %s252 = sphi 0, %s250
    %s253 = sphi 0, %s252
    %s267 = sphi 0, %s253
    %s271 = sphi 0, %s271
    %s273 = sphi 0, %s271
    %s274 = sphi 0, %s273
    %s288 = sphi 0, %s274
    %s292 = sphi 0, %s292
    %s294 = sphi 0, %s292
    %s295 = sphi 0, %s294
    %s309 = sphi 0, %s295
    %s313 = sphi 0, %s313
    %s315 = sphi 0, %s313
    %s316 = sphi 0, %s315
    %s330 = sphi 0, %s316
    %s334 = sphi 0, %s334
    %s336 = sphi 0, %s334
    %s337 = sphi 0, %s336
    %s351 = sphi 0, %s337
    %s355 = sphi 0, %s355
    %s357 = sphi 0, %s355
    %s358 = sphi 0, %s357
    %s372 = sphi 0, %s358
    %s378 = sphi 0, %s380
    %s381 = sphi 0, %s378
    %s382 = sphi 0, %s381
    %s398 = sphi 0, %s382
  $region4: #{osfa_forward.16} parent=0 // loop_header_branch
    %25 = sbr.rel (%p23) target = $region8
  $region5: #{osfa_forward.16} parent=0 // loop_body
    %s27 = ssub.s32 %s22, 1
    %s28 = ssub.s32 %s22, 2
    %s29 = sadd.s32 %s22, 1
    %s30 = ssub.s32 %s22, %s29
    %p31 = scmp.eq.s32.totalorder %s30, 0
    %s33 = sadd.s32 %s32, 1
    %s34 = scalar_select %p31, %s32, %s33
    %p37 = pneg %p31
    %p38 = scmp.eq.s32.totalorder %s22, 1
    %p39 = por %p37, %p38
    %p40 = scmp.ne.s32.totalorder %s32, %s35
    %p41 = scmp.eq.s32.totalorder %s22, 0
    %p42 = por %p40, %p41
    %p43 = scmp.ne.s32.totalorder %s32, %s35
    %p44 = scmp.eq.s32.totalorder %s27, 1
    %p45 = por %p43, %p44
    %p46 = scmp.ne.s32.totalorder %s35, %s36
    %p47 = scmp.eq.s32.totalorder %s27, 0
    %p48 = por %p46, %p47
    %p49 = scmp.ne.s32.totalorder %s35, %s36
    %p50 = scmp.eq.s32.totalorder %s28, 1
    %p51 = por %p49, %p50
    %p53 = scmp.ne.s32.totalorder %s36, %s52
    %p54 = scmp.eq.s32.totalorder %s28, 0
    %p55 = por %p53, %p54
    %s56 = ssub.s32 %s22, %s29
    %p57 = scmp.eq.s32.totalorder %s56, 0
    %s59 = sadd.s32 %s58, 1
    %s60 = scalar_select %p57, %s58, %s59
    %p63 = pneg %p57
    %p64 = scmp.eq.s32.totalorder %s22, 1
    %p65 = por %p63, %p64
    %p66 = scmp.ne.s32.totalorder %s58, %s61
    %p67 = scmp.eq.s32.totalorder %s22, 0
    %p68 = por %p66, %p67
    %p69 = scmp.ne.s32.totalorder %s58, %s61
    %p70 = scmp.eq.s32.totalorder %s27, 1
    %p71 = por %p69, %p70
    %p72 = scmp.ne.s32.totalorder %s61, %s62
    %p73 = scmp.eq.s32.totalorder %s27, 0
    %p74 = por %p72, %p73
    %p75 = scmp.ne.s32.totalorder %s61, %s62
    %p76 = scmp.eq.s32.totalorder %s28, 1
    %p77 = por %p75, %p76
    %p79 = scmp.ne.s32.totalorder %s62, %s78
    %p80 = scmp.eq.s32.totalorder %s28, 0
    %p81 = por %p79, %p80
    %s83 = sadd.s32 %s82, 1
    %p86 = scmp.eq.s32.totalorder %s22, 1
    %p87 = scmp.ne.s32.totalorder %s82, %s84
    %p88 = scmp.eq.s32.totalorder %s22, 0
    %p89 = por %p87, %p88
    %p90 = scmp.ne.s32.totalorder %s82, %s84
    %p91 = scmp.eq.s32.totalorder %s27, 1
    %p92 = por %p90, %p91
    %p93 = scmp.ne.s32.totalorder %s84, %s85
    %p94 = scmp.eq.s32.totalorder %s27, 0
    %p95 = por %p93, %p94
    %p96 = scmp.ne.s32.totalorder %s84, %s85
    %p97 = scmp.eq.s32.totalorder %s28, 1
    %p98 = por %p96, %p97
    %p100 = scmp.ne.s32.totalorder %s85, %s99
    %p101 = scmp.eq.s32.totalorder %s28, 0
    %p102 = por %p100, %p101
    %s104 = sadd.s32 %s103, 1
    %p107 = scmp.eq.s32.totalorder %s22, 1
    %p108 = scmp.ne.s32.totalorder %s103, %s105
    %p109 = scmp.eq.s32.totalorder %s22, 0
    %p110 = por %p108, %p109
    %p111 = scmp.ne.s32.totalorder %s103, %s105
    %p112 = scmp.eq.s32.totalorder %s27, 1
    %p113 = por %p111, %p112
    %p114 = scmp.ne.s32.totalorder %s105, %s106
    %p115 = scmp.eq.s32.totalorder %s27, 0
    %p116 = por %p114, %p115
    %p117 = scmp.ne.s32.totalorder %s105, %s106
    %p118 = scmp.eq.s32.totalorder %s28, 1
    %p119 = por %p117, %p118
    %p121 = scmp.ne.s32.totalorder %s106, %s120
    %p122 = scmp.eq.s32.totalorder %s28, 0
    %p123 = por %p121, %p122
    %s125 = sadd.s32 %s124, 1
    %p128 = scmp.eq.s32.totalorder %s22, 1
    %p129 = scmp.ne.s32.totalorder %s124, %s126
    %p130 = scmp.eq.s32.totalorder %s22, 0
    %p131 = por %p129, %p130
    %p132 = scmp.ne.s32.totalorder %s124, %s126
    %p133 = scmp.eq.s32.totalorder %s27, 1
    %p134 = por %p132, %p133
    %p135 = scmp.ne.s32.totalorder %s126, %s127
    %p136 = scmp.eq.s32.totalorder %s27, 0
    %p137 = por %p135, %p136
    %p138 = scmp.ne.s32.totalorder %s126, %s127
    %p139 = scmp.eq.s32.totalorder %s28, 1
    %p140 = por %p138, %p139
    %p142 = scmp.ne.s32.totalorder %s127, %s141
    %p143 = scmp.eq.s32.totalorder %s28, 0
    %p144 = por %p142, %p143
    %s146 = sadd.s32 %s145, 1
    %p149 = scmp.eq.s32.totalorder %s22, 1
    %p150 = scmp.ne.s32.totalorder %s145, %s147
    %p151 = scmp.eq.s32.totalorder %s22, 0
    %p152 = por %p150, %p151
    %p153 = scmp.ne.s32.totalorder %s145, %s147
    %p154 = scmp.eq.s32.totalorder %s27, 1
    %p155 = por %p153, %p154
    %p156 = scmp.ne.s32.totalorder %s147, %s148
    %p157 = scmp.eq.s32.totalorder %s27, 0
    %p158 = por %p156, %p157
    %p159 = scmp.ne.s32.totalorder %s147, %s148
    %p160 = scmp.eq.s32.totalorder %s28, 1
    %p161 = por %p159, %p160
    %p163 = scmp.ne.s32.totalorder %s148, %s162
    %p164 = scmp.eq.s32.totalorder %s28, 0
    %p165 = por %p163, %p164
    %s167 = sadd.s32 %s166, 1
    %p170 = scmp.eq.s32.totalorder %s22, 1
    %p171 = scmp.ne.s32.totalorder %s166, %s168
    %p172 = scmp.eq.s32.totalorder %s22, 0
    %p173 = por %p171, %p172
    %p174 = scmp.ne.s32.totalorder %s166, %s168
    %p175 = scmp.eq.s32.totalorder %s27, 1
    %p176 = por %p174, %p175
    %p177 = scmp.ne.s32.totalorder %s168, %s169
    %p178 = scmp.eq.s32.totalorder %s27, 0
    %p179 = por %p177, %p178
    %p180 = scmp.ne.s32.totalorder %s168, %s169
    %p181 = scmp.eq.s32.totalorder %s28, 1
    %p182 = por %p180, %p181
    %p184 = scmp.ne.s32.totalorder %s169, %s183
    %p185 = scmp.eq.s32.totalorder %s28, 0
    %p186 = por %p184, %p185
    %s188 = sadd.s32 %s187, 1
    %p191 = scmp.eq.s32.totalorder %s22, 1
    %p192 = scmp.ne.s32.totalorder %s187, %s189
    %p193 = scmp.eq.s32.totalorder %s22, 0
    %p194 = por %p192, %p193
    %p195 = scmp.ne.s32.totalorder %s187, %s189
    %p196 = scmp.eq.s32.totalorder %s27, 1
    %p197 = por %p195, %p196
    %p198 = scmp.ne.s32.totalorder %s189, %s190
    %p199 = scmp.eq.s32.totalorder %s27, 0
    %p200 = por %p198, %p199
    %p201 = scmp.ne.s32.totalorder %s189, %s190
    %p202 = scmp.eq.s32.totalorder %s28, 1
    %p203 = por %p201, %p202
    %p205 = scmp.ne.s32.totalorder %s190, %s204
    %p206 = scmp.eq.s32.totalorder %s28, 0
    %p207 = por %p205, %p206
    %s209 = sadd.s32 %s208, 1
    %p212 = scmp.eq.s32.totalorder %s22, 1
    %p213 = scmp.ne.s32.totalorder %s208, %s210
    %p214 = scmp.eq.s32.totalorder %s22, 0
    %p215 = por %p213, %p214
    %p216 = scmp.ne.s32.totalorder %s208, %s210
    %p217 = scmp.eq.s32.totalorder %s27, 1
    %p218 = por %p216, %p217
    %p219 = scmp.ne.s32.totalorder %s210, %s211
    %p220 = scmp.eq.s32.totalorder %s27, 0
    %p221 = por %p219, %p220
    %p222 = scmp.ne.s32.totalorder %s210, %s211
    %p223 = scmp.eq.s32.totalorder %s28, 1
    %p224 = por %p222, %p223
    %p226 = scmp.ne.s32.totalorder %s211, %s225
    %p227 = scmp.eq.s32.totalorder %s28, 0
    %p228 = por %p226, %p227
    %s230 = sadd.s32 %s229, 1
    %p233 = scmp.eq.s32.totalorder %s22, 1
    %p234 = scmp.ne.s32.totalorder %s229, %s231
    %p235 = scmp.eq.s32.totalorder %s22, 0
    %p236 = por %p234, %p235
    %p237 = scmp.ne.s32.totalorder %s229, %s231
    %p238 = scmp.eq.s32.totalorder %s27, 1
    %p239 = por %p237, %p238
    %p240 = scmp.ne.s32.totalorder %s231, %s232
    %p241 = scmp.eq.s32.totalorder %s27, 0
    %p242 = por %p240, %p241
    %p243 = scmp.ne.s32.totalorder %s231, %s232
    %p244 = scmp.eq.s32.totalorder %s28, 1
    %p245 = por %p243, %p244
    %p247 = scmp.ne.s32.totalorder %s232, %s246
    %p248 = scmp.eq.s32.totalorder %s28, 0
    %p249 = por %p247, %p248
    %s251 = sadd.s32 %s250, 1
    %p254 = scmp.eq.s32.totalorder %s22, 1
    %p255 = scmp.ne.s32.totalorder %s250, %s252
    %p256 = scmp.eq.s32.totalorder %s22, 0
    %p257 = por %p255, %p256
    %p258 = scmp.ne.s32.totalorder %s250, %s252
    %p259 = scmp.eq.s32.totalorder %s27, 1
    %p260 = por %p258, %p259
    %p261 = scmp.ne.s32.totalorder %s252, %s253
    %p262 = scmp.eq.s32.totalorder %s27, 0
    %p263 = por %p261, %p262
    %p264 = scmp.ne.s32.totalorder %s252, %s253
    %p265 = scmp.eq.s32.totalorder %s28, 1
    %p266 = por %p264, %p265
    %p268 = scmp.ne.s32.totalorder %s253, %s267
    %p269 = scmp.eq.s32.totalorder %s28, 0
    %p270 = por %p268, %p269
    %s272 = sadd.s32 %s271, 1
    %p275 = scmp.eq.s32.totalorder %s22, 1
    %p276 = scmp.ne.s32.totalorder %s271, %s273
    %p277 = scmp.eq.s32.totalorder %s22, 0
    %p278 = por %p276, %p277
    %p279 = scmp.ne.s32.totalorder %s271, %s273
    %p280 = scmp.eq.s32.totalorder %s27, 1
    %p281 = por %p279, %p280
    %p282 = scmp.ne.s32.totalorder %s273, %s274
    %p283 = scmp.eq.s32.totalorder %s27, 0
    %p284 = por %p282, %p283
    %p285 = scmp.ne.s32.totalorder %s273, %s274
    %p286 = scmp.eq.s32.totalorder %s28, 1
    %p287 = por %p285, %p286
    %p289 = scmp.ne.s32.totalorder %s274, %s288
    %p290 = scmp.eq.s32.totalorder %s28, 0
    %p291 = por %p289, %p290
    %s293 = sadd.s32 %s292, 1
    %p296 = scmp.eq.s32.totalorder %s22, 1
    %p297 = scmp.ne.s32.totalorder %s292, %s294
    %p298 = scmp.eq.s32.totalorder %s22, 0
    %p299 = por %p297, %p298
    %p300 = scmp.ne.s32.totalorder %s292, %s294
    %p301 = scmp.eq.s32.totalorder %s27, 1
    %p302 = por %p300, %p301
    %p303 = scmp.ne.s32.totalorder %s294, %s295
    %p304 = scmp.eq.s32.totalorder %s27, 0
    %p305 = por %p303, %p304
    %p306 = scmp.ne.s32.totalorder %s294, %s295
    %p307 = scmp.eq.s32.totalorder %s28, 1
    %p308 = por %p306, %p307
    %p310 = scmp.ne.s32.totalorder %s295, %s309
    %p311 = scmp.eq.s32.totalorder %s28, 0
    %p312 = por %p310, %p311
    %s314 = sadd.s32 %s313, 1
    %p317 = scmp.eq.s32.totalorder %s22, 1
    %p318 = scmp.ne.s32.totalorder %s313, %s315
    %p319 = scmp.eq.s32.totalorder %s22, 0
    %p320 = por %p318, %p319
    %p321 = scmp.ne.s32.totalorder %s313, %s315
    %p322 = scmp.eq.s32.totalorder %s27, 1
    %p323 = por %p321, %p322
    %p324 = scmp.ne.s32.totalorder %s315, %s316
    %p325 = scmp.eq.s32.totalorder %s27, 0
    %p326 = por %p324, %p325
    %p327 = scmp.ne.s32.totalorder %s315, %s316
    %p328 = scmp.eq.s32.totalorder %s28, 1
    %p329 = por %p327, %p328
    %p331 = scmp.ne.s32.totalorder %s316, %s330
    %p332 = scmp.eq.s32.totalorder %s28, 0
    %p333 = por %p331, %p332
    %s335 = sadd.s32 %s334, 1
    %p338 = scmp.eq.s32.totalorder %s22, 1
    %p339 = scmp.ne.s32.totalorder %s334, %s336
    %p340 = scmp.eq.s32.totalorder %s22, 0
    %p341 = por %p339, %p340
    %p342 = scmp.ne.s32.totalorder %s334, %s336
    %p343 = scmp.eq.s32.totalorder %s27, 1
    %p344 = por %p342, %p343
    %p345 = scmp.ne.s32.totalorder %s336, %s337
    %p346 = scmp.eq.s32.totalorder %s27, 0
    %p347 = por %p345, %p346
    %p348 = scmp.ne.s32.totalorder %s336, %s337
    %p349 = scmp.eq.s32.totalorder %s28, 1
    %p350 = por %p348, %p349
    %p352 = scmp.ne.s32.totalorder %s337, %s351
    %p353 = scmp.eq.s32.totalorder %s28, 0
    %p354 = por %p352, %p353
    %s356 = sadd.s32 %s355, 1
    %p359 = scmp.eq.s32.totalorder %s22, 1
    %p360 = scmp.ne.s32.totalorder %s355, %s357
    %p361 = scmp.eq.s32.totalorder %s22, 0
    %p362 = por %p360, %p361
    %p363 = scmp.ne.s32.totalorder %s355, %s357
    %p364 = scmp.eq.s32.totalorder %s27, 1
    %p365 = por %p363, %p364
    %p366 = scmp.ne.s32.totalorder %s357, %s358
    %p367 = scmp.eq.s32.totalorder %s27, 0
    %p368 = por %p366, %p367
    %p369 = scmp.ne.s32.totalorder %s357, %s358
    %p370 = scmp.eq.s32.totalorder %s28, 1
    %p371 = por %p369, %p370
    %p373 = scmp.ne.s32.totalorder %s358, %s372
    %p374 = scmp.eq.s32.totalorder %s28, 0
    %p375 = por %p373, %p374
    %s376 = ssub.s32 %s22, %s29
    %p377 = scmp.eq.s32.totalorder %s376, 0
    %s379 = sadd.s32 %s378, 1
    %s380 = scalar_select %p377, %s378, %s379
    %p383 = pneg %p377
    %p384 = scmp.eq.s32.totalorder %s22, 1
    %p385 = por %p383, %p384
    %p386 = scmp.ne.s32.totalorder %s378, %s381
    %p387 = scmp.eq.s32.totalorder %s22, 0
    %p388 = por %p386, %p387
    %p389 = scmp.ne.s32.totalorder %s378, %s381
    %p390 = scmp.eq.s32.totalorder %s27, 1
    %p391 = por %p389, %p390
    %p392 = scmp.ne.s32.totalorder %s381, %s382
    %p393 = scmp.eq.s32.totalorder %s27, 0
    %p394 = por %p392, %p393
    %p395 = scmp.ne.s32.totalorder %s381, %s382
    %p396 = scmp.eq.s32.totalorder %s28, 1
    %p397 = por %p395, %p396
    %p399 = scmp.ne.s32.totalorder %s382, %s398
    %p400 = scmp.eq.s32.totalorder %s28, 0
    %p401 = por %p399, %p400
    %p402 = scmp.le.s32.totalorder 1, %s22
    %p403 = scmp.lt.s32.totalorder %s22, 3
    %p404 = pnand %p402, %p403
    %p405 = pneg %p404
    // Predicated region
    $region9: #{osfa_forward.16} parent=5 // pred_check
      _
    $region10: #{osfa_forward.16} parent=5 // pred_check_branch
      %407 = sbr.rel (%p404) target = $region12
    $region11: #{osfa_forward.16} parent=5 // pred_region
      %s408 = ssub.s32 %s22, 1
      // Predicated region
      $region13: #{osfa_forward.16} parent=11 // pred_check
        %p409 = pneg %p95
      $region14: #{osfa_forward.16} parent=11 // pred_check_branch
        %411 = sbr.rel (%p409) target = $region16
      $region15: #{osfa_forward.16} parent=11 // pred_region
        _
      $region16: #{osfa_forward.16} parent=11 // pred_fallthru
        _
      // Predicated region
      $region17: #{osfa_forward.16} parent=11 // pred_check
        %p412 = pneg %p116
      $region18: #{osfa_forward.16} parent=11 // pred_check_branch
        %414 = sbr.rel (%p412) target = $region20
      $region19: #{osfa_forward.16} parent=11 // pred_region
        _
      $region20: #{osfa_forward.16} parent=11 // pred_fallthru
        _
      // Predicated region
      $region21: #{osfa_forward.16} parent=11 // pred_check
        %p415 = pneg %p137
      $region22: #{osfa_forward.16} parent=11 // pred_check_branch
        %417 = sbr.rel (%p415) target = $region24
      $region23: #{osfa_forward.16} parent=11 // pred_region
        _
      $region24: #{osfa_forward.16} parent=11 // pred_fallthru
        _
      // Predicated region
      $region25: #{osfa_forward.16} parent=11 // pred_check
        %p418 = pneg %p158
      $region26: #{osfa_forward.16} parent=11 // pred_check_branch
        %420 = sbr.rel (%p418) target = $region28
      $region27: #{osfa_forward.16} parent=11 // pred_region
        _
      $region28: #{osfa_forward.16} parent=11 // pred_fallthru
        _
      // Predicated region
      $region29: #{osfa_forward.16} parent=11 // pred_check
        %p421 = pneg %p179
      $region30: #{osfa_forward.16} parent=11 // pred_check_branch
        %423 = sbr.rel (%p421) target = $region32
      $region31: #{osfa_forward.16} parent=11 // pred_region
        _
      $region32: #{osfa_forward.16} parent=11 // pred_fallthru
        _
      // Predicated region
      $region33: #{osfa_forward.16} parent=11 // pred_check
        %p424 = pneg %p200
      $region34: #{osfa_forward.16} parent=11 // pred_check_branch
        %426 = sbr.rel (%p424) target = $region36
      $region35: #{osfa_forward.16} parent=11 // pred_region
        _
      $region36: #{osfa_forward.16} parent=11 // pred_fallthru
        _
      // Predicated region
      $region37: #{osfa_forward.16} parent=11 // pred_check
        %p427 = pneg %p221
      $region38: #{osfa_forward.16} parent=11 // pred_check_branch
        %429 = sbr.rel (%p427) target = $region40
      $region39: #{osfa_forward.16} parent=11 // pred_region
        _
      $region40: #{osfa_forward.16} parent=11 // pred_fallthru
        _
      // Predicated region
      $region41: #{osfa_forward.16} parent=11 // pred_check
        %p430 = pneg %p242
      $region42: #{osfa_forward.16} parent=11 // pred_check_branch
        %432 = sbr.rel (%p430) target = $region44
      $region43: #{osfa_forward.16} parent=11 // pred_region
        _
      $region44: #{osfa_forward.16} parent=11 // pred_fallthru
        _
      // Predicated region
      $region45: #{osfa_forward.16} parent=11 // pred_check
        %p433 = pneg %p263
      $region46: #{osfa_forward.16} parent=11 // pred_check_branch
        %435 = sbr.rel (%p433) target = $region48
      $region47: #{osfa_forward.16} parent=11 // pred_region
        _
      $region48: #{osfa_forward.16} parent=11 // pred_fallthru
        _
      // Predicated region
      $region49: #{osfa_forward.16} parent=11 // pred_check
        %p436 = pneg %p284
      $region50: #{osfa_forward.16} parent=11 // pred_check_branch
        %438 = sbr.rel (%p436) target = $region52
      $region51: #{osfa_forward.16} parent=11 // pred_region
        _
      $region52: #{osfa_forward.16} parent=11 // pred_fallthru
        _
      // Predicated region
      $region53: #{osfa_forward.16} parent=11 // pred_check
        %p439 = pneg %p305
      $region54: #{osfa_forward.16} parent=11 // pred_check_branch
        %441 = sbr.rel (%p439) target = $region56
      $region55: #{osfa_forward.16} parent=11 // pred_region
        _
      $region56: #{osfa_forward.16} parent=11 // pred_fallthru
        _
      // Predicated region
      $region57: #{osfa_forward.16} parent=11 // pred_check
        %p442 = pneg %p326
      $region58: #{osfa_forward.16} parent=11 // pred_check_branch
        %444 = sbr.rel (%p442) target = $region60
      $region59: #{osfa_forward.16} parent=11 // pred_region
        _
      $region60: #{osfa_forward.16} parent=11 // pred_fallthru
        _
      // Predicated region
      $region61: #{osfa_forward.16} parent=11 // pred_check
        %p445 = pneg %p347
      $region62: #{osfa_forward.16} parent=11 // pred_check_branch
        %447 = sbr.rel (%p445) target = $region64
      $region63: #{osfa_forward.16} parent=11 // pred_region
        _
      $region64: #{osfa_forward.16} parent=11 // pred_fallthru
        _
      // Predicated region
      $region65: #{osfa_forward.16} parent=11 // pred_check
        %p448 = pneg %p368
      $region66: #{osfa_forward.16} parent=11 // pred_check_branch
        %450 = sbr.rel (%p448) target = $region68
      $region67: #{osfa_forward.16} parent=11 // pred_region
        _
      $region68: #{osfa_forward.16} parent=11 // pred_fallthru
        _
    $region12: #{osfa_forward.16} parent=5 // pred_fallthru
      _
    %p451 = scmp.lt.s32.totalorder %s22, 2
    // Predicated region
    $region69: #{osfa_forward.16} parent=5 // pred_check
      %p452 = pneg %p451
    $region70: #{osfa_forward.16} parent=5 // pred_check_branch
      %454 = sbr.rel (%p452) target = $region72
    $region71: #{osfa_forward.16} parent=5 // pred_region
      // Predicated region
      $region73: #{osfa_forward.16} parent=71 // pred_check
        %p455 = pneg %p42
      $region74: #{osfa_forward.16} parent=71 // pred_check_branch
        %457 = sbr.rel (%p455) target = $region76
      $region75: #{osfa_forward.16} parent=71 // pred_region
        %p458 = scmp.lt.s32.totalorder %s22, 1
        %s459 = scalar_select %p458, %s22, 1
        %s460 = scalar_lea.vmem %s0, %s459
      $region76: #{osfa_forward.16} parent=71 // pred_fallthru
        _
      // Predicated region
      $region77: #{osfa_forward.16} parent=71 // pred_check
        %p461 = pneg %p68
      $region78: #{osfa_forward.16} parent=71 // pred_check_branch
        %463 = sbr.rel (%p461) target = $region80
      $region79: #{osfa_forward.16} parent=71 // pred_region
        %p464 = scmp.lt.s32.totalorder %s22, 1
        %s465 = scalar_select %p464, %s22, 1
        %s466 = smul.addr %s465, 4
        %s467 = scalar_lea.vmem %s1, %s466
      $region80: #{osfa_forward.16} parent=71 // pred_fallthru
        _
    $region72: #{osfa_forward.16} parent=5 // pred_fallthru
      _
    %p468 = scmp.le.s32.totalorder 1, %s22
    %p469 = scmp.lt.s32.totalorder %s22, 3
    %p470 = pnand %p468, %p469
    %p471 = pneg %p470
    // Predicated region
    $region81: #{osfa_forward.16} parent=5 // pred_check
      _
    $region82: #{osfa_forward.16} parent=5 // pred_check_branch
      %473 = sbr.rel (%p470) target = $region84
    $region83: #{osfa_forward.16} parent=5 // pred_region
      %s474 = ssub.s32 %s22, 1
      %p475 = scmp.lt.s32.totalorder %s27, 1
      %s476 = scalar_select %p475, %s27, 1
      %s477 = scalar_lea.vmem %s0, %s476
      %p478 = pneg %p48
      %p479 = pneg %p45
      %p480 = scmp.lt.s32.totalorder %s27, 1
      %s481 = scalar_select %p480, %s27, 1
      %s482 = smul.addr %s481, 4
      %s483 = scalar_lea.vmem %s1, %s482
      %p484 = pneg %p74
      %p485 = pneg %p71
      %p486 = pneg %p95
      %p487 = pneg %p92
      %p488 = pneg %p116
      %p489 = pneg %p113
      %p490 = pneg %p137
      %p491 = pneg %p134
      %p492 = pneg %p158
      %p493 = pneg %p155
      %p494 = pneg %p179
      %p495 = pneg %p176
      %p496 = pneg %p200
      %p497 = pneg %p197
      %p498 = pneg %p221
      %p499 = pneg %p218
      %p500 = pneg %p242
      %p501 = pneg %p239
      %p502 = pneg %p263
      %p503 = pneg %p260
      %p504 = pneg %p284
      %p505 = pneg %p281
      %p506 = pneg %p305
      %p507 = pneg %p302
      %p508 = pneg %p326
      %p509 = pneg %p323
      %p510 = pneg %p347
      %p511 = pneg %p344
      %p512 = pneg %p368
      %p513 = pneg %p365
      %p514 = pneg %p394
      %p515 = pneg %p391
      %p516 = scmp.lt.s32.totalorder %s27, 1
      %s517 = scalar_select %p516, %s27, 1
      %s518 = scalar_lea.vmem %s16, %s517
      %p519 = scmp.lt.s32.totalorder %s27, 1
      %s520 = scalar_select %p519, %s27, 1
      %s521 = scalar_lea.vmem %s0, %s520
      %p522 = scmp.lt.s32.totalorder %s27, 1
      %s523 = scalar_select %p522, %s27, 1
      %s524 = smul.addr %s523, 4
      %s525 = scalar_lea.vmem %s1, %s524
      %p526 = scmp.lt.s32.totalorder %s27, 1
      %s527 = scalar_select %p526, %s27, 1
      %s528 = scalar_lea.vmem %s16, %s527
      %v530 = vld [vmem:[%s525] sm:$0xf]
      %v531 = vld [vmem:[%s521] sm:$0x1]
      %v532 = vld [vmem:[%s2] sm:$0xf]
      %v533 = vld [vmem:[%s2 + $0x4] sm:$0xf]
      %v534 = vld [vmem:[%s2 + $0x8] sm:$0xf]
      %v535 = vld [vmem:[%s2 + $0xc] sm:$0xf]
      %v536 = vld [vmem:[%s2 + $0x10] sm:$0xf]
      %v537 = vld [vmem:[%s2 + $0x14] sm:$0xf]
      %v538 = vld [vmem:[%s2 + $0x18] sm:$0xf]
      %v539 = vld [vmem:[%s2 + $0x1c] sm:$0xf]
      %v540 = vld [vmem:[%s3] sm:$0x1]
      %v541 = vunpack.c.l.bf16 %v540
      %v550 = vunpack.c.l.b16 %v532
      %v551 = vunpack.c.l.b16 %v533
      %v552 = vunpack.c.l.b16 %v534
      %v553 = vunpack.c.l.b16 %v535
      %v554 = vunpack.c.l.b16 %v536
      %v555 = vunpack.c.l.b16 %v537
      %v556 = vunpack.c.l.b16 %v538
      %v557 = vunpack.c.l.b16 %v539
      %v558 = vpack.c.b16 %v551, %v550
      %v559 = vpack.c.b16 %v553, %v552
      %v560 = vpack.c.b16 %v555, %v554
      %v561 = vpack.c.b16 %v557, %v556
      %vm566 = vcmask 523264
      %v568 = vsel %vm566, %v531, 0
      %570 = vmatprep.subr.bf16.mxu0 0
      %571 = vmatpush1.bf16.msra.mxu0 %v558
      %572 = vmatprep.subr.bf16.mxu0 0
      %573 = vmatpush1.bf16.msra.mxu0 %v559
      %574 = vmatprep.subr.bf16.mxu0 0
      %575 = vmatpush1.bf16.msra.mxu0 %v560
      %576 = vmatprep.subr.bf16.mxu0 0
      %577 = vmatpush1.bf16.msra.mxu0 %v561
      %578 = vmatprep.subr.bf16.mxu0 0
      %579 = vmatpush1.bf16.msra.mxu0 0
      %580 = vmatprep.subr.bf16.mxu0 0
      %581 = vmatpush1.bf16.msra.mxu0 0
      %582 = vmatprep.subr.bf16.mxu0 0
      %583 = vmatpush1.bf16.msra.mxu0 0
      %584 = vmatprep.subr.bf16.mxu0 0
      %585 = vmatpush1.bf16.msra.mxu0 0
      %586 = vmatprep.subr.bf16.mxu0 0
      %587 = vmatpush1.bf16.msra.mxu0 0
      %588 = vmatprep.subr.bf16.mxu0 0
      %589 = vmatpush1.bf16.msra.mxu0 0
      %590 = vmatprep.subr.bf16.mxu0 0
      %591 = vmatpush1.bf16.msra.mxu0 0
      %592 = vmatprep.subr.bf16.mxu0 0
      %593 = vmatpush1.bf16.msra.mxu0 0
      %594 = vmatprep.subr.bf16.mxu0 0
      %595 = vmatpush1.bf16.msra.mxu0 0
      %596 = vmatprep.subr.bf16.mxu0 0
      %597 = vmatpush1.bf16.msra.mxu0 0
      %598 = vmatprep.subr.bf16.mxu0 0
      %599 = vmatpush1.bf16.msra.mxu0 0
      %600 = vmatprep.subr.bf16.mxu0 0
      %601 = vmatpush1.bf16.msra.mxu0 0
      %602 = vmatprep.mubr.bf16.mxu0 0
      %603 = vmatmul.mubr.bf16.gmra.mrb[0].mxu0 %v568
      %v604 = vpop.f32.mrb[0].mxu0
      %v605 = vadd.f32 %v541, %v604
      %v606 = vpop.f32.mrb[0].mxu0
      %v607 = vpop.f32.mrb[0].mxu0
      %v608 = vpop.f32.mrb[0].mxu0
      %609 = vdwg.mxu0
      %v610 = vmul.f32 %v605, 0.35355338
      %v611 = vpack.c.bf16 %v610, %v610
      %v612 = vld [vmem:[%s4] sm:$0xf]
      %v613 = vld [vmem:[%s4 + $0x4] sm:$0xf]
      %v614 = vld [vmem:[%s4 + $0x8] sm:$0xf]
      %v615 = vld [vmem:[%s4 + $0xc] sm:$0xf]
      %v616 = vld [vmem:[%s4 + $0x10] sm:$0xf]
      %v617 = vld [vmem:[%s4 + $0x14] sm:$0xf]
      %v618 = vld [vmem:[%s4 + $0x18] sm:$0xf]
      %v619 = vld [vmem:[%s4 + $0x1c] sm:$0xf]
      %v620 = vld [vmem:[%s5] sm:$0x1]
      %v621 = vunpack.c.l.bf16 %v620
      %v622 = vlaneseq
      %v623 = vshrl.u32 %v622, 7
      %v624 = vsub.s32 0, %v623
      %v625 = vrot.slane %v621, %v624
      %v634 = vunpack.c.l.b16 %v612
      %v635 = vunpack.c.l.b16 %v613
      %v636 = vunpack.c.l.b16 %v614
      %v637 = vunpack.c.l.b16 %v615
      %v638 = vunpack.c.l.b16 %v616
      %v639 = vunpack.c.l.b16 %v617
      %v640 = vunpack.c.l.b16 %v618
      %v641 = vunpack.c.l.b16 %v619
      %v642 = vpack.c.b16 %v635, %v634
      %v643 = vpack.c.b16 %v637, %v636
      %v644 = vpack.c.b16 %v639, %v638
      %v645 = vpack.c.b16 %v641, %v640
      %v651 = vsel %vm566, %v530, 0
      %653 = vmatprep.subr.bf16.mxu0 0
      %654 = vmatpush1.bf16.msra.mxu0 %v642
      %655 = vmatprep.subr.bf16.mxu0 0
      %656 = vmatpush1.bf16.msra.mxu0 %v643
      %657 = vmatprep.subr.bf16.mxu0 0
      %658 = vmatpush1.bf16.msra.mxu0 %v644
      %659 = vmatprep.subr.bf16.mxu0 0
      %660 = vmatpush1.bf16.msra.mxu0 %v645
      %661 = vmatprep.subr.bf16.mxu0 0
      %662 = vmatpush1.bf16.msra.mxu0 0
      %663 = vmatprep.subr.bf16.mxu0 0
      %664 = vmatpush1.bf16.msra.mxu0 0
      %665 = vmatprep.subr.bf16.mxu0 0
      %666 = vmatpush1.bf16.msra.mxu0 0
      %667 = vmatprep.subr.bf16.mxu0 0
      %668 = vmatpush1.bf16.msra.mxu0 0
      %669 = vmatprep.subr.bf16.mxu0 0
      %670 = vmatpush1.bf16.msra.mxu0 0
      %671 = vmatprep.subr.bf16.mxu0 0
      %672 = vmatpush1.bf16.msra.mxu0 0
      %673 = vmatprep.subr.bf16.mxu0 0
      %674 = vmatpush1.bf16.msra.mxu0 0
      %675 = vmatprep.subr.bf16.mxu0 0
      %676 = vmatpush1.bf16.msra.mxu0 0
      %677 = vmatprep.subr.bf16.mxu0 0
      %678 = vmatpush1.bf16.msra.mxu0 0
      %679 = vmatprep.subr.bf16.mxu0 0
      %680 = vmatpush1.bf16.msra.mxu0 0
      %681 = vmatprep.subr.bf16.mxu0 0
      %682 = vmatpush1.bf16.msra.mxu0 0
      %683 = vmatprep.subr.bf16.mxu0 0
      %684 = vmatpush1.bf16.msra.mxu0 0
      %685 = vmatprep.mubr.bf16.mxu0 0
      %686 = vmatmul.mubr.bf16.gmra.mrb[0].mxu0 %v651
      %v687 = vpop.f32.mrb[0].mxu0
      %v688 = vadd.f32 %v625, %v687
      %v689 = vpop.f32.mrb[0].mxu0
      %v690 = vpop.f32.mrb[0].mxu0
      %v691 = vpop.f32.mrb[0].mxu0
      %692 = vdwg.mxu0
      %v693 = vpack.c.bf16 %v688, %v688
      %vm694 = vcmask 64512
      %v696 = vsel %vm694, %v611, 0
      %v699 = vsel %vm694, %v693, 0
      %701 = vmatprep.subr.bf16.mxu0 0
      %702 = vmatpush1.bf16.xpose.msra.mxu0 %v699
      %703 = vmatprep.subr.bf16.mxu0 0
      %704 = vmatpush1.bf16.xpose.msra.mxu0 0
      %705 = vmatprep.subr.bf16.mxu0 0
      %706 = vmatpush1.bf16.xpose.msra.mxu0 0
      %707 = vmatprep.subr.bf16.mxu0 0
      %708 = vmatpush1.bf16.xpose.msra.mxu0 0
      %709 = vmatprep.subr.bf16.mxu0 0
      %710 = vmatpush1.bf16.xpose.msra.mxu0 0
      %711 = vmatprep.subr.bf16.mxu0 0
      %712 = vmatpush1.bf16.xpose.msra.mxu0 0
      %713 = vmatprep.subr.bf16.mxu0 0
      %714 = vmatpush1.bf16.xpose.msra.mxu0 0
      %715 = vmatprep.subr.bf16.mxu0 0
      %716 = vmatpush1.bf16.xpose.msra.mxu0 0
      %717 = vmatprep.subr.bf16.mxu0 0
      %718 = vmatpush1.bf16.xpose.msra.mxu0 0
      %719 = vmatprep.subr.bf16.mxu0 0
      %720 = vmatpush1.bf16.xpose.msra.mxu0 0
      %721 = vmatprep.subr.bf16.mxu0 0
      %722 = vmatpush1.bf16.xpose.msra.mxu0 0
      %723 = vmatprep.subr.bf16.mxu0 0
      %724 = vmatpush1.bf16.xpose.msra.mxu0 0
      %725 = vmatprep.subr.bf16.mxu0 0
      %726 = vmatpush1.bf16.xpose.msra.mxu0 0
      %727 = vmatprep.subr.bf16.mxu0 0
      %728 = vmatpush1.bf16.xpose.msra.mxu0 0
      %729 = vmatprep.subr.bf16.mxu0 0
      %730 = vmatpush1.bf16.xpose.msra.mxu0 0
      %731 = vmatprep.subr.bf16.mxu0 0
      %732 = vmatpush1.bf16.xpose.msra.mxu0 0
      %733 = vmatprep.mubr.bf16.mxu0 0
      %734 = vmatmul.mubr.bf16.gmra.mrb[0].mxu0 %v696
      %v735 = vpop.f32.mrb[0].mxu0
      %v736 = vadd.f32 0.0, %v735
      %v737 = vpop.f32.mrb[0].mxu0
      %v738 = vpop.f32.mrb[0].mxu0
      %v739 = vpop.f32.mrb[0].mxu0
      %740 = vdwg.mxu0
      %vm741 = vcmask 57344
      %v742 = vsel %vm741, %v736, -inf
      %743 = vmax.xlane.f32.xlu0 %v742
      %v744 = vpop.xlane.xlu0 %743
      %v745 = vsub.f32 %v736, %v744
      %v746 = vmul.f32 %v745, 1.442695
      %v747 = vpow.pop %v746
      %v748 = vsel %vm741, %v747, 0.0
      %749 = vadd.xlane.f32.xlu0 %v748
      %v750 = vpop.xlane.xlu0 %749
      %v751 = vrcp.pop %v750
      %v752 = vmul.f32 %v747, %v751
      %v753 = vpack.c.bf16 %v752, %v752
      %755 = vrot.lane.b32.xlu0 %v693, 64
      %v756 = vpop.permute.xlu0 %755
      %v758 = vsel %vm694, %v753, 0
      %vm760 = vcmask 1043456
      %v762 = vsel %vm760, %v756, 0
      %764 = vmatprep.subr.bf16.mxu0 0
      %765 = vmatpush1.bf16.msra.mxu0 %v762
      %766 = vmatprep.subr.bf16.mxu0 0
      %767 = vmatpush1.bf16.msra.mxu0 0
      %768 = vmatprep.subr.bf16.mxu0 0
      %769 = vmatpush1.bf16.msra.mxu0 0
      %770 = vmatprep.subr.bf16.mxu0 0
      %771 = vmatpush1.bf16.msra.mxu0 0
      %772 = vmatprep.subr.bf16.mxu0 0
      %773 = vmatpush1.bf16.msra.mxu0 0
      %774 = vmatprep.subr.bf16.mxu0 0
      %775 = vmatpush1.bf16.msra.mxu0 0
      %776 = vmatprep.subr.bf16.mxu0 0
      %777 = vmatpush1.bf16.msra.mxu0 0
      %778 = vmatprep.subr.bf16.mxu0 0
      %779 = vmatpush1.bf16.msra.mxu0 0
      %780 = vmatprep.subr.bf16.mxu0 0
      %781 = vmatpush1.bf16.msra.mxu0 0
      %782 = vmatprep.subr.bf16.mxu0 0
      %783 = vmatpush1.bf16.msra.mxu0 0
      %784 = vmatprep.subr.bf16.mxu0 0
      %785 = vmatpush1.bf16.msra.mxu0 0
      %786 = vmatprep.subr.bf16.mxu0 0
      %787 = vmatpush1.bf16.msra.mxu0 0
      %788 = vmatprep.subr.bf16.mxu0 0
      %789 = vmatpush1.bf16.msra.mxu0 0
      %790 = vmatprep.subr.bf16.mxu0 0
      %791 = vmatpush1.bf16.msra.mxu0 0
      %792 = vmatprep.subr.bf16.mxu0 0
      %793 = vmatpush1.bf16.msra.mxu0 0
      %794 = vmatprep.subr.bf16.mxu0 0
      %795 = vmatpush1.bf16.msra.mxu0 0
      %796 = vmatprep.mubr.bf16.mxu0 0
      %797 = vmatmul.mubr.bf16.gmra.mrb[0].mxu0 %v758
      %v798 = vpop.f32.mrb[0].mxu0
      %v799 = vadd.f32 0.0, %v798
      %v800 = vpop.f32.mrb[0].mxu0
      %v801 = vpop.f32.mrb[0].mxu0
      %v802 = vpop.f32.mrb[0].mxu0
      %803 = vdwg.mxu0
      %805 = vrot.lane.b32.xlu0 %v611, 120
      %v806 = vpop.permute.xlu0 %805
      %807 = vrot.lane.b32.xlu0 %v693, 120
      %v808 = vpop.permute.xlu0 %807
      %v810 = vsel %vm694, %v806, 0
      %v813 = vsel %vm694, %v808, 0
      %815 = vmatprep.subr.bf16.mxu0 0
      %816 = vmatpush1.bf16.xpose.msra.mxu0 %v813
      %817 = vmatprep.subr.bf16.mxu0 0
      %818 = vmatpush1.bf16.xpose.msra.mxu0 0
      %819 = vmatprep.subr.bf16.mxu0 0
      %820 = vmatpush1.bf16.xpose.msra.mxu0 0
      %821 = vmatprep.subr.bf16.mxu0 0
      %822 = vmatpush1.bf16.xpose.msra.mxu0 0
      %823 = vmatprep.subr.bf16.mxu0 0
      %824 = vmatpush1.bf16.xpose.msra.mxu0 0
      %825 = vmatprep.subr.bf16.mxu0 0
      %826 = vmatpush1.bf16.xpose.msra.mxu0 0
      %827 = vmatprep.subr.bf16.mxu0 0
      %828 = vmatpush1.bf16.xpose.msra.mxu0 0
      %829 = vmatprep.subr.bf16.mxu0 0
      %830 = vmatpush1.bf16.xpose.msra.mxu0 0
      %831 = vmatprep.subr.bf16.mxu0 0
      %832 = vmatpush1.bf16.xpose.msra.mxu0 0
      %833 = vmatprep.subr.bf16.mxu0 0
      %834 = vmatpush1.bf16.xpose.msra.mxu0 0
      %835 = vmatprep.subr.bf16.mxu0 0
      %836 = vmatpush1.bf16.xpose.msra.mxu0 0
      %837 = vmatprep.subr.bf16.mxu0 0
      %838 = vmatpush1.bf16.xpose.msra.mxu0 0
      %839 = vmatprep.subr.bf16.mxu0 0
      %840 = vmatpush1.bf16.xpose.msra.mxu0 0
      %841 = vmatprep.subr.bf16.mxu0 0
      %842 = vmatpush1.bf16.xpose.msra.mxu0 0
      %843 = vmatprep.subr.bf16.mxu0 0
      %844 = vmatpush1.bf16.xpose.msra.mxu0 0
      %845 = vmatprep.subr.bf16.mxu0 0
      %846 = vmatpush1.bf16.xpose.msra.mxu0 0
      %847 = vmatprep.mubr.bf16.mxu0 0
      %848 = vmatmul.mubr.bf16.gmra.mrb[0].mxu0 %v810
      %v849 = vpop.f32.mrb[0].mxu0
      %v850 = vadd.f32 0.0, %v849
      %v851 = vpop.f32.mrb[0].mxu0
      %v852 = vpop.f32.mrb[0].mxu0
      %v853 = vpop.f32.mrb[0].mxu0
      %854 = vdwg.mxu0
      %v855 = vsel %vm741, %v850, -inf
      %856 = vmax.xlane.f32.xlu0 %v855
      %v857 = vpop.xlane.xlu0 %856
      %v858 = vsub.f32 %v850, %v857
      %v859 = vmul.f32 %v858, 1.442695
      %v860 = vpow.pop %v859
      %v861 = vsel %vm741, %v860, 0.0
      %862 = vadd.xlane.f32.xlu0 %v861
      %v863 = vpop.xlane.xlu0 %862
      %v864 = vrcp.pop %v863
      %v865 = vmul.f32 %v860, %v864
      %v866 = vpack.c.bf16 %v865, %v865
      %867 = vrot.lane.b32.xlu0 %v693, 56
      %v868 = vpop.permute.xlu0 %867
      %v870 = vsel %vm694, %v866, 0
      %v873 = vsel %vm760, %v868, 0
      %875 = vmatprep.subr.bf16.mxu0 0
      %876 = vmatpush1.bf16.msra.mxu0 %v873
      %877 = vmatprep.subr.bf16.mxu0 0
      %878 = vmatpush1.bf16.msra.mxu0 0
      %879 = vmatprep.subr.bf16.mxu0 0
      %880 = vmatpush1.bf16.msra.mxu0 0
      %881 = vmatprep.subr.bf16.mxu0 0
      %882 = vmatpush1.bf16.msra.mxu0 0
      %883 = vmatprep.subr.bf16.mxu0 0
      %884 = vmatpush1.bf16.msra.mxu0 0
      %885 = vmatprep.subr.bf16.mxu0 0
      %886 = vmatpush1.bf16.msra.mxu0 0
      %887 = vmatprep.subr.bf16.mxu0 0
      %888 = vmatpush1.bf16.msra.mxu0 0
      %889 = vmatprep.subr.bf16.mxu0 0
      %890 = vmatpush1.bf16.msra.mxu0 0
      %891 = vmatprep.subr.bf16.mxu0 0
      %892 = vmatpush1.bf16.msra.mxu0 0
      %893 = vmatprep.subr.bf16.mxu0 0
      %894 = vmatpush1.bf16.msra.mxu0 0
      %895 = vmatprep.subr.bf16.mxu0 0
      %896 = vmatpush1.bf16.msra.mxu0 0
      %897 = vmatprep.subr.bf16.mxu0 0
      %898 = vmatpush1.bf16.msra.mxu0 0
      %899 = vmatprep.subr.bf16.mxu0 0
      %900 = vmatpush1.bf16.msra.mxu0 0
      %901 = vmatprep.subr.bf16.mxu0 0
      %902 = vmatpush1.bf16.msra.mxu0 0
      %903 = vmatprep.subr.bf16.mxu0 0
      %904 = vmatpush1.bf16.msra.mxu0 0
      %905 = vmatprep.subr.bf16.mxu0 0
      %906 = vmatpush1.bf16.msra.mxu0 0
      %907 = vmatprep.mubr.bf16.mxu0 0
      %908 = vmatmul.mubr.bf16.gmra.mrb[0].mxu0 %v870
      %v909 = vpop.f32.mrb[0].mxu0
      %v910 = vadd.f32 0.0, %v909
      %v911 = vpop.f32.mrb[0].mxu0
      %v912 = vpop.f32.mrb[0].mxu0
      %v913 = vpop.f32.mrb[0].mxu0
      %914 = vdwg.mxu0
      %915 = vrot.lane.b32.xlu0 %v611, 112
      %v916 = vpop.permute.xlu0 %915
      %917 = vrot.lane.b32.xlu0 %v693, 112
      %v918 = vpop.permute.xlu0 %917
      %v920 = vsel %vm694, %v916, 0
      %v923 = vsel %vm694, %v918, 0
      %925 = vmatprep.subr.bf16.mxu0 0
      %926 = vmatpush1.bf16.xpose.msra.mxu0 %v923
      %927 = vmatprep.subr.bf16.mxu0 0
      %928 = vmatpush1.bf16.xpose.msra.mxu0 0
      %929 = vmatprep.subr.bf16.mxu0 0
      %930 = vmatpush1.bf16.xpose.msra.mxu0 0
      %931 = vmatprep.subr.bf16.mxu0 0
      %932 = vmatpush1.bf16.xpose.msra.mxu0 0
      %933 = vmatprep.subr.bf16.mxu0 0
      %934 = vmatpush1.bf16.xpose.msra.mxu0 0
      %935 = vmatprep.subr.bf16.mxu0 0
      %936 = vmatpush1.bf16.xpose.msra.mxu0 0
      %937 = vmatprep.subr.bf16.mxu0 0
      %938 = vmatpush1.bf16.xpose.msra.mxu0 0
      %939 = vmatprep.subr.bf16.mxu0 0
      %940 = vmatpush1.bf16.xpose.msra.mxu0 0
      %941 = vmatprep.subr.bf16.mxu0 0
      %942 = vmatpush1.bf16.xpose.msra.mxu0 0
      %943 = vmatprep.subr.bf16.mxu0 0
      %944 = vmatpush1.bf16.xpose.msra.mxu0 0
      %945 = vmatprep.subr.bf16.mxu0 0
      %946 = vmatpush1.bf16.xpose.msra.mxu0 0
      %947 = vmatprep.subr.bf16.mxu0 0
      %948 = vmatpush1.bf16.xpose.msra.mxu0 0
      %949 = vmatprep.subr.bf16.mxu0 0
      %950 = vmatpush1.bf16.xpose.msra.mxu0 0
      %951 = vmatprep.subr.bf16.mxu0 0
      %952 = vmatpush1.bf16.xpose.msra.mxu0 0
      %953 = vmatprep.subr.bf16.mxu0 0
      %954 = vmatpush1.bf16.xpose.msra.mxu0 0
      %955 = vmatprep.subr.bf16.mxu0 0
      %956 = vmatpush1.bf16.xpose.msra.mxu0 0
      %957 = vmatprep.mubr.bf16.mxu0 0
      %958 = vmatmul.mubr.bf16.gmra.mrb[0].mxu0 %v920
      %v959 = vpop.f32.mrb[0].mxu0
      %v960 = vadd.f32 0.0, %v959
      %v961 = vpop.f32.mrb[0].mxu0
      %v962 = vpop.f32.mrb[0].mxu0
      %v963 = vpop.f32.mrb[0].mxu0
      %964 = vdwg.mxu0
      %v965 = vsel %vm741, %v960, -inf
      %966 = vmax.xlane.f32.xlu0 %v965
      %v967 = vpop.xlane.xlu0 %966
      %v968 = vsub.f32 %v960, %v967
      %v969 = vmul.f32 %v968, 1.442695
      %v970 = vpow.pop %v969
      %v971 = vsel %vm741, %v970, 0.0
      %972 = vadd.xlane.f32.xlu0 %v971
      %v973 = vpop.xlane.xlu0 %972
      %v974 = vrcp.pop %v973
      %v975 = vmul.f32 %v970, %v974
      %v976 = vpack.c.bf16 %v975, %v975
      %977 = vrot.lane.b32.xlu0 %v693, 48
      %v978 = vpop.permute.xlu0 %977
      %v980 = vsel %vm694, %v976, 0
      %v983 = vsel %vm760, %v978, 0
      %985 = vmatprep.subr.bf16.mxu0 0
      %986 = vmatpush1.bf16.msra.mxu0 %v983
      %987 = vmatprep.subr.bf16.mxu0 0
      %988 = vmatpush1.bf16.msra.mxu0 0
      %989 = vmatprep.subr.bf16.mxu0 0
      %990 = vmatpush1.bf16.msra.mxu0 0
      %991 = vmatprep.subr.bf16.mxu0 0
      %992 = vmatpush1.bf16.msra.mxu0 0
      %993 = vmatprep.subr.bf16.mxu0 0
      %994 = vmatpush1.bf16.msra.mxu0 0
      %995 = vmatprep.subr.bf16.mxu0 0
      %996 = vmatpush1.bf16.msra.mxu0 0
      %997 = vmatprep.subr.bf16.mxu0 0
      %998 = vmatpush1.bf16.msra.mxu0 0
      %999 = vmatprep.subr.bf16.mxu0 0
      %1000 = vmatpush1.bf16.msra.mxu0 0
      %1001 = vmatprep.subr.bf16.mxu0 0
      %1002 = vmatpush1.bf16.msra.mxu0 0
      %1003 = vmatprep.subr.bf16.mxu0 0
      %1004 = vmatpush1.bf16.msra.mxu0 0
      %1005 = vmatprep.subr.bf16.mxu0 0
      %1006 = vmatpush1.bf16.msra.mxu0 0
      %1007 = vmatprep.subr.bf16.mxu0 0
      %1008 = vmatpush1.bf16.msra.mxu0 0
      %1009 = vmatprep.subr.bf16.mxu0 0
      %1010 = vmatpush1.bf16.msra.mxu0 0
      %1011 = vmatprep.subr.bf16.mxu0 0
      %1012 = vmatpush1.bf16.msra.mxu0 0
      %1013 = vmatprep.subr.bf16.mxu0 0
      %1014 = vmatpush1.bf16.msra.mxu0 0
      %1015 = vmatprep.subr.bf16.mxu0 0
      %1016 = vmatpush1.bf16.msra.mxu0 0
      %1017 = vmatprep.mubr.bf16.mxu0 0
      %1018 = vmatmul.mubr.bf16.gmra.mrb[0].mxu0 %v980
      %v1019 = vpop.f32.mrb[0].mxu0
      %v1020 = vadd.f32 0.0, %v1019
      %v1021 = vpop.f32.mrb[0].mxu0
      %v1022 = vpop.f32.mrb[0].mxu0
      %v1023 = vpop.f32.mrb[0].mxu0
      %1024 = vdwg.mxu0
      %1025 = vrot.lane.b32.xlu0 %v611, 104
      %v1026 = vpop.permute.xlu0 %1025
      %1027 = vrot.lane.b32.xlu0 %v693, 104
      %v1028 = vpop.permute.xlu0 %1027
      %v1030 = vsel %vm694, %v1026, 0
      %v1033 = vsel %vm694, %v1028, 0
      %1035 = vmatprep.subr.bf16.mxu0 0
      %1036 = vmatpush1.bf16.xpose.msra.mxu0 %v1033
      %1037 = vmatprep.subr.bf16.mxu0 0
      %1038 = vmatpush1.bf16.xpose.msra.mxu0 0
      %1039 = vmatprep.subr.bf16.mxu0 0
      %1040 = vmatpush1.bf16.xpose.msra.mxu0 0
      %1041 = vmatprep.subr.bf16.mxu0 0
      %1042 = vmatpush1.bf16.xpose.msra.mxu0 0
      %1043 = vmatprep.subr.bf16.mxu0 0
      %1044 = vmatpush1.bf16.xpose.msra.mxu0 0
      %1045 = vmatprep.subr.bf16.mxu0 0
      %1046 = vmatpush1.bf16.xpose.msra.mxu0 0
      %1047 = vmatprep.subr.bf16.mxu0 0
      %1048 = vmatpush1.bf16.xpose.msra.mxu0 0
      %1049 = vmatprep.subr.bf16.mxu0 0
      %1050 = vmatpush1.bf16.xpose.msra.mxu0 0
      %1051 = vmatprep.subr.bf16.mxu0 0
      %1052 = vmatpush1.bf16.xpose.msra.mxu0 0
      %1053 = vmatprep.subr.bf16.mxu0 0
      %1054 = vmatpush1.bf16.xpose.msra.mxu0 0
      %1055 = vmatprep.subr.bf16.mxu0 0
      %1056 = vmatpush1.bf16.xpose.msra.mxu0 0
      %1057 = vmatprep.subr.bf16.mxu0 0
      %1058 = vmatpush1.bf16.xpose.msra.mxu0 0
      %1059 = vmatprep.subr.bf16.mxu0 0
      %1060 = vmatpush1.bf16.xpose.msra.mxu0 0
      %1061 = vmatprep.subr.bf16.mxu0 0
      %1062 = vmatpush1.bf16.xpose.msra.mxu0 0
      %1063 = vmatprep.subr.bf16.mxu0 0
      %1064 = vmatpush1.bf16.xpose.msra.mxu0 0
      %1065 = vmatprep.subr.bf16.mxu0 0
      %1066 = vmatpush1.bf16.xpose.msra.mxu0 0
      %1067 = vmatprep.mubr.bf16.mxu0 0
      %1068 = vmatmul.mubr.bf16.gmra.mrb[0].mxu0 %v1030
      %v1069 = vpop.f32.mrb[0].mxu0
      %v1070 = vadd.f32 0.0, %v1069
      %v1071 = vpop.f32.mrb[0].mxu0
      %v1072 = vpop.f32.mrb[0].mxu0
      %v1073 = vpop.f32.mrb[0].mxu0
      %1074 = vdwg.mxu0
      %v1075 = vsel %vm741, %v1070, -inf
      %1076 = vmax.xlane.f32.xlu0 %v1075
      %v1077 = vpop.xlane.xlu0 %1076
      %v1078 = vsub.f32 %v1070, %v1077
      %v1079 = vmul.f32 %v1078, 1.442695
      %v1080 = vpow.pop %v1079
      %v1081 = vsel %vm741, %v1080, 0.0
      %1082 = vadd.xlane.f32.xlu0 %v1081
      %v1083 = vpop.xlane.xlu0 %1082
      %v1084 = vrcp.pop %v1083
      %v1085 = vmul.f32 %v1080, %v1084
      %v1086 = vpack.c.bf16 %v1085, %v1085
      %1087 = vrot.lane.b32.xlu0 %v693, 40
      %v1088 = vpop.permute.xlu0 %1087
      %v1090 = vsel %vm694, %v1086, 0
      %v1093 = vsel %vm760, %v1088, 0
      %1095 = vmatprep.subr.bf16.mxu0 0
      %1096 = vmatpush1.bf16.msra.mxu0 %v1093
      %1097 = vmatprep.subr.bf16.mxu0 0
      %1098 = vmatpush1.bf16.msra.mxu0 0
      %1099 = vmatprep.subr.bf16.mxu0 0
      %1100 = vmatpush1.bf16.msra.mxu0 0
      %1101 = vmatprep.subr.bf16.mxu0 0
      %1102 = vmatpush1.bf16.msra.mxu0 0
      %1103 = vmatprep.subr.bf16.mxu0 0
      %1104 = vmatpush1.bf16.msra.mxu0 0
      %1105 = vmatprep.subr.bf16.mxu0 0
      %1106 = vmatpush1.bf16.msra.mxu0 0
      %1107 = vmatprep.subr.bf16.mxu0 0
      %1108 = vmatpush1.bf16.msra.mxu0 0
      %1109 = vmatprep.subr.bf16.mxu0 0
      %1110 = vmatpush1.bf16.msra.mxu0 0
      %1111 = vmatprep.subr.bf16.mxu0 0
      %1112 = vmatpush1.bf16.msra.mxu0 0
      %1113 = vmatprep.subr.bf16.mxu0 0
      %1114 = vmatpush1.bf16.msra.mxu0 0
      %1115 = vmatprep.subr.bf16.mxu0 0
      %1116 = vmatpush1.bf16.msra.mxu0 0
      %1117 = vmatprep.subr.bf16.mxu0 0
      %1118 = vmatpush1.bf16.msra.mxu0 0
      %1119 = vmatprep.subr.bf16.mxu0 0
      %1120 = vmatpush1.bf16.msra.mxu0 0
      %1121 = vmatprep.subr.bf16.mxu0 0
      %1122 = vmatpush1.bf16.msra.mxu0 0
      %1123 = vmatprep.subr.bf16.mxu0 0
      %1124 = vmatpush1.bf16.msra.mxu0 0
      %1125 = vmatprep.subr.bf16.mxu0 0
      %1126 = vmatpush1.bf16.msra.mxu0 0
      %1127 = vmatprep.mubr.bf16.mxu0 0
      %1128 = vmatmul.mubr.bf16.gmra.mrb[0].mxu0 %v1090
      %v1129 = vpop.f32.mrb[0].mxu0
      %v1130 = vadd.f32 0.0, %v1129
      %v1131 = vpop.f32.mrb[0].mxu0
      %v1132 = vpop.f32.mrb[0].mxu0
      %v1133 = vpop.f32.mrb[0].mxu0
      %1134 = vdwg.mxu0
      %1135 = vrot.lane.b32.xlu0 %v611, 96
      %v1136 = vpop.permute.xlu0 %1135
      %1137 = vrot.lane.b32.xlu0 %v693, 96
      %v1138 = vpop.permute.xlu0 %1137
      %v1140 = vsel %vm694, %v1136, 0
      %v1143 = vsel %vm694, %v1138, 0
      %1145 = vmatprep.subr.bf16.mxu0 0
      %1146 = vmatpush1.bf16.xpose.msra.mxu0 %v1143
      %1147 = vmatprep.subr.bf16.mxu0 0
      %1148 = vmatpush1.bf16.xpose.msra.mxu0 0
      %1149 = vmatprep.subr.bf16.mxu0 0
      %1150 = vmatpush1.bf16.xpose.msra.mxu0 0
      %1151 = vmatprep.subr.bf16.mxu0 0
      %1152 = vmatpush1.bf16.xpose.msra.mxu0 0
      %1153 = vmatprep.subr.bf16.mxu0 0
      %1154 = vmatpush1.bf16.xpose.msra.mxu0 0
      %1155 = vmatprep.subr.bf16.mxu0 0
      %1156 = vmatpush1.bf16.xpose.msra.mxu0 0
      %1157 = vmatprep.subr.bf16.mxu0 0
      %1158 = vmatpush1.bf16.xpose.msra.mxu0 0
      %1159 = vmatprep.subr.bf16.mxu0 0
      %1160 = vmatpush1.bf16.xpose.msra.mxu0 0
      %1161 = vmatprep.subr.bf16.mxu0 0
      %1162 = vmatpush1.bf16.xpose.msra.mxu0 0
      %1163 = vmatprep.subr.bf16.mxu0 0
      %1164 = vmatpush1.bf16.xpose.msra.mxu0 0
      %1165 = vmatprep.subr.bf16.mxu0 0
      %1166 = vmatpush1.bf16.xpose.msra.mxu0 0
      %1167 = vmatprep.subr.bf16.mxu0 0
      %1168 = vmatpush1.bf16.xpose.msra.mxu0 0
      %1169 = vmatprep.subr.bf16.mxu0 0
      %1170 = vmatpush1.bf16.xpose.msra.mxu0 0
      %1171 = vmatprep.subr.bf16.mxu0 0
      %1172 = vmatpush1.bf16.xpose.msra.mxu0 0
      %1173 = vmatprep.subr.bf16.mxu0 0
      %1174 = vmatpush1.bf16.xpose.msra.mxu0 0
      %1175 = vmatprep.subr.bf16.mxu0 0
      %1176 = vmatpush1.bf16.xpose.msra.mxu0 0
      %1177 = vmatprep.mubr.bf16.mxu0 0
      %1178 = vmatmul.mubr.bf16.gmra.mrb[0].mxu0 %v1140
      %v1179 = vpop.f32.mrb[0].mxu0
      %v1180 = vadd.f32 0.0, %v1179
      %v1181 = vpop.f32.mrb[0].mxu0
      %v1182 = vpop.f32.mrb[0].mxu0
      %v1183 = vpop.f32.mrb[0].mxu0
      %1184 = vdwg.mxu0
      %v1185 = vsel %vm741, %v1180, -inf
      %1186 = vmax.xlane.f32.xlu0 %v1185
      %v1187 = vpop.xlane.xlu0 %1186
      %v1188 = vsub.f32 %v1180, %v1187
      %v1189 = vmul.f32 %v1188, 1.442695
      %v1190 = vpow.pop %v1189
      %v1191 = vsel %vm741, %v1190, 0.0
      %1192 = vadd.xlane.f32.xlu0 %v1191
      %v1193 = vpop.xlane.xlu0 %1192
      %v1194 = vrcp.pop %v1193
      %v1195 = vmul.f32 %v1190, %v1194
      %v1196 = vpack.c.bf16 %v1195, %v1195
      %1197 = vrot.lane.b32.xlu0 %v693, 32
      %v1198 = vpop.permute.xlu0 %1197
      %v1200 = vsel %vm694, %v1196, 0
      %v1203 = vsel %vm760, %v1198, 0
      %1205 = vmatprep.subr.bf16.mxu0 0
      %1206 = vmatpush1.bf16.msra.mxu0 %v1203
      %1207 = vmatprep.subr.bf16.mxu0 0
      %1208 = vmatpush1.bf16.msra.mxu0 0
      %1209 = vmatprep.subr.bf16.mxu0 0
      %1210 = vmatpush1.bf16.msra.mxu0 0
      %1211 = vmatprep.subr.bf16.mxu0 0
      %1212 = vmatpush1.bf16.msra.mxu0 0
      %1213 = vmatprep.subr.bf16.mxu0 0
      %1214 = vmatpush1.bf16.msra.mxu0 0
      %1215 = vmatprep.subr.bf16.mxu0 0
      %1216 = vmatpush1.bf16.msra.mxu0 0
      %1217 = vmatprep.subr.bf16.mxu0 0
      %1218 = vmatpush1.bf16.msra.mxu0 0
      %1219 = vmatprep.subr.bf16.mxu0 0
      %1220 = vmatpush1.bf16.msra.mxu0 0
      %1221 = vmatprep.subr.bf16.mxu0 0
      %1222 = vmatpush1.bf16.msra.mxu0 0
      %1223 = vmatprep.subr.bf16.mxu0 0
      %1224 = vmatpush1.bf16.msra.mxu0 0
      %1225 = vmatprep.subr.bf16.mxu0 0
      %1226 = vmatpush1.bf16.msra.mxu0 0
      %1227 = vmatprep.subr.bf16.mxu0 0
      %1228 = vmatpush1.bf16.msra.mxu0 0
      %1229 = vmatprep.subr.bf16.mxu0 0
      %1230 = vmatpush1.bf16.msra.mxu0 0
      %1231 = vmatprep.subr.bf16.mxu0 0
      %1232 = vmatpush1.bf16.msra.mxu0 0
      %1233 = vmatprep.subr.bf16.mxu0 0
      %1234 = vmatpush1.bf16.msra.mxu0 0
      %1235 = vmatprep.subr.bf16.mxu0 0
      %1236 = vmatpush1.bf16.msra.mxu0 0
      %1237 = vmatprep.mubr.bf16.mxu0 0
      %1238 = vmatmul.mubr.bf16.gmra.mrb[0].mxu0 %v1200
      %v1239 = vpop.f32.mrb[0].mxu0
      %v1240 = vadd.f32 0.0, %v1239
      %v1241 = vpop.f32.mrb[0].mxu0
      %v1242 = vpop.f32.mrb[0].mxu0
      %v1243 = vpop.f32.mrb[0].mxu0
      %1244 = vdwg.mxu0
      %1245 = vrot.lane.b32.xlu0 %v611, 88
      %v1246 = vpop.permute.xlu0 %1245
      %1247 = vrot.lane.b32.xlu0 %v693, 88
      %v1248 = vpop.permute.xlu0 %1247
      %v1250 = vsel %vm694, %v1246, 0
      %v1253 = vsel %vm694, %v1248, 0
      %1255 = vmatprep.subr.bf16.mxu0 0
      %1256 = vmatpush1.bf16.xpose.msra.mxu0 %v1253
      %1257 = vmatprep.subr.bf16.mxu0 0
      %1258 = vmatpush1.bf16.xpose.msra.mxu0 0
      %1259 = vmatprep.subr.bf16.mxu0 0
      %1260 = vmatpush1.bf16.xpose.msra.mxu0 0
      %1261 = vmatprep.subr.bf16.mxu0 0
      %1262 = vmatpush1.bf16.xpose.msra.mxu0 0
      %1263 = vmatprep.subr.bf16.mxu0 0
      %1264 = vmatpush1.bf16.xpose.msra.mxu0 0
      %1265 = vmatprep.subr.bf16.mxu0 0
      %1266 = vmatpush1.bf16.xpose.msra.mxu0 0
      %1267 = vmatprep.subr.bf16.mxu0 0
      %1268 = vmatpush1.bf16.xpose.msra.mxu0 0
      %1269 = vmatprep.subr.bf16.mxu0 0
      %1270 = vmatpush1.bf16.xpose.msra.mxu0 0
      %1271 = vmatprep.subr.bf16.mxu0 0
      %1272 = vmatpush1.bf16.xpose.msra.mxu0 0
      %1273 = vmatprep.subr.bf16.mxu0 0
      %1274 = vmatpush1.bf16.xpose.msra.mxu0 0
      %1275 = vmatprep.subr.bf16.mxu0 0
      %1276 = vmatpush1.bf16.xpose.msra.mxu0 0
      %1277 = vmatprep.subr.bf16.mxu0 0
      %1278 = vmatpush1.bf16.xpose.msra.mxu0 0
      %1279 = vmatprep.subr.bf16.mxu0 0
      %1280 = vmatpush1.bf16.xpose.msra.mxu0 0
      %1281 = vmatprep.subr.bf16.mxu0 0
      %1282 = vmatpush1.bf16.xpose.msra.mxu0 0
      %1283 = vmatprep.subr.bf16.mxu0 0
      %1284 = vmatpush1.bf16.xpose.msra.mxu0 0
      %1285 = vmatprep.subr.bf16.mxu0 0
      %1286 = vmatpush1.bf16.xpose.msra.mxu0 0
      %1287 = vmatprep.mubr.bf16.mxu0 0
      %1288 = vmatmul.mubr.bf16.gmra.mrb[0].mxu0 %v1250
      %v1289 = vpop.f32.mrb[0].mxu0
      %v1290 = vadd.f32 0.0, %v1289
      %v1291 = vpop.f32.mrb[0].mxu0
      %v1292 = vpop.f32.mrb[0].mxu0
      %v1293 = vpop.f32.mrb[0].mxu0
      %1294 = vdwg.mxu0
      %v1295 = vsel %vm741, %v1290, -inf
      %1296 = vmax.xlane.f32.xlu0 %v1295
      %v1297 = vpop.xlane.xlu0 %1296
      %v1298 = vsub.f32 %v1290, %v1297
      %v1299 = vmul.f32 %v1298, 1.442695
      %v1300 = vpow.pop %v1299
      %v1301 = vsel %vm741, %v1300, 0.0
      %1302 = vadd.xlane.f32.xlu0 %v1301
      %v1303 = vpop.xlane.xlu0 %1302
      %v1304 = vrcp.pop %v1303
      %v1305 = vmul.f32 %v1300, %v1304
      %v1306 = vpack.c.bf16 %v1305, %v1305
      %1307 = vrot.lane.b32.xlu0 %v693, 24
      %v1308 = vpop.permute.xlu0 %1307
      %v1310 = vsel %vm694, %v1306, 0
      %v1313 = vsel %vm760, %v1308, 0
      %1315 = vmatprep.subr.bf16.mxu0 0
      %1316 = vmatpush1.bf16.msra.mxu0 %v1313
      %1317 = vmatprep.subr.bf16.mxu0 0
      %1318 = vmatpush1.bf16.msra.mxu0 0
      %1319 = vmatprep.subr.bf16.mxu0 0
      %1320 = vmatpush1.bf16.msra.mxu0 0
      %1321 = vmatprep.subr.bf16.mxu0 0
      %1322 = vmatpush1.bf16.msra.mxu0 0
      %1323 = vmatprep.subr.bf16.mxu0 0
      %1324 = vmatpush1.bf16.msra.mxu0 0
      %1325 = vmatprep.subr.bf16.mxu0 0
      %1326 = vmatpush1.bf16.msra.mxu0 0
      %1327 = vmatprep.subr.bf16.mxu0 0
      %1328 = vmatpush1.bf16.msra.mxu0 0
      %1329 = vmatprep.subr.bf16.mxu0 0
      %1330 = vmatpush1.bf16.msra.mxu0 0
      %1331 = vmatprep.subr.bf16.mxu0 0
      %1332 = vmatpush1.bf16.msra.mxu0 0
      %1333 = vmatprep.subr.bf16.mxu0 0
      %1334 = vmatpush1.bf16.msra.mxu0 0
      %1335 = vmatprep.subr.bf16.mxu0 0
      %1336 = vmatpush1.bf16.msra.mxu0 0
      %1337 = vmatprep.subr.bf16.mxu0 0
      %1338 = vmatpush1.bf16.msra.mxu0 0
      %1339 = vmatprep.subr.bf16.mxu0 0
      %1340 = vmatpush1.bf16.msra.mxu0 0
      %1341 = vmatprep.subr.bf16.mxu0 0
      %1342 = vmatpush1.bf16.msra.mxu0 0
      %1343 = vmatprep.subr.bf16.mxu0 0
      %1344 = vmatpush1.bf16.msra.mxu0 0
      %1345 = vmatprep.subr.bf16.mxu0 0
      %1346 = vmatpush1.bf16.msra.mxu0 0
      %1347 = vmatprep.mubr.bf16.mxu0 0
      %1348 = vmatmul.mubr.bf16.gmra.mrb[0].mxu0 %v1310
      %v1349 = vpop.f32.mrb[0].mxu0
      %v1350 = vadd.f32 0.0, %v1349
      %v1351 = vpop.f32.mrb[0].mxu0
      %v1352 = vpop.f32.mrb[0].mxu0
      %v1353 = vpop.f32.mrb[0].mxu0
      %1354 = vdwg.mxu0
      %1355 = vrot.lane.b32.xlu0 %v611, 80
      %v1356 = vpop.permute.xlu0 %1355
      %1357 = vrot.lane.b32.xlu0 %v693, 80
      %v1358 = vpop.permute.xlu0 %1357
      %v1360 = vsel %vm694, %v1356, 0
      %v1363 = vsel %vm694, %v1358, 0
      %1365 = vmatprep.subr.bf16.mxu0 0
      %1366 = vmatpush1.bf16.xpose.msra.mxu0 %v1363
      %1367 = vmatprep.subr.bf16.mxu0 0
      %1368 = vmatpush1.bf16.xpose.msra.mxu0 0
      %1369 = vmatprep.subr.bf16.mxu0 0
      %1370 = vmatpush1.bf16.xpose.msra.mxu0 0
      %1371 = vmatprep.subr.bf16.mxu0 0
      %1372 = vmatpush1.bf16.xpose.msra.mxu0 0
      %1373 = vmatprep.subr.bf16.mxu0 0
      %1374 = vmatpush1.bf16.xpose.msra.mxu0 0
      %1375 = vmatprep.subr.bf16.mxu0 0
      %1376 = vmatpush1.bf16.xpose.msra.mxu0 0
      %1377 = vmatprep.subr.bf16.mxu0 0
      %1378 = vmatpush1.bf16.xpose.msra.mxu0 0
      %1379 = vmatprep.subr.bf16.mxu0 0
      %1380 = vmatpush1.bf16.xpose.msra.mxu0 0
      %1381 = vmatprep.subr.bf16.mxu0 0
      %1382 = vmatpush1.bf16.xpose.msra.mxu0 0
      %1383 = vmatprep.subr.bf16.mxu0 0
      %1384 = vmatpush1.bf16.xpose.msra.mxu0 0
      %1385 = vmatprep.subr.bf16.mxu0 0
      %1386 = vmatpush1.bf16.xpose.msra.mxu0 0
      %1387 = vmatprep.subr.bf16.mxu0 0
      %1388 = vmatpush1.bf16.xpose.msra.mxu0 0
      %1389 = vmatprep.subr.bf16.mxu0 0
      %1390 = vmatpush1.bf16.xpose.msra.mxu0 0
      %1391 = vmatprep.subr.bf16.mxu0 0
      %1392 = vmatpush1.bf16.xpose.msra.mxu0 0
      %1393 = vmatprep.subr.bf16.mxu0 0
      %1394 = vmatpush1.bf16.xpose.msra.mxu0 0
      %1395 = vmatprep.subr.bf16.mxu0 0
      %1396 = vmatpush1.bf16.xpose.msra.mxu0 0
      %1397 = vmatprep.mubr.bf16.mxu0 0
      %1398 = vmatmul.mubr.bf16.gmra.mrb[0].mxu0 %v1360
      %v1399 = vpop.f32.mrb[0].mxu0
      %v1400 = vadd.f32 0.0, %v1399
      %v1401 = vpop.f32.mrb[0].mxu0
      %v1402 = vpop.f32.mrb[0].mxu0
      %v1403 = vpop.f32.mrb[0].mxu0
      %1404 = vdwg.mxu0
      %v1405 = vsel %vm741, %v1400, -inf
      %1406 = vmax.xlane.f32.xlu0 %v1405
      %v1407 = vpop.xlane.xlu0 %1406
      %v1408 = vsub.f32 %v1400, %v1407
      %v1409 = vmul.f32 %v1408, 1.442695
      %v1410 = vpow.pop %v1409
      %v1411 = vsel %vm741, %v1410, 0.0
      %1412 = vadd.xlane.f32.xlu0 %v1411
      %v1413 = vpop.xlane.xlu0 %1412
      %v1414 = vrcp.pop %v1413
      %v1415 = vmul.f32 %v1410, %v1414
      %v1416 = vpack.c.bf16 %v1415, %v1415
      %1417 = vrot.lane.b32.xlu0 %v693, 16
      %v1418 = vpop.permute.xlu0 %1417
      %v1420 = vsel %vm694, %v1416, 0
      %v1423 = vsel %vm760, %v1418, 0
      %1425 = vmatprep.subr.bf16.mxu0 0
      %1426 = vmatpush1.bf16.msra.mxu0 %v1423
      %1427 = vmatprep.subr.bf16.mxu0 0
      %1428 = vmatpush1.bf16.msra.mxu0 0
      %1429 = vmatprep.subr.bf16.mxu0 0
      %1430 = vmatpush1.bf16.msra.mxu0 0
      %1431 = vmatprep.subr.bf16.mxu0 0
      %1432 = vmatpush1.bf16.msra.mxu0 0
      %1433 = vmatprep.subr.bf16.mxu0 0
      %1434 = vmatpush1.bf16.msra.mxu0 0
      %1435 = vmatprep.subr.bf16.mxu0 0
      %1436 = vmatpush1.bf16.msra.mxu0 0
      %1437 = vmatprep.subr.bf16.mxu0 0
      %1438 = vmatpush1.bf16.msra.mxu0 0
      %1439 = vmatprep.subr.bf16.mxu0 0
      %1440 = vmatpush1.bf16.msra.mxu0 0
      %1441 = vmatprep.subr.bf16.mxu0 0
      %1442 = vmatpush1.bf16.msra.mxu0 0
      %1443 = vmatprep.subr.bf16.mxu0 0
      %1444 = vmatpush1.bf16.msra.mxu0 0
      %1445 = vmatprep.subr.bf16.mxu0 0
      %1446 = vmatpush1.bf16.msra.mxu0 0
      %1447 = vmatprep.subr.bf16.mxu0 0
      %1448 = vmatpush1.bf16.msra.mxu0 0
      %1449 = vmatprep.subr.bf16.mxu0 0
      %1450 = vmatpush1.bf16.msra.mxu0 0
      %1451 = vmatprep.subr.bf16.mxu0 0
      %1452 = vmatpush1.bf16.msra.mxu0 0
      %1453 = vmatprep.subr.bf16.mxu0 0
      %1454 = vmatpush1.bf16.msra.mxu0 0
      %1455 = vmatprep.subr.bf16.mxu0 0
      %1456 = vmatpush1.bf16.msra.mxu0 0
      %1457 = vmatprep.mubr.bf16.mxu0 0
      %1458 = vmatmul.mubr.bf16.gmra.mrb[0].mxu0 %v1420
      %v1459 = vpop.f32.mrb[0].mxu0
      %v1460 = vadd.f32 0.0, %v1459
      %v1461 = vpop.f32.mrb[0].mxu0
      %v1462 = vpop.f32.mrb[0].mxu0
      %v1463 = vpop.f32.mrb[0].mxu0
      %1464 = vdwg.mxu0
      %1465 = vrot.lane.b32.xlu0 %v611, 72
      %v1466 = vpop.permute.xlu0 %1465
      %1467 = vrot.lane.b32.xlu0 %v693, 72
      %v1468 = vpop.permute.xlu0 %1467
      %v1470 = vsel %vm694, %v1466, 0
      %v1473 = vsel %vm694, %v1468, 0
      %1475 = vmatprep.subr.bf16.mxu0 0
      %1476 = vmatpush1.bf16.xpose.msra.mxu0 %v1473
      %1477 = vmatprep.subr.bf16.mxu0 0
      %1478 = vmatpush1.bf16.xpose.msra.mxu0 0
      %1479 = vmatprep.subr.bf16.mxu0 0
      %1480 = vmatpush1.bf16.xpose.msra.mxu0 0
      %1481 = vmatprep.subr.bf16.mxu0 0
      %1482 = vmatpush1.bf16.xpose.msra.mxu0 0
      %1483 = vmatprep.subr.bf16.mxu0 0
      %1484 = vmatpush1.bf16.xpose.msra.mxu0 0
      %1485 = vmatprep.subr.bf16.mxu0 0
      %1486 = vmatpush1.bf16.xpose.msra.mxu0 0
      %1487 = vmatprep.subr.bf16.mxu0 0
      %1488 = vmatpush1.bf16.xpose.msra.mxu0 0
      %1489 = vmatprep.subr.bf16.mxu0 0
      %1490 = vmatpush1.bf16.xpose.msra.mxu0 0
      %1491 = vmatprep.subr.bf16.mxu0 0
      %1492 = vmatpush1.bf16.xpose.msra.mxu0 0
      %1493 = vmatprep.subr.bf16.mxu0 0
      %1494 = vmatpush1.bf16.xpose.msra.mxu0 0
      %1495 = vmatprep.subr.bf16.mxu0 0
      %1496 = vmatpush1.bf16.xpose.msra.mxu0 0
      %1497 = vmatprep.subr.bf16.mxu0 0
      %1498 = vmatpush1.bf16.xpose.msra.mxu0 0
      %1499 = vmatprep.subr.bf16.mxu0 0
      %1500 = vmatpush1.bf16.xpose.msra.mxu0 0
      %1501 = vmatprep.subr.bf16.mxu0 0
      %1502 = vmatpush1.bf16.xpose.msra.mxu0 0
      %1503 = vmatprep.subr.bf16.mxu0 0
      %1504 = vmatpush1.bf16.xpose.msra.mxu0 0
      %1505 = vmatprep.subr.bf16.mxu0 0
      %1506 = vmatpush1.bf16.xpose.msra.mxu0 0
      %1507 = vmatprep.mubr.bf16.mxu0 0
      %1508 = vmatmul.mubr.bf16.gmra.mrb[0].mxu0 %v1470
      %v1509 = vpop.f32.mrb[0].mxu0
      %v1510 = vadd.f32 0.0, %v1509
      %v1511 = vpop.f32.mrb[0].mxu0
      %v1512 = vpop.f32.mrb[0].mxu0
      %v1513 = vpop.f32.mrb[0].mxu0
      %1514 = vdwg.mxu0
      %v1515 = vsel %vm741, %v1510, -inf
      %1516 = vmax.xlane.f32.xlu0 %v1515
      %v1517 = vpop.xlane.xlu0 %1516
      %v1518 = vsub.f32 %v1510, %v1517
      %v1519 = vmul.f32 %v1518, 1.442695
      %v1520 = vpow.pop %v1519
      %v1521 = vsel %vm741, %v1520, 0.0
      %1522 = vadd.xlane.f32.xlu0 %v1521
      %v1523 = vpop.xlane.xlu0 %1522
      %v1524 = vrcp.pop %v1523
      %v1525 = vmul.f32 %v1520, %v1524
      %v1526 = vpack.c.bf16 %v1525, %v1525
      %1527 = vrot.lane.b32.xlu0 %v693, 8
      %v1528 = vpop.permute.xlu0 %1527
      %v1530 = vsel %vm694, %v1526, 0
      %v1533 = vsel %vm760, %v1528, 0
      %1535 = vmatprep.subr.bf16.mxu0 0
      %1536 = vmatpush1.bf16.msra.mxu0 %v1533
      %1537 = vmatprep.subr.bf16.mxu0 0
      %1538 = vmatpush1.bf16.msra.mxu0 0
      %1539 = vmatprep.subr.bf16.mxu0 0
      %1540 = vmatpush1.bf16.msra.mxu0 0
      %1541 = vmatprep.subr.bf16.mxu0 0
      %1542 = vmatpush1.bf16.msra.mxu0 0
      %1543 = vmatprep.subr.bf16.mxu0 0
      %1544 = vmatpush1.bf16.msra.mxu0 0
      %1545 = vmatprep.subr.bf16.mxu0 0
      %1546 = vmatpush1.bf16.msra.mxu0 0
      %1547 = vmatprep.subr.bf16.mxu0 0
      %1548 = vmatpush1.bf16.msra.mxu0 0
      %1549 = vmatprep.subr.bf16.mxu0 0
      %1550 = vmatpush1.bf16.msra.mxu0 0
      %1551 = vmatprep.subr.bf16.mxu0 0
      %1552 = vmatpush1.bf16.msra.mxu0 0
      %1553 = vmatprep.subr.bf16.mxu0 0
      %1554 = vmatpush1.bf16.msra.mxu0 0
      %1555 = vmatprep.subr.bf16.mxu0 0
      %1556 = vmatpush1.bf16.msra.mxu0 0
      %1557 = vmatprep.subr.bf16.mxu0 0
      %1558 = vmatpush1.bf16.msra.mxu0 0
      %1559 = vmatprep.subr.bf16.mxu0 0
      %1560 = vmatpush1.bf16.msra.mxu0 0
      %1561 = vmatprep.subr.bf16.mxu0 0
      %1562 = vmatpush1.bf16.msra.mxu0 0
      %1563 = vmatprep.subr.bf16.mxu0 0
      %1564 = vmatpush1.bf16.msra.mxu0 0
      %1565 = vmatprep.subr.bf16.mxu0 0
      %1566 = vmatpush1.bf16.msra.mxu0 0
      %1567 = vmatprep.mubr.bf16.mxu0 0
      %1568 = vmatmul.mubr.bf16.gmra.mrb[0].mxu0 %v1530
      %v1569 = vpop.f32.mrb[0].mxu0
      %v1570 = vadd.f32 0.0, %v1569
      %v1571 = vpop.f32.mrb[0].mxu0
      %v1572 = vpop.f32.mrb[0].mxu0
      %v1573 = vpop.f32.mrb[0].mxu0
      %1574 = vdwg.mxu0
      %1576 = vrot.lane.b32.xlu0 %v910, 8
      %v1577 = vpop.permute.xlu0 %1576
      %1580 = vrot.lane.b32.xlu0 %v1020, 16
      %v1581 = vpop.permute.xlu0 %1580
      %1584 = vrot.lane.b32.xlu0 %v1130, 24
      %v1585 = vpop.permute.xlu0 %1584
      %1588 = vrot.lane.b32.xlu0 %v1240, 32
      %v1589 = vpop.permute.xlu0 %1588
      %1592 = vrot.lane.b32.xlu0 %v1350, 40
      %v1593 = vpop.permute.xlu0 %1592
      %1596 = vrot.lane.b32.xlu0 %v1460, 48
      %v1597 = vpop.permute.xlu0 %1596
      %1600 = vrot.lane.b32.xlu0 %v1570, 56
      %v1601 = vpop.permute.xlu0 %1600
      %v1603 = vsel %vm694, %v799, %v1577
      %vm1604 = vcmask 130048
      %v1605 = vsel %vm1604, %v1603, %v1581
      %vm1606 = vcmask 195584
      %v1607 = vsel %vm1606, %v1605, %v1585
      %vm1608 = vcmask 261120
      %v1609 = vsel %vm1608, %v1607, %v1589
      %vm1610 = vcmask 326656
      %v1611 = vsel %vm1610, %v1609, %v1593
      %vm1612 = vcmask 392192
      %v1613 = vsel %vm1612, %v1611, %v1597
      %vm1614 = vcmask 457728
      %v1615 = vsel %vm1614, %v1613, %v1601
      %v1616 = vpack.c.bf16 %v1615, %v1615
      %v1617 = vld [vmem:[%s6] sm:$0xf]
      %v1618 = vld [vmem:[%s6 + $0x4] sm:$0xf]
      %v1619 = vld [vmem:[%s6 + $0x8] sm:$0xf]
      %v1620 = vld [vmem:[%s6 + $0xc] sm:$0xf]
      %v1621 = vld [vmem:[%s6 + $0x10] sm:$0xf]
      %v1622 = vld [vmem:[%s6 + $0x14] sm:$0xf]
      %v1623 = vld [vmem:[%s6 + $0x18] sm:$0xf]
      %v1624 = vld [vmem:[%s6 + $0x1c] sm:$0xf]
      %v1625 = vld [vmem:[%s7] sm:$0x1]
      %v1626 = vunpack.c.l.bf16 %v1625
      %v1635 = vunpack.c.l.b16 %v1617
      %v1636 = vunpack.c.l.b16 %v1618
      %v1637 = vunpack.c.l.b16 %v1619
      %v1638 = vunpack.c.l.b16 %v1620
      %v1639 = vunpack.c.l.b16 %v1621
      %v1640 = vunpack.c.l.b16 %v1622
      %v1641 = vunpack.c.l.b16 %v1623
      %v1642 = vunpack.c.l.b16 %v1624
      %v1643 = vpack.c.b16 %v1636, %v1635
      %v1644 = vpack.c.b16 %v1638, %v1637
      %v1645 = vpack.c.b16 %v1640, %v1639
      %v1646 = vpack.c.b16 %v1642, %v1641
      %v1652 = vsel %vm566, %v1616, 0
      %1654 = vmatprep.subr.bf16.mxu0 0
      %1655 = vmatpush1.bf16.msra.mxu0 %v1643
      %1656 = vmatprep.subr.bf16.mxu0 0
      %1657 = vmatpush1.bf16.msra.mxu0 %v1644
      %1658 = vmatprep.subr.bf16.mxu0 0
      %1659 = vmatpush1.bf16.msra.mxu0 %v1645
      %1660 = vmatprep.subr.bf16.mxu0 0
      %1661 = vmatpush1.bf16.msra.mxu0 %v1646
      %1662 = vmatprep.subr.bf16.mxu0 0
      %1663 = vmatpush1.bf16.msra.mxu0 0
      %1664 = vmatprep.subr.bf16.mxu0 0
      %1665 = vmatpush1.bf16.msra.mxu0 0
      %1666 = vmatprep.subr.bf16.mxu0 0
      %1667 = vmatpush1.bf16.msra.mxu0 0
      %1668 = vmatprep.subr.bf16.mxu0 0
      %1669 = vmatpush1.bf16.msra.mxu0 0
      %1670 = vmatprep.subr.bf16.mxu0 0
      %1671 = vmatpush1.bf16.msra.mxu0 0
      %1672 = vmatprep.subr.bf16.mxu0 0
      %1673 = vmatpush1.bf16.msra.mxu0 0
      %1674 = vmatprep.subr.bf16.mxu0 0
      %1675 = vmatpush1.bf16.msra.mxu0 0
      %1676 = vmatprep.subr.bf16.mxu0 0
      %1677 = vmatpush1.bf16.msra.mxu0 0
      %1678 = vmatprep.subr.bf16.mxu0 0
      %1679 = vmatpush1.bf16.msra.mxu0 0
      %1680 = vmatprep.subr.bf16.mxu0 0
      %1681 = vmatpush1.bf16.msra.mxu0 0
      %1682 = vmatprep.subr.bf16.mxu0 0
      %1683 = vmatpush1.bf16.msra.mxu0 0
      %1684 = vmatprep.subr.bf16.mxu0 0
      %1685 = vmatpush1.bf16.msra.mxu0 0
      %1686 = vmatprep.mubr.bf16.mxu0 0
      %1687 = vmatmul.mubr.bf16.gmra.mrb[0].mxu0 %v1652
      %v1688 = vpop.f32.mrb[0].mxu0
      %v1689 = vadd.f32 %v1626, %v1688
      %v1690 = vpop.f32.mrb[0].mxu0
      %v1691 = vpop.f32.mrb[0].mxu0
      %v1692 = vpop.f32.mrb[0].mxu0
      %1693 = vdwg.mxu0
      %v1694 = vunpack.c.l.bf16 %v531
      %v1695 = vadd.f32 %v1689, %v1694
      %v1696 = vld [vmem:[%s8] sm:$0x1]
      %v1697 = vunpack.c.l.bf16 %v1696
      %v1698 = vld [vmem:[%s9] sm:$0x1]
      %v1699 = vunpack.c.l.bf16 %v1698
      %vm1700 = vcmask 516096
      %v1701 = vsel %vm1700, %v1695, 0.0
      %1702 = vadd.xlane.f32.xlu0 %v1701
      %v1703 = vpop.xlane.xlu0 %1702
      %v1704 = vrcp.pop 64.0
      %v1705 = vmul.f32 %v1703, %v1704
      %v1706 = vsub.f32 %v1695, %v1705
      %v1707 = vmul.f32 %v1706, %v1706
      %v1708 = vsel %vm1700, %v1707, 0.0
      %1709 = vadd.xlane.f32.xlu0 %v1708
      %v1710 = vpop.xlane.xlu0 %1709
      %v1711 = vmul.f32 %v1710, %v1704
      %v1712 = vadd.f32 %v1711, 1e-05
      %v1713 = vrsqrt.pop %v1712
      %v1714 = vmul.f32 %v1706, %v1713
      %v1715 = vmul.f32 %v1714, %v1697
      %v1716 = vadd.f32 %v1715, %v1699
      %v1717 = vpack.c.bf16 %v1716, %v1716
      %v1718 = vld [vmem:[%s10] sm:$0xff]
      %v1719 = vld [vmem:[%s10 + $0x8] sm:$0xff]
      %v1720 = vld [vmem:[%s10 + $0x10] sm:$0xff]
      %v1721 = vld [vmem:[%s10 + $0x18] sm:$0xff]
      %v1722 = vld [vmem:[%s10 + $0x20] sm:$0xff]
      %v1723 = vld [vmem:[%s10 + $0x28] sm:$0xff]
      %v1724 = vld [vmem:[%s10 + $0x30] sm:$0xff]
      %v1725 = vld [vmem:[%s10 + $0x38] sm:$0xff]
      %v1726 = vld [vmem:[%s11] sm:$0x3]
      %v1727 = vunpack.c.l.bf16 %v1726
      %v1736 = vunpack.c.l.b16 %v1718
      %v1737 = vunpack.c.h.b16 %v1718
      %v1738 = vunpack.c.l.b16 %v1719
      %v1739 = vunpack.c.h.b16 %v1719
      %v1740 = vunpack.c.l.b16 %v1720
      %v1741 = vunpack.c.h.b16 %v1720
      %v1742 = vunpack.c.l.b16 %v1721
      %v1743 = vunpack.c.h.b16 %v1721
      %v1744 = vunpack.c.l.b16 %v1722
      %v1745 = vunpack.c.h.b16 %v1722
      %v1746 = vunpack.c.l.b16 %v1723
      %v1747 = vunpack.c.h.b16 %v1723
      %v1748 = vunpack.c.l.b16 %v1724
      %v1749 = vunpack.c.h.b16 %v1724
      %v1750 = vunpack.c.l.b16 %v1725
      %v1751 = vunpack.c.h.b16 %v1725
      %v1752 = vpack.c.b16 %v1738, %v1736
      %v1753 = vpack.c.b16 %v1739, %v1737
      %v1754 = vpack.c.b16 %v1742, %v1740
      %v1755 = vpack.c.b16 %v1743, %v1741
      %v1756 = vpack.c.b16 %v1746, %v1744
      %v1757 = vpack.c.b16 %v1747, %v1745
      %v1758 = vpack.c.b16 %v1750, %v1748
      %v1759 = vpack.c.b16 %v1751, %v1749
      %v1769 = vlaneseq
      %v1770 = vshrl.u32 %v1769, 7
      %v1771 = vsub.s32 0, %v1770
      %v1772 = vrot.slane %v1727, %v1771
      %v1773 = vlaneseq
      %v1774 = vshrl.u32 %v1773, 7
      %v1775 = vsub.s32 2, %v1774
      %v1776 = vrot.slane %v1727, %v1775
      %v1780 = vsel %vm566, %v1717, 0
      %1782 = vmatprep.subr.bf16.mxu0 %v1753
      %1783 = vmatpush1.bf16.msra.mxu0 %v1752
      %1784 = vmatprep.subr.bf16.mxu0 %v1755
      %1785 = vmatpush1.bf16.msra.mxu0 %v1754
      %1786 = vmatprep.subr.bf16.mxu0 %v1757
      %1787 = vmatpush1.bf16.msra.mxu0 %v1756
      %1788 = vmatprep.subr.bf16.mxu0 %v1759
      %1789 = vmatpush1.bf16.msra.mxu0 %v1758
      %1790 = vmatprep.subr.bf16.mxu0 0
      %1791 = vmatpush1.bf16.msra.mxu0 0
      %1792 = vmatprep.subr.bf16.mxu0 0
      %1793 = vmatpush1.bf16.msra.mxu0 0
      %1794 = vmatprep.subr.bf16.mxu0 0
      %1795 = vmatpush1.bf16.msra.mxu0 0
      %1796 = vmatprep.subr.bf16.mxu0 0
      %1797 = vmatpush1.bf16.msra.mxu0 0
      %1798 = vmatprep.subr.bf16.mxu0 0
      %1799 = vmatpush1.bf16.msra.mxu0 0
      %1800 = vmatprep.subr.bf16.mxu0 0
      %1801 = vmatpush1.bf16.msra.mxu0 0
      %1802 = vmatprep.subr.bf16.mxu0 0
      %1803 = vmatpush1.bf16.msra.mxu0 0
      %1804 = vmatprep.subr.bf16.mxu0 0
      %1805 = vmatpush1.bf16.msra.mxu0 0
      %1806 = vmatprep.subr.bf16.mxu0 0
      %1807 = vmatpush1.bf16.msra.mxu0 0
      %1808 = vmatprep.subr.bf16.mxu0 0
      %1809 = vmatpush1.bf16.msra.mxu0 0
      %1810 = vmatprep.subr.bf16.mxu0 0
      %1811 = vmatpush1.bf16.msra.mxu0 0
      %1812 = vmatprep.subr.bf16.mxu0 0
      %1813 = vmatpush1.bf16.msra.mxu0 0
      %1814 = vmatprep.mubr.bf16.mxu0 0
      %1815 = vmatmul.mubr.bf16.gmra.mrb[0].mxu0 %v1780
      %v1816 = vpop.f32.mrb[0].mxu0
      %v1817 = vadd.f32 %v1772, %v1816
      %v1818 = vpop.f32.mrb[0].mxu0
      %v1819 = vadd.f32 %v1776, %v1818
      %v1820 = vpop.f32.mrb[0].mxu0
      %v1821 = vpop.f32.mrb[0].mxu0
      %1822 = vdwg.mxu0
      %v1823 = vmul.f32 %v1817, 0.5
      %v1824 = vmul.f32 %v1819, 0.5
      %v1825 = vmul.f32 %v1817, 0.044715
      %v1826 = vmul.f32 %v1819, 0.044715
      %v1827 = vmul.f32 %v1825, %v1817
      %v1828 = vmul.f32 %v1826, %v1819
      %v1829 = vmul.f32 %v1827, %v1817
      %v1830 = vmul.f32 %v1828, %v1819
      %v1831 = vadd.f32 %v1817, %v1829
      %v1832 = vadd.f32 %v1819, %v1830
      %v1833 = vmul.f32 %v1831, 0.7978846
      %v1834 = vmul.f32 %v1832, 0.7978846
      %v1835 = vtanh.pop %v1833
      %v1836 = vtanh.pop %v1834
      %v1837 = vadd.f32 %v1835, 1.0
      %v1838 = vadd.f32 %v1836, 1.0
      %v1839 = vmul.f32 %v1823, %v1837
      %v1840 = vmul.f32 %v1824, %v1838
      %v1841 = vpack.c.bf16 %v1839, %v1839
      %v1842 = vpack.c.bf16 %v1840, %v1840
      %v1843 = vld [vmem:[%s12] sm:$0xf]
      %v1844 = vld [vmem:[%s12 + $0x4] sm:$0xf]
      %v1845 = vld [vmem:[%s12 + $0x8] sm:$0xf]
      %v1846 = vld [vmem:[%s12 + $0xc] sm:$0xf]
      %v1847 = vld [vmem:[%s12 + $0x10] sm:$0xf]
      %v1848 = vld [vmem:[%s12 + $0x14] sm:$0xf]
      %v1849 = vld [vmem:[%s12 + $0x18] sm:$0xf]
      %v1850 = vld [vmem:[%s12 + $0x1c] sm:$0xf]
      %v1851 = vld [vmem:[%s12 + $0x20] sm:$0xf]
      %v1852 = vld [vmem:[%s12 + $0x24] sm:$0xf]
      %v1853 = vld [vmem:[%s12 + $0x28] sm:$0xf]
      %v1854 = vld [vmem:[%s12 + $0x2c] sm:$0xf]
      %v1855 = vld [vmem:[%s12 + $0x30] sm:$0xf]
      %v1856 = vld [vmem:[%s12 + $0x34] sm:$0xf]
      %v1857 = vld [vmem:[%s12 + $0x38] sm:$0xf]
      %v1858 = vld [vmem:[%s12 + $0x3c] sm:$0xf]
      %v1859 = vld [vmem:[%s12 + $0x40] sm:$0xf]
      %v1860 = vld [vmem:[%s12 + $0x44] sm:$0xf]
      %v1861 = vld [vmem:[%s12 + $0x48] sm:$0xf]
      %v1862 = vld [vmem:[%s12 + $0x4c] sm:$0xf]
      %v1863 = vld [vmem:[%s12 + $0x50] sm:$0xf]
      %v1864 = vld [vmem:[%s12 + $0x54] sm:$0xf]
      %v1865 = vld [vmem:[%s12 + $0x58] sm:$0xf]
      %v1866 = vld [vmem:[%s12 + $0x5c] sm:$0xf]
      %v1867 = vld [vmem:[%s12 + $0x60] sm:$0xf]
      %v1868 = vld [vmem:[%s12 + $0x64] sm:$0xf]
      %v1869 = vld [vmem:[%s12 + $0x68] sm:$0xf]
      %v1870 = vld [vmem:[%s12 + $0x6c] sm:$0xf]
      %v1871 = vld [vmem:[%s12 + $0x70] sm:$0xf]
      %v1872 = vld [vmem:[%s12 + $0x74] sm:$0xf]
      %v1873 = vld [vmem:[%s12 + $0x78] sm:$0xf]
      %v1874 = vld [vmem:[%s12 + $0x7c] sm:$0xf]
      %v1875 = vld [vmem:[%s13] sm:$0x1]
      %v1876 = vunpack.c.l.bf16 %v1875
      %v1909 = vunpack.c.l.b16 %v1843
      %v1910 = vunpack.c.l.b16 %v1844
      %v1911 = vunpack.c.l.b16 %v1845
      %v1912 = vunpack.c.l.b16 %v1846
      %v1913 = vunpack.c.l.b16 %v1847
      %v1914 = vunpack.c.l.b16 %v1848
      %v1915 = vunpack.c.l.b16 %v1849
      %v1916 = vunpack.c.l.b16 %v1850
      %v1917 = vunpack.c.l.b16 %v1851
      %v1918 = vunpack.c.l.b16 %v1852
      %v1919 = vunpack.c.l.b16 %v1853
      %v1920 = vunpack.c.l.b16 %v1854
      %v1921 = vunpack.c.l.b16 %v1855
      %v1922 = vunpack.c.l.b16 %v1856
      %v1923 = vunpack.c.l.b16 %v1857
      %v1924 = vunpack.c.l.b16 %v1858
      %v1925 = vunpack.c.l.b16 %v1859
      %v1926 = vunpack.c.l.b16 %v1860
      %v1927 = vunpack.c.l.b16 %v1861
      %v1928 = vunpack.c.l.b16 %v1862
      %v1929 = vunpack.c.l.b16 %v1863
      %v1930 = vunpack.c.l.b16 %v1864
      %v1931 = vunpack.c.l.b16 %v1865
      %v1932 = vunpack.c.l.b16 %v1866
      %v1933 = vunpack.c.l.b16 %v1867
      %v1934 = vunpack.c.l.b16 %v1868
      %v1935 = vunpack.c.l.b16 %v1869
      %v1936 = vunpack.c.l.b16 %v1870
      %v1937 = vunpack.c.l.b16 %v1871
      %v1938 = vunpack.c.l.b16 %v1872
      %v1939 = vunpack.c.l.b16 %v1873
      %v1940 = vunpack.c.l.b16 %v1874
      %v1941 = vpack.c.b16 %v1910, %v1909
      %v1942 = vpack.c.b16 %v1912, %v1911
      %v1943 = vpack.c.b16 %v1914, %v1913
      %v1944 = vpack.c.b16 %v1916, %v1915
      %v1945 = vpack.c.b16 %v1918, %v1917
      %v1946 = vpack.c.b16 %v1920, %v1919
      %v1947 = vpack.c.b16 %v1922, %v1921
      %v1948 = vpack.c.b16 %v1924, %v1923
      %v1949 = vpack.c.b16 %v1926, %v1925
      %v1950 = vpack.c.b16 %v1928, %v1927
      %v1951 = vpack.c.b16 %v1930, %v1929
      %v1952 = vpack.c.b16 %v1932, %v1931
      %v1953 = vpack.c.b16 %v1934, %v1933
      %v1954 = vpack.c.b16 %v1936, %v1935
      %v1955 = vpack.c.b16 %v1938, %v1937
      %v1956 = vpack.c.b16 %v1940, %v1939
      %1973 = vmatprep.subr.bf16.mxu0 0
      %1974 = vmatpush1.bf16.msra.mxu0 %v1941
      %1975 = vmatprep.subr.bf16.mxu0 0
      %1976 = vmatpush1.bf16.msra.mxu0 %v1942
      %1977 = vmatprep.subr.bf16.mxu0 0
      %1978 = vmatpush1.bf16.msra.mxu0 %v1943
      %1979 = vmatprep.subr.bf16.mxu0 0
      %1980 = vmatpush1.bf16.msra.mxu0 %v1944
      %1981 = vmatprep.subr.bf16.mxu0 0
      %1982 = vmatpush1.bf16.msra.mxu0 %v1945
      %1983 = vmatprep.subr.bf16.mxu0 0
      %1984 = vmatpush1.bf16.msra.mxu0 %v1946
      %1985 = vmatprep.subr.bf16.mxu0 0
      %1986 = vmatpush1.bf16.msra.mxu0 %v1947
      %1987 = vmatprep.subr.bf16.mxu0 0
      %1988 = vmatpush1.bf16.msra.mxu0 %v1948
      %1989 = vmatprep.subr.bf16.mxu0 0
      %1990 = vmatpush1.bf16.msra.mxu0 %v1949
      %1991 = vmatprep.subr.bf16.mxu0 0
      %1992 = vmatpush1.bf16.msra.mxu0 %v1950
      %1993 = vmatprep.subr.bf16.mxu0 0
      %1994 = vmatpush1.bf16.msra.mxu0 %v1951
      %1995 = vmatprep.subr.bf16.mxu0 0
      %1996 = vmatpush1.bf16.msra.mxu0 %v1952
      %1997 = vmatprep.subr.bf16.mxu0 0
      %1998 = vmatpush1.bf16.msra.mxu0 %v1953
      %1999 = vmatprep.subr.bf16.mxu0 0
      %2000 = vmatpush1.bf16.msra.mxu0 %v1954
      %2001 = vmatprep.subr.bf16.mxu0 0
      %2002 = vmatpush1.bf16.msra.mxu0 %v1955
      %2003 = vmatprep.subr.bf16.mxu0 0
      %2004 = vmatpush1.bf16.msra.mxu0 %v1956
      %2005 = vmatprep.mubr.bf16.mxu0 %v1842
      %2006 = vmatmul.mubr.bf16.gmra.mrb[0].mxu0 %v1841
      %v2007 = vpop.f32.mrb[0].mxu0
      %v2008 = vadd.f32 %v1876, %v2007
      %v2009 = vpop.f32.mrb[0].mxu0
      %v2010 = vpop.f32.mrb[0].mxu0
      %v2011 = vpop.f32.mrb[0].mxu0
      %2012 = vdwg.mxu0
      %v2013 = vadd.f32 %v2008, %v1716
      %v2014 = vld [vmem:[%s14] sm:$0x1]
      %v2015 = vunpack.c.l.bf16 %v2014
      %v2016 = vld [vmem:[%s15] sm:$0x1]
      %v2017 = vunpack.c.l.bf16 %v2016
      %v2018 = vsel %vm1700, %v2013, 0.0
      %2019 = vadd.xlane.f32.xlu0 %v2018
      %v2020 = vpop.xlane.xlu0 %2019
      %v2021 = vmul.f32 %v2020, %v1704
      %v2022 = vsub.f32 %v2013, %v2021
      %v2023 = vmul.f32 %v2022, %v2022
      %v2024 = vsel %vm1700, %v2023, 0.0
      %2025 = vadd.xlane.f32.xlu0 %v2024
      %v2026 = vpop.xlane.xlu0 %2025
      %v2027 = vmul.f32 %v2026, %v1704
      %v2028 = vadd.f32 %v2027, 1e-05
      %v2029 = vrsqrt.pop %v2028
      %v2030 = vmul.f32 %v2022, %v2029
      %v2031 = vmul.f32 %v2030, %v2015
      %v2032 = vadd.f32 %v2031, %v2017
      %v2033 = vpack.c.bf16 %v2032, %v2032
      %vm2034 = vcmask 516096
      %vm2035 = vsmask.f32 256
      %vm2036 = vmand %vm2034, %vm2035
      %v2037 = vld [vmem:[%s528] sm:$0x1]
      %v2038 = vsel %vm2036, %v2033, %v2037
      %2039 = vst [vmem:[%s528] sm:$0x1] %v2038
      %p2040 = scmp.lt.s32.totalorder %s27, 1
      %s2041 = scalar_select %p2040, %s27, 1
      %s2042 = scalar_lea.vmem %s16, %s2041
      // Predicated region
      $region85: #{osfa_forward.16} parent=83 // pred_check
        %p2043 = pneg %p391
      $region86: #{osfa_forward.16} parent=83 // pred_check_branch
        %2045 = sbr.rel (%p2043) target = $region88
      $region87: #{osfa_forward.16} parent=83 // pred_region
        _
      $region88: #{osfa_forward.16} parent=83 // pred_fallthru
        _
    $region84: #{osfa_forward.16} parent=5 // pred_fallthru
      _
    %p2046 = scmp.le.s32.totalorder 2, %s22
    // Predicated region
    $region89: #{osfa_forward.16} parent=5 // pred_check
      %p2047 = pneg %p2046
    $region90: #{osfa_forward.16} parent=5 // pred_check_branch
      %2049 = sbr.rel (%p2047) target = $region92
    $region91: #{osfa_forward.16} parent=5 // pred_region
      %s2050 = ssub.s32 %s22, 2
      // Predicated region
      $region93: #{osfa_forward.16} parent=91 // pred_check
        %p2051 = pneg %p397
      $region94: #{osfa_forward.16} parent=91 // pred_check_branch
        %2053 = sbr.rel (%p2051) target = $region96
      $region95: #{osfa_forward.16} parent=91 // pred_region
        %p2054 = scmp.lt.s32.totalorder %s28, 1
        %s2055 = scalar_select %p2054, %s28, 1
        %s2056 = scalar_lea.vmem %s16, %s2055
      $region96: #{osfa_forward.16} parent=91 // pred_fallthru
        _
    $region92: #{osfa_forward.16} parent=5 // pred_fallthru
      _
  $region6: #{osfa_forward.16} parent=0 // loop_footer
    %s26 = sadd.s32 1, %s22
  $region7: #{osfa_forward.16} parent=0 // loop_footer_branch
    %21 = sbr.rel target = $region3
  $region8: #{osfa_forward.16} parent=0 // loop_exit
    _

// kernel: osfa_forward.13
$region0: #{osfa_forward.13}
  #allocation0 [shape = 'u32[]', space=smem, size = 0x4, offset = 0x4, fixed_abs, tag = 'smem constant byte address 0x4 - core index']
  #allocation1 [shape = 'u32[144,128]{1,0:T(1,128)}', space=vmem, size = 0x12000, scoped, tag = 'internal scratch']
  %s0 = inlined_call_operand.vmem [shape: bf16[2,1,64], index: 0, kind: input, shape index: {}]
  %s1 = inlined_call_operand.vmem [shape: bf16[2,16,64], index: 1, kind: input, shape index: {}]
  %s2 = inlined_call_operand.vmem [shape: bf16[64,64], index: 2, kind: input, shape index: {}]
  %s3 = inlined_call_operand.vmem [shape: bf16[1,64], index: 3, kind: input, shape index: {}]
  %s4 = inlined_call_operand.vmem [shape: bf16[64,128], index: 4, kind: input, shape index: {}]
  %s5 = inlined_call_operand.vmem [shape: bf16[1,128], index: 5, kind: input, shape index: {}]
  %s6 = inlined_call_operand.vmem [shape: bf16[64,64], index: 6, kind: input, shape index: {}]
  %s7 = inlined_call_operand.vmem [shape: bf16[1,64], index: 7, kind: input, shape index: {}]
  %s8 = inlined_call_operand.vmem [shape: bf16[1,64], index: 8, kind: input, shape index: {}]
  %s9 = inlined_call_operand.vmem [shape: bf16[1,64], index: 9, kind: input, shape index: {}]
  %s10 = inlined_call_operand.vmem [shape: bf16[64,256], index: 10, kind: input, shape index: {}]
  %s11 = inlined_call_operand.vmem [shape: bf16[1,256], index: 11, kind: input, shape index: {}]
  %s12 = inlined_call_operand.vmem [shape: bf16[256,64], index: 12, kind: input, shape index: {}]
  %s13 = inlined_call_operand.vmem [shape: bf16[1,64], index: 13, kind: input, shape index: {}]
  %s14 = inlined_call_operand.vmem [shape: bf16[1,64], index: 14, kind: input, shape index: {}]
  %s15 = inlined_call_operand.vmem [shape: bf16[1,64], index: 15, kind: input, shape index: {}]
  %s16 = inlined_call_operand.vmem [shape: bf16[2,1,64], index: 16, kind: output, shape index: {}]
  %s17 = sld [smem:[#allocation0]]
  $region97: #{osfa_forward.13} parent=0
    _
  %s19 = ssub.s32 1, %s17
  %s20 = scalar_select 0, %s19, %s17
  loop: start=0, step=1, limit=4
  $region2: #{osfa_forward.13} parent=0 // loop_pre_header
    _
  $region3: #{osfa_forward.13} parent=0 // loop_header
    %s22 = sphi 0, %s26
    %p23 = scmp.ge.s32.totalorder %s22, 4
    %s32 = sphi 0, %s34
    %s35 = sphi 0, %s32
    %s36 = sphi 0, %s35
    %s52 = sphi 0, %s36
    %s58 = sphi 0, %s60
    %s61 = sphi 0, %s58
    %s62 = sphi 0, %s61
    %s78 = sphi 0, %s62
    %s82 = sphi 0, %s82
    %s84 = sphi 0, %s82
    %s85 = sphi 0, %s84
    %s99 = sphi 0, %s85
    %s103 = sphi 0, %s103
    %s105 = sphi 0, %s103
    %s106 = sphi 0, %s105
    %s120 = sphi 0, %s106
    %s124 = sphi 0, %s124
    %s126 = sphi 0, %s124
    %s127 = sphi 0, %s126
    %s141 = sphi 0, %s127
    %s145 = sphi 0, %s145
    %s147 = sphi 0, %s145
    %s148 = sphi 0, %s147
    %s162 = sphi 0, %s148
    %s166 = sphi 0, %s166
    %s168 = sphi 0, %s166
    %s169 = sphi 0, %s168
    %s183 = sphi 0, %s169
    %s187 = sphi 0, %s187
    %s189 = sphi 0, %s187
    %s190 = sphi 0, %s189
    %s204 = sphi 0, %s190
    %s208 = sphi 0, %s208
    %s210 = sphi 0, %s208
    %s211 = sphi 0, %s210
    %s225 = sphi 0, %s211
    %s229 = sphi 0, %s229
    %s231 = sphi 0, %s229
    %s232 = sphi 0, %s231
    %s246 = sphi 0, %s232
    %s250 = sphi 0, %s250
    %s252 = sphi 0, %s250
    %s253 = sphi 0, %s252
    %s267 = sphi 0, %s253
    %s271 = sphi 0, %s271
    %s273 = sphi 0, %s271
    %s274 = sphi 0, %s273
    %s288 = sphi 0, %s274
    %s292 = sphi 0, %s292
    %s294 = sphi 0, %s292
    %s295 = sphi 0, %s294
    %s309 = sphi 0, %s295
    %s313 = sphi 0, %s313
    %s315 = sphi 0, %s313
    %s316 = sphi 0, %s315
    %s330 = sphi 0, %s316
    %s334 = sphi 0, %s334
    %s336 = sphi 0, %s334
    %s337 = sphi 0, %s336
    %s351 = sphi 0, %s337
    %s355 = sphi 0, %s355
    %s357 = sphi 0, %s355
    %s358 = sphi 0, %s357
    %s372 = sphi 0, %s358
    %s378 = sphi 0, %s380
    %s381 = sphi 0, %s378
    %s382 = sphi 0, %s381
    %s398 = sphi 0, %s382
  $region4: #{osfa_forward.13} parent=0 // loop_header_branch
    %25 = sbr.rel (%p23) target = $region8
  $region5: #{osfa_forward.13} parent=0 // loop_body
    %s27 = ssub.s32 %s22, 1
    %s28 = ssub.s32 %s22, 2
    %s29 = sadd.s32 %s22, 1
    %s30 = ssub.s32 %s22, %s29
    %p31 = scmp.eq.s32.totalorder %s30, 0
    %s33 = sadd.s32 %s32, 1
    %s34 = scalar_select %p31, %s32, %s33
    %p37 = pneg %p31
    %p38 = scmp.eq.s32.totalorder %s22, 1
    %p39 = por %p37, %p38
    %p40 = scmp.ne.s32.totalorder %s32, %s35
    %p41 = scmp.eq.s32.totalorder %s22, 0
    %p42 = por %p40, %p41
    %p43 = scmp.ne.s32.totalorder %s32, %s35
    %p44 = scmp.eq.s32.totalorder %s27, 1
    %p45 = por %p43, %p44
    %p46 = scmp.ne.s32.totalorder %s35, %s36
    %p47 = scmp.eq.s32.totalorder %s27, 0
    %p48 = por %p46, %p47
    %p49 = scmp.ne.s32.totalorder %s35, %s36
    %p50 = scmp.eq.s32.totalorder %s28, 1
    %p51 = por %p49, %p50
    %p53 = scmp.ne.s32.totalorder %s36, %s52
    %p54 = scmp.eq.s32.totalorder %s28, 0
    %p55 = por %p53, %p54
    %s56 = ssub.s32 %s22, %s29
    %p57 = scmp.eq.s32.totalorder %s56, 0
    %s59 = sadd.s32 %s58, 1
    %s60 = scalar_select %p57, %s58, %s59
    %p63 = pneg %p57
    %p64 = scmp.eq.s32.totalorder %s22, 1
    %p65 = por %p63, %p64
    %p66 = scmp.ne.s32.totalorder %s58, %s61
    %p67 = scmp.eq.s32.totalorder %s22, 0
    %p68 = por %p66, %p67
    %p69 = scmp.ne.s32.totalorder %s58, %s61
    %p70 = scmp.eq.s32.totalorder %s27, 1
    %p71 = por %p69, %p70
    %p72 = scmp.ne.s32.totalorder %s61, %s62
    %p73 = scmp.eq.s32.totalorder %s27, 0
    %p74 = por %p72, %p73
    %p75 = scmp.ne.s32.totalorder %s61, %s62
    %p76 = scmp.eq.s32.totalorder %s28, 1
    %p77 = por %p75, %p76
    %p79 = scmp.ne.s32.totalorder %s62, %s78
    %p80 = scmp.eq.s32.totalorder %s28, 0
    %p81 = por %p79, %p80
    %s83 = sadd.s32 %s82, 1
    %p86 = scmp.eq.s32.totalorder %s22, 1
    %p87 = scmp.ne.s32.totalorder %s82, %s84
    %p88 = scmp.eq.s32.totalorder %s22, 0
    %p89 = por %p87, %p88
    %p90 = scmp.ne.s32.totalorder %s82, %s84
    %p91 = scmp.eq.s32.totalorder %s27, 1
    %p92 = por %p90, %p91
    %p93 = scmp.ne.s32.totalorder %s84, %s85
    %p94 = scmp.eq.s32.totalorder %s27, 0
    %p95 = por %p93, %p94
    %p96 = scmp.ne.s32.totalorder %s84, %s85
    %p97 = scmp.eq.s32.totalorder %s28, 1
    %p98 = por %p96, %p97
    %p100 = scmp.ne.s32.totalorder %s85, %s99
    %p101 = scmp.eq.s32.totalorder %s28, 0
    %p102 = por %p100, %p101
    %s104 = sadd.s32 %s103, 1
    %p107 = scmp.eq.s32.totalorder %s22, 1
    %p108 = scmp.ne.s32.totalorder %s103, %s105
    %p109 = scmp.eq.s32.totalorder %s22, 0
    %p110 = por %p108, %p109
    %p111 = scmp.ne.s32.totalorder %s103, %s105
    %p112 = scmp.eq.s32.totalorder %s27, 1
    %p113 = por %p111, %p112
    %p114 = scmp.ne.s32.totalorder %s105, %s106
    %p115 = scmp.eq.s32.totalorder %s27, 0
    %p116 = por %p114, %p115
    %p117 = scmp.ne.s32.totalorder %s105, %s106
    %p118 = scmp.eq.s32.totalorder %s28, 1
    %p119 = por %p117, %p118
    %p121 = scmp.ne.s32.totalorder %s106, %s120
    %p122 = scmp.eq.s32.totalorder %s28, 0
    %p123 = por %p121, %p122
    %s125 = sadd.s32 %s124, 1
    %p128 = scmp.eq.s32.totalorder %s22, 1
    %p129 = scmp.ne.s32.totalorder %s124, %s126
    %p130 = scmp.eq.s32.totalorder %s22, 0
    %p131 = por %p129, %p130
    %p132 = scmp.ne.s32.totalorder %s124, %s126
    %p133 = scmp.eq.s32.totalorder %s27, 1
    %p134 = por %p132, %p133
    %p135 = scmp.ne.s32.totalorder %s126, %s127
    %p136 = scmp.eq.s32.totalorder %s27, 0
    %p137 = por %p135, %p136
    %p138 = scmp.ne.s32.totalorder %s126, %s127
    %p139 = scmp.eq.s32.totalorder %s28, 1
    %p140 = por %p138, %p139
    %p142 = scmp.ne.s32.totalorder %s127, %s141
    %p143 = scmp.eq.s32.totalorder %s28, 0
    %p144 = por %p142, %p143
    %s146 = sadd.s32 %s145, 1
    %p149 = scmp.eq.s32.totalorder %s22, 1
    %p150 = scmp.ne.s32.totalorder %s145, %s147
    %p151 = scmp.eq.s32.totalorder %s22, 0
    %p152 = por %p150, %p151
    %p153 = scmp.ne.s32.totalorder %s145, %s147
    %p154 = scmp.eq.s32.totalorder %s27, 1
    %p155 = por %p153, %p154
    %p156 = scmp.ne.s32.totalorder %s147, %s148
    %p157 = scmp.eq.s32.totalorder %s27, 0
    %p158 = por %p156, %p157
    %p159 = scmp.ne.s32.totalorder %s147, %s148
    %p160 = scmp.eq.s32.totalorder %s28, 1
    %p161 = por %p159, %p160
    %p163 = scmp.ne.s32.totalorder %s148, %s162
    %p164 = scmp.eq.s32.totalorder %s28, 0
    %p165 = por %p163, %p164
    %s167 = sadd.s32 %s166, 1
    %p170 = scmp.eq.s32.totalorder %s22, 1
    %p171 = scmp.ne.s32.totalorder %s166, %s168
    %p172 = scmp.eq.s32.totalorder %s22, 0
    %p173 = por %p171, %p172
    %p174 = scmp.ne.s32.totalorder %s166, %s168
    %p175 = scmp.eq.s32.totalorder %s27, 1
    %p176 = por %p174, %p175
    %p177 = scmp.ne.s32.totalorder %s168, %s169
    %p178 = scmp.eq.s32.totalorder %s27, 0
    %p179 = por %p177, %p178
    %p180 = scmp.ne.s32.totalorder %s168, %s169
    %p181 = scmp.eq.s32.totalorder %s28, 1
    %p182 = por %p180, %p181
    %p184 = scmp.ne.s32.totalorder %s169, %s183
    %p185 = scmp.eq.s32.totalorder %s28, 0
    %p186 = por %p184, %p185
    %s188 = sadd.s32 %s187, 1
    %p191 = scmp.eq.s32.totalorder %s22, 1
    %p192 = scmp.ne.s32.totalorder %s187, %s189
    %p193 = scmp.eq.s32.totalorder %s22, 0
    %p194 = por %p192, %p193
    %p195 = scmp.ne.s32.totalorder %s187, %s189
    %p196 = scmp.eq.s32.totalorder %s27, 1
    %p197 = por %p195, %p196
    %p198 = scmp.ne.s32.totalorder %s189, %s190
    %p199 = scmp.eq.s32.totalorder %s27, 0
    %p200 = por %p198, %p199
    %p201 = scmp.ne.s32.totalorder %s189, %s190
    %p202 = scmp.eq.s32.totalorder %s28, 1
    %p203 = por %p201, %p202
    %p205 = scmp.ne.s32.totalorder %s190, %s204
    %p206 = scmp.eq.s32.totalorder %s28, 0
    %p207 = por %p205, %p206
    %s209 = sadd.s32 %s208, 1
    %p212 = scmp.eq.s32.totalorder %s22, 1
    %p213 = scmp.ne.s32.totalorder %s208, %s210
    %p214 = scmp.eq.s32.totalorder %s22, 0
    %p215 = por %p213, %p214
    %p216 = scmp.ne.s32.totalorder %s208, %s210
    %p217 = scmp.eq.s32.totalorder %s27, 1
    %p218 = por %p216, %p217
    %p219 = scmp.ne.s32.totalorder %s210, %s211
    %p220 = scmp.eq.s32.totalorder %s27, 0
    %p221 = por %p219, %p220
    %p222 = scmp.ne.s32.totalorder %s210, %s211
    %p223 = scmp.eq.s32.totalorder %s28, 1
    %p224 = por %p222, %p223
    %p226 = scmp.ne.s32.totalorder %s211, %s225
    %p227 = scmp.eq.s32.totalorder %s28, 0
    %p228 = por %p226, %p227
    %s230 = sadd.s32 %s229, 1
    %p233 = scmp.eq.s32.totalorder %s22, 1
    %p234 = scmp.ne.s32.totalorder %s229, %s231
    %p235 = scmp.eq.s32.totalorder %s22, 0
    %p236 = por %p234, %p235
    %p237 = scmp.ne.s32.totalorder %s229, %s231
    %p238 = scmp.eq.s32.totalorder %s27, 1
    %p239 = por %p237, %p238
    %p240 = scmp.ne.s32.totalorder %s231, %s232
    %p241 = scmp.eq.s32.totalorder %s27, 0
    %p242 = por %p240, %p241
    %p243 = scmp.ne.s32.totalorder %s231, %s232
    %p244 = scmp.eq.s32.totalorder %s28, 1
    %p245 = por %p243, %p244
    %p247 = scmp.ne.s32.totalorder %s232, %s246
    %p248 = scmp.eq.s32.totalorder %s28, 0
    %p249 = por %p247, %p248
    %s251 = sadd.s32 %s250, 1
    %p254 = scmp.eq.s32.totalorder %s22, 1
    %p255 = scmp.ne.s32.totalorder %s250, %s252
    %p256 = scmp.eq.s32.totalorder %s22, 0
    %p257 = por %p255, %p256
    %p258 = scmp.ne.s32.totalorder %s250, %s252
    %p259 = scmp.eq.s32.totalorder %s27, 1
    %p260 = por %p258, %p259
    %p261 = scmp.ne.s32.totalorder %s252, %s253
    %p262 = scmp.eq.s32.totalorder %s27, 0
    %p263 = por %p261, %p262
    %p264 = scmp.ne.s32.totalorder %s252, %s253
    %p265 = scmp.eq.s32.totalorder %s28, 1
    %p266 = por %p264, %p265
    %p268 = scmp.ne.s32.totalorder %s253, %s267
    %p269 = scmp.eq.s32.totalorder %s28, 0
    %p270 = por %p268, %p269
    %s272 = sadd.s32 %s271, 1
    %p275 = scmp.eq.s32.totalorder %s22, 1
    %p276 = scmp.ne.s32.totalorder %s271, %s273
    %p277 = scmp.eq.s32.totalorder %s22, 0
    %p278 = por %p276, %p277
    %p279 = scmp.ne.s32.totalorder %s271, %s273
    %p280 = scmp.eq.s32.totalorder %s27, 1
    %p281 = por %p279, %p280
    %p282 = scmp.ne.s32.totalorder %s273, %s274
    %p283 = scmp.eq.s32.totalorder %s27, 0
    %p284 = por %p282, %p283
    %p285 = scmp.ne.s32.totalorder %s273, %s274
    %p286 = scmp.eq.s32.totalorder %s28, 1
    %p287 = por %p285, %p286
    %p289 = scmp.ne.s32.totalorder %s274, %s288
    %p290 = scmp.eq.s32.totalorder %s28, 0
    %p291 = por %p289, %p290
    %s293 = sadd.s32 %s292, 1
    %p296 = scmp.eq.s32.totalorder %s22, 1
    %p297 = scmp.ne.s32.totalorder %s292, %s294
    %p298 = scmp.eq.s32.totalorder %s22, 0
    %p299 = por %p297, %p298
    %p300 = scmp.ne.s32.totalorder %s292, %s294
    %p301 = scmp.eq.s32.totalorder %s27, 1
    %p302 = por %p300, %p301
    %p303 = scmp.ne.s32.totalorder %s294, %s295
    %p304 = scmp.eq.s32.totalorder %s27, 0
    %p305 = por %p303, %p304
    %p306 = scmp.ne.s32.totalorder %s294, %s295
    %p307 = scmp.eq.s32.totalorder %s28, 1
    %p308 = por %p306, %p307
    %p310 = scmp.ne.s32.totalorder %s295, %s309
    %p311 = scmp.eq.s32.totalorder %s28, 0
    %p312 = por %p310, %p311
    %s314 = sadd.s32 %s313, 1
    %p317 = scmp.eq.s32.totalorder %s22, 1
    %p318 = scmp.ne.s32.totalorder %s313, %s315
    %p319 = scmp.eq.s32.totalorder %s22, 0
    %p320 = por %p318, %p319
    %p321 = scmp.ne.s32.totalorder %s313, %s315
    %p322 = scmp.eq.s32.totalorder %s27, 1
    %p323 = por %p321, %p322
    %p324 = scmp.ne.s32.totalorder %s315, %s316
    %p325 = scmp.eq.s32.totalorder %s27, 0
    %p326 = por %p324, %p325
    %p327 = scmp.ne.s32.totalorder %s315, %s316
    %p328 = scmp.eq.s32.totalorder %s28, 1
    %p329 = por %p327, %p328
    %p331 = scmp.ne.s32.totalorder %s316, %s330
    %p332 = scmp.eq.s32.totalorder %s28, 0
    %p333 = por %p331, %p332
    %s335 = sadd.s32 %s334, 1
    %p338 = scmp.eq.s32.totalorder %s22, 1
    %p339 = scmp.ne.s32.totalorder %s334, %s336
    %p340 = scmp.eq.s32.totalorder %s22, 0
    %p341 = por %p339, %p340
    %p342 = scmp.ne.s32.totalorder %s334, %s336
    %p343 = scmp.eq.s32.totalorder %s27, 1
    %p344 = por %p342, %p343
    %p345 = scmp.ne.s32.totalorder %s336, %s337
    %p346 = scmp.eq.s32.totalorder %s27, 0
    %p347 = por %p345, %p346
    %p348 = scmp.ne.s32.totalorder %s336, %s337
    %p349 = scmp.eq.s32.totalorder %s28, 1
    %p350 = por %p348, %p349
    %p352 = scmp.ne.s32.totalorder %s337, %s351
    %p353 = scmp.eq.s32.totalorder %s28, 0
    %p354 = por %p352, %p353
    %s356 = sadd.s32 %s355, 1
    %p359 = scmp.eq.s32.totalorder %s22, 1
    %p360 = scmp.ne.s32.totalorder %s355, %s357
    %p361 = scmp.eq.s32.totalorder %s22, 0
    %p362 = por %p360, %p361
    %p363 = scmp.ne.s32.totalorder %s355, %s357
    %p364 = scmp.eq.s32.totalorder %s27, 1
    %p365 = por %p363, %p364
    %p366 = scmp.ne.s32.totalorder %s357, %s358
    %p367 = scmp.eq.s32.totalorder %s27, 0
    %p368 = por %p366, %p367
    %p369 = scmp.ne.s32.totalorder %s357, %s358
    %p370 = scmp.eq.s32.totalorder %s28, 1
    %p371 = por %p369, %p370
    %p373 = scmp.ne.s32.totalorder %s358, %s372
    %p374 = scmp.eq.s32.totalorder %s28, 0
    %p375 = por %p373, %p374
    %s376 = ssub.s32 %s22, %s29
    %p377 = scmp.eq.s32.totalorder %s376, 0
    %s379 = sadd.s32 %s378, 1
    %s380 = scalar_select %p377, %s378, %s379
    %p383 = pneg %p377
    %p384 = scmp.eq.s32.totalorder %s22, 1
    %p385 = por %p383, %p384
    %p386 = scmp.ne.s32.totalorder %s378, %s381
    %p387 = scmp.eq.s32.totalorder %s22, 0
    %p388 = por %p386, %p387
    %p389 = scmp.ne.s32.totalorder %s378, %s381
    %p390 = scmp.eq.s32.totalorder %s27, 1
    %p391 = por %p389, %p390
    %p392 = scmp.ne.s32.totalorder %s381, %s382
    %p393 = scmp.eq.s32.totalorder %s27, 0
    %p394 = por %p392, %p393
    %p395 = scmp.ne.s32.totalorder %s381, %s382
    %p396 = scmp.eq.s32.totalorder %s28, 1
    %p397 = por %p395, %p396
    %p399 = scmp.ne.s32.totalorder %s382, %s398
    %p400 = scmp.eq.s32.totalorder %s28, 0
    %p401 = por %p399, %p400
    %p402 = scmp.le.s32.totalorder 1, %s22
    %p403 = scmp.lt.s32.totalorder %s22, 3
    %p404 = pnand %p402, %p403
    %p405 = pneg %p404
    // Predicated region
    $region9: #{osfa_forward.13} parent=5 // pred_check
      _
    $region10: #{osfa_forward.13} parent=5 // pred_check_branch
      %407 = sbr.rel (%p404) target = $region12
    $region11: #{osfa_forward.13} parent=5 // pred_region
      %s408 = ssub.s32 %s22, 1
      // Predicated region
      $region13: #{osfa_forward.13} parent=11 // pred_check
        %p409 = pneg %p95
      $region14: #{osfa_forward.13} parent=11 // pred_check_branch
        %411 = sbr.rel (%p409) target = $region16
      $region15: #{osfa_forward.13} parent=11 // pred_region
        _
      $region16: #{osfa_forward.13} parent=11 // pred_fallthru
        _
      // Predicated region
      $region17: #{osfa_forward.13} parent=11 // pred_check
        %p412 = pneg %p116
      $region18: #{osfa_forward.13} parent=11 // pred_check_branch
        %414 = sbr.rel (%p412) target = $region20
      $region19: #{osfa_forward.13} parent=11 // pred_region
        _
      $region20: #{osfa_forward.13} parent=11 // pred_fallthru
        _
      // Predicated region
      $region21: #{osfa_forward.13} parent=11 // pred_check
        %p415 = pneg %p137
      $region22: #{osfa_forward.13} parent=11 // pred_check_branch
        %417 = sbr.rel (%p415) target = $region24
      $region23: #{osfa_forward.13} parent=11 // pred_region
        _
      $region24: #{osfa_forward.13} parent=11 // pred_fallthru
        _
      // Predicated region
      $region25: #{osfa_forward.13} parent=11 // pred_check
        %p418 = pneg %p158
      $region26: #{osfa_forward.13} parent=11 // pred_check_branch
        %420 = sbr.rel (%p418) target = $region28
      $region27: #{osfa_forward.13} parent=11 // pred_region
        _
      $region28: #{osfa_forward.13} parent=11 // pred_fallthru
        _
      // Predicated region
      $region29: #{osfa_forward.13} parent=11 // pred_check
        %p421 = pneg %p179
      $region30: #{osfa_forward.13} parent=11 // pred_check_branch
        %423 = sbr.rel (%p421) target = $region32
      $region31: #{osfa_forward.13} parent=11 // pred_region
        _
      $region32: #{osfa_forward.13} parent=11 // pred_fallthru
        _
      // Predicated region
      $region33: #{osfa_forward.13} parent=11 // pred_check
        %p424 = pneg %p200
      $region34: #{osfa_forward.13} parent=11 // pred_check_branch
        %426 = sbr.rel (%p424) target = $region36
      $region35: #{osfa_forward.13} parent=11 // pred_region
        _
      $region36: #{osfa_forward.13} parent=11 // pred_fallthru
        _
      // Predicated region
      $region37: #{osfa_forward.13} parent=11 // pred_check
        %p427 = pneg %p221
      $region38: #{osfa_forward.13} parent=11 // pred_check_branch
        %429 = sbr.rel (%p427) target = $region40
      $region39: #{osfa_forward.13} parent=11 // pred_region
        _
      $region40: #{osfa_forward.13} parent=11 // pred_fallthru
        _
      // Predicated region
      $region41: #{osfa_forward.13} parent=11 // pred_check
        %p430 = pneg %p242
      $region42: #{osfa_forward.13} parent=11 // pred_check_branch
        %432 = sbr.rel (%p430) target = $region44
      $region43: #{osfa_forward.13} parent=11 // pred_region
        _
      $region44: #{osfa_forward.13} parent=11 // pred_fallthru
        _
      // Predicated region
      $region45: #{osfa_forward.13} parent=11 // pred_check
        %p433 = pneg %p263
      $region46: #{osfa_forward.13} parent=11 // pred_check_branch
        %435 = sbr.rel (%p433) target = $region48
      $region47: #{osfa_forward.13} parent=11 // pred_region
        _
      $region48: #{osfa_forward.13} parent=11 // pred_fallthru
        _
      // Predicated region
      $region49: #{osfa_forward.13} parent=11 // pred_check
        %p436 = pneg %p284
      $region50: #{osfa_forward.13} parent=11 // pred_check_branch
        %438 = sbr.rel (%p436) target = $region52
      $region51: #{osfa_forward.13} parent=11 // pred_region
        _
      $region52: #{osfa_forward.13} parent=11 // pred_fallthru
        _
      // Predicated region
      $region53: #{osfa_forward.13} parent=11 // pred_check
        %p439 = pneg %p305
      $region54: #{osfa_forward.13} parent=11 // pred_check_branch
        %441 = sbr.rel (%p439) target = $region56
      $region55: #{osfa_forward.13} parent=11 // pred_region
        _
      $region56: #{osfa_forward.13} parent=11 // pred_fallthru
        _
      // Predicated region
      $region57: #{osfa_forward.13} parent=11 // pred_check
        %p442 = pneg %p326
      $region58: #{osfa_forward.13} parent=11 // pred_check_branch
        %444 = sbr.rel (%p442) target = $region60
      $region59: #{osfa_forward.13} parent=11 // pred_region
        _
      $region60: #{osfa_forward.13} parent=11 // pred_fallthru
        _
      // Predicated region
      $region61: #{osfa_forward.13} parent=11 // pred_check
        %p445 = pneg %p347
      $region62: #{osfa_forward.13} parent=11 // pred_check_branch
        %447 = sbr.rel (%p445) target = $region64
      $region63: #{osfa_forward.13} parent=11 // pred_region
        _
      $region64: #{osfa_forward.13} parent=11 // pred_fallthru
        _
      // Predicated region
      $region65: #{osfa_forward.13} parent=11 // pred_check
        %p448 = pneg %p368
      $region66: #{osfa_forward.13} parent=11 // pred_check_branch
        %450 = sbr.rel (%p448) target = $region68
      $region67: #{osfa_forward.13} parent=11 // pred_region
        _
      $region68: #{osfa_forward.13} parent=11 // pred_fallthru
        _
    $region12: #{osfa_forward.13} parent=5 // pred_fallthru
      _
    %p451 = scmp.lt.s32.totalorder %s22, 2
    // Predicated region
    $region69: #{osfa_forward.13} parent=5 // pred_check
      %p452 = pneg %p451
    $region70: #{osfa_forward.13} parent=5 // pred_check_branch
      %454 = sbr.rel (%p452) target = $region72
    $region71: #{osfa_forward.13} parent=5 // pred_region
      // Predicated region
      $region73: #{osfa_forward.13} parent=71 // pred_check
        %p455 = pneg %p42
      $region74: #{osfa_forward.13} parent=71 // pred_check_branch
        %457 = sbr.rel (%p455) target = $region76
      $region75: #{osfa_forward.13} parent=71 // pred_region
        %p458 = scmp.lt.s32.totalorder %s22, 1
        %s459 = scalar_select %p458, %s22, 1
        %s460 = scalar_lea.vmem %s0, %s459
      $region76: #{osfa_forward.13} parent=71 // pred_fallthru
        _
      // Predicated region
      $region77: #{osfa_forward.13} parent=71 // pred_check
        %p461 = pneg %p68
      $region78: #{osfa_forward.13} parent=71 // pred_check_branch
        %463 = sbr.rel (%p461) target = $region80
      $region79: #{osfa_forward.13} parent=71 // pred_region
        %p464 = scmp.lt.s32.totalorder %s22, 1
        %s465 = scalar_select %p464, %s22, 1
        %s466 = smul.addr %s465, 2
        %s467 = smul.addr %s466, 4
        %s468 = scalar_lea.vmem %s1, %s467
      $region80: #{osfa_forward.13} parent=71 // pred_fallthru
        _
    $region72: #{osfa_forward.13} parent=5 // pred_fallthru
      _
    %p469 = scmp.le.s32.totalorder 1, %s22
    %p470 = scmp.lt.s32.totalorder %s22, 3
    %p471 = pnand %p469, %p470
    %p472 = pneg %p471
    // Predicated region
    $region81: #{osfa_forward.13} parent=5 // pred_check
      _
    $region82: #{osfa_forward.13} parent=5 // pred_check_branch
      %474 = sbr.rel (%p471) target = $region84
    $region83: #{osfa_forward.13} parent=5 // pred_region
      %s475 = ssub.s32 %s22, 1
      %p476 = scmp.lt.s32.totalorder %s27, 1
      %s477 = scalar_select %p476, %s27, 1
      %s478 = scalar_lea.vmem %s0, %s477
      %p479 = pneg %p48
      %p480 = pneg %p45
      %p481 = scmp.lt.s32.totalorder %s27, 1
      %s482 = scalar_select %p481, %s27, 1
      %s483 = smul.addr %s482, 2
      %s484 = smul.addr %s483, 4
      %s485 = scalar_lea.vmem %s1, %s484
      %p486 = pneg %p74
      %p487 = pneg %p71
      %p488 = pneg %p95
      %p489 = pneg %p92
      %p490 = pneg %p116
      %p491 = pneg %p113
      %p492 = pneg %p137
      %p493 = pneg %p134
      %p494 = pneg %p158
      %p495 = pneg %p155
      %p496 = pneg %p179
      %p497 = pneg %p176
      %p498 = pneg %p200
      %p499 = pneg %p197
      %p500 = pneg %p221
      %p501 = pneg %p218
      %p502 = pneg %p242
      %p503 = pneg %p239
      %p504 = pneg %p263
      %p505 = pneg %p260
      %p506 = pneg %p284
      %p507 = pneg %p281
      %p508 = pneg %p305
      %p509 = pneg %p302
      %p510 = pneg %p326
      %p511 = pneg %p323
      %p512 = pneg %p347
      %p513 = pneg %p344
      %p514 = pneg %p368
      %p515 = pneg %p365
      %p516 = pneg %p394
      %p517 = pneg %p391
      %p518 = scmp.lt.s32.totalorder %s27, 1
      %s519 = scalar_select %p518, %s27, 1
      %s520 = scalar_lea.vmem %s16, %s519
      %p521 = scmp.lt.s32.totalorder %s27, 1
      %s522 = scalar_select %p521, %s27, 1
      %s523 = scalar_lea.vmem %s0, %s522
      %p524 = scmp.lt.s32.totalorder %s27, 1
      %s525 = scalar_select %p524, %s27, 1
      %s526 = smul.addr %s525, 2
      %s527 = smul.addr %s526, 4
      %s528 = scalar_lea.vmem %s1, %s527
      %p529 = scmp.lt.s32.totalorder %s27, 1
      %s530 = scalar_select %p529, %s27, 1
      %s531 = scalar_lea.vmem %s16, %s530
      %v533 = vld [vmem:[%s528] sm:$0xf]
      %v534 = vld [vmem:[%s528 + $0x4] sm:$0xf]
      %v535 = vld [vmem:[%s523] sm:$0x1]
      %v536 = vld [vmem:[%s2] sm:$0xf]
      %v537 = vld [vmem:[%s2 + $0x4] sm:$0xf]
      %v538 = vld [vmem:[%s2 + $0x8] sm:$0xf]
      %v539 = vld [vmem:[%s2 + $0xc] sm:$0xf]
      %v540 = vld [vmem:[%s2 + $0x10] sm:$0xf]
      %v541 = vld [vmem:[%s2 + $0x14] sm:$0xf]
      %v542 = vld [vmem:[%s2 + $0x18] sm:$0xf]
      %v543 = vld [vmem:[%s2 + $0x1c] sm:$0xf]
      %v544 = vld [vmem:[%s3] sm:$0x1]
      %v545 = vunpack.c.l.bf16 %v544
      %v554 = vunpack.c.l.b16 %v536
      %v555 = vunpack.c.l.b16 %v537
      %v556 = vunpack.c.l.b16 %v538
      %v557 = vunpack.c.l.b16 %v539
      %v558 = vunpack.c.l.b16 %v540
      %v559 = vunpack.c.l.b16 %v541
      %v560 = vunpack.c.l.b16 %v542
      %v561 = vunpack.c.l.b16 %v543
      %v562 = vpack.c.b16 %v555, %v554
      %v563 = vpack.c.b16 %v557, %v556
      %v564 = vpack.c.b16 %v559, %v558
      %v565 = vpack.c.b16 %v561, %v560
      %vm570 = vcmask 523264
      %v572 = vsel %vm570, %v535, 0
      %574 = vmatprep.subr.bf16.mxu0 0
      %575 = vmatpush1.bf16.msra.mxu0 %v562
      %576 = vmatprep.subr.bf16.mxu0 0
      %577 = vmatpush1.bf16.msra.mxu0 %v563
      %578 = vmatprep.subr.bf16.mxu0 0
      %579 = vmatpush1.bf16.msra.mxu0 %v564
      %580 = vmatprep.subr.bf16.mxu0 0
      %581 = vmatpush1.bf16.msra.mxu0 %v565
      %582 = vmatprep.subr.bf16.mxu0 0
      %583 = vmatpush1.bf16.msra.mxu0 0
      %584 = vmatprep.subr.bf16.mxu0 0
      %585 = vmatpush1.bf16.msra.mxu0 0
      %586 = vmatprep.subr.bf16.mxu0 0
      %587 = vmatpush1.bf16.msra.mxu0 0
      %588 = vmatprep.subr.bf16.mxu0 0
      %589 = vmatpush1.bf16.msra.mxu0 0
      %590 = vmatprep.subr.bf16.mxu0 0
      %591 = vmatpush1.bf16.msra.mxu0 0
      %592 = vmatprep.subr.bf16.mxu0 0
      %593 = vmatpush1.bf16.msra.mxu0 0
      %594 = vmatprep.subr.bf16.mxu0 0
      %595 = vmatpush1.bf16.msra.mxu0 0
      %596 = vmatprep.subr.bf16.mxu0 0
      %597 = vmatpush1.bf16.msra.mxu0 0
      %598 = vmatprep.subr.bf16.mxu0 0
      %599 = vmatpush1.bf16.msra.mxu0 0
      %600 = vmatprep.subr.bf16.mxu0 0
      %601 = vmatpush1.bf16.msra.mxu0 0
      %602 = vmatprep.subr.bf16.mxu0 0
      %603 = vmatpush1.bf16.msra.mxu0 0
      %604 = vmatprep.subr.bf16.mxu0 0
      %605 = vmatpush1.bf16.msra.mxu0 0
      %606 = vmatprep.mubr.bf16.mxu0 0
      %607 = vmatmul.mubr.bf16.gmra.mrb[0].mxu0 %v572
      %v608 = vpop.f32.mrb[0].mxu0
      %v609 = vadd.f32 %v545, %v608
      %v610 = vpop.f32.mrb[0].mxu0
      %v611 = vpop.f32.mrb[0].mxu0
      %v612 = vpop.f32.mrb[0].mxu0
      %613 = vdwg.mxu0
      %v614 = vmul.f32 %v609, 0.35355338
      %v615 = vpack.c.bf16 %v614, %v614
      %v616 = vld [vmem:[%s4] sm:$0xf]
      %v617 = vld [vmem:[%s4 + $0x4] sm:$0xf]
      %v618 = vld [vmem:[%s4 + $0x8] sm:$0xf]
      %v619 = vld [vmem:[%s4 + $0xc] sm:$0xf]
      %v620 = vld [vmem:[%s4 + $0x10] sm:$0xf]
      %v621 = vld [vmem:[%s4 + $0x14] sm:$0xf]
      %v622 = vld [vmem:[%s4 + $0x18] sm:$0xf]
      %v623 = vld [vmem:[%s4 + $0x1c] sm:$0xf]
      %v624 = vld [vmem:[%s5] sm:$0x1]
      %v625 = vunpack.c.l.bf16 %v624
      %v626 = vlaneseq
      %v627 = vshrl.u32 %v626, 7
      %v628 = vsub.s32 0, %v627
      %v629 = vrot.slane %v625, %v628
      %v632 = vunpack.c.l.b16 %v533
      %v633 = vunpack.c.l.b16 %v534
      %v634 = vpack.c.b16 %v633, %v632
      %v643 = vunpack.c.l.b16 %v616
      %v644 = vunpack.c.l.b16 %v617
      %v645 = vunpack.c.l.b16 %v618
      %v646 = vunpack.c.l.b16 %v619
      %v647 = vunpack.c.l.b16 %v620
      %v648 = vunpack.c.l.b16 %v621
      %v649 = vunpack.c.l.b16 %v622
      %v650 = vunpack.c.l.b16 %v623
      %v651 = vpack.c.b16 %v644, %v643
      %v652 = vpack.c.b16 %v646, %v645
      %v653 = vpack.c.b16 %v648, %v647
      %v654 = vpack.c.b16 %v650, %v649
      %v660 = vsel %vm570, %v634, 0
      %662 = vmatprep.subr.bf16.mxu0 0
      %663 = vmatpush1.bf16.msra.mxu0 %v651
      %664 = vmatprep.subr.bf16.mxu0 0
      %665 = vmatpush1.bf16.msra.mxu0 %v652
      %666 = vmatprep.subr.bf16.mxu0 0
      %667 = vmatpush1.bf16.msra.mxu0 %v653
      %668 = vmatprep.subr.bf16.mxu0 0
      %669 = vmatpush1.bf16.msra.mxu0 %v654
      %670 = vmatprep.subr.bf16.mxu0 0
      %671 = vmatpush1.bf16.msra.mxu0 0
      %672 = vmatprep.subr.bf16.mxu0 0
      %673 = vmatpush1.bf16.msra.mxu0 0
      %674 = vmatprep.subr.bf16.mxu0 0
      %675 = vmatpush1.bf16.msra.mxu0 0
      %676 = vmatprep.subr.bf16.mxu0 0
      %677 = vmatpush1.bf16.msra.mxu0 0
      %678 = vmatprep.subr.bf16.mxu0 0
      %679 = vmatpush1.bf16.msra.mxu0 0
      %680 = vmatprep.subr.bf16.mxu0 0
      %681 = vmatpush1.bf16.msra.mxu0 0
      %682 = vmatprep.subr.bf16.mxu0 0
      %683 = vmatpush1.bf16.msra.mxu0 0
      %684 = vmatprep.subr.bf16.mxu0 0
      %685 = vmatpush1.bf16.msra.mxu0 0
      %686 = vmatprep.subr.bf16.mxu0 0
      %687 = vmatpush1.bf16.msra.mxu0 0
      %688 = vmatprep.subr.bf16.mxu0 0
      %689 = vmatpush1.bf16.msra.mxu0 0
      %690 = vmatprep.subr.bf16.mxu0 0
      %691 = vmatpush1.bf16.msra.mxu0 0
      %692 = vmatprep.subr.bf16.mxu0 0
      %693 = vmatpush1.bf16.msra.mxu0 0
      %694 = vmatprep.mubr.bf16.mxu0 0
      %695 = vmatmul.mubr.bf16.gmra.mrb[0].mxu0 %v660
      %v696 = vpop.f32.mrb[0].mxu0
      %v697 = vadd.f32 %v629, %v696
      %v698 = vpop.f32.mrb[0].mxu0
      %v699 = vpop.f32.mrb[0].mxu0
      %v700 = vadd.f32 %v629, %v699
      %v701 = vpop.f32.mrb[0].mxu0
      %702 = vdwg.mxu0
      %v703 = vpack.c.bf16 %v700, %v697
      %vm704 = vcmask 64512
      %v706 = vsel %vm704, %v615, 0
      %v709 = vsel %vm704, %v703, 0
      %711 = vmatprep.subr.bf16.mxu0 0
      %712 = vmatpush1.bf16.xpose.msra.mxu0 %v709
      %713 = vmatprep.subr.bf16.mxu0 0
      %714 = vmatpush1.bf16.xpose.msra.mxu0 0
      %715 = vmatprep.subr.bf16.mxu0 0
      %716 = vmatpush1.bf16.xpose.msra.mxu0 0
      %717 = vmatprep.subr.bf16.mxu0 0
      %718 = vmatpush1.bf16.xpose.msra.mxu0 0
      %719 = vmatprep.subr.bf16.mxu0 0
      %720 = vmatpush1.bf16.xpose.msra.mxu0 0
      %721 = vmatprep.subr.bf16.mxu0 0
      %722 = vmatpush1.bf16.xpose.msra.mxu0 0
      %723 = vmatprep.subr.bf16.mxu0 0
      %724 = vmatpush1.bf16.xpose.msra.mxu0 0
      %725 = vmatprep.subr.bf16.mxu0 0
      %726 = vmatpush1.bf16.xpose.msra.mxu0 0
      %727 = vmatprep.subr.bf16.mxu0 0
      %728 = vmatpush1.bf16.xpose.msra.mxu0 0
      %729 = vmatprep.subr.bf16.mxu0 0
      %730 = vmatpush1.bf16.xpose.msra.mxu0 0
      %731 = vmatprep.subr.bf16.mxu0 0
      %732 = vmatpush1.bf16.xpose.msra.mxu0 0
      %733 = vmatprep.subr.bf16.mxu0 0
      %734 = vmatpush1.bf16.xpose.msra.mxu0 0
      %735 = vmatprep.subr.bf16.mxu0 0
      %736 = vmatpush1.bf16.xpose.msra.mxu0 0
      %737 = vmatprep.subr.bf16.mxu0 0
      %738 = vmatpush1.bf16.xpose.msra.mxu0 0
      %739 = vmatprep.subr.bf16.mxu0 0
      %740 = vmatpush1.bf16.xpose.msra.mxu0 0
      %741 = vmatprep.subr.bf16.mxu0 0
      %742 = vmatpush1.bf16.xpose.msra.mxu0 0
      %743 = vmatprep.mubr.bf16.mxu0 0
      %744 = vmatmul.mubr.bf16.gmra.mrb[0].mxu0 %v706
      %v745 = vpop.f32.mrb[0].mxu0
      %v746 = vadd.f32 0.0, %v745
      %v747 = vpop.f32.mrb[0].mxu0
      %v748 = vpop.f32.mrb[0].mxu0
      %v749 = vpop.f32.mrb[0].mxu0
      %750 = vdwg.mxu0
      %vm751 = vcmask 122880
      %v752 = vsel %vm751, %v746, -inf
      %753 = vmax.xlane.f32.xlu0 %v752
      %v754 = vpop.xlane.xlu0 %753
      %v755 = vsub.f32 %v746, %v754
      %v756 = vmul.f32 %v755, 1.442695
      %v757 = vpow.pop %v756
      %v758 = vsel %vm751, %v757, 0.0
      %759 = vadd.xlane.f32.xlu0 %v758
      %v760 = vpop.xlane.xlu0 %759
      %v761 = vrcp.pop %v760
      %v762 = vmul.f32 %v757, %v761
      %v763 = vpack.c.bf16 %v762, %v762
      %765 = vrot.lane.b32.xlu0 %v703, 64
      %v766 = vpop.permute.xlu0 %765
      %vm768 = vcmask 130048
      %v770 = vsel %vm768, %v763, 0
      %772 = vmatprep.subr.bf16.mxu0 0
      %773 = vmatpush1.bf16.msra.mxu0 %v766
      %774 = vmatprep.subr.bf16.mxu0 0
      %775 = vmatpush1.bf16.msra.mxu0 0
      %776 = vmatprep.subr.bf16.mxu0 0
      %777 = vmatpush1.bf16.msra.mxu0 0
      %778 = vmatprep.subr.bf16.mxu0 0
      %779 = vmatpush1.bf16.msra.mxu0 0
      %780 = vmatprep.subr.bf16.mxu0 0
      %781 = vmatpush1.bf16.msra.mxu0 0
      %782 = vmatprep.subr.bf16.mxu0 0
      %783 = vmatpush1.bf16.msra.mxu0 0
      %784 = vmatprep.subr.bf16.mxu0 0
      %785 = vmatpush1.bf16.msra.mxu0 0
      %786 = vmatprep.subr.bf16.mxu0 0
      %787 = vmatpush1.bf16.msra.mxu0 0
      %788 = vmatprep.subr.bf16.mxu0 0
      %789 = vmatpush1.bf16.msra.mxu0 0
      %790 = vmatprep.subr.bf16.mxu0 0
      %791 = vmatpush1.bf16.msra.mxu0 0
      %792 = vmatprep.subr.bf16.mxu0 0
      %793 = vmatpush1.bf16.msra.mxu0 0
      %794 = vmatprep.subr.bf16.mxu0 0
      %795 = vmatpush1.bf16.msra.mxu0 0
      %796 = vmatprep.subr.bf16.mxu0 0
      %797 = vmatpush1.bf16.msra.mxu0 0
      %798 = vmatprep.subr.bf16.mxu0 0
      %799 = vmatpush1.bf16.msra.mxu0 0
      %800 = vmatprep.subr.bf16.mxu0 0
      %801 = vmatpush1.bf16.msra.mxu0 0
      %802 = vmatprep.subr.bf16.mxu0 0
      %803 = vmatpush1.bf16.msra.mxu0 0
      %804 = vmatprep.mubr.bf16.mxu0 0
      %805 = vmatmul.mubr.bf16.gmra.mrb[0].mxu0 %v770
      %v806 = vpop.f32.mrb[0].mxu0
      %v807 = vadd.f32 0.0, %v806
      %v808 = vpop.f32.mrb[0].mxu0
      %v809 = vpop.f32.mrb[0].mxu0
      %v810 = vpop.f32.mrb[0].mxu0
      %811 = vdwg.mxu0
      %813 = vrot.lane.b32.xlu0 %v615, 120
      %v814 = vpop.permute.xlu0 %813
      %815 = vrot.lane.b32.xlu0 %v703, 120
      %v816 = vpop.permute.xlu0 %815
      %v818 = vsel %vm704, %v814, 0
      %v821 = vsel %vm704, %v816, 0
      %823 = vmatprep.subr.bf16.mxu0 0
      %824 = vmatpush1.bf16.xpose.msra.mxu0 %v821
      %825 = vmatprep.subr.bf16.mxu0 0
      %826 = vmatpush1.bf16.xpose.msra.mxu0 0
      %827 = vmatprep.subr.bf16.mxu0 0
      %828 = vmatpush1.bf16.xpose.msra.mxu0 0
      %829 = vmatprep.subr.bf16.mxu0 0
      %830 = vmatpush1.bf16.xpose.msra.mxu0 0
      %831 = vmatprep.subr.bf16.mxu0 0
      %832 = vmatpush1.bf16.xpose.msra.mxu0 0
      %833 = vmatprep.subr.bf16.mxu0 0
      %834 = vmatpush1.bf16.xpose.msra.mxu0 0
      %835 = vmatprep.subr.bf16.mxu0 0
      %836 = vmatpush1.bf16.xpose.msra.mxu0 0
      %837 = vmatprep.subr.bf16.mxu0 0
      %838 = vmatpush1.bf16.xpose.msra.mxu0 0
      %839 = vmatprep.subr.bf16.mxu0 0
      %840 = vmatpush1.bf16.xpose.msra.mxu0 0
      %841 = vmatprep.subr.bf16.mxu0 0
      %842 = vmatpush1.bf16.xpose.msra.mxu0 0
      %843 = vmatprep.subr.bf16.mxu0 0
      %844 = vmatpush1.bf16.xpose.msra.mxu0 0
      %845 = vmatprep.subr.bf16.mxu0 0
      %846 = vmatpush1.bf16.xpose.msra.mxu0 0
      %847 = vmatprep.subr.bf16.mxu0 0
      %848 = vmatpush1.bf16.xpose.msra.mxu0 0
      %849 = vmatprep.subr.bf16.mxu0 0
      %850 = vmatpush1.bf16.xpose.msra.mxu0 0
      %851 = vmatprep.subr.bf16.mxu0 0
      %852 = vmatpush1.bf16.xpose.msra.mxu0 0
      %853 = vmatprep.subr.bf16.mxu0 0
      %854 = vmatpush1.bf16.xpose.msra.mxu0 0
      %855 = vmatprep.mubr.bf16.mxu0 0
      %856 = vmatmul.mubr.bf16.gmra.mrb[0].mxu0 %v818
      %v857 = vpop.f32.mrb[0].mxu0
      %v858 = vadd.f32 0.0, %v857
      %v859 = vpop.f32.mrb[0].mxu0
      %v860 = vpop.f32.mrb[0].mxu0
      %v861 = vpop.f32.mrb[0].mxu0
      %862 = vdwg.mxu0
      %v863 = vsel %vm751, %v858, -inf
      %864 = vmax.xlane.f32.xlu0 %v863
      %v865 = vpop.xlane.xlu0 %864
      %v866 = vsub.f32 %v858, %v865
      %v867 = vmul.f32 %v866, 1.442695
      %v868 = vpow.pop %v867
      %v869 = vsel %vm751, %v868, 0.0
      %870 = vadd.xlane.f32.xlu0 %v869
      %v871 = vpop.xlane.xlu0 %870
      %v872 = vrcp.pop %v871
      %v873 = vmul.f32 %v868, %v872
      %v874 = vpack.c.bf16 %v873, %v873
      %875 = vrot.lane.b32.xlu0 %v703, 56
      %v876 = vpop.permute.xlu0 %875
      %v879 = vsel %vm768, %v874, 0
      %881 = vmatprep.subr.bf16.mxu0 0
      %882 = vmatpush1.bf16.msra.mxu0 %v876
      %883 = vmatprep.subr.bf16.mxu0 0
      %884 = vmatpush1.bf16.msra.mxu0 0
      %885 = vmatprep.subr.bf16.mxu0 0
      %886 = vmatpush1.bf16.msra.mxu0 0
      %887 = vmatprep.subr.bf16.mxu0 0
      %888 = vmatpush1.bf16.msra.mxu0 0
      %889 = vmatprep.subr.bf16.mxu0 0
      %890 = vmatpush1.bf16.msra.mxu0 0
      %891 = vmatprep.subr.bf16.mxu0 0
      %892 = vmatpush1.bf16.msra.mxu0 0
      %893 = vmatprep.subr.bf16.mxu0 0
      %894 = vmatpush1.bf16.msra.mxu0 0
      %895 = vmatprep.subr.bf16.mxu0 0
      %896 = vmatpush1.bf16.msra.mxu0 0
      %897 = vmatprep.subr.bf16.mxu0 0
      %898 = vmatpush1.bf16.msra.mxu0 0
      %899 = vmatprep.subr.bf16.mxu0 0
      %900 = vmatpush1.bf16.msra.mxu0 0
      %901 = vmatprep.subr.bf16.mxu0 0
      %902 = vmatpush1.bf16.msra.mxu0 0
      %903 = vmatprep.subr.bf16.mxu0 0
      %904 = vmatpush1.bf16.msra.mxu0 0
      %905 = vmatprep.subr.bf16.mxu0 0
      %906 = vmatpush1.bf16.msra.mxu0 0
      %907 = vmatprep.subr.bf16.mxu0 0
      %908 = vmatpush1.bf16.msra.mxu0 0
      %909 = vmatprep.subr.bf16.mxu0 0
      %910 = vmatpush1.bf16.msra.mxu0 0
      %911 = vmatprep.subr.bf16.mxu0 0
      %912 = vmatpush1.bf16.msra.mxu0 0
      %913 = vmatprep.mubr.bf16.mxu0 0
      %914 = vmatmul.mubr.bf16.gmra.mrb[0].mxu0 %v879
      %v915 = vpop.f32.mrb[0].mxu0
      %v916 = vadd.f32 0.0, %v915
      %v917 = vpop.f32.mrb[0].mxu0
      %v918 = vpop.f32.mrb[0].mxu0
      %v919 = vpop.f32.mrb[0].mxu0
      %920 = vdwg.mxu0
      %921 = vrot.lane.b32.xlu0 %v615, 112
      %v922 = vpop.permute.xlu0 %921
      %923 = vrot.lane.b32.xlu0 %v703, 112
      %v924 = vpop.permute.xlu0 %923
      %v926 = vsel %vm704, %v922, 0
      %v929 = vsel %vm704, %v924, 0
      %931 = vmatprep.subr.bf16.mxu0 0
      %932 = vmatpush1.bf16.xpose.msra.mxu0 %v929
      %933 = vmatprep.subr.bf16.mxu0 0
      %934 = vmatpush1.bf16.xpose.msra.mxu0 0
      %935 = vmatprep.subr.bf16.mxu0 0
      %936 = vmatpush1.bf16.xpose.msra.mxu0 0
      %937 = vmatprep.subr.bf16.mxu0 0
      %938 = vmatpush1.bf16.xpose.msra.mxu0 0
      %939 = vmatprep.subr.bf16.mxu0 0
      %940 = vmatpush1.bf16.xpose.msra.mxu0 0
      %941 = vmatprep.subr.bf16.mxu0 0
      %942 = vmatpush1.bf16.xpose.msra.mxu0 0
      %943 = vmatprep.subr.bf16.mxu0 0
      %944 = vmatpush1.bf16.xpose.msra.mxu0 0
      %945 = vmatprep.subr.bf16.mxu0 0
      %946 = vmatpush1.bf16.xpose.msra.mxu0 0
      %947 = vmatprep.subr.bf16.mxu0 0
      %948 = vmatpush1.bf16.xpose.msra.mxu0 0
      %949 = vmatprep.subr.bf16.mxu0 0
      %950 = vmatpush1.bf16.xpose.msra.mxu0 0
      %951 = vmatprep.subr.bf16.mxu0 0
      %952 = vmatpush1.bf16.xpose.msra.mxu0 0
      %953 = vmatprep.subr.bf16.mxu0 0
      %954 = vmatpush1.bf16.xpose.msra.mxu0 0
      %955 = vmatprep.subr.bf16.mxu0 0
      %956 = vmatpush1.bf16.xpose.msra.mxu0 0
      %957 = vmatprep.subr.bf16.mxu0 0
      %958 = vmatpush1.bf16.xpose.msra.mxu0 0
      %959 = vmatprep.subr.bf16.mxu0 0
      %960 = vmatpush1.bf16.xpose.msra.mxu0 0
      %961 = vmatprep.subr.bf16.mxu0 0
      %962 = vmatpush1.bf16.xpose.msra.mxu0 0
      %963 = vmatprep.mubr.bf16.mxu0 0
      %964 = vmatmul.mubr.bf16.gmra.mrb[0].mxu0 %v926
      %v965 = vpop.f32.mrb[0].mxu0
      %v966 = vadd.f32 0.0, %v965
      %v967 = vpop.f32.mrb[0].mxu0
      %v968 = vpop.f32.mrb[0].mxu0
      %v969 = vpop.f32.mrb[0].mxu0
      %970 = vdwg.mxu0
      %v971 = vsel %vm751, %v966, -inf
      %972 = vmax.xlane.f32.xlu0 %v971
      %v973 = vpop.xlane.xlu0 %972
      %v974 = vsub.f32 %v966, %v973
      %v975 = vmul.f32 %v974, 1.442695
      %v976 = vpow.pop %v975
      %v977 = vsel %vm751, %v976, 0.0
      %978 = vadd.xlane.f32.xlu0 %v977
      %v979 = vpop.xlane.xlu0 %978
      %v980 = vrcp.pop %v979
      %v981 = vmul.f32 %v976, %v980
      %v982 = vpack.c.bf16 %v981, %v981
      %983 = vrot.lane.b32.xlu0 %v703, 48
      %v984 = vpop.permute.xlu0 %983
      %v987 = vsel %vm768, %v982, 0
      %989 = vmatprep.subr.bf16.mxu0 0
      %990 = vmatpush1.bf16.msra.mxu0 %v984
      %991 = vmatprep.subr.bf16.mxu0 0
      %992 = vmatpush1.bf16.msra.mxu0 0
      %993 = vmatprep.subr.bf16.mxu0 0
      %994 = vmatpush1.bf16.msra.mxu0 0
      %995 = vmatprep.subr.bf16.mxu0 0
      %996 = vmatpush1.bf16.msra.mxu0 0
      %997 = vmatprep.subr.bf16.mxu0 0
      %998 = vmatpush1.bf16.msra.mxu0 0
      %999 = vmatprep.subr.bf16.mxu0 0
      %1000 = vmatpush1.bf16.msra.mxu0 0
      %1001 = vmatprep.subr.bf16.mxu0 0
      %1002 = vmatpush1.bf16.msra.mxu0 0
      %1003 = vmatprep.subr.bf16.mxu0 0
      %1004 = vmatpush1.bf16.msra.mxu0 0
      %1005 = vmatprep.subr.bf16.mxu0 0
      %1006 = vmatpush1.bf16.msra.mxu0 0
      %1007 = vmatprep.subr.bf16.mxu0 0
      %1008 = vmatpush1.bf16.msra.mxu0 0
      %1009 = vmatprep.subr.bf16.mxu0 0
      %1010 = vmatpush1.bf16.msra.mxu0 0
      %1011 = vmatprep.subr.bf16.mxu0 0
      %1012 = vmatpush1.bf16.msra.mxu0 0
      %1013 = vmatprep.subr.bf16.mxu0 0
      %1014 = vmatpush1.bf16.msra.mxu0 0
      %1015 = vmatprep.subr.bf16.mxu0 0
      %1016 = vmatpush1.bf16.msra.mxu0 0
      %1017 = vmatprep.subr.bf16.mxu0 0
      %1018 = vmatpush1.bf16.msra.mxu0 0
      %1019 = vmatprep.subr.bf16.mxu0 0
      %1020 = vmatpush1.bf16.msra.mxu0 0
      %1021 = vmatprep.mubr.bf16.mxu0 0
      %1022 = vmatmul.mubr.bf16.gmra.mrb[0].mxu0 %v987
      %v1023 = vpop.f32.mrb[0].mxu0
      %v1024 = vadd.f32 0.0, %v1023
      %v1025 = vpop.f32.mrb[0].mxu0
      %v1026 = vpop.f32.mrb[0].mxu0
      %v1027 = vpop.f32.mrb[0].mxu0
      %1028 = vdwg.mxu0
      %1029 = vrot.lane.b32.xlu0 %v615, 104
      %v1030 = vpop.permute.xlu0 %1029
      %1031 = vrot.lane.b32.xlu0 %v703, 104
      %v1032 = vpop.permute.xlu0 %1031
      %v1034 = vsel %vm704, %v1030, 0
      %v1037 = vsel %vm704, %v1032, 0
      %1039 = vmatprep.subr.bf16.mxu0 0
      %1040 = vmatpush1.bf16.xpose.msra.mxu0 %v1037
      %1041 = vmatprep.subr.bf16.mxu0 0
      %1042 = vmatpush1.bf16.xpose.msra.mxu0 0
      %1043 = vmatprep.subr.bf16.mxu0 0
      %1044 = vmatpush1.bf16.xpose.msra.mxu0 0
      %1045 = vmatprep.subr.bf16.mxu0 0
      %1046 = vmatpush1.bf16.xpose.msra.mxu0 0
      %1047 = vmatprep.subr.bf16.mxu0 0
      %1048 = vmatpush1.bf16.xpose.msra.mxu0 0
      %1049 = vmatprep.subr.bf16.mxu0 0
      %1050 = vmatpush1.bf16.xpose.msra.mxu0 0
      %1051 = vmatprep.subr.bf16.mxu0 0
      %1052 = vmatpush1.bf16.xpose.msra.mxu0 0
      %1053 = vmatprep.subr.bf16.mxu0 0
      %1054 = vmatpush1.bf16.xpose.msra.mxu0 0
      %1055 = vmatprep.subr.bf16.mxu0 0
      %1056 = vmatpush1.bf16.xpose.msra.mxu0 0
      %1057 = vmatprep.subr.bf16.mxu0 0
      %1058 = vmatpush1.bf16.xpose.msra.mxu0 0
      %1059 = vmatprep.subr.bf16.mxu0 0
      %1060 = vmatpush1.bf16.xpose.msra.mxu0 0
      %1061 = vmatprep.subr.bf16.mxu0 0
      %1062 = vmatpush1.bf16.xpose.msra.mxu0 0
      %1063 = vmatprep.subr.bf16.mxu0 0
      %1064 = vmatpush1.bf16.xpose.msra.mxu0 0
      %1065 = vmatprep.subr.bf16.mxu0 0
      %1066 = vmatpush1.bf16.xpose.msra.mxu0 0
      %1067 = vmatprep.subr.bf16.mxu0 0
      %1068 = vmatpush1.bf16.xpose.msra.mxu0 0
      %1069 = vmatprep.subr.bf16.mxu0 0
      %1070 = vmatpush1.bf16.xpose.msra.mxu0 0
      %1071 = vmatprep.mubr.bf16.mxu0 0
      %1072 = vmatmul.mubr.bf16.gmra.mrb[0].mxu0 %v1034
      %v1073 = vpop.f32.mrb[0].mxu0
      %v1074 = vadd.f32 0.0, %v1073
      %v1075 = vpop.f32.mrb[0].mxu0
      %v1076 = vpop.f32.mrb[0].mxu0
      %v1077 = vpop.f32.mrb[0].mxu0
      %1078 = vdwg.mxu0
      %v1079 = vsel %vm751, %v1074, -inf
      %1080 = vmax.xlane.f32.xlu0 %v1079
      %v1081 = vpop.xlane.xlu0 %1080
      %v1082 = vsub.f32 %v1074, %v1081
      %v1083 = vmul.f32 %v1082, 1.442695
      %v1084 = vpow.pop %v1083
      %v1085 = vsel %vm751, %v1084, 0.0
      %1086 = vadd.xlane.f32.xlu0 %v1085
      %v1087 = vpop.xlane.xlu0 %1086
      %v1088 = vrcp.pop %v1087
      %v1089 = vmul.f32 %v1084, %v1088
      %v1090 = vpack.c.bf16 %v1089, %v1089
      %1091 = vrot.lane.b32.xlu0 %v703, 40
      %v1092 = vpop.permute.xlu0 %1091
      %v1095 = vsel %vm768, %v1090, 0
      %1097 = vmatprep.subr.bf16.mxu0 0
      %1098 = vmatpush1.bf16.msra.mxu0 %v1092
      %1099 = vmatprep.subr.bf16.mxu0 0
      %1100 = vmatpush1.bf16.msra.mxu0 0
      %1101 = vmatprep.subr.bf16.mxu0 0
      %1102 = vmatpush1.bf16.msra.mxu0 0
      %1103 = vmatprep.subr.bf16.mxu0 0
      %1104 = vmatpush1.bf16.msra.mxu0 0
      %1105 = vmatprep.subr.bf16.mxu0 0
      %1106 = vmatpush1.bf16.msra.mxu0 0
      %1107 = vmatprep.subr.bf16.mxu0 0
      %1108 = vmatpush1.bf16.msra.mxu0 0
      %1109 = vmatprep.subr.bf16.mxu0 0
      %1110 = vmatpush1.bf16.msra.mxu0 0
      %1111 = vmatprep.subr.bf16.mxu0 0
      %1112 = vmatpush1.bf16.msra.mxu0 0
      %1113 = vmatprep.subr.bf16.mxu0 0
      %1114 = vmatpush1.bf16.msra.mxu0 0
      %1115 = vmatprep.subr.bf16.mxu0 0
      %1116 = vmatpush1.bf16.msra.mxu0 0
      %1117 = vmatprep.subr.bf16.mxu0 0
      %1118 = vmatpush1.bf16.msra.mxu0 0
      %1119 = vmatprep.subr.bf16.mxu0 0
      %1120 = vmatpush1.bf16.msra.mxu0 0
      %1121 = vmatprep.subr.bf16.mxu0 0
      %1122 = vmatpush1.bf16.msra.mxu0 0
      %1123 = vmatprep.subr.bf16.mxu0 0
      %1124 = vmatpush1.bf16.msra.mxu0 0
      %1125 = vmatprep.subr.bf16.mxu0 0
      %1126 = vmatpush1.bf16.msra.mxu0 0
      %1127 = vmatprep.subr.bf16.mxu0 0
      %1128 = vmatpush1.bf16.msra.mxu0 0
      %1129 = vmatprep.mubr.bf16.mxu0 0
      %1130 = vmatmul.mubr.bf16.gmra.mrb[0].mxu0 %v1095
      %v1131 = vpop.f32.mrb[0].mxu0
      %v1132 = vadd.f32 0.0, %v1131
      %v1133 = vpop.f32.mrb[0].mxu0
      %v1134 = vpop.f32.mrb[0].mxu0
      %v1135 = vpop.f32.mrb[0].mxu0
      %1136 = vdwg.mxu0
      %1137 = vrot.lane.b32.xlu0 %v615, 96
      %v1138 = vpop.permute.xlu0 %1137
      %1139 = vrot.lane.b32.xlu0 %v703, 96
      %v1140 = vpop.permute.xlu0 %1139
      %v1142 = vsel %vm704, %v1138, 0
      %v1145 = vsel %vm704, %v1140, 0
      %1147 = vmatprep.subr.bf16.mxu0 0
      %1148 = vmatpush1.bf16.xpose.msra.mxu0 %v1145
      %1149 = vmatprep.subr.bf16.mxu0 0
      %1150 = vmatpush1.bf16.xpose.msra.mxu0 0
      %1151 = vmatprep.subr.bf16.mxu0 0
      %1152 = vmatpush1.bf16.xpose.msra.mxu0 0
      %1153 = vmatprep.subr.bf16.mxu0 0
      %1154 = vmatpush1.bf16.xpose.msra.mxu0 0
      %1155 = vmatprep.subr.bf16.mxu0 0
      %1156 = vmatpush1.bf16.xpose.msra.mxu0 0
      %1157 = vmatprep.subr.bf16.mxu0 0
      %1158 = vmatpush1.bf16.xpose.msra.mxu0 0
      %1159 = vmatprep.subr.bf16.mxu0 0
      %1160 = vmatpush1.bf16.xpose.msra.mxu0 0
      %1161 = vmatprep.subr.bf16.mxu0 0
      %1162 = vmatpush1.bf16.xpose.msra.mxu0 0
      %1163 = vmatprep.subr.bf16.mxu0 0
      %1164 = vmatpush1.bf16.xpose.msra.mxu0 0
      %1165 = vmatprep.subr.bf16.mxu0 0
      %1166 = vmatpush1.bf16.xpose.msra.mxu0 0
      %1167 = vmatprep.subr.bf16.mxu0 0
      %1168 = vmatpush1.bf16.xpose.msra.mxu0 0
      %1169 = vmatprep.subr.bf16.mxu0 0
      %1170 = vmatpush1.bf16.xpose.msra.mxu0 0
      %1171 = vmatprep.subr.bf16.mxu0 0
      %1172 = vmatpush1.bf16.xpose.msra.mxu0 0
      %1173 = vmatprep.subr.bf16.mxu0 0
      %1174 = vmatpush1.bf16.xpose.msra.mxu0 0
      %1175 = vmatprep.subr.bf16.mxu0 0
      %1176 = vmatpush1.bf16.xpose.msra.mxu0 0
      %1177 = vmatprep.subr.bf16.mxu0 0
      %1178 = vmatpush1.bf16.xpose.msra.mxu0 0
      %1179 = vmatprep.mubr.bf16.mxu0 0
      %1180 = vmatmul.mubr.bf16.gmra.mrb[0].mxu0 %v1142
      %v1181 = vpop.f32.mrb[0].mxu0
      %v1182 = vadd.f32 0.0, %v1181
      %v1183 = vpop.f32.mrb[0].mxu0
      %v1184 = vpop.f32.mrb[0].mxu0
      %v1185 = vpop.f32.mrb[0].mxu0
      %1186 = vdwg.mxu0
      %v1187 = vsel %vm751, %v1182, -inf
      %1188 = vmax.xlane.f32.xlu0 %v1187
      %v1189 = vpop.xlane.xlu0 %1188
      %v1190 = vsub.f32 %v1182, %v1189
      %v1191 = vmul.f32 %v1190, 1.442695
      %v1192 = vpow.pop %v1191
      %v1193 = vsel %vm751, %v1192, 0.0
      %1194 = vadd.xlane.f32.xlu0 %v1193
      %v1195 = vpop.xlane.xlu0 %1194
      %v1196 = vrcp.pop %v1195
      %v1197 = vmul.f32 %v1192, %v1196
      %v1198 = vpack.c.bf16 %v1197, %v1197
      %1199 = vrot.lane.b32.xlu0 %v703, 32
      %v1200 = vpop.permute.xlu0 %1199
      %v1203 = vsel %vm768, %v1198, 0
      %1205 = vmatprep.subr.bf16.mxu0 0
      %1206 = vmatpush1.bf16.msra.mxu0 %v1200
      %1207 = vmatprep.subr.bf16.mxu0 0
      %1208 = vmatpush1.bf16.msra.mxu0 0
      %1209 = vmatprep.subr.bf16.mxu0 0
      %1210 = vmatpush1.bf16.msra.mxu0 0
      %1211 = vmatprep.subr.bf16.mxu0 0
      %1212 = vmatpush1.bf16.msra.mxu0 0
      %1213 = vmatprep.subr.bf16.mxu0 0
      %1214 = vmatpush1.bf16.msra.mxu0 0
      %1215 = vmatprep.subr.bf16.mxu0 0
      %1216 = vmatpush1.bf16.msra.mxu0 0
      %1217 = vmatprep.subr.bf16.mxu0 0
      %1218 = vmatpush1.bf16.msra.mxu0 0
      %1219 = vmatprep.subr.bf16.mxu0 0
      %1220 = vmatpush1.bf16.msra.mxu0 0
      %1221 = vmatprep.subr.bf16.mxu0 0
      %1222 = vmatpush1.bf16.msra.mxu0 0
      %1223 = vmatprep.subr.bf16.mxu0 0
      %1224 = vmatpush1.bf16.msra.mxu0 0
      %1225 = vmatprep.subr.bf16.mxu0 0
      %1226 = vmatpush1.bf16.msra.mxu0 0
      %1227 = vmatprep.subr.bf16.mxu0 0
      %1228 = vmatpush1.bf16.msra.mxu0 0
      %1229 = vmatprep.subr.bf16.mxu0 0
      %1230 = vmatpush1.bf16.msra.mxu0 0
      %1231 = vmatprep.subr.bf16.mxu0 0
      %1232 = vmatpush1.bf16.msra.mxu0 0
      %1233 = vmatprep.subr.bf16.mxu0 0
      %1234 = vmatpush1.bf16.msra.mxu0 0
      %1235 = vmatprep.subr.bf16.mxu0 0
      %1236 = vmatpush1.bf16.msra.mxu0 0
      %1237 = vmatprep.mubr.bf16.mxu0 0
      %1238 = vmatmul.mubr.bf16.gmra.mrb[0].mxu0 %v1203
      %v1239 = vpop.f32.mrb[0].mxu0
      %v1240 = vadd.f32 0.0, %v1239
      %v1241 = vpop.f32.mrb[0].mxu0
      %v1242 = vpop.f32.mrb[0].mxu0
      %v1243 = vpop.f32.mrb[0].mxu0
      %1244 = vdwg.mxu0
      %1245 = vrot.lane.b32.xlu0 %v615, 88
      %v1246 = vpop.permute.xlu0 %1245
      %1247 = vrot.lane.b32.xlu0 %v703, 88
      %v1248 = vpop.permute.xlu0 %1247
      %v1250 = vsel %vm704, %v1246, 0
      %v1253 = vsel %vm704, %v1248, 0
      %1255 = vmatprep.subr.bf16.mxu0 0
      %1256 = vmatpush1.bf16.xpose.msra.mxu0 %v1253
      %1257 = vmatprep.subr.bf16.mxu0 0
      %1258 = vmatpush1.bf16.xpose.msra.mxu0 0
      %1259 = vmatprep.subr.bf16.mxu0 0
      %1260 = vmatpush1.bf16.xpose.msra.mxu0 0
      %1261 = vmatprep.subr.bf16.mxu0 0
      %1262 = vmatpush1.bf16.xpose.msra.mxu0 0
      %1263 = vmatprep.subr.bf16.mxu0 0
      %1264 = vmatpush1.bf16.xpose.msra.mxu0 0
      %1265 = vmatprep.subr.bf16.mxu0 0
      %1266 = vmatpush1.bf16.xpose.msra.mxu0 0
      %1267 = vmatprep.subr.bf16.mxu0 0
      %1268 = vmatpush1.bf16.xpose.msra.mxu0 0
      %1269 = vmatprep.subr.bf16.mxu0 0
      %1270 = vmatpush1.bf16.xpose.msra.mxu0 0
      %1271 = vmatprep.subr.bf16.mxu0 0
      %1272 = vmatpush1.bf16.xpose.msra.mxu0 0
      %1273 = vmatprep.subr.bf16.mxu0 0
      %1274 = vmatpush1.bf16.xpose.msra.mxu0 0
      %1275 = vmatprep.subr.bf16.mxu0 0
      %1276 = vmatpush1.bf16.xpose.msra.mxu0 0
      %1277 = vmatprep.subr.bf16.mxu0 0
      %1278 = vmatpush1.bf16.xpose.msra.mxu0 0
      %1279 = vmatprep.subr.bf16.mxu0 0
      %1280 = vmatpush1.bf16.xpose.msra.mxu0 0
      %1281 = vmatprep.subr.bf16.mxu0 0
      %1282 = vmatpush1.bf16.xpose.msra.mxu0 0
      %1283 = vmatprep.subr.bf16.mxu0 0
      %1284 = vmatpush1.bf16.xpose.msra.mxu0 0
      %1285 = vmatprep.subr.bf16.mxu0 0
      %1286 = vmatpush1.bf16.xpose.msra.mxu0 0
      %1287 = vmatprep.mubr.bf16.mxu0 0
      %1288 = vmatmul.mubr.bf16.gmra.mrb[0].mxu0 %v1250
      %v1289 = vpop.f32.mrb[0].mxu0
      %v1290 = vadd.f32 0.0, %v1289
      %v1291 = vpop.f32.mrb[0].mxu0
      %v1292 = vpop.f32.mrb[0].mxu0
      %v1293 = vpop.f32.mrb[0].mxu0
      %1294 = vdwg.mxu0
      %v1295 = vsel %vm751, %v1290, -inf
      %1296 = vmax.xlane.f32.xlu0 %v1295
      %v1297 = vpop.xlane.xlu0 %1296
      %v1298 = vsub.f32 %v1290, %v1297
      %v1299 = vmul.f32 %v1298, 1.442695
      %v1300 = vpow.pop %v1299
      %v1301 = vsel %vm751, %v1300, 0.0
      %1302 = vadd.xlane.f32.xlu0 %v1301
      %v1303 = vpop.xlane.xlu0 %1302
      %v1304 = vrcp.pop %v1303
      %v1305 = vmul.f32 %v1300, %v1304
      %v1306 = vpack.c.bf16 %v1305, %v1305
      %1307 = vrot.lane.b32.xlu0 %v703, 24
      %v1308 = vpop.permute.xlu0 %1307
      %v1311 = vsel %vm768, %v1306, 0
      %1313 = vmatprep.subr.bf16.mxu0 0
      %1314 = vmatpush1.bf16.msra.mxu0 %v1308
      %1315 = vmatprep.subr.bf16.mxu0 0
      %1316 = vmatpush1.bf16.msra.mxu0 0
      %1317 = vmatprep.subr.bf16.mxu0 0
      %1318 = vmatpush1.bf16.msra.mxu0 0
      %1319 = vmatprep.subr.bf16.mxu0 0
      %1320 = vmatpush1.bf16.msra.mxu0 0
      %1321 = vmatprep.subr.bf16.mxu0 0
      %1322 = vmatpush1.bf16.msra.mxu0 0
      %1323 = vmatprep.subr.bf16.mxu0 0
      %1324 = vmatpush1.bf16.msra.mxu0 0
      %1325 = vmatprep.subr.bf16.mxu0 0
      %1326 = vmatpush1.bf16.msra.mxu0 0
      %1327 = vmatprep.subr.bf16.mxu0 0
      %1328 = vmatpush1.bf16.msra.mxu0 0
      %1329 = vmatprep.subr.bf16.mxu0 0
      %1330 = vmatpush1.bf16.msra.mxu0 0
      %1331 = vmatprep.subr.bf16.mxu0 0
      %1332 = vmatpush1.bf16.msra.mxu0 0
      %1333 = vmatprep.subr.bf16.mxu0 0
      %1334 = vmatpush1.bf16.msra.mxu0 0
      %1335 = vmatprep.subr.bf16.mxu0 0
      %1336 = vmatpush1.bf16.msra.mxu0 0
      %1337 = vmatprep.subr.bf16.mxu0 0
      %1338 = vmatpush1.bf16.msra.mxu0 0
      %1339 = vmatprep.subr.bf16.mxu0 0
      %1340 = vmatpush1.bf16.msra.mxu0 0
      %1341 = vmatprep.subr.bf16.mxu0 0
      %1342 = vmatpush1.bf16.msra.mxu0 0
      %1343 = vmatprep.subr.bf16.mxu0 0
      %1344 = vmatpush1.bf16.msra.mxu0 0
      %1345 = vmatprep.mubr.bf16.mxu0 0
      %1346 = vmatmul.mubr.bf16.gmra.mrb[0].mxu0 %v1311
      %v1347 = vpop.f32.mrb[0].mxu0
      %v1348 = vadd.f32 0.0, %v1347
      %v1349 = vpop.f32.mrb[0].mxu0
      %v1350 = vpop.f32.mrb[0].mxu0
      %v1351 = vpop.f32.mrb[0].mxu0
      %1352 = vdwg.mxu0
      %1353 = vrot.lane.b32.xlu0 %v615, 80
      %v1354 = vpop.permute.xlu0 %1353
      %1355 = vrot.lane.b32.xlu0 %v703, 80
      %v1356 = vpop.permute.xlu0 %1355
      %v1358 = vsel %vm704, %v1354, 0
      %v1361 = vsel %vm704, %v1356, 0
      %1363 = vmatprep.subr.bf16.mxu0 0
      %1364 = vmatpush1.bf16.xpose.msra.mxu0 %v1361
      %1365 = vmatprep.subr.bf16.mxu0 0
      %1366 = vmatpush1.bf16.xpose.msra.mxu0 0
      %1367 = vmatprep.subr.bf16.mxu0 0
      %1368 = vmatpush1.bf16.xpose.msra.mxu0 0
      %1369 = vmatprep.subr.bf16.mxu0 0
      %1370 = vmatpush1.bf16.xpose.msra.mxu0 0
      %1371 = vmatprep.subr.bf16.mxu0 0
      %1372 = vmatpush1.bf16.xpose.msra.mxu0 0
      %1373 = vmatprep.subr.bf16.mxu0 0
      %1374 = vmatpush1.bf16.xpose.msra.mxu0 0
      %1375 = vmatprep.subr.bf16.mxu0 0
      %1376 = vmatpush1.bf16.xpose.msra.mxu0 0
      %1377 = vmatprep.subr.bf16.mxu0 0
      %1378 = vmatpush1.bf16.xpose.msra.mxu0 0
      %1379 = vmatprep.subr.bf16.mxu0 0
      %1380 = vmatpush1.bf16.xpose.msra.mxu0 0
      %1381 = vmatprep.subr.bf16.mxu0 0
      %1382 = vmatpush1.bf16.xpose.msra.mxu0 0
      %1383 = vmatprep.subr.bf16.mxu0 0
      %1384 = vmatpush1.bf16.xpose.msra.mxu0 0
      %1385 = vmatprep.subr.bf16.mxu0 0
      %1386 = vmatpush1.bf16.xpose.msra.mxu0 0
      %1387 = vmatprep.subr.bf16.mxu0 0
      %1388 = vmatpush1.bf16.xpose.msra.mxu0 0
      %1389 = vmatprep.subr.bf16.mxu0 0
      %1390 = vmatpush1.bf16.xpose.msra.mxu0 0
      %1391 = vmatprep.subr.bf16.mxu0 0
      %1392 = vmatpush1.bf16.xpose.msra.mxu0 0
      %1393 = vmatprep.subr.bf16.mxu0 0
      %1394 = vmatpush1.bf16.xpose.msra.mxu0 0
      %1395 = vmatprep.mubr.bf16.mxu0 0
      %1396 = vmatmul.mubr.bf16.gmra.mrb[0].mxu0 %v1358
      %v1397 = vpop.f32.mrb[0].mxu0
      %v1398 = vadd.f32 0.0, %v1397
      %v1399 = vpop.f32.mrb[0].mxu0
      %v1400 = vpop.f32.mrb[0].mxu0
      %v1401 = vpop.f32.mrb[0].mxu0
      %1402 = vdwg.mxu0
      %v1403 = vsel %vm751, %v1398, -inf
      %1404 = vmax.xlane.f32.xlu0 %v1403
      %v1405 = vpop.xlane.xlu0 %1404
      %v1406 = vsub.f32 %v1398, %v1405
      %v1407 = vmul.f32 %v1406, 1.442695
      %v1408 = vpow.pop %v1407
      %v1409 = vsel %vm751, %v1408, 0.0
      %1410 = vadd.xlane.f32.xlu0 %v1409
      %v1411 = vpop.xlane.xlu0 %1410
      %v1412 = vrcp.pop %v1411
      %v1413 = vmul.f32 %v1408, %v1412
      %v1414 = vpack.c.bf16 %v1413, %v1413
      %1415 = vrot.lane.b32.xlu0 %v703, 16
      %v1416 = vpop.permute.xlu0 %1415
      %v1419 = vsel %vm768, %v1414, 0
      %1421 = vmatprep.subr.bf16.mxu0 0
      %1422 = vmatpush1.bf16.msra.mxu0 %v1416
      %1423 = vmatprep.subr.bf16.mxu0 0
      %1424 = vmatpush1.bf16.msra.mxu0 0
      %1425 = vmatprep.subr.bf16.mxu0 0
      %1426 = vmatpush1.bf16.msra.mxu0 0
      %1427 = vmatprep.subr.bf16.mxu0 0
      %1428 = vmatpush1.bf16.msra.mxu0 0
      %1429 = vmatprep.subr.bf16.mxu0 0
      %1430 = vmatpush1.bf16.msra.mxu0 0
      %1431 = vmatprep.subr.bf16.mxu0 0
      %1432 = vmatpush1.bf16.msra.mxu0 0
      %1433 = vmatprep.subr.bf16.mxu0 0
      %1434 = vmatpush1.bf16.msra.mxu0 0
      %1435 = vmatprep.subr.bf16.mxu0 0
      %1436 = vmatpush1.bf16.msra.mxu0 0
      %1437 = vmatprep.subr.bf16.mxu0 0
      %1438 = vmatpush1.bf16.msra.mxu0 0
      %1439 = vmatprep.subr.bf16.mxu0 0
      %1440 = vmatpush1.bf16.msra.mxu0 0
      %1441 = vmatprep.subr.bf16.mxu0 0
      %1442 = vmatpush1.bf16.msra.mxu0 0
      %1443 = vmatprep.subr.bf16.mxu0 0
      %1444 = vmatpush1.bf16.msra.mxu0 0
      %1445 = vmatprep.subr.bf16.mxu0 0
      %1446 = vmatpush1.bf16.msra.mxu0 0
      %1447 = vmatprep.subr.bf16.mxu0 0
      %1448 = vmatpush1.bf16.msra.mxu0 0
      %1449 = vmatprep.subr.bf16.mxu0 0
      %1450 = vmatpush1.bf16.msra.mxu0 0
      %1451 = vmatprep.subr.bf16.mxu0 0
      %1452 = vmatpush1.bf16.msra.mxu0 0
      %1453 = vmatprep.mubr.bf16.mxu0 0
      %1454 = vmatmul.mubr.bf16.gmra.mrb[0].mxu0 %v1419
      %v1455 = vpop.f32.mrb[0].mxu0
      %v1456 = vadd.f32 0.0, %v1455
      %v1457 = vpop.f32.mrb[0].mxu0
      %v1458 = vpop.f32.mrb[0].mxu0
      %v1459 = vpop.f32.mrb[0].mxu0
      %1460 = vdwg.mxu0
      %1461 = vrot.lane.b32.xlu0 %v615, 72
      %v1462 = vpop.permute.xlu0 %1461
      %1463 = vrot.lane.b32.xlu0 %v703, 72
      %v1464 = vpop.permute.xlu0 %1463
      %v1466 = vsel %vm704, %v1462, 0
      %v1469 = vsel %vm704, %v1464, 0
      %1471 = vmatprep.subr.bf16.mxu0 0
      %1472 = vmatpush1.bf16.xpose.msra.mxu0 %v1469
      %1473 = vmatprep.subr.bf16.mxu0 0
      %1474 = vmatpush1.bf16.xpose.msra.mxu0 0
      %1475 = vmatprep.subr.bf16.mxu0 0
      %1476 = vmatpush1.bf16.xpose.msra.mxu0 0
      %1477 = vmatprep.subr.bf16.mxu0 0
      %1478 = vmatpush1.bf16.xpose.msra.mxu0 0
      %1479 = vmatprep.subr.bf16.mxu0 0
      %1480 = vmatpush1.bf16.xpose.msra.mxu0 0
      %1481 = vmatprep.subr.bf16.mxu0 0
      %1482 = vmatpush1.bf16.xpose.msra.mxu0 0
      %1483 = vmatprep.subr.bf16.mxu0 0
      %1484 = vmatpush1.bf16.xpose.msra.mxu0 0
      %1485 = vmatprep.subr.bf16.mxu0 0
      %1486 = vmatpush1.bf16.xpose.msra.mxu0 0
      %1487 = vmatprep.subr.bf16.mxu0 0
      %1488 = vmatpush1.bf16.xpose.msra.mxu0 0
      %1489 = vmatprep.subr.bf16.mxu0 0
      %1490 = vmatpush1.bf16.xpose.msra.mxu0 0
      %1491 = vmatprep.subr.bf16.mxu0 0
      %1492 = vmatpush1.bf16.xpose.msra.mxu0 0
      %1493 = vmatprep.subr.bf16.mxu0 0
      %1494 = vmatpush1.bf16.xpose.msra.mxu0 0
      %1495 = vmatprep.subr.bf16.mxu0 0
      %1496 = vmatpush1.bf16.xpose.msra.mxu0 0
      %1497 = vmatprep.subr.bf16.mxu0 0
      %1498 = vmatpush1.bf16.xpose.msra.mxu0 0
      %1499 = vmatprep.subr.bf16.mxu0 0
      %1500 = vmatpush1.bf16.xpose.msra.mxu0 0
      %1501 = vmatprep.subr.bf16.mxu0 0
      %1502 = vmatpush1.bf16.xpose.msra.mxu0 0
      %1503 = vmatprep.mubr.bf16.mxu0 0
      %1504 = vmatmul.mubr.bf16.gmra.mrb[0].mxu0 %v1466
      %v1505 = vpop.f32.mrb[0].mxu0
      %v1506 = vadd.f32 0.0, %v1505
      %v1507 = vpop.f32.mrb[0].mxu0
      %v1508 = vpop.f32.mrb[0].mxu0
      %v1509 = vpop.f32.mrb[0].mxu0
      %1510 = vdwg.mxu0
      %v1511 = vsel %vm751, %v1506, -inf
      %1512 = vmax.xlane.f32.xlu0 %v1511
      %v1513 = vpop.xlane.xlu0 %1512
      %v1514 = vsub.f32 %v1506, %v1513
      %v1515 = vmul.f32 %v1514, 1.442695
      %v1516 = vpow.pop %v1515
      %v1517 = vsel %vm751, %v1516, 0.0
      %1518 = vadd.xlane.f32.xlu0 %v1517
      %v1519 = vpop.xlane.xlu0 %1518
      %v1520 = vrcp.pop %v1519
      %v1521 = vmul.f32 %v1516, %v1520
      %v1522 = vpack.c.bf16 %v1521, %v1521
      %1523 = vrot.lane.b32.xlu0 %v703, 8
      %v1524 = vpop.permute.xlu0 %1523
      %v1527 = vsel %vm768, %v1522, 0
      %1529 = vmatprep.subr.bf16.mxu0 0
      %1530 = vmatpush1.bf16.msra.mxu0 %v1524
      %1531 = vmatprep.subr.bf16.mxu0 0
      %1532 = vmatpush1.bf16.msra.mxu0 0
      %1533 = vmatprep.subr.bf16.mxu0 0
      %1534 = vmatpush1.bf16.msra.mxu0 0
      %1535 = vmatprep.subr.bf16.mxu0 0
      %1536 = vmatpush1.bf16.msra.mxu0 0
      %1537 = vmatprep.subr.bf16.mxu0 0
      %1538 = vmatpush1.bf16.msra.mxu0 0
      %1539 = vmatprep.subr.bf16.mxu0 0
      %1540 = vmatpush1.bf16.msra.mxu0 0
      %1541 = vmatprep.subr.bf16.mxu0 0
      %1542 = vmatpush1.bf16.msra.mxu0 0
      %1543 = vmatprep.subr.bf16.mxu0 0
      %1544 = vmatpush1.bf16.msra.mxu0 0
      %1545 = vmatprep.subr.bf16.mxu0 0
      %1546 = vmatpush1.bf16.msra.mxu0 0
      %1547 = vmatprep.subr.bf16.mxu0 0
      %1548 = vmatpush1.bf16.msra.mxu0 0
      %1549 = vmatprep.subr.bf16.mxu0 0
      %1550 = vmatpush1.bf16.msra.mxu0 0
      %1551 = vmatprep.subr.bf16.mxu0 0
      %1552 = vmatpush1.bf16.msra.mxu0 0
      %1553 = vmatprep.subr.bf16.mxu0 0
      %1554 = vmatpush1.bf16.msra.mxu0 0
      %1555 = vmatprep.subr.bf16.mxu0 0
      %1556 = vmatpush1.bf16.msra.mxu0 0
      %1557 = vmatprep.subr.bf16.mxu0 0
      %1558 = vmatpush1.bf16.msra.mxu0 0
      %1559 = vmatprep.subr.bf16.mxu0 0
      %1560 = vmatpush1.bf16.msra.mxu0 0
      %1561 = vmatprep.mubr.bf16.mxu0 0
      %1562 = vmatmul.mubr.bf16.gmra.mrb[0].mxu0 %v1527
      %v1563 = vpop.f32.mrb[0].mxu0
      %v1564 = vadd.f32 0.0, %v1563
      %v1565 = vpop.f32.mrb[0].mxu0
      %v1566 = vpop.f32.mrb[0].mxu0
      %v1567 = vpop.f32.mrb[0].mxu0
      %1568 = vdwg.mxu0
      %1570 = vrot.lane.b32.xlu0 %v916, 8
      %v1571 = vpop.permute.xlu0 %1570
      %1574 = vrot.lane.b32.xlu0 %v1024, 16
      %v1575 = vpop.permute.xlu0 %1574
      %1578 = vrot.lane.b32.xlu0 %v1132, 24
      %v1579 = vpop.permute.xlu0 %1578
      %1582 = vrot.lane.b32.xlu0 %v1240, 32
      %v1583 = vpop.permute.xlu0 %1582
      %1586 = vrot.lane.b32.xlu0 %v1348, 40
      %v1587 = vpop.permute.xlu0 %1586
      %1590 = vrot.lane.b32.xlu0 %v1456, 48
      %v1591 = vpop.permute.xlu0 %1590
      %1594 = vrot.lane.b32.xlu0 %v1564, 56
      %v1595 = vpop.permute.xlu0 %1594
      %v1597 = vsel %vm704, %v807, %v1571
      %v1598 = vsel %vm768, %v1597, %v1575
      %vm1599 = vcmask 195584
      %v1600 = vsel %vm1599, %v1598, %v1579
      %vm1601 = vcmask 261120
      %v1602 = vsel %vm1601, %v1600, %v1583
      %vm1603 = vcmask 326656
      %v1604 = vsel %vm1603, %v1602, %v1587
      %vm1605 = vcmask 392192
      %v1606 = vsel %vm1605, %v1604, %v1591
      %vm1607 = vcmask 457728
      %v1608 = vsel %vm1607, %v1606, %v1595
      %v1609 = vpack.c.bf16 %v1608, %v1608
      %v1610 = vld [vmem:[%s6] sm:$0xf]
      %v1611 = vld [vmem:[%s6 + $0x4] sm:$0xf]
      %v1612 = vld [vmem:[%s6 + $0x8] sm:$0xf]
      %v1613 = vld [vmem:[%s6 + $0xc] sm:$0xf]
      %v1614 = vld [vmem:[%s6 + $0x10] sm:$0xf]
      %v1615 = vld [vmem:[%s6 + $0x14] sm:$0xf]
      %v1616 = vld [vmem:[%s6 + $0x18] sm:$0xf]
      %v1617 = vld [vmem:[%s6 + $0x1c] sm:$0xf]
      %v1618 = vld [vmem:[%s7] sm:$0x1]
      %v1619 = vunpack.c.l.bf16 %v1618
      %v1628 = vunpack.c.l.b16 %v1610
      %v1629 = vunpack.c.l.b16 %v1611
      %v1630 = vunpack.c.l.b16 %v1612
      %v1631 = vunpack.c.l.b16 %v1613
      %v1632 = vunpack.c.l.b16 %v1614
      %v1633 = vunpack.c.l.b16 %v1615
      %v1634 = vunpack.c.l.b16 %v1616
      %v1635 = vunpack.c.l.b16 %v1617
      %v1636 = vpack.c.b16 %v1629, %v1628
      %v1637 = vpack.c.b16 %v1631, %v1630
      %v1638 = vpack.c.b16 %v1633, %v1632
      %v1639 = vpack.c.b16 %v1635, %v1634
      %v1645 = vsel %vm570, %v1609, 0
      %1647 = vmatprep.subr.bf16.mxu0 0
      %1648 = vmatpush1.bf16.msra.mxu0 %v1636
      %1649 = vmatprep.subr.bf16.mxu0 0
      %1650 = vmatpush1.bf16.msra.mxu0 %v1637
      %1651 = vmatprep.subr.bf16.mxu0 0
      %1652 = vmatpush1.bf16.msra.mxu0 %v1638
      %1653 = vmatprep.subr.bf16.mxu0 0
      %1654 = vmatpush1.bf16.msra.mxu0 %v1639
      %1655 = vmatprep.subr.bf16.mxu0 0
      %1656 = vmatpush1.bf16.msra.mxu0 0
      %1657 = vmatprep.subr.bf16.mxu0 0
      %1658 = vmatpush1.bf16.msra.mxu0 0
      %1659 = vmatprep.subr.bf16.mxu0 0
      %1660 = vmatpush1.bf16.msra.mxu0 0
      %1661 = vmatprep.subr.bf16.mxu0 0
      %1662 = vmatpush1.bf16.msra.mxu0 0
      %1663 = vmatprep.subr.bf16.mxu0 0
      %1664 = vmatpush1.bf16.msra.mxu0 0
      %1665 = vmatprep.subr.bf16.mxu0 0
      %1666 = vmatpush1.bf16.msra.mxu0 0
      %1667 = vmatprep.subr.bf16.mxu0 0
      %1668 = vmatpush1.bf16.msra.mxu0 0
      %1669 = vmatprep.subr.bf16.mxu0 0
      %1670 = vmatpush1.bf16.msra.mxu0 0
      %1671 = vmatprep.subr.bf16.mxu0 0
      %1672 = vmatpush1.bf16.msra.mxu0 0
      %1673 = vmatprep.subr.bf16.mxu0 0
      %1674 = vmatpush1.bf16.msra.mxu0 0
      %1675 = vmatprep.subr.bf16.mxu0 0
      %1676 = vmatpush1.bf16.msra.mxu0 0
      %1677 = vmatprep.subr.bf16.mxu0 0
      %1678 = vmatpush1.bf16.msra.mxu0 0
      %1679 = vmatprep.mubr.bf16.mxu0 0
      %1680 = vmatmul.mubr.bf16.gmra.mrb[0].mxu0 %v1645
      %v1681 = vpop.f32.mrb[0].mxu0
      %v1682 = vadd.f32 %v1619, %v1681
      %v1683 = vpop.f32.mrb[0].mxu0
      %v1684 = vpop.f32.mrb[0].mxu0
      %v1685 = vpop.f32.mrb[0].mxu0
      %1686 = vdwg.mxu0
      %v1687 = vunpack.c.l.bf16 %v535
      %v1688 = vadd.f32 %v1682, %v1687
      %v1689 = vld [vmem:[%s8] sm:$0x1]
      %v1690 = vunpack.c.l.bf16 %v1689
      %v1691 = vld [vmem:[%s9] sm:$0x1]
      %v1692 = vunpack.c.l.bf16 %v1691
      %vm1693 = vcmask 516096
      %v1694 = vsel %vm1693, %v1688, 0.0
      %1695 = vadd.xlane.f32.xlu0 %v1694
      %v1696 = vpop.xlane.xlu0 %1695
      %v1697 = vrcp.pop 64.0
      %v1698 = vmul.f32 %v1696, %v1697
      %v1699 = vsub.f32 %v1688, %v1698
      %v1700 = vmul.f32 %v1699, %v1699
      %v1701 = vsel %vm1693, %v1700, 0.0
      %1702 = vadd.xlane.f32.xlu0 %v1701
      %v1703 = vpop.xlane.xlu0 %1702
      %v1704 = vmul.f32 %v1703, %v1697
      %v1705 = vadd.f32 %v1704, 1e-05
      %v1706 = vrsqrt.pop %v1705
      %v1707 = vmul.f32 %v1699, %v1706
      %v1708 = vmul.f32 %v1707, %v1690
      %v1709 = vadd.f32 %v1708, %v1692
      %v1710 = vpack.c.bf16 %v1709, %v1709
      %v1711 = vld [vmem:[%s10] sm:$0xff]
      %v1712 = vld [vmem:[%s10 + $0x8] sm:$0xff]
      %v1713 = vld [vmem:[%s10 + $0x10] sm:$0xff]
      %v1714 = vld [vmem:[%s10 + $0x18] sm:$0xff]
      %v1715 = vld [vmem:[%s10 + $0x20] sm:$0xff]
      %v1716 = vld [vmem:[%s10 + $0x28] sm:$0xff]
      %v1717 = vld [vmem:[%s10 + $0x30] sm:$0xff]
      %v1718 = vld [vmem:[%s10 + $0x38] sm:$0xff]
      %v1719 = vld [vmem:[%s11] sm:$0x3]
      %v1720 = vunpack.c.l.bf16 %v1719
      %v1729 = vunpack.c.l.b16 %v1711
      %v1730 = vunpack.c.h.b16 %v1711
      %v1731 = vunpack.c.l.b16 %v1712
      %v1732 = vunpack.c.h.b16 %v1712
      %v1733 = vunpack.c.l.b16 %v1713
      %v1734 = vunpack.c.h.b16 %v1713
      %v1735 = vunpack.c.l.b16 %v1714
      %v1736 = vunpack.c.h.b16 %v1714
      %v1737 = vunpack.c.l.b16 %v1715
      %v1738 = vunpack.c.h.b16 %v1715
      %v1739 = vunpack.c.l.b16 %v1716
      %v1740 = vunpack.c.h.b16 %v1716
      %v1741 = vunpack.c.l.b16 %v1717
      %v1742 = vunpack.c.h.b16 %v1717
      %v1743 = vunpack.c.l.b16 %v1718
      %v1744 = vunpack.c.h.b16 %v1718
      %v1745 = vpack.c.b16 %v1731, %v1729
      %v1746 = vpack.c.b16 %v1732, %v1730
      %v1747 = vpack.c.b16 %v1735, %v1733
      %v1748 = vpack.c.b16 %v1736, %v1734
      %v1749 = vpack.c.b16 %v1739, %v1737
      %v1750 = vpack.c.b16 %v1740, %v1738
      %v1751 = vpack.c.b16 %v1743, %v1741
      %v1752 = vpack.c.b16 %v1744, %v1742
      %v1762 = vlaneseq
      %v1763 = vshrl.u32 %v1762, 7
      %v1764 = vsub.s32 0, %v1763
      %v1765 = vrot.slane %v1720, %v1764
      %v1766 = vlaneseq
      %v1767 = vshrl.u32 %v1766, 7
      %v1768 = vsub.s32 2, %v1767
      %v1769 = vrot.slane %v1720, %v1768
      %v1773 = vsel %vm570, %v1710, 0
      %1775 = vmatprep.subr.bf16.mxu0 %v1746
      %1776 = vmatpush1.bf16.msra.mxu0 %v1745
      %1777 = vmatprep.subr.bf16.mxu0 %v1748
      %1778 = vmatpush1.bf16.msra.mxu0 %v1747
      %1779 = vmatprep.subr.bf16.mxu0 %v1750
      %1780 = vmatpush1.bf16.msra.mxu0 %v1749
      %1781 = vmatprep.subr.bf16.mxu0 %v1752
      %1782 = vmatpush1.bf16.msra.mxu0 %v1751
      %1783 = vmatprep.subr.bf16.mxu0 0
      %1784 = vmatpush1.bf16.msra.mxu0 0
      %1785 = vmatprep.subr.bf16.mxu0 0
      %1786 = vmatpush1.bf16.msra.mxu0 0
      %1787 = vmatprep.subr.bf16.mxu0 0
      %1788 = vmatpush1.bf16.msra.mxu0 0
      %1789 = vmatprep.subr.bf16.mxu0 0
      %1790 = vmatpush1.bf16.msra.mxu0 0
      %1791 = vmatprep.subr.bf16.mxu0 0
      %1792 = vmatpush1.bf16.msra.mxu0 0
      %1793 = vmatprep.subr.bf16.mxu0 0
      %1794 = vmatpush1.bf16.msra.mxu0 0
      %1795 = vmatprep.subr.bf16.mxu0 0
      %1796 = vmatpush1.bf16.msra.mxu0 0
      %1797 = vmatprep.subr.bf16.mxu0 0
      %1798 = vmatpush1.bf16.msra.mxu0 0
      %1799 = vmatprep.subr.bf16.mxu0 0
      %1800 = vmatpush1.bf16.msra.mxu0 0
      %1801 = vmatprep.subr.bf16.mxu0 0
      %1802 = vmatpush1.bf16.msra.mxu0 0
      %1803 = vmatprep.subr.bf16.mxu0 0
      %1804 = vmatpush1.bf16.msra.mxu0 0
      %1805 = vmatprep.subr.bf16.mxu0 0
      %1806 = vmatpush1.bf16.msra.mxu0 0
      %1807 = vmatprep.mubr.bf16.mxu0 0
      %1808 = vmatmul.mubr.bf16.gmra.mrb[0].mxu0 %v1773
      %v1809 = vpop.f32.mrb[0].mxu0
      %v1810 = vadd.f32 %v1765, %v1809
      %v1811 = vpop.f32.mrb[0].mxu0
      %v1812 = vadd.f32 %v1769, %v1811
      %v1813 = vpop.f32.mrb[0].mxu0
      %v1814 = vpop.f32.mrb[0].mxu0
      %1815 = vdwg.mxu0
      %v1816 = vmul.f32 %v1810, 0.5
      %v1817 = vmul.f32 %v1812, 0.5
      %v1818 = vmul.f32 %v1810, 0.044715
      %v1819 = vmul.f32 %v1812, 0.044715
      %v1820 = vmul.f32 %v1818, %v1810
      %v1821 = vmul.f32 %v1819, %v1812
      %v1822 = vmul.f32 %v1820, %v1810
      %v1823 = vmul.f32 %v1821, %v1812
      %v1824 = vadd.f32 %v1810, %v1822
      %v1825 = vadd.f32 %v1812, %v1823
      %v1826 = vmul.f32 %v1824, 0.7978846
      %v1827 = vmul.f32 %v1825, 0.7978846
      %v1828 = vtanh.pop %v1826
      %v1829 = vtanh.pop %v1827
      %v1830 = vadd.f32 %v1828, 1.0
      %v1831 = vadd.f32 %v1829, 1.0
      %v1832 = vmul.f32 %v1816, %v1830
      %v1833 = vmul.f32 %v1817, %v1831
      %v1834 = vpack.c.bf16 %v1832, %v1832
      %v1835 = vpack.c.bf16 %v1833, %v1833
      %v1836 = vld [vmem:[%s12] sm:$0xf]
      %v1837 = vld [vmem:[%s12 + $0x4] sm:$0xf]
      %v1838 = vld [vmem:[%s12 + $0x8] sm:$0xf]
      %v1839 = vld [vmem:[%s12 + $0xc] sm:$0xf]
      %v1840 = vld [vmem:[%s12 + $0x10] sm:$0xf]
      %v1841 = vld [vmem:[%s12 + $0x14] sm:$0xf]
      %v1842 = vld [vmem:[%s12 + $0x18] sm:$0xf]
      %v1843 = vld [vmem:[%s12 + $0x1c] sm:$0xf]
      %v1844 = vld [vmem:[%s12 + $0x20] sm:$0xf]
      %v1845 = vld [vmem:[%s12 + $0x24] sm:$0xf]
      %v1846 = vld [vmem:[%s12 + $0x28] sm:$0xf]
      %v1847 = vld [vmem:[%s12 + $0x2c] sm:$0xf]
      %v1848 = vld [vmem:[%s12 + $0x30] sm:$0xf]
      %v1849 = vld [vmem:[%s12 + $0x34] sm:$0xf]
      %v1850 = vld [vmem:[%s12 + $0x38] sm:$0xf]
      %v1851 = vld [vmem:[%s12 + $0x3c] sm:$0xf]
      %v1852 = vld [vmem:[%s12 + $0x40] sm:$0xf]
      %v1853 = vld [vmem:[%s12 + $0x44] sm:$0xf]
      %v1854 = vld [vmem:[%s12 + $0x48] sm:$0xf]
      %v1855 = vld [vmem:[%s12 + $0x4c] sm:$0xf]
      %v1856 = vld [vmem:[%s12 + $0x50] sm:$0xf]
      %v1857 = vld [vmem:[%s12 + $0x54] sm:$0xf]
      %v1858 = vld [vmem:[%s12 + $0x58] sm:$0xf]
      %v1859 = vld [vmem:[%s12 + $0x5c] sm:$0xf]
      %v1860 = vld [vmem:[%s12 + $0x60] sm:$0xf]
      %v1861 = vld [vmem:[%s12 + $0x64] sm:$0xf]
      %v1862 = vld [vmem:[%s12 + $0x68] sm:$0xf]
      %v1863 = vld [vmem:[%s12 + $0x6c] sm:$0xf]
      %v1864 = vld [vmem:[%s12 + $0x70] sm:$0xf]
      %v1865 = vld [vmem:[%s12 + $0x74] sm:$0xf]
      %v1866 = vld [vmem:[%s12 + $0x78] sm:$0xf]
      %v1867 = vld [vmem:[%s12 + $0x7c] sm:$0xf]
      %v1868 = vld [vmem:[%s13] sm:$0x1]
      %v1869 = vunpack.c.l.bf16 %v1868
      %v1902 = vunpack.c.l.b16 %v1836
      %v1903 = vunpack.c.l.b16 %v1837
      %v1904 = vunpack.c.l.b16 %v1838
      %v1905 = vunpack.c.l.b16 %v1839
      %v1906 = vunpack.c.l.b16 %v1840
      %v1907 = vunpack.c.l.b16 %v1841
      %v1908 = vunpack.c.l.b16 %v1842
      %v1909 = vunpack.c.l.b16 %v1843
      %v1910 = vunpack.c.l.b16 %v1844
      %v1911 = vunpack.c.l.b16 %v1845
      %v1912 = vunpack.c.l.b16 %v1846
      %v1913 = vunpack.c.l.b16 %v1847
      %v1914 = vunpack.c.l.b16 %v1848
      %v1915 = vunpack.c.l.b16 %v1849
      %v1916 = vunpack.c.l.b16 %v1850
      %v1917 = vunpack.c.l.b16 %v1851
      %v1918 = vunpack.c.l.b16 %v1852
      %v1919 = vunpack.c.l.b16 %v1853
      %v1920 = vunpack.c.l.b16 %v1854
      %v1921 = vunpack.c.l.b16 %v1855
      %v1922 = vunpack.c.l.b16 %v1856
      %v1923 = vunpack.c.l.b16 %v1857
      %v1924 = vunpack.c.l.b16 %v1858
      %v1925 = vunpack.c.l.b16 %v1859
      %v1926 = vunpack.c.l.b16 %v1860
      %v1927 = vunpack.c.l.b16 %v1861
      %v1928 = vunpack.c.l.b16 %v1862
      %v1929 = vunpack.c.l.b16 %v1863
      %v1930 = vunpack.c.l.b16 %v1864
      %v1931 = vunpack.c.l.b16 %v1865
      %v1932 = vunpack.c.l.b16 %v1866
      %v1933 = vunpack.c.l.b16 %v1867
      %v1934 = vpack.c.b16 %v1903, %v1902
      %v1935 = vpack.c.b16 %v1905, %v1904
      %v1936 = vpack.c.b16 %v1907, %v1906
      %v1937 = vpack.c.b16 %v1909, %v1908
      %v1938 = vpack.c.b16 %v1911, %v1910
      %v1939 = vpack.c.b16 %v1913, %v1912
      %v1940 = vpack.c.b16 %v1915, %v1914
      %v1941 = vpack.c.b16 %v1917, %v1916
      %v1942 = vpack.c.b16 %v1919, %v1918
      %v1943 = vpack.c.b16 %v1921, %v1920
      %v1944 = vpack.c.b16 %v1923, %v1922
      %v1945 = vpack.c.b16 %v1925, %v1924
      %v1946 = vpack.c.b16 %v1927, %v1926
      %v1947 = vpack.c.b16 %v1929, %v1928
      %v1948 = vpack.c.b16 %v1931, %v1930
      %v1949 = vpack.c.b16 %v1933, %v1932
      %1966 = vmatprep.subr.bf16.mxu0 0
      %1967 = vmatpush1.bf16.msra.mxu0 %v1934
      %1968 = vmatprep.subr.bf16.mxu0 0
      %1969 = vmatpush1.bf16.msra.mxu0 %v1935
      %1970 = vmatprep.subr.bf16.mxu0 0
      %1971 = vmatpush1.bf16.msra.mxu0 %v1936
      %1972 = vmatprep.subr.bf16.mxu0 0
      %1973 = vmatpush1.bf16.msra.mxu0 %v1937
      %1974 = vmatprep.subr.bf16.mxu0 0
      %1975 = vmatpush1.bf16.msra.mxu0 %v1938
      %1976 = vmatprep.subr.bf16.mxu0 0
      %1977 = vmatpush1.bf16.msra.mxu0 %v1939
      %1978 = vmatprep.subr.bf16.mxu0 0
      %1979 = vmatpush1.bf16.msra.mxu0 %v1940
      %1980 = vmatprep.subr.bf16.mxu0 0
      %1981 = vmatpush1.bf16.msra.mxu0 %v1941
      %1982 = vmatprep.subr.bf16.mxu0 0
      %1983 = vmatpush1.bf16.msra.mxu0 %v1942
      %1984 = vmatprep.subr.bf16.mxu0 0
      %1985 = vmatpush1.bf16.msra.mxu0 %v1943
      %1986 = vmatprep.subr.bf16.mxu0 0
      %1987 = vmatpush1.bf16.msra.mxu0 %v1944
      %1988 = vmatprep.subr.bf16.mxu0 0
      %1989 = vmatpush1.bf16.msra.mxu0 %v1945
      %1990 = vmatprep.subr.bf16.mxu0 0
      %1991 = vmatpush1.bf16.msra.mxu0 %v1946
      %1992 = vmatprep.subr.bf16.mxu0 0
      %1993 = vmatpush1.bf16.msra.mxu0 %v1947
      %1994 = vmatprep.subr.bf16.mxu0 0
      %1995 = vmatpush1.bf16.msra.mxu0 %v1948
      %1996 = vmatprep.subr.bf16.mxu0 0
      %1997 = vmatpush1.bf16.msra.mxu0 %v1949
      %1998 = vmatprep.mubr.bf16.mxu0 %v1835
      %1999 = vmatmul.mubr.bf16.gmra.mrb[0].mxu0 %v1834
      %v2000 = vpop.f32.mrb[0].mxu0
      %v2001 = vadd.f32 %v1869, %v2000
      %v2002 = vpop.f32.mrb[0].mxu0
      %v2003 = vpop.f32.mrb[0].mxu0
      %v2004 = vpop.f32.mrb[0].mxu0
      %2005 = vdwg.mxu0
      %v2006 = vadd.f32 %v2001, %v1709
      %v2007 = vld [vmem:[%s14] sm:$0x1]
      %v2008 = vunpack.c.l.bf16 %v2007
      %v2009 = vld [vmem:[%s15] sm:$0x1]
      %v2010 = vunpack.c.l.bf16 %v2009
      %v2011 = vsel %vm1693, %v2006, 0.0
      %2012 = vadd.xlane.f32.xlu0 %v2011
      %v2013 = vpop.xlane.xlu0 %2012
      %v2014 = vmul.f32 %v2013, %v1697
      %v2015 = vsub.f32 %v2006, %v2014
      %v2016 = vmul.f32 %v2015, %v2015
      %v2017 = vsel %vm1693, %v2016, 0.0
      %2018 = vadd.xlane.f32.xlu0 %v2017
      %v2019 = vpop.xlane.xlu0 %2018
      %v2020 = vmul.f32 %v2019, %v1697
      %v2021 = vadd.f32 %v2020, 1e-05
      %v2022 = vrsqrt.pop %v2021
      %v2023 = vmul.f32 %v2015, %v2022
      %v2024 = vmul.f32 %v2023, %v2008
      %v2025 = vadd.f32 %v2024, %v2010
      %v2026 = vpack.c.bf16 %v2025, %v2025
      %vm2027 = vcmask 516096
      %vm2028 = vsmask.f32 256
      %vm2029 = vmand %vm2027, %vm2028
      %v2030 = vld [vmem:[%s531] sm:$0x1]
      %v2031 = vsel %vm2029, %v2026, %v2030
      %2032 = vst [vmem:[%s531] sm:$0x1] %v2031
      %p2033 = scmp.lt.s32.totalorder %s27, 1
      %s2034 = scalar_select %p2033, %s27, 1
      %s2035 = scalar_lea.vmem %s16, %s2034
      // Predicated region
      $region85: #{osfa_forward.13} parent=83 // pred_check
        %p2036 = pneg %p391
      $region86: #{osfa_forward.13} parent=83 // pred_check_branch
        %2038 = sbr.rel (%p2036) target = $region88
      $region87: #{osfa_forward.13} parent=83 // pred_region
        _
      $region88: #{osfa_forward.13} parent=83 // pred_fallthru
        _
    $region84: #{osfa_forward.13} parent=5 // pred_fallthru
      _
    %p2039 = scmp.le.s32.totalorder 2, %s22
    // Predicated region
    $region89: #{osfa_forward.13} parent=5 // pred_check
      %p2040 = pneg %p2039
    $region90: #{osfa_forward.13} parent=5 // pred_check_branch
      %2042 = sbr.rel (%p2040) target = $region92
    $region91: #{osfa_forward.13} parent=5 // pred_region
      %s2043 = ssub.s32 %s22, 2
      // Predicated region
      $region93: #{osfa_forward.13} parent=91 // pred_check
        %p2044 = pneg %p397
      $region94: #{osfa_forward.13} parent=91 // pred_check_branch
        %2046 = sbr.rel (%p2044) target = $region96
      $region95: #{osfa_forward.13} parent=91 // pred_region
        %p2047 = scmp.lt.s32.totalorder %s28, 1
        %s2048 = scalar_select %p2047, %s28, 1
        %s2049 = scalar_lea.vmem %s16, %s2048
      $region96: #{osfa_forward.13} parent=91 // pred_fallthru
        _
    $region92: #{osfa_forward.13} parent=5 // pred_fallthru
      _
  $region6: #{osfa_forward.13} parent=0 // loop_footer
    %s26 = sadd.s32 1, %s22
  $region7: #{osfa_forward.13} parent=0 // loop_footer_branch
    %21 = sbr.rel target = $region3
  $region8: #{osfa_forward.13} parent=0 // loop_exit
    _

</llo_original>
